<compile_context>
chip_gen: v6e
topology: v6e:2x2x1
jax: 0.10.0
libtpu: 0.0.40
codegen_flags: <defaults>
</compile_context>

<pallas_src>
import functools

import jax
import jax.numpy as jnp
from jax.experimental import pallas as pl
from jax.experimental.pallas import tpu as pltpu


def _round_up(x, m):
    return ((x + m - 1) // m) * m


def _pad_to(a, shape):
    pads = [(0, s - d) for d, s in zip(a.shape, shape)]
    return jnp.pad(a, pads)


# PyTorch fused-gate order is (i, f, g, o); kernel wants (i, f, o, g) so that sigmoid is
# one contiguous 3Hp slice and tanh the last Hp slice.
_GATE_PERM = (0, 1, 3, 2)


def _pack_gates(w, rows_p, Hp):
    """(rows, 4H) in PyTorch gate order -> (rows_p, 4Hp) padded, reordered to (i,f,o,g)."""
    rows, four_h = w.shape
    H = four_h // 4
    w4 = w.reshape(rows, 4, H)[:, list(_GATE_PERM), :]
    return _pad_to(w4, (rows_p, 4, Hp)).reshape(rows_p, 4 * Hp)


def _lstm_attn_kernel(x_ref, h0_ref, c0_ref, ctx_ref, ctx_hl_ref,
                      wi_ref, wh_ref, b_ref, win_ref, woutc_ref, wouth_ref,
                      out_h_ref, out_c_ref,
                      hx_sc, cx_sc, xw_sc,
                      *, chunk, src_len, hidden_pad, unroll):
    Hp = hidden_pad
    c = pl.program_id(1)

    # Initialize the carried state on the first time-chunk of each batch block.
    @pl.when(c == 0)
    def _():
        hx_sc[...] = h0_ref[...]
        cx_sc[...] = c0_ref[...]

    # Chunk-invariant operands (loaded once per grid step, closed over in the loop).
    ctx = ctx_ref[...]            # (Bb, Lp, Hp)   for the weighted-context contraction
    ctx_hl = ctx_hl_ref[...]      # (Bb, Hp, Lp)   pre-transposed for the score contraction
    wh = wh_ref[...]              # (Hp, 4Hp)
    win = win_ref[...]            # (Hp, Hp)
    woutc = woutc_ref[...]        # (Hp, Hp)   acts on weighted context
    wouth = wouth_ref[...]        # (Hp, Hp)   acts on hy
    cdt = ctx.dtype

    Bb, Lp = ctx.shape[0], ctx.shape[1]

    # --- Hoisted input projection for the whole chunk: one big MXU matmul + bias add ---
    x_all = x_ref[...]                                          # (Tc, Bb, Dp)
    Tc = x_all.shape[0]
    xw = jnp.dot(x_all.reshape(Tc * Bb, x_all.shape[2]), wi_ref[...],
                 preferred_element_type=jnp.float32) + b_ref[...]
    xw_sc[...] = xw.reshape(Tc, Bb, 4 * Hp)                     # f32, sliced per step

    # Mask for padded source positions (built once per chunk).
    if src_len < Lp:
        l_valid = jax.lax.broadcasted_iota(jnp.int32, (Bb, Lp), 1) < src_len
    else:
        l_valid = None

    def step(t, carry):
        hx, cx = carry                                          # (Bb, Hp) f32 each

        # Only the recurrent matmul stays on the serial chain.
        gates = xw_sc[t] + jnp.dot(hx.astype(wh.dtype), wh,
                                   preferred_element_type=jnp.float32)   # (Bb, 4Hp)

        # Gate order (i, f, o, g): one wide sigmoid, one tanh.
        sig = jax.nn.sigmoid(gates[:, :3 * Hp])
        ingate = sig[:, 0 * Hp:1 * Hp]
        forgetgate = sig[:, 1 * Hp:2 * Hp]
        outgate = sig[:, 2 * Hp:3 * Hp]
        cellgate = jnp.tanh(gates[:, 3 * Hp:4 * Hp])

        cy = forgetgate * cx + ingate * cellgate
        hy = outgate * jnp.tanh(cy)

        # --- SoftDotAttention (all contractions on the MXU; softmax on 2-D vregs) ---
        target = jnp.dot(hy.astype(win.dtype), win,
                         preferred_element_type=jnp.float32)              # (Bb, Hp)
        scores = jnp.einsum('bqh,bhl->bql',
                            target[:, None, :].astype(cdt), ctx_hl,
                            preferred_element_type=jnp.float32)[:, 0, :]  # (Bb, Lp)
        if l_valid is not None:
            scores = jnp.where(l_valid, scores, -1e30)
        scores = scores - jnp.max(scores, axis=-1, keepdims=True)
        e = jnp.exp(scores)
        attn = e * pl.reciprocal(jnp.sum(e, axis=-1, keepdims=True), approx=True)
        wc = jnp.einsum('bql,blh->bqh',
                        attn[:, None, :].astype(cdt), ctx,
                        preferred_element_type=jnp.float32)[:, 0, :]      # (Bb, Hp)

        # Split output projection (no per-step concat/relayout).
        h_tilde = jnp.tanh(
            jnp.dot(wc.astype(woutc.dtype), woutc, preferred_element_type=jnp.float32)
            + jnp.dot(hy.astype(wouth.dtype), wouth, preferred_element_type=jnp.float32))

        out_h_ref[t] = h_tilde                                  # lane-dense store
        return h_tilde, cy

    h_fin, c_fin = jax.lax.fori_loop(0, chunk, step,
                                     (hx_sc[...], cx_sc[...]),
                                     unroll=unroll)

    hx_sc[...] = h_fin
    cx_sc[...] = c_fin

    @pl.when(c == pl.num_programs(1) - 1)
    def _():
        out_c_ref[...] = c_fin


def lstm_attention_dot(x_btd, h0, c0, ctx_lbh, params, *,
                       time_chunk=None, batch_block=None, mxu_dtype=jnp.bfloat16):
    """x_btd: (B, T, D); h0, c0: (B, H); ctx_lbh: (L, B, H).

    mxu_dtype=bfloat16 (default) feeds the MXU with bf16 operands (f32 accumulation,
    gates/softmax/carries stay f32). Pass jnp.float32 for an all-f32 path.
    time_chunk (divisor of T) bounds per-grid-step VMEM; batch_block (divisor of the
    padded batch) enables megacore batch parallelism on v7x.
    """
    B, T, D = x_btd.shape
    H = h0.shape[-1]
    L = ctx_lbh.shape[0]

    LANE = 128
    itm = jnp.dtype(mxu_dtype).itemsize
    sub = 16 if itm == 2 else 8                 # bf16 min tile is (16, 128)
    Bp = _round_up(B, sub)
    Dp = _round_up(D, LANE)
    Hp = _round_up(H, LANE)
    Lp = _round_up(L, LANE)

    Bb = Bp if batch_block is None else batch_block
    assert Bp % Bb == 0 and Bb % sub == 0, "batch_block must divide padded batch"
    nb = Bp // Bb

    # Default time chunk: keep the x / out_h / xw-scratch blocks around ~2 MiB and give
    # nc >= 2 so the pipeline can prefetch / write back under the recurrence.
    if time_chunk is None:
        target_bytes = 2 << 20
        per_t = Bb * (Dp * itm + 4 * Hp * 4 + Hp * 4)
        divs = [d for d in range(1, T + 1) if T % d == 0]
        fit = [d for d in divs if d * per_t <= target_bytes]
        small = [d for d in fit if d < T]
        Tc = max(small) if small else (max(fit) if fit else 1)
    else:
        Tc = time_chunk
    assert T % Tc == 0, "time_chunk must divide T"
    nc = T // Tc
    unroll = Tc if Tc <= 8 else 8

    f32 = jnp.float32

    # (T, Bp, Dp) time-major, zero-padded input.
    x_p = _pad_to(jnp.transpose(x_btd, (1, 0, 2)), (T, Bp, Dp)).astype(mxu_dtype)
    h0_p = _pad_to(h0.astype(f32), (Bp, Hp))
    c0_p = _pad_to(c0.astype(f32), (Bp, Hp))
    ctx_blh = jnp.transpose(ctx_lbh, (1, 0, 2))
    ctx_p = _pad_to(ctx_blh, (Bp, Lp, Hp)).astype(mxu_dtype)        # (Bp, Lp, Hp)
    ctx_hl_p = jnp.transpose(ctx_p, (0, 2, 1))                      # (Bp, Hp, Lp)

    # Gate-aware, gate-reordered zero padding keeps padded lanes exactly zero.
    wi = _pack_gates(params["wi"], Dp, Hp).astype(mxu_dtype)
    wh = _pack_gates(params["wh"], Hp, Hp).astype(mxu_dtype)
    b = _pack_gates(params["bi"] + params["bh"], 1, Hp).astype(f32)
    win = _pad_to(params["win"], (Hp, Hp)).astype(mxu_dtype)
    wout_c = _pad_to(params["wout"][:H], (Hp, Hp)).astype(mxu_dtype)   # acts on wc
    wout_h = _pad_to(params["wout"][H:], (Hp, Hp)).astype(mxu_dtype)   # acts on hy

    # VMEM budget: 2x (double-buffered) blocks + scratch, capped at 56 MiB (v7x-safe).
    block_bytes = (
        Tc * Bb * Dp * itm                      # x chunk
        + 2 * Bb * Hp * 4                       # h0, c0
        + 2 * Bb * Lp * Hp * itm                # ctx, ctx_hl
        + Dp * 4 * Hp * itm + Hp * 4 * Hp * itm # wi, wh
        + 4 * Hp * 4                            # fused bias
        + 3 * Hp * Hp * itm                     # win, wout_c, wout_h
        + Tc * Bb * Hp * 4                      # out_h chunk
        + Bb * Hp * 4                           # out_c
    )
    scratch_bytes = 2 * Bb * Hp * 4 + Tc * Bb * 4 * Hp * 4
    est = 2 * block_bytes + scratch_bytes
    vmem_limit = int(min(56 * 2 ** 20, max(2 * est, 16 * 2 ** 20)))

    kernel = functools.partial(_lstm_attn_kernel, chunk=Tc, src_len=L,
                               hidden_pad=Hp, unroll=unroll)

    out_h_p, c_final_p = pl.pallas_call(
        kernel,
        out_shape=(jax.ShapeDtypeStruct((T, Bp, Hp), f32),
                   jax.ShapeDtypeStruct((Bp, Hp), f32)),
        grid_spec=pltpu.PrefetchScalarGridSpec(
            num_scalar_prefetch=0,
            grid=(nb, nc),
            in_specs=[
                pl.BlockSpec((Tc, Bb, Dp), lambda b, c: (c, b, 0)),     # x chunk
                pl.BlockSpec((Bb, Hp), lambda b, c: (b, 0)),            # h0
                pl.BlockSpec((Bb, Hp), lambda b, c: (b, 0)),            # c0
                pl.BlockSpec((Bb, Lp, Hp), lambda b, c: (b, 0, 0)),     # ctx (B,L,H)
                pl.BlockSpec((Bb, Hp, Lp), lambda b, c: (b, 0, 0)),     # ctx (B,H,L)
                pl.BlockSpec((Dp, 4 * Hp), lambda b, c: (0, 0)),        # wi
                pl.BlockSpec((Hp, 4 * Hp), lambda b, c: (0, 0)),        # wh
                pl.BlockSpec((1, 4 * Hp), lambda b, c: (0, 0)),         # fused bias
                pl.BlockSpec((Hp, Hp), lambda b, c: (0, 0)),            # win
                pl.BlockSpec((Hp, Hp), lambda b, c: (0, 0)),            # wout_c
                pl.BlockSpec((Hp, Hp), lambda b, c: (0, 0)),            # wout_h
            ],
            out_specs=[
                pl.BlockSpec((Tc, Bb, Hp), lambda b, c: (c, b, 0)),     # per-step h_tilde
                pl.BlockSpec((Bb, Hp), lambda b, c: (b, 0)),            # final cell state
            ],
            scratch_shapes=[
                pltpu.VMEM((Bb, Hp), f32),                              # hx carry
                pltpu.VMEM((Bb, Hp), f32),                              # cx carry
                pltpu.VMEM((Tc, Bb, 4 * Hp), f32),                      # hoisted x@Wi + b
            ],
        ),
        compiler_params=pltpu.CompilerParams(
            dimension_semantics=("parallel", "arbitrary"),
            vmem_limit_bytes=vmem_limit,
        ),
    )(x_p, h0_p, c0_p, ctx_p, ctx_hl_p, wi, wh, b, win, wout_c, wout_h)

    out_bth = jnp.transpose(out_h_p, (1, 0, 2))[:B, :, :H]   # strip padding
    c_final = c_final_p[:B, :H]
    h_final = out_bth[:, -1, :]
    return out_bth, (h_final, c_final)


def lstm_attention_dot_ref(x_btd, h0, c0, ctx_lbh, params):
    """Pure-JAX reference mirroring the PyTorch forward (gate order i, f, g, o)."""
    H = h0.shape[-1]
    ctx_blh = jnp.transpose(ctx_lbh, (1, 0, 2))

    def step(carry, x_t):
        hx, cx = carry
        gates = (x_t @ params["wi"] + params["bi"][0]
                 + hx @ params["wh"] + params["bh"][0])
        ingate = jax.nn.sigmoid(gates[:, :H])
        forgetgate = jax.nn.sigmoid(gates[:, H:2 * H])
        cellgate = jnp.tanh(gates[:, 2 * H:3 * H])
        outgate = jax.nn.sigmoid(gates[:, 3 * H:])
        cy = forgetgate * cx + ingate * cellgate
        hy = outgate * jnp.tanh(cy)
        target = hy @ params["win"]
        scores = jnp.einsum("blh,bh->bl", ctx_blh, target)
        attn = jax.nn.softmax(scores, axis=1)
        wc = jnp.einsum("bl,blh->bh", attn, ctx_blh)
        h_tilde = jnp.tanh(jnp.concatenate([wc, hy], axis=1) @ params["wout"])
        return (h_tilde, cy), h_tilde

    x_tbd = jnp.transpose(x_btd, (1, 0, 2))
    (hf, cf), out_tbh = jax.lax.scan(step, (h0, c0), x_tbd)
    return jnp.transpose(out_tbh, (1, 0, 2)), (hf, cf)


if __name__ == "__main__":
    B, T, D, H, L = 2, 8, 32, 32, 8

    key = jax.random.PRNGKey(0)
    ks = jax.random.split(key, 10)
    scale = 0.1
    x = jax.random.normal(ks[0], (B, T, D), jnp.float32)
    h0 = jax.random.normal(ks[1], (B, H), jnp.float32)
    c0 = jax.random.normal(ks[2], (B, H), jnp.float32)
    ctx = jax.random.normal(ks[3], (L, B, H), jnp.float32)

    params = {
        "wi": scale * jax.random.normal(ks[4], (D, 4 * H), jnp.float32),
        "bi": scale * jax.random.normal(ks[5], (1, 4 * H), jnp.float32),
        "wh": scale * jax.random.normal(ks[6], (H, 4 * H), jnp.float32),
        "bh": scale * jax.random.normal(ks[7], (1, 4 * H), jnp.float32),
        "win": scale * jax.random.normal(ks[8], (H, H), jnp.float32),
        "wout": scale * jax.random.normal(ks[9], (2 * H, H), jnp.float32),
    }

    out_r, (hf_r, cf_r) = lstm_attention_dot_ref(x, h0, c0, ctx, params)

    # f32 MXU path: tight check (tolerance covers the EUP approx-reciprocal softmax).
    out, (hf, cf) = lstm_attention_dot(x, h0, c0, ctx, params, mxu_dtype=jnp.float32)
    jax.block_until_ready((out, hf, cf))
    assert jnp.allclose(out, out_r, atol=2e-3, rtol=2e-3)
    assert jnp.allclose(hf, hf_r, atol=2e-3, rtol=2e-3)
    assert jnp.allclose(cf, cf_r, atol=2e-3, rtol=2e-3)

    # Default bf16-operand path: looser check (bf16 MXU operands, f32 accumulation).
    out_b, (hf_b, cf_b) = lstm_attention_dot(x, h0, c0, ctx, params)
    jax.block_until_ready((out_b, hf_b, cf_b))
    assert jnp.allclose(out_b, out_r, atol=5e-2, rtol=5e-2)
    assert jnp.allclose(hf_b, hf_r, atol=5e-2, rtol=5e-2)
    assert jnp.allclose(cf_b, cf_r, atol=5e-2, rtol=5e-2)

    # TODO(synk): per-step attention weights (alpha) and ctx_mask are not surfaced; the
    # PyTorch forward ignores ctx_mask and discards alpha, so semantics are unchanged.
    print("KERNEL_OK")
</pallas_src>

<mosaic_0001>
module attributes {stable_mosaic.version = 11 : i64} {
  func.func @_lstm_attn_kernel(%arg0: i32, %arg1: i32, %arg2: memref<4x8x128xf32, #tpu.memory_space<vmem>>, %arg3: memref<8x128xf32, #tpu.memory_space<vmem>>, %arg4: memref<8x128xf32, #tpu.memory_space<vmem>>, %arg5: memref<8x128x128xf32, #tpu.memory_space<vmem>>, %arg6: memref<8x128x128xf32, #tpu.memory_space<vmem>>, %arg7: memref<128x512xf32, #tpu.memory_space<vmem>>, %arg8: memref<128x512xf32, #tpu.memory_space<vmem>>, %arg9: memref<1x512xf32, #tpu.memory_space<vmem>>, %arg10: memref<128x128xf32, #tpu.memory_space<vmem>>, %arg11: memref<128x128xf32, #tpu.memory_space<vmem>>, %arg12: memref<128x128xf32, #tpu.memory_space<vmem>>, %arg13: memref<4x8x128xf32, #tpu.memory_space<vmem>>, %arg14: memref<8x128xf32, #tpu.memory_space<vmem>>, %arg15: memref<8x128xf32, #tpu.memory_space<vmem>>, %arg16: memref<8x128xf32, #tpu.memory_space<vmem>>, %arg17: memref<4x8x512xf32, #tpu.memory_space<vmem>>) attributes {dimension_semantics = [#tpu.dimension_semantics<parallel>, #tpu.dimension_semantics<arbitrary>], iteration_bounds = array<i64: 1, 2>, scalar_prefetch = 0 : i64, scratch_operands = 3 : i64, tpu.core_type = #tpu.core_type<tc>, window_params = [{transform_indices = @transform_0, window_bounds = array<i64: 4, 8, 128>}, {transform_indices = @transform_1, window_bounds = array<i64: 8, 128>}, {transform_indices = @transform_2, window_bounds = array<i64: 8, 128>}, {transform_indices = @transform_3, window_bounds = array<i64: 8, 128, 128>}, {transform_indices = @transform_4, window_bounds = array<i64: 8, 128, 128>}, {pipeline_mode = #tpu.pipeline_mode<synchronous>, transform_indices = @transform_5, window_bounds = array<i64: 128, 512>}, {pipeline_mode = #tpu.pipeline_mode<synchronous>, transform_indices = @transform_6, window_bounds = array<i64: 128, 512>}, {pipeline_mode = #tpu.pipeline_mode<synchronous>, transform_indices = @transform_7, window_bounds = array<i64: 1, 512>}, {pipeline_mode = #tpu.pipeline_mode<synchronous>, transform_indices = @transform_8, window_bounds = array<i64: 128, 128>}, {pipeline_mode = #tpu.pipeline_mode<synchronous>, transform_indices = @transform_9, window_bounds = array<i64: 128, 128>}, {pipeline_mode = #tpu.pipeline_mode<synchronous>, transform_indices = @transform_10, window_bounds = array<i64: 128, 128>}, {transform_indices = @transform_11, window_bounds = array<i64: 4, 8, 128>}, {transform_indices = @transform_12, window_bounds = array<i64: 8, 128>}]} {
    %c0_i32 = arith.constant 0 : i32
    %0 = arith.cmpi eq, %arg1, %c0_i32 : i32
    %1 = arith.extui %0 : i1 to i32
    %c0_i32_0 = arith.constant 0 : i32
    %2 = arith.cmpi ne, %1, %c0_i32_0 : i32
    scf.if %2 {
      %c0_91 = arith.constant 0 : index
      %c0_92 = arith.constant 0 : index
      %220 = vector.load %arg3[%c0_91, %c0_92] : memref<8x128xf32, #tpu.memory_space<vmem>>, vector<8x128xf32>
      %c0_93 = arith.constant 0 : index
      %c0_94 = arith.constant 0 : index
      %221 = vector.load %arg15[%c0_93, %c0_94] : memref<8x128xf32, #tpu.memory_space<vmem>>, vector<8x128xf32>
      tpu.vector_store %arg15[%c0_93, %c0_94], %220 {strides = array<i32>} : memref<8x128xf32, #tpu.memory_space<vmem>>, vector<8x128xf32>,
      %c0_95 = arith.constant 0 : index
      %c0_96 = arith.constant 0 : index
      %222 = vector.load %arg4[%c0_95, %c0_96] : memref<8x128xf32, #tpu.memory_space<vmem>>, vector<8x128xf32>
      %c0_97 = arith.constant 0 : index
      %c0_98 = arith.constant 0 : index
      %223 = vector.load %arg16[%c0_97, %c0_98] : memref<8x128xf32, #tpu.memory_space<vmem>>, vector<8x128xf32>
      tpu.vector_store %arg16[%c0_97, %c0_98], %222 {strides = array<i32>} : memref<8x128xf32, #tpu.memory_space<vmem>>, vector<8x128xf32>,
    } else {
    }
    %c0 = arith.constant 0 : index
    %c0_1 = arith.constant 0 : index
    %c0_2 = arith.constant 0 : index
    %3 = vector.load %arg5[%c0, %c0_1, %c0_2] : memref<8x128x128xf32, #tpu.memory_space<vmem>>, vector<8x128x128xf32>
    %c0_3 = arith.constant 0 : index
    %c0_4 = arith.constant 0 : index
    %c0_5 = arith.constant 0 : index
    %4 = vector.load %arg6[%c0_3, %c0_4, %c0_5] : memref<8x128x128xf32, #tpu.memory_space<vmem>>, vector<8x128x128xf32>
    %c0_6 = arith.constant 0 : index
    %c0_7 = arith.constant 0 : index
    %5 = vector.load %arg8[%c0_6, %c0_7] : memref<128x512xf32, #tpu.memory_space<vmem>>, vector<128x512xf32>
    %c0_8 = arith.constant 0 : index
    %c0_9 = arith.constant 0 : index
    %6 = vector.load %arg10[%c0_8, %c0_9] : memref<128x128xf32, #tpu.memory_space<vmem>>, vector<128x128xf32>
    %c0_10 = arith.constant 0 : index
    %c0_11 = arith.constant 0 : index
    %7 = vector.load %arg11[%c0_10, %c0_11] : memref<128x128xf32, #tpu.memory_space<vmem>>, vector<128x128xf32>
    %c0_12 = arith.constant 0 : index
    %c0_13 = arith.constant 0 : index
    %8 = vector.load %arg12[%c0_12, %c0_13] : memref<128x128xf32, #tpu.memory_space<vmem>>, vector<128x128xf32>
    %c0_14 = arith.constant 0 : index
    %c0_15 = arith.constant 0 : index
    %c0_16 = arith.constant 0 : index
    %9 = vector.load %arg2[%c0_14, %c0_15, %c0_16] : memref<4x8x128xf32, #tpu.memory_space<vmem>>, vector<4x8x128xf32>
    %10 = vector.shape_cast %9 : vector<4x8x128xf32> to vector<32x128xf32>
    %c0_17 = arith.constant 0 : index
    %c0_18 = arith.constant 0 : index
    %11 = vector.load %arg7[%c0_17, %c0_18] : memref<128x512xf32, #tpu.memory_space<vmem>>, vector<128x512xf32>
    %cst = arith.constant dense<0.000000e+00> : vector<32x512xf32>
    %12 = tpu.matmul %10, %11, %cst {dimension_numbers = #tpu.dot_dimension_numbers<[1], [0], [0], [1], [0, 0, 1, 1], [], []>} : vector<32x128xf32>, vector<128x512xf32>, vector<32x512xf32> -> vector<32x512xf32>
    %c0_19 = arith.constant 0 : index
    %c0_20 = arith.constant 0 : index
    %13 = vector.load %arg9[%c0_19, %c0_20] : memref<1x512xf32, #tpu.memory_space<vmem>>, vector<1x512xf32>
    %14 = vector.broadcast %13 : vector<1x512xf32> to vector<32x512xf32>
    %15 = arith.addf %12, %14 : vector<32x512xf32>
    %16 = vector.shape_cast %15 : vector<32x512xf32> to vector<4x8x512xf32>
    %c0_21 = arith.constant 0 : index
    %c0_22 = arith.constant 0 : index
    %c0_23 = arith.constant 0 : index
    %17 = vector.load %arg17[%c0_21, %c0_22, %c0_23] : memref<4x8x512xf32, #tpu.memory_space<vmem>>, vector<4x8x512xf32>
    tpu.vector_store %arg17[%c0_21, %c0_22, %c0_23], %16 {strides = array<i32>} : memref<4x8x512xf32, #tpu.memory_space<vmem>>, vector<4x8x512xf32>,
    %18 = tpu.iota {dimensions = array<i32: 1>} : vector<8x128xi32>
    %c8_i32 = arith.constant 8 : i32
    %19 = vector.broadcast %c8_i32 : i32 to vector<8x128xi32>
    %20 = arith.cmpi slt, %18, %19 : vector<8x128xi32>
    %c0_24 = arith.constant 0 : index
    %c0_25 = arith.constant 0 : index
    %21 = vector.load %arg15[%c0_24, %c0_25] : memref<8x128xf32, #tpu.memory_space<vmem>>, vector<8x128xf32>
    %c0_26 = arith.constant 0 : index
    %c0_27 = arith.constant 0 : index
    %22 = vector.load %arg16[%c0_26, %c0_27] : memref<8x128xf32, #tpu.memory_space<vmem>>, vector<8x128xf32>
    %c0_i32_28 = arith.constant 0 : i32
    %23 = arith.index_cast %c0_i32_28 : i32 to index
    %c0_29 = arith.constant 0 : index
    %c0_30 = arith.constant 0 : index
    %24 = vector.load %arg17[%23, %c0_29, %c0_30] : memref<4x8x512xf32, #tpu.memory_space<vmem>>, vector<1x8x512xf32>
    %25 = vector.shape_cast %24 : vector<1x8x512xf32> to vector<8x512xf32>
    %cst_31 = arith.constant dense<0.000000e+00> : vector<8x512xf32>
    %26 = tpu.matmul %21, %5, %cst_31 {dimension_numbers = #tpu.dot_dimension_numbers<[1], [0], [0], [1], [0, 0, 1, 1], [], []>} : vector<8x128xf32>, vector<128x512xf32>, vector<8x512xf32> -> vector<8x512xf32>
    %27 = arith.addf %25, %26 : vector<8x512xf32>
    %28 = vector.extract_strided_slice %27 {offsets = [0, 0], sizes = [8, 384], strides = [1, 1]} : vector<8x512xf32> to vector<8x384xf32>
    %29 = arith.negf %28 : vector<8x384xf32>
    %30 = math.exp %29 : vector<8x384xf32>
    %cst_32 = arith.constant 1.000000e+00 : f32
    %31 = vector.broadcast %cst_32 : f32 to vector<8x384xf32>
    %32 = arith.addf %31, %30 : vector<8x384xf32>
    %33 = arith.divf %31, %32 : vector<8x384xf32>
    %34 = vector.extract_strided_slice %33 {offsets = [0, 0], sizes = [8, 128], strides = [1, 1]} : vector<8x384xf32> to vector<8x128xf32>
    %35 = vector.extract_strided_slice %33 {offsets = [0, 128], sizes = [8, 128], strides = [1, 1]} : vector<8x384xf32> to vector<8x128xf32>
    %36 = vector.extract_strided_slice %33 {offsets = [0, 256], sizes = [8, 128], strides = [1, 1]} : vector<8x384xf32> to vector<8x128xf32>
    %37 = vector.extract_strided_slice %27 {offsets = [0, 384], sizes = [8, 128], strides = [1, 1]} : vector<8x512xf32> to vector<8x128xf32>
    %38 = math.tanh %37 : vector<8x128xf32>
    %39 = arith.mulf %35, %22 : vector<8x128xf32>
    %40 = arith.mulf %34, %38 : vector<8x128xf32>
    %41 = arith.addf %39, %40 : vector<8x128xf32>
    %42 = math.tanh %41 : vector<8x128xf32>
    %43 = arith.mulf %36, %42 : vector<8x128xf32>
    %cst_33 = arith.constant dense<0.000000e+00> : vector<8x128xf32>
    %44 = tpu.matmul %43, %6, %cst_33 {dimension_numbers = #tpu.dot_dimension_numbers<[1], [0], [0], [1], [0, 0, 1, 1], [], []>} : vector<8x128xf32>, vector<128x128xf32>, vector<8x128xf32> -> vector<8x128xf32>
    %45 = vector.shape_cast %44 : vector<8x128xf32> to vector<8x1x128xf32>
    "tpu.trace_start"() <{level = 10 : i32, message = "bqh,bhl->bql"}> : () -> ()
    %cst_34 = arith.constant dense<0.000000e+00> : vector<8x1x128xf32>
    %46 = tpu.matmul %45, %4, %cst_34 {dimension_numbers = #tpu.dot_dimension_numbers<[2], [1], [1], [2], [0, 0, 0, 1, 1, 2], [0], [0]>} : vector<8x1x128xf32>, vector<8x128x128xf32>, vector<8x1x128xf32> -> vector<8x1x128xf32>
    "tpu.trace_stop"() : () -> ()
    %47 = vector.shape_cast %46 : vector<8x1x128xf32> to vector<8x128xf32>
    %cst_35 = arith.constant -1.000000e+30 : f32
    %48 = vector.broadcast %cst_35 : f32 to vector<8x128xf32>
    %49 = arith.select %20, %47, %48 : vector<8x128xi1>, vector<8x128xf32>
    %cst_36 = arith.constant dense<0xFF800000> : vector<8xf32>
    %50 = vector.multi_reduction <maximumf>, %49, %cst_36 [1] : vector<8x128xf32> to vector<8xf32>
    %51 = vector.shape_cast %50 : vector<8xf32> to vector<8x1xf32>
    %52 = vector.broadcast %51 : vector<8x1xf32> to vector<8x128xf32>
    %53 = arith.subf %49, %52 : vector<8x128xf32>
    %54 = math.exp %53 : vector<8x128xf32>
    %cst_37 = arith.constant dense<0.000000e+00> : vector<8xf32>
    %55 = vector.multi_reduction <add>, %54, %cst_37 [1] : vector<8x128xf32> to vector<8xf32>
    %56 = vector.shape_cast %55 : vector<8xf32> to vector<8x1xf32>
    %57 = tpu.reciprocal %56 {approx = true} : vector<8x1xf32> -> vector<8x1xf32>
    %58 = vector.broadcast %57 : vector<8x1xf32> to vector<8x128xf32>
    %59 = arith.mulf %54, %58 : vector<8x128xf32>
    %60 = vector.shape_cast %59 : vector<8x128xf32> to vector<8x1x128xf32>
    "tpu.trace_start"() <{level = 10 : i32, message = "bql,blh->bqh"}> : () -> ()
    %cst_38 = arith.constant dense<0.000000e+00> : vector<8x1x128xf32>
    %61 = tpu.matmul %60, %3, %cst_38 {dimension_numbers = #tpu.dot_dimension_numbers<[2], [1], [1], [2], [0, 0, 0, 1, 1, 2], [0], [0]>} : vector<8x1x128xf32>, vector<8x128x128xf32>, vector<8x1x128xf32> -> vector<8x1x128xf32>
    "tpu.trace_stop"() : () -> ()
    %62 = vector.shape_cast %61 : vector<8x1x128xf32> to vector<8x128xf32>
    %cst_39 = arith.constant dense<0.000000e+00> : vector<8x128xf32>
    %63 = tpu.matmul %62, %7, %cst_39 {dimension_numbers = #tpu.dot_dimension_numbers<[1], [0], [0], [1], [0, 0, 1, 1], [], []>} : vector<8x128xf32>, vector<128x128xf32>, vector<8x128xf32> -> vector<8x128xf32>
    %cst_40 = arith.constant dense<0.000000e+00> : vector<8x128xf32>
    %64 = tpu.matmul %43, %8, %cst_40 {dimension_numbers = #tpu.dot_dimension_numbers<[1], [0], [0], [1], [0, 0, 1, 1], [], []>} : vector<8x128xf32>, vector<128x128xf32>, vector<8x128xf32> -> vector<8x128xf32>
    %65 = arith.addf %63, %64 : vector<8x128xf32>
    %66 = math.tanh %65 : vector<8x128xf32>
    %67 = arith.index_cast %c0_i32_28 : i32 to index
    %c0_41 = arith.constant 0 : index
    %c0_42 = arith.constant 0 : index
    %68 = vector.load %arg13[%67, %c0_41, %c0_42] : memref<4x8x128xf32, #tpu.memory_space<vmem>>, vector<1x8x128xf32>
    %69 = vector.shape_cast %68 : vector<1x8x128xf32> to vector<8x128xf32>
    %70 = vector.shape_cast %66 : vector<8x128xf32> to vector<1x8x128xf32>
    tpu.vector_store %arg13[%67, %c0_41, %c0_42], %70 {strides = array<i32>} : memref<4x8x128xf32, #tpu.memory_space<vmem>>, vector<1x8x128xf32>,
    %c1_i32 = arith.constant 1 : i32
    %71 = arith.index_cast %c1_i32 : i32 to index
    %c0_43 = arith.constant 0 : index
    %c0_44 = arith.constant 0 : index
    %72 = vector.load %arg17[%71, %c0_43, %c0_44] : memref<4x8x512xf32, #tpu.memory_space<vmem>>, vector<1x8x512xf32>
    %73 = vector.shape_cast %72 : vector<1x8x512xf32> to vector<8x512xf32>
    %cst_45 = arith.constant dense<0.000000e+00> : vector<8x512xf32>
    %74 = tpu.matmul %66, %5, %cst_45 {dimension_numbers = #tpu.dot_dimension_numbers<[1], [0], [0], [1], [0, 0, 1, 1], [], []>} : vector<8x128xf32>, vector<128x512xf32>, vector<8x512xf32> -> vector<8x512xf32>
    %75 = arith.addf %73, %74 : vector<8x512xf32>
    %76 = vector.extract_strided_slice %75 {offsets = [0, 0], sizes = [8, 384], strides = [1, 1]} : vector<8x512xf32> to vector<8x384xf32>
    %77 = arith.negf %76 : vector<8x384xf32>
    %78 = math.exp %77 : vector<8x384xf32>
    %cst_46 = arith.constant 1.000000e+00 : f32
    %79 = vector.broadcast %cst_46 : f32 to vector<8x384xf32>
    %80 = arith.addf %79, %78 : vector<8x384xf32>
    %81 = arith.divf %79, %80 : vector<8x384xf32>
    %82 = vector.extract_strided_slice %81 {offsets = [0, 0], sizes = [8, 128], strides = [1, 1]} : vector<8x384xf32> to vector<8x128xf32>
    %83 = vector.extract_strided_slice %81 {offsets = [0, 128], sizes = [8, 128], strides = [1, 1]} : vector<8x384xf32> to vector<8x128xf32>
    %84 = vector.extract_strided_slice %81 {offsets = [0, 256], sizes = [8, 128], strides = [1, 1]} : vector<8x384xf32> to vector<8x128xf32>
    %85 = vector.extract_strided_slice %75 {offsets = [0, 384], sizes = [8, 128], strides = [1, 1]} : vector<8x512xf32> to vector<8x128xf32>
    %86 = math.tanh %85 : vector<8x128xf32>
    %87 = arith.mulf %83, %41 : vector<8x128xf32>
    %88 = arith.mulf %82, %86 : vector<8x128xf32>
    %89 = arith.addf %87, %88 : vector<8x128xf32>
    %90 = math.tanh %89 : vector<8x128xf32>
    %91 = arith.mulf %84, %90 : vector<8x128xf32>
    %cst_47 = arith.constant dense<0.000000e+00> : vector<8x128xf32>
    %92 = tpu.matmul %91, %6, %cst_47 {dimension_numbers = #tpu.dot_dimension_numbers<[1], [0], [0], [1], [0, 0, 1, 1], [], []>} : vector<8x128xf32>, vector<128x128xf32>, vector<8x128xf32> -> vector<8x128xf32>
    %93 = vector.shape_cast %92 : vector<8x128xf32> to vector<8x1x128xf32>
    "tpu.trace_start"() <{level = 10 : i32, message = "bqh,bhl->bql"}> : () -> ()
    %cst_48 = arith.constant dense<0.000000e+00> : vector<8x1x128xf32>
    %94 = tpu.matmul %93, %4, %cst_48 {dimension_numbers = #tpu.dot_dimension_numbers<[2], [1], [1], [2], [0, 0, 0, 1, 1, 2], [0], [0]>} : vector<8x1x128xf32>, vector<8x128x128xf32>, vector<8x1x128xf32> -> vector<8x1x128xf32>
    "tpu.trace_stop"() : () -> ()
    %95 = vector.shape_cast %94 : vector<8x1x128xf32> to vector<8x128xf32>
    %cst_49 = arith.constant -1.000000e+30 : f32
    %96 = vector.broadcast %cst_49 : f32 to vector<8x128xf32>
    %97 = arith.select %20, %95, %96 : vector<8x128xi1>, vector<8x128xf32>
    %cst_50 = arith.constant dense<0xFF800000> : vector<8xf32>
    %98 = vector.multi_reduction <maximumf>, %97, %cst_50 [1] : vector<8x128xf32> to vector<8xf32>
    %99 = vector.shape_cast %98 : vector<8xf32> to vector<8x1xf32>
    %100 = vector.broadcast %99 : vector<8x1xf32> to vector<8x128xf32>
    %101 = arith.subf %97, %100 : vector<8x128xf32>
    %102 = math.exp %101 : vector<8x128xf32>
    %cst_51 = arith.constant dense<0.000000e+00> : vector<8xf32>
    %103 = vector.multi_reduction <add>, %102, %cst_51 [1] : vector<8x128xf32> to vector<8xf32>
    %104 = vector.shape_cast %103 : vector<8xf32> to vector<8x1xf32>
    %105 = tpu.reciprocal %104 {approx = true} : vector<8x1xf32> -> vector<8x1xf32>
    %106 = vector.broadcast %105 : vector<8x1xf32> to vector<8x128xf32>
    %107 = arith.mulf %102, %106 : vector<8x128xf32>
    %108 = vector.shape_cast %107 : vector<8x128xf32> to vector<8x1x128xf32>
    "tpu.trace_start"() <{level = 10 : i32, message = "bql,blh->bqh"}> : () -> ()
    %cst_52 = arith.constant dense<0.000000e+00> : vector<8x1x128xf32>
    %109 = tpu.matmul %108, %3, %cst_52 {dimension_numbers = #tpu.dot_dimension_numbers<[2], [1], [1], [2], [0, 0, 0, 1, 1, 2], [0], [0]>} : vector<8x1x128xf32>, vector<8x128x128xf32>, vector<8x1x128xf32> -> vector<8x1x128xf32>
    "tpu.trace_stop"() : () -> ()
    %110 = vector.shape_cast %109 : vector<8x1x128xf32> to vector<8x128xf32>
    %cst_53 = arith.constant dense<0.000000e+00> : vector<8x128xf32>
    %111 = tpu.matmul %110, %7, %cst_53 {dimension_numbers = #tpu.dot_dimension_numbers<[1], [0], [0], [1], [0, 0, 1, 1], [], []>} : vector<8x128xf32>, vector<128x128xf32>, vector<8x128xf32> -> vector<8x128xf32>
    %cst_54 = arith.constant dense<0.000000e+00> : vector<8x128xf32>
    %112 = tpu.matmul %91, %8, %cst_54 {dimension_numbers = #tpu.dot_dimension_numbers<[1], [0], [0], [1], [0, 0, 1, 1], [], []>} : vector<8x128xf32>, vector<128x128xf32>, vector<8x128xf32> -> vector<8x128xf32>
    %113 = arith.addf %111, %112 : vector<8x128xf32>
    %114 = math.tanh %113 : vector<8x128xf32>
    %115 = arith.index_cast %c1_i32 : i32 to index
    %c0_55 = arith.constant 0 : index
    %c0_56 = arith.constant 0 : index
    %116 = vector.load %arg13[%115, %c0_55, %c0_56] : memref<4x8x128xf32, #tpu.memory_space<vmem>>, vector<1x8x128xf32>
    %117 = vector.shape_cast %116 : vector<1x8x128xf32> to vector<8x128xf32>
    %118 = vector.shape_cast %114 : vector<8x128xf32> to vector<1x8x128xf32>
    tpu.vector_store %arg13[%115, %c0_55, %c0_56], %118 {strides = array<i32>} : memref<4x8x128xf32, #tpu.memory_space<vmem>>, vector<1x8x128xf32>,
    %c2_i32 = arith.constant 2 : i32
    %119 = arith.index_cast %c2_i32 : i32 to index
    %c0_57 = arith.constant 0 : index
    %c0_58 = arith.constant 0 : index
    %120 = vector.load %arg17[%119, %c0_57, %c0_58] : memref<4x8x512xf32, #tpu.memory_space<vmem>>, vector<1x8x512xf32>
    %121 = vector.shape_cast %120 : vector<1x8x512xf32> to vector<8x512xf32>
    %cst_59 = arith.constant dense<0.000000e+00> : vector<8x512xf32>
    %122 = tpu.matmul %114, %5, %cst_59 {dimension_numbers = #tpu.dot_dimension_numbers<[1], [0], [0], [1], [0, 0, 1, 1], [], []>} : vector<8x128xf32>, vector<128x512xf32>, vector<8x512xf32> -> vector<8x512xf32>
    %123 = arith.addf %121, %122 : vector<8x512xf32>
    %124 = vector.extract_strided_slice %123 {offsets = [0, 0], sizes = [8, 384], strides = [1, 1]} : vector<8x512xf32> to vector<8x384xf32>
    %125 = arith.negf %124 : vector<8x384xf32>
    %126 = math.exp %125 : vector<8x384xf32>
    %cst_60 = arith.constant 1.000000e+00 : f32
    %127 = vector.broadcast %cst_60 : f32 to vector<8x384xf32>
    %128 = arith.addf %127, %126 : vector<8x384xf32>
    %129 = arith.divf %127, %128 : vector<8x384xf32>
    %130 = vector.extract_strided_slice %129 {offsets = [0, 0], sizes = [8, 128], strides = [1, 1]} : vector<8x384xf32> to vector<8x128xf32>
    %131 = vector.extract_strided_slice %129 {offsets = [0, 128], sizes = [8, 128], strides = [1, 1]} : vector<8x384xf32> to vector<8x128xf32>
    %132 = vector.extract_strided_slice %129 {offsets = [0, 256], sizes = [8, 128], strides = [1, 1]} : vector<8x384xf32> to vector<8x128xf32>
    %133 = vector.extract_strided_slice %123 {offsets = [0, 384], sizes = [8, 128], strides = [1, 1]} : vector<8x512xf32> to vector<8x128xf32>
    %134 = math.tanh %133 : vector<8x128xf32>
    %135 = arith.mulf %131, %89 : vector<8x128xf32>
    %136 = arith.mulf %130, %134 : vector<8x128xf32>
    %137 = arith.addf %135, %136 : vector<8x128xf32>
    %138 = math.tanh %137 : vector<8x128xf32>
    %139 = arith.mulf %132, %138 : vector<8x128xf32>
    %cst_61 = arith.constant dense<0.000000e+00> : vector<8x128xf32>
    %140 = tpu.matmul %139, %6, %cst_61 {dimension_numbers = #tpu.dot_dimension_numbers<[1], [0], [0], [1], [0, 0, 1, 1], [], []>} : vector<8x128xf32>, vector<128x128xf32>, vector<8x128xf32> -> vector<8x128xf32>
    %141 = vector.shape_cast %140 : vector<8x128xf32> to vector<8x1x128xf32>
    "tpu.trace_start"() <{level = 10 : i32, message = "bqh,bhl->bql"}> : () -> ()
    %cst_62 = arith.constant dense<0.000000e+00> : vector<8x1x128xf32>
    %142 = tpu.matmul %141, %4, %cst_62 {dimension_numbers = #tpu.dot_dimension_numbers<[2], [1], [1], [2], [0, 0, 0, 1, 1, 2], [0], [0]>} : vector<8x1x128xf32>, vector<8x128x128xf32>, vector<8x1x128xf32> -> vector<8x1x128xf32>
    "tpu.trace_stop"() : () -> ()
    %143 = vector.shape_cast %142 : vector<8x1x128xf32> to vector<8x128xf32>
    %cst_63 = arith.constant -1.000000e+30 : f32
    %144 = vector.broadcast %cst_63 : f32 to vector<8x128xf32>
    %145 = arith.select %20, %143, %144 : vector<8x128xi1>, vector<8x128xf32>
    %cst_64 = arith.constant dense<0xFF800000> : vector<8xf32>
    %146 = vector.multi_reduction <maximumf>, %145, %cst_64 [1] : vector<8x128xf32> to vector<8xf32>
    %147 = vector.shape_cast %146 : vector<8xf32> to vector<8x1xf32>
    %148 = vector.broadcast %147 : vector<8x1xf32> to vector<8x128xf32>
    %149 = arith.subf %145, %148 : vector<8x128xf32>
    %150 = math.exp %149 : vector<8x128xf32>
    %cst_65 = arith.constant dense<0.000000e+00> : vector<8xf32>
    %151 = vector.multi_reduction <add>, %150, %cst_65 [1] : vector<8x128xf32> to vector<8xf32>
    %152 = vector.shape_cast %151 : vector<8xf32> to vector<8x1xf32>
    %153 = tpu.reciprocal %152 {approx = true} : vector<8x1xf32> -> vector<8x1xf32>
    %154 = vector.broadcast %153 : vector<8x1xf32> to vector<8x128xf32>
    %155 = arith.mulf %150, %154 : vector<8x128xf32>
    %156 = vector.shape_cast %155 : vector<8x128xf32> to vector<8x1x128xf32>
    "tpu.trace_start"() <{level = 10 : i32, message = "bql,blh->bqh"}> : () -> ()
    %cst_66 = arith.constant dense<0.000000e+00> : vector<8x1x128xf32>
    %157 = tpu.matmul %156, %3, %cst_66 {dimension_numbers = #tpu.dot_dimension_numbers<[2], [1], [1], [2], [0, 0, 0, 1, 1, 2], [0], [0]>} : vector<8x1x128xf32>, vector<8x128x128xf32>, vector<8x1x128xf32> -> vector<8x1x128xf32>
    "tpu.trace_stop"() : () -> ()
    %158 = vector.shape_cast %157 : vector<8x1x128xf32> to vector<8x128xf32>
    %cst_67 = arith.constant dense<0.000000e+00> : vector<8x128xf32>
    %159 = tpu.matmul %158, %7, %cst_67 {dimension_numbers = #tpu.dot_dimension_numbers<[1], [0], [0], [1], [0, 0, 1, 1], [], []>} : vector<8x128xf32>, vector<128x128xf32>, vector<8x128xf32> -> vector<8x128xf32>
    %cst_68 = arith.constant dense<0.000000e+00> : vector<8x128xf32>
    %160 = tpu.matmul %139, %8, %cst_68 {dimension_numbers = #tpu.dot_dimension_numbers<[1], [0], [0], [1], [0, 0, 1, 1], [], []>} : vector<8x128xf32>, vector<128x128xf32>, vector<8x128xf32> -> vector<8x128xf32>
    %161 = arith.addf %159, %160 : vector<8x128xf32>
    %162 = math.tanh %161 : vector<8x128xf32>
    %163 = arith.index_cast %c2_i32 : i32 to index
    %c0_69 = arith.constant 0 : index
    %c0_70 = arith.constant 0 : index
    %164 = vector.load %arg13[%163, %c0_69, %c0_70] : memref<4x8x128xf32, #tpu.memory_space<vmem>>, vector<1x8x128xf32>
    %165 = vector.shape_cast %164 : vector<1x8x128xf32> to vector<8x128xf32>
    %166 = vector.shape_cast %162 : vector<8x128xf32> to vector<1x8x128xf32>
    tpu.vector_store %arg13[%163, %c0_69, %c0_70], %166 {strides = array<i32>} : memref<4x8x128xf32, #tpu.memory_space<vmem>>, vector<1x8x128xf32>,
    %c3_i32 = arith.constant 3 : i32
    %167 = arith.index_cast %c3_i32 : i32 to index
    %c0_71 = arith.constant 0 : index
    %c0_72 = arith.constant 0 : index
    %168 = vector.load %arg17[%167, %c0_71, %c0_72] : memref<4x8x512xf32, #tpu.memory_space<vmem>>, vector<1x8x512xf32>
    %169 = vector.shape_cast %168 : vector<1x8x512xf32> to vector<8x512xf32>
    %cst_73 = arith.constant dense<0.000000e+00> : vector<8x512xf32>
    %170 = tpu.matmul %162, %5, %cst_73 {dimension_numbers = #tpu.dot_dimension_numbers<[1], [0], [0], [1], [0, 0, 1, 1], [], []>} : vector<8x128xf32>, vector<128x512xf32>, vector<8x512xf32> -> vector<8x512xf32>
    %171 = arith.addf %169, %170 : vector<8x512xf32>
    %172 = vector.extract_strided_slice %171 {offsets = [0, 0], sizes = [8, 384], strides = [1, 1]} : vector<8x512xf32> to vector<8x384xf32>
    %173 = arith.negf %172 : vector<8x384xf32>
    %174 = math.exp %173 : vector<8x384xf32>
    %cst_74 = arith.constant 1.000000e+00 : f32
    %175 = vector.broadcast %cst_74 : f32 to vector<8x384xf32>
    %176 = arith.addf %175, %174 : vector<8x384xf32>
    %177 = arith.divf %175, %176 : vector<8x384xf32>
    %178 = vector.extract_strided_slice %177 {offsets = [0, 0], sizes = [8, 128], strides = [1, 1]} : vector<8x384xf32> to vector<8x128xf32>
    %179 = vector.extract_strided_slice %177 {offsets = [0, 128], sizes = [8, 128], strides = [1, 1]} : vector<8x384xf32> to vector<8x128xf32>
    %180 = vector.extract_strided_slice %177 {offsets = [0, 256], sizes = [8, 128], strides = [1, 1]} : vector<8x384xf32> to vector<8x128xf32>
    %181 = vector.extract_strided_slice %171 {offsets = [0, 384], sizes = [8, 128], strides = [1, 1]} : vector<8x512xf32> to vector<8x128xf32>
    %182 = math.tanh %181 : vector<8x128xf32>
    %183 = arith.mulf %179, %137 : vector<8x128xf32>
    %184 = arith.mulf %178, %182 : vector<8x128xf32>
    %185 = arith.addf %183, %184 : vector<8x128xf32>
    %186 = math.tanh %185 : vector<8x128xf32>
    %187 = arith.mulf %180, %186 : vector<8x128xf32>
    %cst_75 = arith.constant dense<0.000000e+00> : vector<8x128xf32>
    %188 = tpu.matmul %187, %6, %cst_75 {dimension_numbers = #tpu.dot_dimension_numbers<[1], [0], [0], [1], [0, 0, 1, 1], [], []>} : vector<8x128xf32>, vector<128x128xf32>, vector<8x128xf32> -> vector<8x128xf32>
    %189 = vector.shape_cast %188 : vector<8x128xf32> to vector<8x1x128xf32>
    "tpu.trace_start"() <{level = 10 : i32, message = "bqh,bhl->bql"}> : () -> ()
    %cst_76 = arith.constant dense<0.000000e+00> : vector<8x1x128xf32>
    %190 = tpu.matmul %189, %4, %cst_76 {dimension_numbers = #tpu.dot_dimension_numbers<[2], [1], [1], [2], [0, 0, 0, 1, 1, 2], [0], [0]>} : vector<8x1x128xf32>, vector<8x128x128xf32>, vector<8x1x128xf32> -> vector<8x1x128xf32>
    "tpu.trace_stop"() : () -> ()
    %191 = vector.shape_cast %190 : vector<8x1x128xf32> to vector<8x128xf32>
    %cst_77 = arith.constant -1.000000e+30 : f32
    %192 = vector.broadcast %cst_77 : f32 to vector<8x128xf32>
    %193 = arith.select %20, %191, %192 : vector<8x128xi1>, vector<8x128xf32>
    %cst_78 = arith.constant dense<0xFF800000> : vector<8xf32>
    %194 = vector.multi_reduction <maximumf>, %193, %cst_78 [1] : vector<8x128xf32> to vector<8xf32>
    %195 = vector.shape_cast %194 : vector<8xf32> to vector<8x1xf32>
    %196 = vector.broadcast %195 : vector<8x1xf32> to vector<8x128xf32>
    %197 = arith.subf %193, %196 : vector<8x128xf32>
    %198 = math.exp %197 : vector<8x128xf32>
    %cst_79 = arith.constant dense<0.000000e+00> : vector<8xf32>
    %199 = vector.multi_reduction <add>, %198, %cst_79 [1] : vector<8x128xf32> to vector<8xf32>
    %200 = vector.shape_cast %199 : vector<8xf32> to vector<8x1xf32>
    %201 = tpu.reciprocal %200 {approx = true} : vector<8x1xf32> -> vector<8x1xf32>
    %202 = vector.broadcast %201 : vector<8x1xf32> to vector<8x128xf32>
    %203 = arith.mulf %198, %202 : vector<8x128xf32>
    %204 = vector.shape_cast %203 : vector<8x128xf32> to vector<8x1x128xf32>
    "tpu.trace_start"() <{level = 10 : i32, message = "bql,blh->bqh"}> : () -> ()
    %cst_80 = arith.constant dense<0.000000e+00> : vector<8x1x128xf32>
    %205 = tpu.matmul %204, %3, %cst_80 {dimension_numbers = #tpu.dot_dimension_numbers<[2], [1], [1], [2], [0, 0, 0, 1, 1, 2], [0], [0]>} : vector<8x1x128xf32>, vector<8x128x128xf32>, vector<8x1x128xf32> -> vector<8x1x128xf32>
    "tpu.trace_stop"() : () -> ()
    %206 = vector.shape_cast %205 : vector<8x1x128xf32> to vector<8x128xf32>
    %cst_81 = arith.constant dense<0.000000e+00> : vector<8x128xf32>
    %207 = tpu.matmul %206, %7, %cst_81 {dimension_numbers = #tpu.dot_dimension_numbers<[1], [0], [0], [1], [0, 0, 1, 1], [], []>} : vector<8x128xf32>, vector<128x128xf32>, vector<8x128xf32> -> vector<8x128xf32>
    %cst_82 = arith.constant dense<0.000000e+00> : vector<8x128xf32>
    %208 = tpu.matmul %187, %8, %cst_82 {dimension_numbers = #tpu.dot_dimension_numbers<[1], [0], [0], [1], [0, 0, 1, 1], [], []>} : vector<8x128xf32>, vector<128x128xf32>, vector<8x128xf32> -> vector<8x128xf32>
    %209 = arith.addf %207, %208 : vector<8x128xf32>
    %210 = math.tanh %209 : vector<8x128xf32>
    %211 = arith.index_cast %c3_i32 : i32 to index
    %c0_83 = arith.constant 0 : index
    %c0_84 = arith.constant 0 : index
    %212 = vector.load %arg13[%211, %c0_83, %c0_84] : memref<4x8x128xf32, #tpu.memory_space<vmem>>, vector<1x8x128xf32>
    %213 = vector.shape_cast %212 : vector<1x8x128xf32> to vector<8x128xf32>
    %214 = vector.shape_cast %210 : vector<8x128xf32> to vector<1x8x128xf32>
    tpu.vector_store %arg13[%211, %c0_83, %c0_84], %214 {strides = array<i32>} : memref<4x8x128xf32, #tpu.memory_space<vmem>>, vector<1x8x128xf32>,
    %c4_i32 = arith.constant 4 : i32
    %c0_85 = arith.constant 0 : index
    %c0_86 = arith.constant 0 : index
    %215 = vector.load %arg15[%c0_85, %c0_86] : memref<8x128xf32, #tpu.memory_space<vmem>>, vector<8x128xf32>
    tpu.vector_store %arg15[%c0_85, %c0_86], %210 {strides = array<i32>} : memref<8x128xf32, #tpu.memory_space<vmem>>, vector<8x128xf32>,
    %c0_87 = arith.constant 0 : index
    %c0_88 = arith.constant 0 : index
    %216 = vector.load %arg16[%c0_87, %c0_88] : memref<8x128xf32, #tpu.memory_space<vmem>>, vector<8x128xf32>
    tpu.vector_store %arg16[%c0_87, %c0_88], %185 {strides = array<i32>} : memref<8x128xf32, #tpu.memory_space<vmem>>, vector<8x128xf32>,
    %c1_i32_89 = arith.constant 1 : i32
    %217 = arith.cmpi eq, %arg1, %c1_i32_89 : i32
    %218 = arith.extui %217 : i1 to i32
    %c0_i32_90 = arith.constant 0 : i32
    %219 = arith.cmpi ne, %218, %c0_i32_90 : i32
    scf.if %219 {
      %c0_91 = arith.constant 0 : index
      %c0_92 = arith.constant 0 : index
      %220 = vector.load %arg14[%c0_91, %c0_92] : memref<8x128xf32, #tpu.memory_space<vmem>>, vector<8x128xf32>
      tpu.vector_store %arg14[%c0_91, %c0_92], %185 {strides = array<i32>} : memref<8x128xf32, #tpu.memory_space<vmem>>, vector<8x128xf32>,
    } else {
    }
    return
  }
  func.func @transform_0(%arg0: i32, %arg1: i32) -> (i32, i32, i32) {
    %c0_i32 = arith.constant 0 : i32
    %c0_i32_0 = arith.constant 0 : i32
    return %arg1, %arg0, %c0_i32 : i32, i32, i32
  }
  func.func @transform_1(%arg0: i32, %arg1: i32) -> (i32, i32) {
    %c0_i32 = arith.constant 0 : i32
    %c0_i32_0 = arith.constant 0 : i32
    return %arg0, %c0_i32 : i32, i32
  }
  func.func @transform_2(%arg0: i32, %arg1: i32) -> (i32, i32) {
    %c0_i32 = arith.constant 0 : i32
    %c0_i32_0 = arith.constant 0 : i32
    return %arg0, %c0_i32 : i32, i32
  }
  func.func @transform_3(%arg0: i32, %arg1: i32) -> (i32, i32, i32) {
    %c0_i32 = arith.constant 0 : i32
    %c0_i32_0 = arith.constant 0 : i32
    %c0_i32_1 = arith.constant 0 : i32
    return %arg0, %c0_i32, %c0_i32_0 : i32, i32, i32
  }
  func.func @transform_4(%arg0: i32, %arg1: i32) -> (i32, i32, i32) {
    %c0_i32 = arith.constant 0 : i32
    %c0_i32_0 = arith.constant 0 : i32
    %c0_i32_1 = arith.constant 0 : i32
    return %arg0, %c0_i32, %c0_i32_0 : i32, i32, i32
  }
  func.func @transform_5(%arg0: i32, %arg1: i32) -> (i32, i32) {
    %c0_i32 = arith.constant 0 : i32
    %c0_i32_0 = arith.constant 0 : i32
    %c0_i32_1 = arith.constant 0 : i32
    return %c0_i32, %c0_i32_0 : i32, i32
  }
  func.func @transform_6(%arg0: i32, %arg1: i32) -> (i32, i32) {
    %c0_i32 = arith.constant 0 : i32
    %c0_i32_0 = arith.constant 0 : i32
    %c0_i32_1 = arith.constant 0 : i32
    return %c0_i32, %c0_i32_0 : i32, i32
  }
  func.func @transform_7(%arg0: i32, %arg1: i32) -> (i32, i32) {
    %c0_i32 = arith.constant 0 : i32
    %c0_i32_0 = arith.constant 0 : i32
    %c0_i32_1 = arith.constant 0 : i32
    return %c0_i32, %c0_i32_0 : i32, i32
  }
  func.func @transform_8(%arg0: i32, %arg1: i32) -> (i32, i32) {
    %c0_i32 = arith.constant 0 : i32
    %c0_i32_0 = arith.constant 0 : i32
    %c0_i32_1 = arith.constant 0 : i32
    return %c0_i32, %c0_i32_0 : i32, i32
  }
  func.func @transform_9(%arg0: i32, %arg1: i32) -> (i32, i32) {
    %c0_i32 = arith.constant 0 : i32
    %c0_i32_0 = arith.constant 0 : i32
    %c0_i32_1 = arith.constant 0 : i32
    return %c0_i32, %c0_i32_0 : i32, i32
  }
  func.func @transform_10(%arg0: i32, %arg1: i32) -> (i32, i32) {
    %c0_i32 = arith.constant 0 : i32
    %c0_i32_0 = arith.constant 0 : i32
    %c0_i32_1 = arith.constant 0 : i32
    return %c0_i32, %c0_i32_0 : i32, i32
  }
  func.func @transform_11(%arg0: i32, %arg1: i32) -> (i32, i32, i32) {
    %c0_i32 = arith.constant 0 : i32
    %c0_i32_0 = arith.constant 0 : i32
    return %arg1, %arg0, %c0_i32 : i32, i32, i32
  }
  func.func @transform_12(%arg0: i32, %arg1: i32) -> (i32, i32) {
    %c0_i32 = arith.constant 0 : i32
    %c0_i32_0 = arith.constant 0 : i32
    return %arg0, %c0_i32 : i32, i32
  }
}

</mosaic_0001>

<llo_original>
// kernel: tpu_custom_call.1
$region0: #{tpu_custom_call.1}
  #allocation0 [shape = 'u32[]', space=smem, size = 0x4, offset = 0x4, fixed_abs, tag = 'smem constant byte address 0x4 - core index']
  #allocation1 [shape = 'u32[144,128]{1,0:T(1,128)}', space=vmem, size = 0x12000, scoped, tag = 'internal scratch']
  #allocation2 [shape = 'f32[8,128]{1,0:T(8,128)}', space=vmem, size = 0x1000, scoped, tag = 'scratch operand']
  #allocation3 [shape = 'f32[8,128]{1,0:T(8,128)}', space=vmem, size = 0x1000, scoped, tag = 'scratch operand']
  #allocation4 [shape = 'f32[4,8,512]{2,1,0:T(8,128)}', space=vmem, size = 0x10000, scoped, tag = 'scratch operand']
  %s0 = inlined_call_operand.hbm [shape: f32[8,8,128], index: 0, kind: input, shape index: {}]
  %s1 = inlined_call_operand.hbm [shape: f32[8,128], index: 1, kind: input, shape index: {}]
  %s2 = inlined_call_operand.hbm [shape: f32[8,128], index: 2, kind: input, shape index: {}]
  %s3 = inlined_call_operand.hbm [shape: f32[8,128,128], index: 3, kind: input, shape index: {}]
  %s4 = inlined_call_operand.hbm [shape: f32[8,128,128], index: 4, kind: input, shape index: {}]
  %s5 = inlined_call_operand.hbm [shape: f32[128,512], index: 5, kind: input, shape index: {}]
  %s6 = inlined_call_operand.hbm [shape: f32[128,512], index: 6, kind: input, shape index: {}]
  %s7 = inlined_call_operand.vmem [shape: f32[1,512], index: 7, kind: input, shape index: {}]
  %s8 = inlined_call_operand.hbm [shape: f32[128,128], index: 8, kind: input, shape index: {}]
  %s9 = inlined_call_operand.hbm [shape: f32[128,128], index: 9, kind: input, shape index: {}]
  %s10 = inlined_call_operand.hbm [shape: f32[128,128], index: 10, kind: input, shape index: {}]
  %s11 = inlined_call_operand.hbm [shape: f32[8,8,128], index: 11, kind: output, shape index: {0}]
  %s12 = inlined_call_operand.hbm [shape: f32[8,128], index: 12, kind: output, shape index: {1}]
  %13 = xla_tuple %s11, %s12
  %s14 = sld [smem:[#allocation0]]
  $region133: #{tpu_custom_call.1} parent=0
    _
  %s16 = ssub.s32 1, %s14
  %s17 = scalar_select 0, %s16, %s14
  $region1: #{tpu_custom_call.1} parent=0
    #allocation5 [shape = 'u8[32768]{0}', space=vmem, size = 0x8000, scoped, tag = 'input window, operand 0']
    #allocation6 [shape = 's32[2]{0}', space=sflag, size = 0x8, scoped, tag = 'scoped memory for tpu_custom_call.1']
    #allocation7 [shape = 's32[2]{0}', space=sflag, size = 0x8, scoped, tag = 'scoped memory for tpu_custom_call.1']
    #allocation8 [shape = 'u8[4096]{0}', space=vmem, size = 0x1000, scoped, tag = 'input window, operand 1, single buffered']
    #allocation9 [shape = 's32[1]{0}', space=sflag, size = 0x4, scoped, tag = 'scoped memory for tpu_custom_call.1']
    #allocation10 [shape = 'u8[4096]{0}', space=vmem, size = 0x1000, scoped, tag = 'input window, operand 2, single buffered']
    #allocation11 [shape = 'u8[524288]{0}', space=vmem, size = 0x80000, scoped, tag = 'input window, operand 3, single buffered']
    #allocation12 [shape = 's32[1]{0}', space=sflag, size = 0x4, scoped, tag = 'scoped memory for tpu_custom_call.1']
    #allocation13 [shape = 'u8[524288]{0}', space=vmem, size = 0x80000, scoped, tag = 'input window, operand 4, single buffered']
    #allocation14 [shape = 'u8[262144]{0}', space=vmem, size = 0x40000, scoped, tag = 'input window, operand 5, single buffered']
    #allocation15 [shape = 's32[1]{0}', space=sflag, size = 0x4, scoped, tag = 'scoped memory for tpu_custom_call.1']
    #allocation16 [shape = 'u8[262144]{0}', space=vmem, size = 0x40000, scoped, tag = 'input window, operand 6, single buffered']
    #allocation17 [shape = 'u8[65536]{0}', space=vmem, size = 0x10000, scoped, tag = 'input window, operand 8, single buffered']
    #allocation18 [shape = 's32[1]{0}', space=sflag, size = 0x4, scoped, tag = 'scoped memory for tpu_custom_call.1']
    #allocation19 [shape = 'u8[65536]{0}', space=vmem, size = 0x10000, scoped, tag = 'input window, operand 9, single buffered']
    #allocation20 [shape = 'u8[65536]{0}', space=vmem, size = 0x10000, scoped, tag = 'input window, operand 10, single buffered']
    #allocation21 [shape = 's32[1]{0}', space=sflag, size = 0x4, scoped, tag = 'scoped memory for tpu_custom_call.1']
    #allocation22 [shape = 'u8[32768]{0}', space=vmem, size = 0x8000, scoped, tag = 'output window, operand 0']
    #allocation23 [shape = 'u8[4096]{0}', space=vmem, size = 0x1000, scoped, tag = 'output window, operand 1, single buffered']
    #allocation24 [shape = 's32[1]{0}', space=sflag, size = 0x4, scoped, tag = 'scoped memory for tpu_custom_call.1']
    %18 = vsyncpa [#allocation6], 0
    %s19 = scalar_lea.sflag [#allocation6], 1
    %20 = vsyncpa %s19, 0
    %21 = vsyncpa [#allocation9], 0
    %22 = vsyncpa [#allocation12], 0
    %23 = vsyncpa [#allocation15], 0
    %24 = vsyncpa [#allocation18], 0
    %25 = vsyncpa [#allocation21], 0
    %26 = vsyncpa [#allocation7], 0
    %s27 = scalar_lea.sflag [#allocation7], 1
    %28 = vsyncpa %s27, 0
    %29 = vsyncpa [#allocation24], 0
    loop: start=0, step=1, limit=4
    $region2: #{tpu_custom_call.1} parent=1 // loop_pre_header
      _
    $region3: #{tpu_custom_call.1} parent=1 // loop_header
      %s31 = sphi 0, %s35
      %p32 = scmp.ge.s32.totalorder %s31, 4
      %s38 = sphi 0, %s50
      %s39 = sphi 0, %s46
      %s40 = sphi 0, %s38
      %s41 = sphi 0, %s39
      %s42 = sphi 0, %s40
      %s43 = sphi 0, %s41
      %s55 = sphi 0, %s57
      %s58 = sphi 0, %s55
      %s59 = sphi 0, %s58
      %s75 = sphi 0, %s59
      %s81 = sphi 0, %s83
      %s84 = sphi 0, %s81
      %s85 = sphi 0, %s84
      %s101 = sphi 0, %s85
      %s107 = sphi 0, %s109
      %s110 = sphi 0, %s107
      %s111 = sphi 0, %s110
      %s127 = sphi 0, %s111
      %s133 = sphi 0, %s135
      %s136 = sphi 0, %s133
      %s137 = sphi 0, %s136
      %s153 = sphi 0, %s137
      %s159 = sphi 0, %s161
      %s162 = sphi 0, %s159
      %s163 = sphi 0, %s162
      %s179 = sphi 0, %s163
      %s183 = sphi 0, %s183
      %s185 = sphi 0, %s183
      %s186 = sphi 0, %s185
      %s200 = sphi 0, %s186
      %s204 = sphi 0, %s204
      %s206 = sphi 0, %s204
      %s207 = sphi 0, %s206
      %s221 = sphi 0, %s207
      %s225 = sphi 0, %s225
      %s227 = sphi 0, %s225
      %s228 = sphi 0, %s227
      %s242 = sphi 0, %s228
      %s246 = sphi 0, %s246
      %s248 = sphi 0, %s246
      %s249 = sphi 0, %s248
      %s263 = sphi 0, %s249
      %s267 = sphi 0, %s267
      %s269 = sphi 0, %s267
      %s270 = sphi 0, %s269
      %s284 = sphi 0, %s270
      %s288 = sphi 0, %s288
      %s290 = sphi 0, %s288
      %s291 = sphi 0, %s290
      %s305 = sphi 0, %s291
      %s313 = sphi 0, %s315
      %s316 = sphi 0, %s313
      %s317 = sphi 0, %s316
      %s333 = sphi 0, %s317
      %s339 = sphi 0, %s341
      %s342 = sphi 0, %s339
      %s343 = sphi 0, %s342
      %s359 = sphi 0, %s343
    $region4: #{tpu_custom_call.1} parent=1 // loop_header_branch
      %34 = sbr.rel (%p32) target = $region8
    $region5: #{tpu_custom_call.1} parent=1 // loop_body
      %s36 = ssub.s32 %s31, 1
      %s37 = ssub.s32 %s31, 2
      %s44 = sadd.s32 1, %s39
      %p45 = scmp.ge.s32.totalorder %s44, 2
      %s46 = scalar_select %p45, 0, %s44
      %s47 = sadd.s32 1, %s38
      %s48 = scalar_select %p45, %s47, %s38
      %p49 = scmp.ge.s32.totalorder %s48, 1
      %s50 = scalar_select %p49, 0, %s48
      %s51 = ssub.s32 %s39, %s46
      %s52 = ssub.s32 %s38, %s50
      %s53 = sor.u32 %s51, %s52
      %p54 = scmp.eq.s32.totalorder %s53, 0
      %s56 = sadd.s32 %s55, 1
      %s57 = scalar_select %p54, %s55, %s56
      %p60 = pneg %p54
      %p61 = scmp.eq.s32.totalorder %s31, 1
      %p62 = por %p60, %p61
      %p63 = scmp.ne.s32.totalorder %s55, %s58
      %p64 = scmp.eq.s32.totalorder %s31, 0
      %p65 = por %p63, %p64
      %p66 = scmp.ne.s32.totalorder %s55, %s58
      %p67 = scmp.eq.s32.totalorder %s36, 1
      %p68 = por %p66, %p67
      %p69 = scmp.ne.s32.totalorder %s58, %s59
      %p70 = scmp.eq.s32.totalorder %s36, 0
      %p71 = por %p69, %p70
      %p72 = scmp.ne.s32.totalorder %s58, %s59
      %p73 = scmp.eq.s32.totalorder %s37, 1
      %p74 = por %p72, %p73
      %p76 = scmp.ne.s32.totalorder %s59, %s75
      %p77 = scmp.eq.s32.totalorder %s37, 0
      %p78 = por %p76, %p77
      %s79 = ssub.s32 %s38, %s50
      %p80 = scmp.eq.s32.totalorder %s79, 0
      %s82 = sadd.s32 %s81, 1
      %s83 = scalar_select %p80, %s81, %s82
      %p86 = pneg %p80
      %p87 = scmp.eq.s32.totalorder %s31, 1
      %p88 = por %p86, %p87
      %p89 = scmp.ne.s32.totalorder %s81, %s84
      %p90 = scmp.eq.s32.totalorder %s31, 0
      %p91 = por %p89, %p90
      %p92 = scmp.ne.s32.totalorder %s81, %s84
      %p93 = scmp.eq.s32.totalorder %s36, 1
      %p94 = por %p92, %p93
      %p95 = scmp.ne.s32.totalorder %s84, %s85
      %p96 = scmp.eq.s32.totalorder %s36, 0
      %p97 = por %p95, %p96
      %p98 = scmp.ne.s32.totalorder %s84, %s85
      %p99 = scmp.eq.s32.totalorder %s37, 1
      %p100 = por %p98, %p99
      %p102 = scmp.ne.s32.totalorder %s85, %s101
      %p103 = scmp.eq.s32.totalorder %s37, 0
      %p104 = por %p102, %p103
      %s105 = ssub.s32 %s38, %s50
      %p106 = scmp.eq.s32.totalorder %s105, 0
      %s108 = sadd.s32 %s107, 1
      %s109 = scalar_select %p106, %s107, %s108
      %p112 = pneg %p106
      %p113 = scmp.eq.s32.totalorder %s31, 1
      %p114 = por %p112, %p113
      %p115 = scmp.ne.s32.totalorder %s107, %s110
      %p116 = scmp.eq.s32.totalorder %s31, 0
      %p117 = por %p115, %p116
      %p118 = scmp.ne.s32.totalorder %s107, %s110
      %p119 = scmp.eq.s32.totalorder %s36, 1
      %p120 = por %p118, %p119
      %p121 = scmp.ne.s32.totalorder %s110, %s111
      %p122 = scmp.eq.s32.totalorder %s36, 0
      %p123 = por %p121, %p122
      %p124 = scmp.ne.s32.totalorder %s110, %s111
      %p125 = scmp.eq.s32.totalorder %s37, 1
      %p126 = por %p124, %p125
      %p128 = scmp.ne.s32.totalorder %s111, %s127
      %p129 = scmp.eq.s32.totalorder %s37, 0
      %p130 = por %p128, %p129
      %s131 = ssub.s32 %s38, %s50
      %p132 = scmp.eq.s32.totalorder %s131, 0
      %s134 = sadd.s32 %s133, 1
      %s135 = scalar_select %p132, %s133, %s134
      %p138 = pneg %p132
      %p139 = scmp.eq.s32.totalorder %s31, 1
      %p140 = por %p138, %p139
      %p141 = scmp.ne.s32.totalorder %s133, %s136
      %p142 = scmp.eq.s32.totalorder %s31, 0
      %p143 = por %p141, %p142
      %p144 = scmp.ne.s32.totalorder %s133, %s136
      %p145 = scmp.eq.s32.totalorder %s36, 1
      %p146 = por %p144, %p145
      %p147 = scmp.ne.s32.totalorder %s136, %s137
      %p148 = scmp.eq.s32.totalorder %s36, 0
      %p149 = por %p147, %p148
      %p150 = scmp.ne.s32.totalorder %s136, %s137
      %p151 = scmp.eq.s32.totalorder %s37, 1
      %p152 = por %p150, %p151
      %p154 = scmp.ne.s32.totalorder %s137, %s153
      %p155 = scmp.eq.s32.totalorder %s37, 0
      %p156 = por %p154, %p155
      %s157 = ssub.s32 %s38, %s50
      %p158 = scmp.eq.s32.totalorder %s157, 0
      %s160 = sadd.s32 %s159, 1
      %s161 = scalar_select %p158, %s159, %s160
      %p164 = pneg %p158
      %p165 = scmp.eq.s32.totalorder %s31, 1
      %p166 = por %p164, %p165
      %p167 = scmp.ne.s32.totalorder %s159, %s162
      %p168 = scmp.eq.s32.totalorder %s31, 0
      %p169 = por %p167, %p168
      %p170 = scmp.ne.s32.totalorder %s159, %s162
      %p171 = scmp.eq.s32.totalorder %s36, 1
      %p172 = por %p170, %p171
      %p173 = scmp.ne.s32.totalorder %s162, %s163
      %p174 = scmp.eq.s32.totalorder %s36, 0
      %p175 = por %p173, %p174
      %p176 = scmp.ne.s32.totalorder %s162, %s163
      %p177 = scmp.eq.s32.totalorder %s37, 1
      %p178 = por %p176, %p177
      %p180 = scmp.ne.s32.totalorder %s163, %s179
      %p181 = scmp.eq.s32.totalorder %s37, 0
      %p182 = por %p180, %p181
      %s184 = sadd.s32 %s183, 1
      %p187 = scmp.eq.s32.totalorder %s31, 1
      %p188 = scmp.ne.s32.totalorder %s183, %s185
      %p189 = scmp.eq.s32.totalorder %s31, 0
      %p190 = por %p188, %p189
      %p191 = scmp.ne.s32.totalorder %s183, %s185
      %p192 = scmp.eq.s32.totalorder %s36, 1
      %p193 = por %p191, %p192
      %p194 = scmp.ne.s32.totalorder %s185, %s186
      %p195 = scmp.eq.s32.totalorder %s36, 0
      %p196 = por %p194, %p195
      %p197 = scmp.ne.s32.totalorder %s185, %s186
      %p198 = scmp.eq.s32.totalorder %s37, 1
      %p199 = por %p197, %p198
      %p201 = scmp.ne.s32.totalorder %s186, %s200
      %p202 = scmp.eq.s32.totalorder %s37, 0
      %p203 = por %p201, %p202
      %s205 = sadd.s32 %s204, 1
      %p208 = scmp.eq.s32.totalorder %s31, 1
      %p209 = scmp.ne.s32.totalorder %s204, %s206
      %p210 = scmp.eq.s32.totalorder %s31, 0
      %p211 = por %p209, %p210
      %p212 = scmp.ne.s32.totalorder %s204, %s206
      %p213 = scmp.eq.s32.totalorder %s36, 1
      %p214 = por %p212, %p213
      %p215 = scmp.ne.s32.totalorder %s206, %s207
      %p216 = scmp.eq.s32.totalorder %s36, 0
      %p217 = por %p215, %p216
      %p218 = scmp.ne.s32.totalorder %s206, %s207
      %p219 = scmp.eq.s32.totalorder %s37, 1
      %p220 = por %p218, %p219
      %p222 = scmp.ne.s32.totalorder %s207, %s221
      %p223 = scmp.eq.s32.totalorder %s37, 0
      %p224 = por %p222, %p223
      %s226 = sadd.s32 %s225, 1
      %p229 = scmp.eq.s32.totalorder %s31, 1
      %p230 = scmp.ne.s32.totalorder %s225, %s227
      %p231 = scmp.eq.s32.totalorder %s31, 0
      %p232 = por %p230, %p231
      %p233 = scmp.ne.s32.totalorder %s225, %s227
      %p234 = scmp.eq.s32.totalorder %s36, 1
      %p235 = por %p233, %p234
      %p236 = scmp.ne.s32.totalorder %s227, %s228
      %p237 = scmp.eq.s32.totalorder %s36, 0
      %p238 = por %p236, %p237
      %p239 = scmp.ne.s32.totalorder %s227, %s228
      %p240 = scmp.eq.s32.totalorder %s37, 1
      %p241 = por %p239, %p240
      %p243 = scmp.ne.s32.totalorder %s228, %s242
      %p244 = scmp.eq.s32.totalorder %s37, 0
      %p245 = por %p243, %p244
      %s247 = sadd.s32 %s246, 1
      %p250 = scmp.eq.s32.totalorder %s31, 1
      %p251 = scmp.ne.s32.totalorder %s246, %s248
      %p252 = scmp.eq.s32.totalorder %s31, 0
      %p253 = por %p251, %p252
      %p254 = scmp.ne.s32.totalorder %s246, %s248
      %p255 = scmp.eq.s32.totalorder %s36, 1
      %p256 = por %p254, %p255
      %p257 = scmp.ne.s32.totalorder %s248, %s249
      %p258 = scmp.eq.s32.totalorder %s36, 0
      %p259 = por %p257, %p258
      %p260 = scmp.ne.s32.totalorder %s248, %s249
      %p261 = scmp.eq.s32.totalorder %s37, 1
      %p262 = por %p260, %p261
      %p264 = scmp.ne.s32.totalorder %s249, %s263
      %p265 = scmp.eq.s32.totalorder %s37, 0
      %p266 = por %p264, %p265
      %s268 = sadd.s32 %s267, 1
      %p271 = scmp.eq.s32.totalorder %s31, 1
      %p272 = scmp.ne.s32.totalorder %s267, %s269
      %p273 = scmp.eq.s32.totalorder %s31, 0
      %p274 = por %p272, %p273
      %p275 = scmp.ne.s32.totalorder %s267, %s269
      %p276 = scmp.eq.s32.totalorder %s36, 1
      %p277 = por %p275, %p276
      %p278 = scmp.ne.s32.totalorder %s269, %s270
      %p279 = scmp.eq.s32.totalorder %s36, 0
      %p280 = por %p278, %p279
      %p281 = scmp.ne.s32.totalorder %s269, %s270
      %p282 = scmp.eq.s32.totalorder %s37, 1
      %p283 = por %p281, %p282
      %p285 = scmp.ne.s32.totalorder %s270, %s284
      %p286 = scmp.eq.s32.totalorder %s37, 0
      %p287 = por %p285, %p286
      %s289 = sadd.s32 %s288, 1
      %p292 = scmp.eq.s32.totalorder %s31, 1
      %p293 = scmp.ne.s32.totalorder %s288, %s290
      %p294 = scmp.eq.s32.totalorder %s31, 0
      %p295 = por %p293, %p294
      %p296 = scmp.ne.s32.totalorder %s288, %s290
      %p297 = scmp.eq.s32.totalorder %s36, 1
      %p298 = por %p296, %p297
      %p299 = scmp.ne.s32.totalorder %s290, %s291
      %p300 = scmp.eq.s32.totalorder %s36, 0
      %p301 = por %p299, %p300
      %p302 = scmp.ne.s32.totalorder %s290, %s291
      %p303 = scmp.eq.s32.totalorder %s37, 1
      %p304 = por %p302, %p303
      %p306 = scmp.ne.s32.totalorder %s291, %s305
      %p307 = scmp.eq.s32.totalorder %s37, 0
      %p308 = por %p306, %p307
      %s309 = ssub.s32 %s39, %s46
      %s310 = ssub.s32 %s38, %s50
      %s311 = sor.u32 %s309, %s310
      %p312 = scmp.eq.s32.totalorder %s311, 0
      %s314 = sadd.s32 %s313, 1
      %s315 = scalar_select %p312, %s313, %s314
      %p318 = pneg %p312
      %p319 = scmp.eq.s32.totalorder %s31, 1
      %p320 = por %p318, %p319
      %p321 = scmp.ne.s32.totalorder %s313, %s316
      %p322 = scmp.eq.s32.totalorder %s31, 0
      %p323 = por %p321, %p322
      %p324 = scmp.ne.s32.totalorder %s313, %s316
      %p325 = scmp.eq.s32.totalorder %s36, 1
      %p326 = por %p324, %p325
      %p327 = scmp.ne.s32.totalorder %s316, %s317
      %p328 = scmp.eq.s32.totalorder %s36, 0
      %p329 = por %p327, %p328
      %p330 = scmp.ne.s32.totalorder %s316, %s317
      %p331 = scmp.eq.s32.totalorder %s37, 1
      %p332 = por %p330, %p331
      %p334 = scmp.ne.s32.totalorder %s317, %s333
      %p335 = scmp.eq.s32.totalorder %s37, 0
      %p336 = por %p334, %p335
      %s337 = ssub.s32 %s38, %s50
      %p338 = scmp.eq.s32.totalorder %s337, 0
      %s340 = sadd.s32 %s339, 1
      %s341 = scalar_select %p338, %s339, %s340
      %p344 = pneg %p338
      %p345 = scmp.eq.s32.totalorder %s31, 1
      %p346 = por %p344, %p345
      %p347 = scmp.ne.s32.totalorder %s339, %s342
      %p348 = scmp.eq.s32.totalorder %s31, 0
      %p349 = por %p347, %p348
      %p350 = scmp.ne.s32.totalorder %s339, %s342
      %p351 = scmp.eq.s32.totalorder %s36, 1
      %p352 = por %p350, %p351
      %p353 = scmp.ne.s32.totalorder %s342, %s343
      %p354 = scmp.eq.s32.totalorder %s36, 0
      %p355 = por %p353, %p354
      %p356 = scmp.ne.s32.totalorder %s342, %s343
      %p357 = scmp.eq.s32.totalorder %s37, 1
      %p358 = por %p356, %p357
      %p360 = scmp.ne.s32.totalorder %s343, %s359
      %p361 = scmp.eq.s32.totalorder %s37, 0
      %p362 = por %p360, %p361
      %p363 = scmp.le.s32.totalorder 1, %s31
      %p364 = scmp.lt.s32.totalorder %s31, 3
      %p365 = pnand %p363, %p364
      %p366 = pneg %p365
      // Predicated region
      $region9: #{tpu_custom_call.1} parent=5 // pred_check
        _
      $region10: #{tpu_custom_call.1} parent=5 // pred_check_branch
        %368 = sbr.rel (%p365) target = $region12
      $region11: #{tpu_custom_call.1} parent=5 // pred_region
        %s369 = ssub.s32 %s31, 1
        // Predicated region
        $region13: #{tpu_custom_call.1} parent=11 // pred_check
          %p370 = pneg %p97
        $region14: #{tpu_custom_call.1} parent=11 // pred_check_branch
          %372 = sbr.rel (%p370) target = $region16
        $region15: #{tpu_custom_call.1} parent=11 // pred_region
          %s374 = ssub.s32 128, 128
          %375 = vsyncadd [#allocation9], %s374
          %s376 = smul.addr %s40, 128
          %s377 = scalar_lea.hbm %s1, %s376
          %s379 = sshll.u32 [#allocation8], 4
          %s380 = int_to_ptr.vmem [resolvable:$true] %s379
          %382 = dma.hbm_to_vmem [thread:$0]  %s377, 128, %s380, [#allocation9]
        $region16: #{tpu_custom_call.1} parent=11 // pred_fallthru
          _
        // Predicated region
        $region17: #{tpu_custom_call.1} parent=11 // pred_check
          %p383 = pneg %p123
        $region18: #{tpu_custom_call.1} parent=11 // pred_check_branch
          %385 = sbr.rel (%p383) target = $region20
        $region19: #{tpu_custom_call.1} parent=11 // pred_region
          %s387 = ssub.s32 128, 128
          %388 = vsyncadd [#allocation9], %s387
          %s389 = smul.addr %s40, 128
          %s390 = scalar_lea.hbm %s2, %s389
          %s392 = sshll.u32 [#allocation10], 4
          %s393 = int_to_ptr.vmem [resolvable:$true] %s392
          %395 = dma.hbm_to_vmem [thread:$0]  %s390, 128, %s393, [#allocation9]
        $region20: #{tpu_custom_call.1} parent=11 // pred_fallthru
          _
        // Predicated region
        $region21: #{tpu_custom_call.1} parent=11 // pred_check
          %p396 = pneg %p149
        $region22: #{tpu_custom_call.1} parent=11 // pred_check_branch
          %398 = sbr.rel (%p396) target = $region24
        $region23: #{tpu_custom_call.1} parent=11 // pred_region
          %s399 = smul.u32 8, %s40
          %s401 = ssub.s32 16384, 16384
          %402 = vsyncadd [#allocation12], %s401
          %s403 = smul.addr %s399, 16
          %s404 = smul.addr %s403, 128
          %s405 = scalar_lea.hbm %s3, %s404
          %s406 = sshll.u32 [#allocation11], 4
          %s407 = int_to_ptr.vmem [resolvable:$true] %s406
          %412 = dma.hbm_to_vmem [thread:$0]  %s405, 16384, %s407, [#allocation12], 128, 128, 8
        $region24: #{tpu_custom_call.1} parent=11 // pred_fallthru
          _
        // Predicated region
        $region25: #{tpu_custom_call.1} parent=11 // pred_check
          %p413 = pneg %p175
        $region26: #{tpu_custom_call.1} parent=11 // pred_check_branch
          %415 = sbr.rel (%p413) target = $region28
        $region27: #{tpu_custom_call.1} parent=11 // pred_region
          %s416 = smul.u32 8, %s40
          %s418 = ssub.s32 16384, 16384
          %419 = vsyncadd [#allocation12], %s418
          %s420 = smul.addr %s416, 16
          %s421 = smul.addr %s420, 128
          %s422 = scalar_lea.hbm %s4, %s421
          %s423 = sshll.u32 [#allocation13], 4
          %s424 = int_to_ptr.vmem [resolvable:$true] %s423
          %429 = dma.hbm_to_vmem [thread:$0]  %s422, 16384, %s424, [#allocation12], 128, 128, 8
        $region28: #{tpu_custom_call.1} parent=11 // pred_fallthru
          _
        // Predicated region
        $region29: #{tpu_custom_call.1} parent=11 // pred_check
          %p430 = pneg %p196
        $region30: #{tpu_custom_call.1} parent=11 // pred_check_branch
          %432 = sbr.rel (%p430) target = $region32
        $region31: #{tpu_custom_call.1} parent=11 // pred_region
          %s434 = ssub.s32 8192, 8192
          %435 = vsyncadd [#allocation15], %s434
          %s436 = sshll.u32 [#allocation14], 4
          %s437 = int_to_ptr.vmem [resolvable:$true] %s436
          %442 = dma.hbm_to_vmem [thread:$0]  %s5, 8192, %s437, [#allocation15], 512, 512, 32
        $region32: #{tpu_custom_call.1} parent=11 // pred_fallthru
          _
        // Predicated region
        $region33: #{tpu_custom_call.1} parent=11 // pred_check
          %p443 = pneg %p217
        $region34: #{tpu_custom_call.1} parent=11 // pred_check_branch
          %445 = sbr.rel (%p443) target = $region36
        $region35: #{tpu_custom_call.1} parent=11 // pred_region
          %s447 = ssub.s32 8192, 8192
          %448 = vsyncadd [#allocation15], %s447
          %s449 = sshll.u32 [#allocation16], 4
          %s450 = int_to_ptr.vmem [resolvable:$true] %s449
          %455 = dma.hbm_to_vmem [thread:$0]  %s6, 8192, %s450, [#allocation15], 512, 512, 32
        $region36: #{tpu_custom_call.1} parent=11 // pred_fallthru
          _
        // Predicated region
        $region37: #{tpu_custom_call.1} parent=11 // pred_check
          %p456 = pneg %p238
        $region38: #{tpu_custom_call.1} parent=11 // pred_check_branch
          %458 = sbr.rel (%p456) target = $region40
        $region39: #{tpu_custom_call.1} parent=11 // pred_region
          _
        $region40: #{tpu_custom_call.1} parent=11 // pred_fallthru
          _
        // Predicated region
        $region41: #{tpu_custom_call.1} parent=11 // pred_check
          %p459 = pneg %p259
        $region42: #{tpu_custom_call.1} parent=11 // pred_check_branch
          %461 = sbr.rel (%p459) target = $region44
        $region43: #{tpu_custom_call.1} parent=11 // pred_region
          %s463 = ssub.s32 2048, 2048
          %464 = vsyncadd [#allocation18], %s463
          %s465 = sshll.u32 [#allocation17], 4
          %s466 = int_to_ptr.vmem [resolvable:$true] %s465
          %471 = dma.hbm_to_vmem [thread:$0]  %s8, 2048, %s466, [#allocation18], 128, 128, 8
        $region44: #{tpu_custom_call.1} parent=11 // pred_fallthru
          _
        // Predicated region
        $region45: #{tpu_custom_call.1} parent=11 // pred_check
          %p472 = pneg %p280
        $region46: #{tpu_custom_call.1} parent=11 // pred_check_branch
          %474 = sbr.rel (%p472) target = $region48
        $region47: #{tpu_custom_call.1} parent=11 // pred_region
          %s476 = ssub.s32 2048, 2048
          %477 = vsyncadd [#allocation18], %s476
          %s478 = sshll.u32 [#allocation19], 4
          %s479 = int_to_ptr.vmem [resolvable:$true] %s478
          %484 = dma.hbm_to_vmem [thread:$0]  %s9, 2048, %s479, [#allocation18], 128, 128, 8
        $region48: #{tpu_custom_call.1} parent=11 // pred_fallthru
          _
        // Predicated region
        $region49: #{tpu_custom_call.1} parent=11 // pred_check
          %p485 = pneg %p301
        $region50: #{tpu_custom_call.1} parent=11 // pred_check_branch
          %487 = sbr.rel (%p485) target = $region52
        $region51: #{tpu_custom_call.1} parent=11 // pred_region
          %s489 = ssub.s32 2048, 2048
          %490 = vsyncadd [#allocation21], %s489
          %s491 = sshll.u32 [#allocation20], 4
          %s492 = int_to_ptr.vmem [resolvable:$true] %s491
          %497 = dma.hbm_to_vmem [thread:$0]  %s10, 2048, %s492, [#allocation21], 128, 128, 8
        $region52: #{tpu_custom_call.1} parent=11 // pred_fallthru
          _
      $region12: #{tpu_custom_call.1} parent=5 // pred_fallthru
        _
      %p498 = scmp.lt.s32.totalorder %s31, 2
      // Predicated region
      $region53: #{tpu_custom_call.1} parent=5 // pred_check
        %p499 = pneg %p498
      $region54: #{tpu_custom_call.1} parent=5 // pred_check_branch
        %501 = sbr.rel (%p499) target = $region56
      $region55: #{tpu_custom_call.1} parent=5 // pred_region
        // Predicated region
        $region57: #{tpu_custom_call.1} parent=55 // pred_check
          %p502 = pneg %p65
        $region58: #{tpu_custom_call.1} parent=55 // pred_check_branch
          %504 = sbr.rel (%p502) target = $region60
        $region59: #{tpu_custom_call.1} parent=55 // pred_region
          %s505 = sand.u32 %s55, 1
          %s506 = scalar_lea.sflag [#allocation6], %s505
          %s507 = sand.u32 %s55, 1
          %s508 = smul.addr %s507, 32
          %s509 = scalar_lea.vmem [#allocation5], %s508
          %s510 = smul.u32 4, %s39
          %s512 = ssub.s32 512, 512
          %513 = vsyncadd %s506, %s512
          %s514 = sadd.s32 %s38, %s510
          %s515 = smul.addr %s514, 128
          %s516 = scalar_lea.hbm %s0, %s515
          %s517 = sshll.u32 %s509, 4
          %s518 = int_to_ptr.vmem [resolvable:$true] %s517
          %523 = dma.hbm_to_vmem [thread:$0]  %s516, 512, %s518, %s506, 128, 128, 8
        $region60: #{tpu_custom_call.1} parent=55 // pred_fallthru
          _
      $region56: #{tpu_custom_call.1} parent=5 // pred_fallthru
        _
      %p524 = scmp.le.s32.totalorder 1, %s31
      %p525 = scmp.lt.s32.totalorder %s31, 3
      %p526 = pnand %p524, %p525
      %p527 = pneg %p526
      // Predicated region
      $region61: #{tpu_custom_call.1} parent=5 // pred_check
        _
      $region62: #{tpu_custom_call.1} parent=5 // pred_check_branch
        %529 = sbr.rel (%p526) target = $region64
      $region63: #{tpu_custom_call.1} parent=5 // pred_region
        %s530 = ssub.s32 %s31, 1
        %s531 = sand.u32 %s58, 1
        %s532 = scalar_lea.sflag [#allocation6], %s531
        %s533 = sand.u32 %s58, 1
        %s534 = smul.addr %s533, 32
        %s535 = scalar_lea.vmem [#allocation5], %s534
        // Predicated region
        $region65: #{tpu_custom_call.1} parent=63 // pred_check
          %p536 = pneg %p71
        $region66: #{tpu_custom_call.1} parent=63 // pred_check_branch
          %538 = sbr.rel (%p536) target = $region68
        $region67: #{tpu_custom_call.1} parent=63 // pred_region
          %539 = dma.done %s532, 512
        $region68: #{tpu_custom_call.1} parent=63 // pred_fallthru
          _
        // Predicated region
        $region69: #{tpu_custom_call.1} parent=63 // pred_check
          %p540 = pneg %p97
        $region70: #{tpu_custom_call.1} parent=63 // pred_check_branch
          %542 = sbr.rel (%p540) target = $region72
        $region71: #{tpu_custom_call.1} parent=63 // pred_region
          %543 = dma.done [#allocation9], 128
        $region72: #{tpu_custom_call.1} parent=63 // pred_fallthru
          _
        // Predicated region
        $region73: #{tpu_custom_call.1} parent=63 // pred_check
          %p544 = pneg %p123
        $region74: #{tpu_custom_call.1} parent=63 // pred_check_branch
          %546 = sbr.rel (%p544) target = $region76
        $region75: #{tpu_custom_call.1} parent=63 // pred_region
          %547 = dma.done [#allocation9], 128
        $region76: #{tpu_custom_call.1} parent=63 // pred_fallthru
          _
        // Predicated region
        $region77: #{tpu_custom_call.1} parent=63 // pred_check
          %p548 = pneg %p149
        $region78: #{tpu_custom_call.1} parent=63 // pred_check_branch
          %550 = sbr.rel (%p548) target = $region80
        $region79: #{tpu_custom_call.1} parent=63 // pred_region
          %551 = dma.done [#allocation12], 16384
        $region80: #{tpu_custom_call.1} parent=63 // pred_fallthru
          _
        // Predicated region
        $region81: #{tpu_custom_call.1} parent=63 // pred_check
          %p552 = pneg %p175
        $region82: #{tpu_custom_call.1} parent=63 // pred_check_branch
          %554 = sbr.rel (%p552) target = $region84
        $region83: #{tpu_custom_call.1} parent=63 // pred_region
          %555 = dma.done [#allocation12], 16384
        $region84: #{tpu_custom_call.1} parent=63 // pred_fallthru
          _
        // Predicated region
        $region85: #{tpu_custom_call.1} parent=63 // pred_check
          %p556 = pneg %p196
        $region86: #{tpu_custom_call.1} parent=63 // pred_check_branch
          %558 = sbr.rel (%p556) target = $region88
        $region87: #{tpu_custom_call.1} parent=63 // pred_region
          %559 = dma.done [#allocation15], 8192
        $region88: #{tpu_custom_call.1} parent=63 // pred_fallthru
          _
        // Predicated region
        $region89: #{tpu_custom_call.1} parent=63 // pred_check
          %p560 = pneg %p217
        $region90: #{tpu_custom_call.1} parent=63 // pred_check_branch
          %562 = sbr.rel (%p560) target = $region92
        $region91: #{tpu_custom_call.1} parent=63 // pred_region
          %563 = dma.done [#allocation15], 8192
        $region92: #{tpu_custom_call.1} parent=63 // pred_fallthru
          _
        // Predicated region
        $region93: #{tpu_custom_call.1} parent=63 // pred_check
          %p564 = pneg %p259
        $region94: #{tpu_custom_call.1} parent=63 // pred_check_branch
          %566 = sbr.rel (%p564) target = $region96
        $region95: #{tpu_custom_call.1} parent=63 // pred_region
          %567 = dma.done [#allocation18], 2048
        $region96: #{tpu_custom_call.1} parent=63 // pred_fallthru
          _
        // Predicated region
        $region97: #{tpu_custom_call.1} parent=63 // pred_check
          %p568 = pneg %p280
        $region98: #{tpu_custom_call.1} parent=63 // pred_check_branch
          %570 = sbr.rel (%p568) target = $region100
        $region99: #{tpu_custom_call.1} parent=63 // pred_region
          %571 = dma.done [#allocation18], 2048
        $region100: #{tpu_custom_call.1} parent=63 // pred_fallthru
          _
        // Predicated region
        $region101: #{tpu_custom_call.1} parent=63 // pred_check
          %p572 = pneg %p301
        $region102: #{tpu_custom_call.1} parent=63 // pred_check_branch
          %574 = sbr.rel (%p572) target = $region104
        $region103: #{tpu_custom_call.1} parent=63 // pred_region
          %575 = dma.done [#allocation21], 2048
        $region104: #{tpu_custom_call.1} parent=63 // pred_fallthru
          _
        %s576 = sand.u32 %s58, 1
        %s577 = scalar_lea.sflag [#allocation6], %s576
        %s578 = sand.u32 %s58, 1
        %s579 = smul.addr %s578, 32
        %s580 = scalar_lea.vmem [#allocation5], %s579
        %p581 = pneg %p71
        %p582 = pneg %p68
        %p583 = pneg %p97
        %p584 = pneg %p94
        %p585 = pneg %p123
        %p586 = pneg %p120
        %p587 = pneg %p149
        %p588 = pneg %p146
        %p589 = pneg %p175
        %p590 = pneg %p172
        %p591 = pneg %p196
        %p592 = pneg %p193
        %p593 = pneg %p217
        %p594 = pneg %p214
        %p595 = pneg %p238
        %p596 = pneg %p235
        %p597 = pneg %p259
        %p598 = pneg %p256
        %p599 = pneg %p280
        %p600 = pneg %p277
        %p601 = pneg %p301
        %p602 = pneg %p298
        %p603 = pneg %p329
        %p604 = pneg %p326
        %s605 = sand.u32 %s316, 1
        %s606 = scalar_lea.sflag [#allocation7], %s605
        %s607 = sand.u32 %s316, 1
        %s608 = smul.addr %s607, 32
        %s609 = scalar_lea.vmem [#allocation22], %s608
        %p610 = pneg %p355
        %p611 = pneg %p352
        %s612 = smul.u32 4, %s41
        %s613 = smul.u32 8, %s40
        %s614 = smul.u32 8, %s40
        %s615 = smul.u32 4, %s41
        %p616 = scmp.eq.s32.totalorder %s41, 0
        // Predicated region
        $region105: #{tpu_custom_call.1} parent=63 // pred_check
          %p617 = pneg %p616
        $region106: #{tpu_custom_call.1} parent=63 // pred_check_branch
          %619 = sbr.rel (%p617) target = $region108
        $region107: #{tpu_custom_call.1} parent=63 // pred_region
          %v620 = vld [vmem:[#allocation8] sm:$0xff]
          %621 = vst [vmem:[#allocation2] sm:$0xff] %v620
          %v622 = vld [vmem:[#allocation10] sm:$0xff]
          %623 = vst [vmem:[#allocation3] sm:$0xff] %v622
        $region108: #{tpu_custom_call.1} parent=63 // pred_fallthru
          _
        %v624 = vld [vmem:[#allocation11] sm:$0xff]
        %v625 = vld [vmem:[#allocation11 + $0x8] sm:$0xff]
        %v626 = vld [vmem:[#allocation11 + $0x10] sm:$0xff]
        %v627 = vld [vmem:[#allocation11 + $0x18] sm:$0xff]
        %v628 = vld [vmem:[#allocation11 + $0x20] sm:$0xff]
        %v629 = vld [vmem:[#allocation11 + $0x28] sm:$0xff]
        %v630 = vld [vmem:[#allocation11 + $0x30] sm:$0xff]
        %v631 = vld [vmem:[#allocation11 + $0x38] sm:$0xff]
        %v632 = vld [vmem:[#allocation11 + $0x40] sm:$0xff]
        %v633 = vld [vmem:[#allocation11 + $0x48] sm:$0xff]
        %v634 = vld [vmem:[#allocation11 + $0x50] sm:$0xff]
        %v635 = vld [vmem:[#allocation11 + $0x58] sm:$0xff]
        %v636 = vld [vmem:[#allocation11 + $0x60] sm:$0xff]
        %v637 = vld [vmem:[#allocation11 + $0x68] sm:$0xff]
        %v638 = vld [vmem:[#allocation11 + $0x70] sm:$0xff]
        %v639 = vld [vmem:[#allocation11 + $0x78] sm:$0xff]
        %v640 = vld [vmem:[#allocation11 + $0x80] sm:$0xff]
        %v641 = vld [vmem:[#allocation11 + $0x88] sm:$0xff]
        %v642 = vld [vmem:[#allocation11 + $0x90] sm:$0xff]
        %v643 = vld [vmem:[#allocation11 + $0x98] sm:$0xff]
        %v644 = vld [vmem:[#allocation11 + $0xa0] sm:$0xff]
        %v645 = vld [vmem:[#allocation11 + $0xa8] sm:$0xff]
        %v646 = vld [vmem:[#allocation11 + $0xb0] sm:$0xff]
        %v647 = vld [vmem:[#allocation11 + $0xb8] sm:$0xff]
        %v648 = vld [vmem:[#allocation11 + $0xc0] sm:$0xff]
        %v649 = vld [vmem:[#allocation11 + $0xc8] sm:$0xff]
        %v650 = vld [vmem:[#allocation11 + $0xd0] sm:$0xff]
        %v651 = vld [vmem:[#allocation11 + $0xd8] sm:$0xff]
        %v652 = vld [vmem:[#allocation11 + $0xe0] sm:$0xff]
        %v653 = vld [vmem:[#allocation11 + $0xe8] sm:$0xff]
        %v654 = vld [vmem:[#allocation11 + $0xf0] sm:$0xff]
        %v655 = vld [vmem:[#allocation11 + $0xf8] sm:$0xff]
        %v656 = vld [vmem:[#allocation11 + $0x100] sm:$0xff]
        %v657 = vld [vmem:[#allocation11 + $0x108] sm:$0xff]
        %v658 = vld [vmem:[#allocation11 + $0x110] sm:$0xff]
        %v659 = vld [vmem:[#allocation11 + $0x118] sm:$0xff]
        %v660 = vld [vmem:[#allocation11 + $0x120] sm:$0xff]
        %v661 = vld [vmem:[#allocation11 + $0x128] sm:$0xff]
        %v662 = vld [vmem:[#allocation11 + $0x130] sm:$0xff]
        %v663 = vld [vmem:[#allocation11 + $0x138] sm:$0xff]
        %v664 = vld [vmem:[#allocation11 + $0x140] sm:$0xff]
        %v665 = vld [vmem:[#allocation11 + $0x148] sm:$0xff]
        %v666 = vld [vmem:[#allocation11 + $0x150] sm:$0xff]
        %v667 = vld [vmem:[#allocation11 + $0x158] sm:$0xff]
        %v668 = vld [vmem:[#allocation11 + $0x160] sm:$0xff]
        %v669 = vld [vmem:[#allocation11 + $0x168] sm:$0xff]
        %v670 = vld [vmem:[#allocation11 + $0x170] sm:$0xff]
        %v671 = vld [vmem:[#allocation11 + $0x178] sm:$0xff]
        %v672 = vld [vmem:[#allocation11 + $0x180] sm:$0xff]
        %v673 = vld [vmem:[#allocation11 + $0x188] sm:$0xff]
        %v674 = vld [vmem:[#allocation11 + $0x190] sm:$0xff]
        %v675 = vld [vmem:[#allocation11 + $0x198] sm:$0xff]
        %v676 = vld [vmem:[#allocation11 + $0x1a0] sm:$0xff]
        %v677 = vld [vmem:[#allocation11 + $0x1a8] sm:$0xff]
        %v678 = vld [vmem:[#allocation11 + $0x1b0] sm:$0xff]
        %v679 = vld [vmem:[#allocation11 + $0x1b8] sm:$0xff]
        %v680 = vld [vmem:[#allocation11 + $0x1c0] sm:$0xff]
        %v681 = vld [vmem:[#allocation11 + $0x1c8] sm:$0xff]
        %v682 = vld [vmem:[#allocation11 + $0x1d0] sm:$0xff]
        %v683 = vld [vmem:[#allocation11 + $0x1d8] sm:$0xff]
        %v684 = vld [vmem:[#allocation11 + $0x1e0] sm:$0xff]
        %v685 = vld [vmem:[#allocation11 + $0x1e8] sm:$0xff]
        %v686 = vld [vmem:[#allocation11 + $0x1f0] sm:$0xff]
        %v687 = vld [vmem:[#allocation11 + $0x1f8] sm:$0xff]
        %v688 = vld [vmem:[#allocation11 + $0x200] sm:$0xff]
        %v689 = vld [vmem:[#allocation11 + $0x208] sm:$0xff]
        %v690 = vld [vmem:[#allocation11 + $0x210] sm:$0xff]
        %v691 = vld [vmem:[#allocation11 + $0x218] sm:$0xff]
        %v692 = vld [vmem:[#allocation11 + $0x220] sm:$0xff]
        %v693 = vld [vmem:[#allocation11 + $0x228] sm:$0xff]
        %v694 = vld [vmem:[#allocation11 + $0x230] sm:$0xff]
        %v695 = vld [vmem:[#allocation11 + $0x238] sm:$0xff]
        %v696 = vld [vmem:[#allocation11 + $0x240] sm:$0xff]
        %v697 = vld [vmem:[#allocation11 + $0x248] sm:$0xff]
        %v698 = vld [vmem:[#allocation11 + $0x250] sm:$0xff]
        %v699 = vld [vmem:[#allocation11 + $0x258] sm:$0xff]
        %v700 = vld [vmem:[#allocation11 + $0x260] sm:$0xff]
        %v701 = vld [vmem:[#allocation11 + $0x268] sm:$0xff]
        %v702 = vld [vmem:[#allocation11 + $0x270] sm:$0xff]
        %v703 = vld [vmem:[#allocation11 + $0x278] sm:$0xff]
        %v704 = vld [vmem:[#allocation11 + $0x280] sm:$0xff]
        %v705 = vld [vmem:[#allocation11 + $0x288] sm:$0xff]
        %v706 = vld [vmem:[#allocation11 + $0x290] sm:$0xff]
        %v707 = vld [vmem:[#allocation11 + $0x298] sm:$0xff]
        %v708 = vld [vmem:[#allocation11 + $0x2a0] sm:$0xff]
        %v709 = vld [vmem:[#allocation11 + $0x2a8] sm:$0xff]
        %v710 = vld [vmem:[#allocation11 + $0x2b0] sm:$0xff]
        %v711 = vld [vmem:[#allocation11 + $0x2b8] sm:$0xff]
        %v712 = vld [vmem:[#allocation11 + $0x2c0] sm:$0xff]
        %v713 = vld [vmem:[#allocation11 + $0x2c8] sm:$0xff]
        %v714 = vld [vmem:[#allocation11 + $0x2d0] sm:$0xff]
        %v715 = vld [vmem:[#allocation11 + $0x2d8] sm:$0xff]
        %v716 = vld [vmem:[#allocation11 + $0x2e0] sm:$0xff]
        %v717 = vld [vmem:[#allocation11 + $0x2e8] sm:$0xff]
        %v718 = vld [vmem:[#allocation11 + $0x2f0] sm:$0xff]
        %v719 = vld [vmem:[#allocation11 + $0x2f8] sm:$0xff]
        %v720 = vld [vmem:[#allocation11 + $0x300] sm:$0xff]
        %v721 = vld [vmem:[#allocation11 + $0x308] sm:$0xff]
        %v722 = vld [vmem:[#allocation11 + $0x310] sm:$0xff]
        %v723 = vld [vmem:[#allocation11 + $0x318] sm:$0xff]
        %v724 = vld [vmem:[#allocation11 + $0x320] sm:$0xff]
        %v725 = vld [vmem:[#allocation11 + $0x328] sm:$0xff]
        %v726 = vld [vmem:[#allocation11 + $0x330] sm:$0xff]
        %v727 = vld [vmem:[#allocation11 + $0x338] sm:$0xff]
        %v728 = vld [vmem:[#allocation11 + $0x340] sm:$0xff]
        %v729 = vld [vmem:[#allocation11 + $0x348] sm:$0xff]
        %v730 = vld [vmem:[#allocation11 + $0x350] sm:$0xff]
        %v731 = vld [vmem:[#allocation11 + $0x358] sm:$0xff]
        %v732 = vld [vmem:[#allocation11 + $0x360] sm:$0xff]
        %v733 = vld [vmem:[#allocation11 + $0x368] sm:$0xff]
        %v734 = vld [vmem:[#allocation11 + $0x370] sm:$0xff]
        %v735 = vld [vmem:[#allocation11 + $0x378] sm:$0xff]
        %v736 = vld [vmem:[#allocation11 + $0x380] sm:$0xff]
        %v737 = vld [vmem:[#allocation11 + $0x388] sm:$0xff]
        %v738 = vld [vmem:[#allocation11 + $0x390] sm:$0xff]
        %v739 = vld [vmem:[#allocation11 + $0x398] sm:$0xff]
        %v740 = vld [vmem:[#allocation11 + $0x3a0] sm:$0xff]
        %v741 = vld [vmem:[#allocation11 + $0x3a8] sm:$0xff]
        %v742 = vld [vmem:[#allocation11 + $0x3b0] sm:$0xff]
        %v743 = vld [vmem:[#allocation11 + $0x3b8] sm:$0xff]
        %v744 = vld [vmem:[#allocation11 + $0x3c0] sm:$0xff]
        %v745 = vld [vmem:[#allocation11 + $0x3c8] sm:$0xff]
        %v746 = vld [vmem:[#allocation11 + $0x3d0] sm:$0xff]
        %v747 = vld [vmem:[#allocation11 + $0x3d8] sm:$0xff]
        %v748 = vld [vmem:[#allocation11 + $0x3e0] sm:$0xff]
        %v749 = vld [vmem:[#allocation11 + $0x3e8] sm:$0xff]
        %v750 = vld [vmem:[#allocation11 + $0x3f0] sm:$0xff]
        %v751 = vld [vmem:[#allocation11 + $0x3f8] sm:$0xff]
        %v752 = vld [vmem:[#allocation13] sm:$0xff]
        %v753 = vld [vmem:[#allocation13 + $0x8] sm:$0xff]
        %v754 = vld [vmem:[#allocation13 + $0x10] sm:$0xff]
        %v755 = vld [vmem:[#allocation13 + $0x18] sm:$0xff]
        %v756 = vld [vmem:[#allocation13 + $0x20] sm:$0xff]
        %v757 = vld [vmem:[#allocation13 + $0x28] sm:$0xff]
        %v758 = vld [vmem:[#allocation13 + $0x30] sm:$0xff]
        %v759 = vld [vmem:[#allocation13 + $0x38] sm:$0xff]
        %v760 = vld [vmem:[#allocation13 + $0x40] sm:$0xff]
        %v761 = vld [vmem:[#allocation13 + $0x48] sm:$0xff]
        %v762 = vld [vmem:[#allocation13 + $0x50] sm:$0xff]
        %v763 = vld [vmem:[#allocation13 + $0x58] sm:$0xff]
        %v764 = vld [vmem:[#allocation13 + $0x60] sm:$0xff]
        %v765 = vld [vmem:[#allocation13 + $0x68] sm:$0xff]
        %v766 = vld [vmem:[#allocation13 + $0x70] sm:$0xff]
        %v767 = vld [vmem:[#allocation13 + $0x78] sm:$0xff]
        %v768 = vld [vmem:[#allocation13 + $0x80] sm:$0xff]
        %v769 = vld [vmem:[#allocation13 + $0x88] sm:$0xff]
        %v770 = vld [vmem:[#allocation13 + $0x90] sm:$0xff]
        %v771 = vld [vmem:[#allocation13 + $0x98] sm:$0xff]
        %v772 = vld [vmem:[#allocation13 + $0xa0] sm:$0xff]
        %v773 = vld [vmem:[#allocation13 + $0xa8] sm:$0xff]
        %v774 = vld [vmem:[#allocation13 + $0xb0] sm:$0xff]
        %v775 = vld [vmem:[#allocation13 + $0xb8] sm:$0xff]
        %v776 = vld [vmem:[#allocation13 + $0xc0] sm:$0xff]
        %v777 = vld [vmem:[#allocation13 + $0xc8] sm:$0xff]
        %v778 = vld [vmem:[#allocation13 + $0xd0] sm:$0xff]
        %v779 = vld [vmem:[#allocation13 + $0xd8] sm:$0xff]
        %v780 = vld [vmem:[#allocation13 + $0xe0] sm:$0xff]
        %v781 = vld [vmem:[#allocation13 + $0xe8] sm:$0xff]
        %v782 = vld [vmem:[#allocation13 + $0xf0] sm:$0xff]
        %v783 = vld [vmem:[#allocation13 + $0xf8] sm:$0xff]
        %v784 = vld [vmem:[#allocation13 + $0x100] sm:$0xff]
        %v785 = vld [vmem:[#allocation13 + $0x108] sm:$0xff]
        %v786 = vld [vmem:[#allocation13 + $0x110] sm:$0xff]
        %v787 = vld [vmem:[#allocation13 + $0x118] sm:$0xff]
        %v788 = vld [vmem:[#allocation13 + $0x120] sm:$0xff]
        %v789 = vld [vmem:[#allocation13 + $0x128] sm:$0xff]
        %v790 = vld [vmem:[#allocation13 + $0x130] sm:$0xff]
        %v791 = vld [vmem:[#allocation13 + $0x138] sm:$0xff]
        %v792 = vld [vmem:[#allocation13 + $0x140] sm:$0xff]
        %v793 = vld [vmem:[#allocation13 + $0x148] sm:$0xff]
        %v794 = vld [vmem:[#allocation13 + $0x150] sm:$0xff]
        %v795 = vld [vmem:[#allocation13 + $0x158] sm:$0xff]
        %v796 = vld [vmem:[#allocation13 + $0x160] sm:$0xff]
        %v797 = vld [vmem:[#allocation13 + $0x168] sm:$0xff]
        %v798 = vld [vmem:[#allocation13 + $0x170] sm:$0xff]
        %v799 = vld [vmem:[#allocation13 + $0x178] sm:$0xff]
        %v800 = vld [vmem:[#allocation13 + $0x180] sm:$0xff]
        %v801 = vld [vmem:[#allocation13 + $0x188] sm:$0xff]
        %v802 = vld [vmem:[#allocation13 + $0x190] sm:$0xff]
        %v803 = vld [vmem:[#allocation13 + $0x198] sm:$0xff]
        %v804 = vld [vmem:[#allocation13 + $0x1a0] sm:$0xff]
        %v805 = vld [vmem:[#allocation13 + $0x1a8] sm:$0xff]
        %v806 = vld [vmem:[#allocation13 + $0x1b0] sm:$0xff]
        %v807 = vld [vmem:[#allocation13 + $0x1b8] sm:$0xff]
        %v808 = vld [vmem:[#allocation13 + $0x1c0] sm:$0xff]
        %v809 = vld [vmem:[#allocation13 + $0x1c8] sm:$0xff]
        %v810 = vld [vmem:[#allocation13 + $0x1d0] sm:$0xff]
        %v811 = vld [vmem:[#allocation13 + $0x1d8] sm:$0xff]
        %v812 = vld [vmem:[#allocation13 + $0x1e0] sm:$0xff]
        %v813 = vld [vmem:[#allocation13 + $0x1e8] sm:$0xff]
        %v814 = vld [vmem:[#allocation13 + $0x1f0] sm:$0xff]
        %v815 = vld [vmem:[#allocation13 + $0x1f8] sm:$0xff]
        %v816 = vld [vmem:[#allocation13 + $0x200] sm:$0xff]
        %v817 = vld [vmem:[#allocation13 + $0x208] sm:$0xff]
        %v818 = vld [vmem:[#allocation13 + $0x210] sm:$0xff]
        %v819 = vld [vmem:[#allocation13 + $0x218] sm:$0xff]
        %v820 = vld [vmem:[#allocation13 + $0x220] sm:$0xff]
        %v821 = vld [vmem:[#allocation13 + $0x228] sm:$0xff]
        %v822 = vld [vmem:[#allocation13 + $0x230] sm:$0xff]
        %v823 = vld [vmem:[#allocation13 + $0x238] sm:$0xff]
        %v824 = vld [vmem:[#allocation13 + $0x240] sm:$0xff]
        %v825 = vld [vmem:[#allocation13 + $0x248] sm:$0xff]
        %v826 = vld [vmem:[#allocation13 + $0x250] sm:$0xff]
        %v827 = vld [vmem:[#allocation13 + $0x258] sm:$0xff]
        %v828 = vld [vmem:[#allocation13 + $0x260] sm:$0xff]
        %v829 = vld [vmem:[#allocation13 + $0x268] sm:$0xff]
        %v830 = vld [vmem:[#allocation13 + $0x270] sm:$0xff]
        %v831 = vld [vmem:[#allocation13 + $0x278] sm:$0xff]
        %v832 = vld [vmem:[#allocation13 + $0x280] sm:$0xff]
        %v833 = vld [vmem:[#allocation13 + $0x288] sm:$0xff]
        %v834 = vld [vmem:[#allocation13 + $0x290] sm:$0xff]
        %v835 = vld [vmem:[#allocation13 + $0x298] sm:$0xff]
        %v836 = vld [vmem:[#allocation13 + $0x2a0] sm:$0xff]
        %v837 = vld [vmem:[#allocation13 + $0x2a8] sm:$0xff]
        %v838 = vld [vmem:[#allocation13 + $0x2b0] sm:$0xff]
        %v839 = vld [vmem:[#allocation13 + $0x2b8] sm:$0xff]
        %v840 = vld [vmem:[#allocation13 + $0x2c0] sm:$0xff]
        %v841 = vld [vmem:[#allocation13 + $0x2c8] sm:$0xff]
        %v842 = vld [vmem:[#allocation13 + $0x2d0] sm:$0xff]
        %v843 = vld [vmem:[#allocation13 + $0x2d8] sm:$0xff]
        %v844 = vld [vmem:[#allocation13 + $0x2e0] sm:$0xff]
        %v845 = vld [vmem:[#allocation13 + $0x2e8] sm:$0xff]
        %v846 = vld [vmem:[#allocation13 + $0x2f0] sm:$0xff]
        %v847 = vld [vmem:[#allocation13 + $0x2f8] sm:$0xff]
        %v848 = vld [vmem:[#allocation13 + $0x300] sm:$0xff]
        %v849 = vld [vmem:[#allocation13 + $0x308] sm:$0xff]
        %v850 = vld [vmem:[#allocation13 + $0x310] sm:$0xff]
        %v851 = vld [vmem:[#allocation13 + $0x318] sm:$0xff]
        %v852 = vld [vmem:[#allocation13 + $0x320] sm:$0xff]
        %v853 = vld [vmem:[#allocation13 + $0x328] sm:$0xff]
        %v854 = vld [vmem:[#allocation13 + $0x330] sm:$0xff]
        %v855 = vld [vmem:[#allocation13 + $0x338] sm:$0xff]
        %v856 = vld [vmem:[#allocation13 + $0x340] sm:$0xff]
        %v857 = vld [vmem:[#allocation13 + $0x348] sm:$0xff]
        %v858 = vld [vmem:[#allocation13 + $0x350] sm:$0xff]
        %v859 = vld [vmem:[#allocation13 + $0x358] sm:$0xff]
        %v860 = vld [vmem:[#allocation13 + $0x360] sm:$0xff]
        %v861 = vld [vmem:[#allocation13 + $0x368] sm:$0xff]
        %v862 = vld [vmem:[#allocation13 + $0x370] sm:$0xff]
        %v863 = vld [vmem:[#allocation13 + $0x378] sm:$0xff]
        %v864 = vld [vmem:[#allocation13 + $0x380] sm:$0xff]
        %v865 = vld [vmem:[#allocation13 + $0x388] sm:$0xff]
        %v866 = vld [vmem:[#allocation13 + $0x390] sm:$0xff]
        %v867 = vld [vmem:[#allocation13 + $0x398] sm:$0xff]
        %v868 = vld [vmem:[#allocation13 + $0x3a0] sm:$0xff]
        %v869 = vld [vmem:[#allocation13 + $0x3a8] sm:$0xff]
        %v870 = vld [vmem:[#allocation13 + $0x3b0] sm:$0xff]
        %v871 = vld [vmem:[#allocation13 + $0x3b8] sm:$0xff]
        %v872 = vld [vmem:[#allocation13 + $0x3c0] sm:$0xff]
        %v873 = vld [vmem:[#allocation13 + $0x3c8] sm:$0xff]
        %v874 = vld [vmem:[#allocation13 + $0x3d0] sm:$0xff]
        %v875 = vld [vmem:[#allocation13 + $0x3d8] sm:$0xff]
        %v876 = vld [vmem:[#allocation13 + $0x3e0] sm:$0xff]
        %v877 = vld [vmem:[#allocation13 + $0x3e8] sm:$0xff]
        %v878 = vld [vmem:[#allocation13 + $0x3f0] sm:$0xff]
        %v879 = vld [vmem:[#allocation13 + $0x3f8] sm:$0xff]
        %v880 = vld [vmem:[#allocation16] sm:$0xff]
        %v881 = vld [vmem:[#allocation16 + $0x8] sm:$0xff]
        %v882 = vld [vmem:[#allocation16 + $0x10] sm:$0xff]
        %v883 = vld [vmem:[#allocation16 + $0x18] sm:$0xff]
        %v884 = vld [vmem:[#allocation16 + $0x20] sm:$0xff]
        %v885 = vld [vmem:[#allocation16 + $0x28] sm:$0xff]
        %v886 = vld [vmem:[#allocation16 + $0x30] sm:$0xff]
        %v887 = vld [vmem:[#allocation16 + $0x38] sm:$0xff]
        %v888 = vld [vmem:[#allocation16 + $0x40] sm:$0xff]
        %v889 = vld [vmem:[#allocation16 + $0x48] sm:$0xff]
        %v890 = vld [vmem:[#allocation16 + $0x50] sm:$0xff]
        %v891 = vld [vmem:[#allocation16 + $0x58] sm:$0xff]
        %v892 = vld [vmem:[#allocation16 + $0x60] sm:$0xff]
        %v893 = vld [vmem:[#allocation16 + $0x68] sm:$0xff]
        %v894 = vld [vmem:[#allocation16 + $0x70] sm:$0xff]
        %v895 = vld [vmem:[#allocation16 + $0x78] sm:$0xff]
        %v896 = vld [vmem:[#allocation16 + $0x80] sm:$0xff]
        %v897 = vld [vmem:[#allocation16 + $0x88] sm:$0xff]
        %v898 = vld [vmem:[#allocation16 + $0x90] sm:$0xff]
        %v899 = vld [vmem:[#allocation16 + $0x98] sm:$0xff]
        %v900 = vld [vmem:[#allocation16 + $0xa0] sm:$0xff]
        %v901 = vld [vmem:[#allocation16 + $0xa8] sm:$0xff]
        %v902 = vld [vmem:[#allocation16 + $0xb0] sm:$0xff]
        %v903 = vld [vmem:[#allocation16 + $0xb8] sm:$0xff]
        %v904 = vld [vmem:[#allocation16 + $0xc0] sm:$0xff]
        %v905 = vld [vmem:[#allocation16 + $0xc8] sm:$0xff]
        %v906 = vld [vmem:[#allocation16 + $0xd0] sm:$0xff]
        %v907 = vld [vmem:[#allocation16 + $0xd8] sm:$0xff]
        %v908 = vld [vmem:[#allocation16 + $0xe0] sm:$0xff]
        %v909 = vld [vmem:[#allocation16 + $0xe8] sm:$0xff]
        %v910 = vld [vmem:[#allocation16 + $0xf0] sm:$0xff]
        %v911 = vld [vmem:[#allocation16 + $0xf8] sm:$0xff]
        %v912 = vld [vmem:[#allocation16 + $0x100] sm:$0xff]
        %v913 = vld [vmem:[#allocation16 + $0x108] sm:$0xff]
        %v914 = vld [vmem:[#allocation16 + $0x110] sm:$0xff]
        %v915 = vld [vmem:[#allocation16 + $0x118] sm:$0xff]
        %v916 = vld [vmem:[#allocation16 + $0x120] sm:$0xff]
        %v917 = vld [vmem:[#allocation16 + $0x128] sm:$0xff]
        %v918 = vld [vmem:[#allocation16 + $0x130] sm:$0xff]
        %v919 = vld [vmem:[#allocation16 + $0x138] sm:$0xff]
        %v920 = vld [vmem:[#allocation16 + $0x140] sm:$0xff]
        %v921 = vld [vmem:[#allocation16 + $0x148] sm:$0xff]
        %v922 = vld [vmem:[#allocation16 + $0x150] sm:$0xff]
        %v923 = vld [vmem:[#allocation16 + $0x158] sm:$0xff]
        %v924 = vld [vmem:[#allocation16 + $0x160] sm:$0xff]
        %v925 = vld [vmem:[#allocation16 + $0x168] sm:$0xff]
        %v926 = vld [vmem:[#allocation16 + $0x170] sm:$0xff]
        %v927 = vld [vmem:[#allocation16 + $0x178] sm:$0xff]
        %v928 = vld [vmem:[#allocation16 + $0x180] sm:$0xff]
        %v929 = vld [vmem:[#allocation16 + $0x188] sm:$0xff]
        %v930 = vld [vmem:[#allocation16 + $0x190] sm:$0xff]
        %v931 = vld [vmem:[#allocation16 + $0x198] sm:$0xff]
        %v932 = vld [vmem:[#allocation16 + $0x1a0] sm:$0xff]
        %v933 = vld [vmem:[#allocation16 + $0x1a8] sm:$0xff]
        %v934 = vld [vmem:[#allocation16 + $0x1b0] sm:$0xff]
        %v935 = vld [vmem:[#allocation16 + $0x1b8] sm:$0xff]
        %v936 = vld [vmem:[#allocation16 + $0x1c0] sm:$0xff]
        %v937 = vld [vmem:[#allocation16 + $0x1c8] sm:$0xff]
        %v938 = vld [vmem:[#allocation16 + $0x1d0] sm:$0xff]
        %v939 = vld [vmem:[#allocation16 + $0x1d8] sm:$0xff]
        %v940 = vld [vmem:[#allocation16 + $0x1e0] sm:$0xff]
        %v941 = vld [vmem:[#allocation16 + $0x1e8] sm:$0xff]
        %v942 = vld [vmem:[#allocation16 + $0x1f0] sm:$0xff]
        %v943 = vld [vmem:[#allocation16 + $0x1f8] sm:$0xff]
        %v944 = vld [vmem:[#allocation17] sm:$0xff]
        %v945 = vld [vmem:[#allocation17 + $0x8] sm:$0xff]
        %v946 = vld [vmem:[#allocation17 + $0x10] sm:$0xff]
        %v947 = vld [vmem:[#allocation17 + $0x18] sm:$0xff]
        %v948 = vld [vmem:[#allocation17 + $0x20] sm:$0xff]
        %v949 = vld [vmem:[#allocation17 + $0x28] sm:$0xff]
        %v950 = vld [vmem:[#allocation17 + $0x30] sm:$0xff]
        %v951 = vld [vmem:[#allocation17 + $0x38] sm:$0xff]
        %v952 = vld [vmem:[#allocation17 + $0x40] sm:$0xff]
        %v953 = vld [vmem:[#allocation17 + $0x48] sm:$0xff]
        %v954 = vld [vmem:[#allocation17 + $0x50] sm:$0xff]
        %v955 = vld [vmem:[#allocation17 + $0x58] sm:$0xff]
        %v956 = vld [vmem:[#allocation17 + $0x60] sm:$0xff]
        %v957 = vld [vmem:[#allocation17 + $0x68] sm:$0xff]
        %v958 = vld [vmem:[#allocation17 + $0x70] sm:$0xff]
        %v959 = vld [vmem:[#allocation17 + $0x78] sm:$0xff]
        %v960 = vld [vmem:[#allocation19] sm:$0xff]
        %v961 = vld [vmem:[#allocation19 + $0x8] sm:$0xff]
        %v962 = vld [vmem:[#allocation19 + $0x10] sm:$0xff]
        %v963 = vld [vmem:[#allocation19 + $0x18] sm:$0xff]
        %v964 = vld [vmem:[#allocation19 + $0x20] sm:$0xff]
        %v965 = vld [vmem:[#allocation19 + $0x28] sm:$0xff]
        %v966 = vld [vmem:[#allocation19 + $0x30] sm:$0xff]
        %v967 = vld [vmem:[#allocation19 + $0x38] sm:$0xff]
        %v968 = vld [vmem:[#allocation19 + $0x40] sm:$0xff]
        %v969 = vld [vmem:[#allocation19 + $0x48] sm:$0xff]
        %v970 = vld [vmem:[#allocation19 + $0x50] sm:$0xff]
        %v971 = vld [vmem:[#allocation19 + $0x58] sm:$0xff]
        %v972 = vld [vmem:[#allocation19 + $0x60] sm:$0xff]
        %v973 = vld [vmem:[#allocation19 + $0x68] sm:$0xff]
        %v974 = vld [vmem:[#allocation19 + $0x70] sm:$0xff]
        %v975 = vld [vmem:[#allocation19 + $0x78] sm:$0xff]
        %v976 = vld [vmem:[#allocation20] sm:$0xff]
        %v977 = vld [vmem:[#allocation20 + $0x8] sm:$0xff]
        %v978 = vld [vmem:[#allocation20 + $0x10] sm:$0xff]
        %v979 = vld [vmem:[#allocation20 + $0x18] sm:$0xff]
        %v980 = vld [vmem:[#allocation20 + $0x20] sm:$0xff]
        %v981 = vld [vmem:[#allocation20 + $0x28] sm:$0xff]
        %v982 = vld [vmem:[#allocation20 + $0x30] sm:$0xff]
        %v983 = vld [vmem:[#allocation20 + $0x38] sm:$0xff]
        %v984 = vld [vmem:[#allocation20 + $0x40] sm:$0xff]
        %v985 = vld [vmem:[#allocation20 + $0x48] sm:$0xff]
        %v986 = vld [vmem:[#allocation20 + $0x50] sm:$0xff]
        %v987 = vld [vmem:[#allocation20 + $0x58] sm:$0xff]
        %v988 = vld [vmem:[#allocation20 + $0x60] sm:$0xff]
        %v989 = vld [vmem:[#allocation20 + $0x68] sm:$0xff]
        %v990 = vld [vmem:[#allocation20 + $0x70] sm:$0xff]
        %v991 = vld [vmem:[#allocation20 + $0x78] sm:$0xff]
        %v992 = vld [vmem:[%s535] sm:$0xff]
        %v993 = vld [vmem:[%s535 + $0x8] sm:$0xff]
        %v994 = vld [vmem:[%s535 + $0x10] sm:$0xff]
        %v995 = vld [vmem:[%s535 + $0x18] sm:$0xff]
        %v996 = vld [vmem:[#allocation14] sm:$0xff]
        %v997 = vld [vmem:[#allocation14 + $0x8] sm:$0xff]
        %v998 = vld [vmem:[#allocation14 + $0x10] sm:$0xff]
        %v999 = vld [vmem:[#allocation14 + $0x18] sm:$0xff]
        %v1000 = vld [vmem:[#allocation14 + $0x20] sm:$0xff]
        %v1001 = vld [vmem:[#allocation14 + $0x28] sm:$0xff]
        %v1002 = vld [vmem:[#allocation14 + $0x30] sm:$0xff]
        %v1003 = vld [vmem:[#allocation14 + $0x38] sm:$0xff]
        %v1004 = vld [vmem:[#allocation14 + $0x40] sm:$0xff]
        %v1005 = vld [vmem:[#allocation14 + $0x48] sm:$0xff]
        %v1006 = vld [vmem:[#allocation14 + $0x50] sm:$0xff]
        %v1007 = vld [vmem:[#allocation14 + $0x58] sm:$0xff]
        %v1008 = vld [vmem:[#allocation14 + $0x60] sm:$0xff]
        %v1009 = vld [vmem:[#allocation14 + $0x68] sm:$0xff]
        %v1010 = vld [vmem:[#allocation14 + $0x70] sm:$0xff]
        %v1011 = vld [vmem:[#allocation14 + $0x78] sm:$0xff]
        %v1012 = vld [vmem:[#allocation14 + $0x80] sm:$0xff]
        %v1013 = vld [vmem:[#allocation14 + $0x88] sm:$0xff]
        %v1014 = vld [vmem:[#allocation14 + $0x90] sm:$0xff]
        %v1015 = vld [vmem:[#allocation14 + $0x98] sm:$0xff]
        %v1016 = vld [vmem:[#allocation14 + $0xa0] sm:$0xff]
        %v1017 = vld [vmem:[#allocation14 + $0xa8] sm:$0xff]
        %v1018 = vld [vmem:[#allocation14 + $0xb0] sm:$0xff]
        %v1019 = vld [vmem:[#allocation14 + $0xb8] sm:$0xff]
        %v1020 = vld [vmem:[#allocation14 + $0xc0] sm:$0xff]
        %v1021 = vld [vmem:[#allocation14 + $0xc8] sm:$0xff]
        %v1022 = vld [vmem:[#allocation14 + $0xd0] sm:$0xff]
        %v1023 = vld [vmem:[#allocation14 + $0xd8] sm:$0xff]
        %v1024 = vld [vmem:[#allocation14 + $0xe0] sm:$0xff]
        %v1025 = vld [vmem:[#allocation14 + $0xe8] sm:$0xff]
        %v1026 = vld [vmem:[#allocation14 + $0xf0] sm:$0xff]
        %v1027 = vld [vmem:[#allocation14 + $0xf8] sm:$0xff]
        %v1028 = vld [vmem:[#allocation14 + $0x100] sm:$0xff]
        %v1029 = vld [vmem:[#allocation14 + $0x108] sm:$0xff]
        %v1030 = vld [vmem:[#allocation14 + $0x110] sm:$0xff]
        %v1031 = vld [vmem:[#allocation14 + $0x118] sm:$0xff]
        %v1032 = vld [vmem:[#allocation14 + $0x120] sm:$0xff]
        %v1033 = vld [vmem:[#allocation14 + $0x128] sm:$0xff]
        %v1034 = vld [vmem:[#allocation14 + $0x130] sm:$0xff]
        %v1035 = vld [vmem:[#allocation14 + $0x138] sm:$0xff]
        %v1036 = vld [vmem:[#allocation14 + $0x140] sm:$0xff]
        %v1037 = vld [vmem:[#allocation14 + $0x148] sm:$0xff]
        %v1038 = vld [vmem:[#allocation14 + $0x150] sm:$0xff]
        %v1039 = vld [vmem:[#allocation14 + $0x158] sm:$0xff]
        %v1040 = vld [vmem:[#allocation14 + $0x160] sm:$0xff]
        %v1041 = vld [vmem:[#allocation14 + $0x168] sm:$0xff]
        %v1042 = vld [vmem:[#allocation14 + $0x170] sm:$0xff]
        %v1043 = vld [vmem:[#allocation14 + $0x178] sm:$0xff]
        %v1044 = vld [vmem:[#allocation14 + $0x180] sm:$0xff]
        %v1045 = vld [vmem:[#allocation14 + $0x188] sm:$0xff]
        %v1046 = vld [vmem:[#allocation14 + $0x190] sm:$0xff]
        %v1047 = vld [vmem:[#allocation14 + $0x198] sm:$0xff]
        %v1048 = vld [vmem:[#allocation14 + $0x1a0] sm:$0xff]
        %v1049 = vld [vmem:[#allocation14 + $0x1a8] sm:$0xff]
        %v1050 = vld [vmem:[#allocation14 + $0x1b0] sm:$0xff]
        %v1051 = vld [vmem:[#allocation14 + $0x1b8] sm:$0xff]
        %v1052 = vld [vmem:[#allocation14 + $0x1c0] sm:$0xff]
        %v1053 = vld [vmem:[#allocation14 + $0x1c8] sm:$0xff]
        %v1054 = vld [vmem:[#allocation14 + $0x1d0] sm:$0xff]
        %v1055 = vld [vmem:[#allocation14 + $0x1d8] sm:$0xff]
        %v1056 = vld [vmem:[#allocation14 + $0x1e0] sm:$0xff]
        %v1057 = vld [vmem:[#allocation14 + $0x1e8] sm:$0xff]
        %v1058 = vld [vmem:[#allocation14 + $0x1f0] sm:$0xff]
        %v1059 = vld [vmem:[#allocation14 + $0x1f8] sm:$0xff]
        %v1060 = vld [vmem:[%s7] sm:$0xf]
        %v1062 = vlaneseq
        %v1063 = vshrl.u32 %v1062, 7
        %v1064 = vsub.s32 0, %v1063
        %v1065 = vrot.slane %v1060, %v1064
        %v1066 = vlaneseq
        %v1067 = vshrl.u32 %v1066, 7
        %v1068 = vsub.s32 1, %v1067
        %v1069 = vrot.slane %v1060, %v1068
        %v1070 = vlaneseq
        %v1071 = vshrl.u32 %v1070, 7
        %v1072 = vsub.s32 2, %v1071
        %v1073 = vrot.slane %v1060, %v1072
        %v1074 = vlaneseq
        %v1075 = vshrl.u32 %v1074, 7
        %v1076 = vsub.s32 3, %v1075
        %v1077 = vrot.slane %v1060, %v1076
        %1082 = vmatprep.subr.mxu0 %v1057
        %1083 = vmatpush1.msra.mxu0 %v1056
        %1084 = vmatprep.subr.mxu0 %v1053
        %1085 = vmatpush1.msra.mxu0 %v1052
        %1086 = vmatprep.subr.mxu0 %v1049
        %1087 = vmatpush1.msra.mxu0 %v1048
        %1088 = vmatprep.subr.mxu0 %v1045
        %1089 = vmatpush1.msra.mxu0 %v1044
        %1090 = vmatprep.subr.mxu0 %v1041
        %1091 = vmatpush1.msra.mxu0 %v1040
        %1092 = vmatprep.subr.mxu0 %v1037
        %1093 = vmatpush1.msra.mxu0 %v1036
        %1094 = vmatprep.subr.mxu0 %v1033
        %1095 = vmatpush1.msra.mxu0 %v1032
        %1096 = vmatprep.subr.mxu0 %v1029
        %1097 = vmatpush1.msra.mxu0 %v1028
        %1098 = vmatprep.subr.mxu0 %v1025
        %1099 = vmatpush1.msra.mxu0 %v1024
        %1100 = vmatprep.subr.mxu0 %v1021
        %1101 = vmatpush1.msra.mxu0 %v1020
        %1102 = vmatprep.subr.mxu0 %v1017
        %1103 = vmatpush1.msra.mxu0 %v1016
        %1104 = vmatprep.subr.mxu0 %v1013
        %1105 = vmatpush1.msra.mxu0 %v1012
        %1106 = vmatprep.subr.mxu0 %v1009
        %1107 = vmatpush1.msra.mxu0 %v1008
        %1108 = vmatprep.subr.mxu0 %v1005
        %1109 = vmatpush1.msra.mxu0 %v1004
        %1110 = vmatprep.subr.mxu0 %v1001
        %1111 = vmatpush1.msra.mxu0 %v1000
        %1112 = vmatprep.subr.mxu0 %v997
        %1113 = vmatpush1.msra.mxu0 %v996
        %1114 = vmatprep.subr.mxu0 0.0
        %1115 = vmatpush2.msra.mxu0 0.0
        %1116 = vmatprep.subr.mxu0 0.0
        %1117 = vmatpush2.msra.mxu0 0.0
        %1118 = vmatprep.subr.mxu0 0.0
        %1119 = vmatpush2.msra.mxu0 0.0
        %1120 = vmatprep.subr.mxu0 0.0
        %1121 = vmatpush2.msra.mxu0 0.0
        %1122 = vmatprep.subr.mxu0 0.0
        %1123 = vmatpush2.msra.mxu0 0.0
        %1124 = vmatprep.subr.mxu0 0.0
        %1125 = vmatpush2.msra.mxu0 0.0
        %1126 = vmatprep.subr.mxu0 0.0
        %1127 = vmatpush2.msra.mxu0 0.0
        %1128 = vmatprep.subr.mxu0 0.0
        %1129 = vmatpush2.msra.mxu0 0.0
        %1130 = vmatprep.subr.mxu0 0.0
        %1131 = vmatpush2.msra.mxu0 0.0
        %1132 = vmatprep.subr.mxu0 0.0
        %1133 = vmatpush2.msra.mxu0 0.0
        %1134 = vmatprep.subr.mxu0 0.0
        %1135 = vmatpush2.msra.mxu0 0.0
        %1136 = vmatprep.subr.mxu0 0.0
        %1137 = vmatpush2.msra.mxu0 0.0
        %1138 = vmatprep.subr.mxu0 0.0
        %1139 = vmatpush2.msra.mxu0 0.0
        %1140 = vmatprep.subr.mxu0 0.0
        %1141 = vmatpush2.msra.mxu0 0.0
        %1142 = vmatprep.subr.mxu0 0.0
        %1143 = vmatpush2.msra.mxu0 0.0
        %1144 = vmatprep.subr.mxu0 0.0
        %1145 = vmatpush2.msra.mxu0 0.0
        %1146 = vmatprep.mubr.f32.mxu0 0.0
        %1147 = vmatmul.mubr.f32.gmra.mxu0 %v992
        %v1148 = vpop.f32.mrf.mxu0
        %v1149 = vadd.f32 %v1065, %v1148
        %v1150 = vpop.f32.mrf.mxu0
        %v1151 = vadd.f32 %v1069, %v1150
        %1152 = vmatprep.mubr.f32.mxu0 0.0
        %1153 = vmatmul.mubr.f32.gmra.mxu0 %v993
        %v1154 = vpop.f32.mrf.mxu0
        %v1155 = vadd.f32 %v1065, %v1154
        %v1156 = vpop.f32.mrf.mxu0
        %v1157 = vadd.f32 %v1069, %v1156
        %1158 = vmatprep.mubr.f32.mxu0 0.0
        %1159 = vmatmul.mubr.f32.gmra.mxu0 %v994
        %v1160 = vpop.f32.mrf.mxu0
        %v1161 = vadd.f32 %v1065, %v1160
        %v1162 = vpop.f32.mrf.mxu0
        %v1163 = vadd.f32 %v1069, %v1162
        %1164 = vmatprep.mubr.f32.mxu0 0.0
        %1165 = vmatmul.mubr.f32.gmra.mxu0 %v995
        %v1166 = vpop.f32.mrf.mxu0
        %v1167 = vadd.f32 %v1065, %v1166
        %v1168 = vpop.f32.mrf.mxu0
        %v1169 = vadd.f32 %v1069, %v1168
        %1170 = vdwg.mxu0
        %1171 = vmatprep.subr.mxu0 %v1059
        %1172 = vmatpush1.msra.mxu0 %v1058
        %1173 = vmatprep.subr.mxu0 %v1055
        %1174 = vmatpush1.msra.mxu0 %v1054
        %1175 = vmatprep.subr.mxu0 %v1051
        %1176 = vmatpush1.msra.mxu0 %v1050
        %1177 = vmatprep.subr.mxu0 %v1047
        %1178 = vmatpush1.msra.mxu0 %v1046
        %1179 = vmatprep.subr.mxu0 %v1043
        %1180 = vmatpush1.msra.mxu0 %v1042
        %1181 = vmatprep.subr.mxu0 %v1039
        %1182 = vmatpush1.msra.mxu0 %v1038
        %1183 = vmatprep.subr.mxu0 %v1035
        %1184 = vmatpush1.msra.mxu0 %v1034
        %1185 = vmatprep.subr.mxu0 %v1031
        %1186 = vmatpush1.msra.mxu0 %v1030
        %1187 = vmatprep.subr.mxu0 %v1027
        %1188 = vmatpush1.msra.mxu0 %v1026
        %1189 = vmatprep.subr.mxu0 %v1023
        %1190 = vmatpush1.msra.mxu0 %v1022
        %1191 = vmatprep.subr.mxu0 %v1019
        %1192 = vmatpush1.msra.mxu0 %v1018
        %1193 = vmatprep.subr.mxu0 %v1015
        %1194 = vmatpush1.msra.mxu0 %v1014
        %1195 = vmatprep.subr.mxu0 %v1011
        %1196 = vmatpush1.msra.mxu0 %v1010
        %1197 = vmatprep.subr.mxu0 %v1007
        %1198 = vmatpush1.msra.mxu0 %v1006
        %1199 = vmatprep.subr.mxu0 %v1003
        %1200 = vmatpush1.msra.mxu0 %v1002
        %1201 = vmatprep.subr.mxu0 %v999
        %1202 = vmatpush1.msra.mxu0 %v998
        %1203 = vmatprep.subr.mxu0 0.0
        %1204 = vmatpush2.msra.mxu0 0.0
        %1205 = vmatprep.subr.mxu0 0.0
        %1206 = vmatpush2.msra.mxu0 0.0
        %1207 = vmatprep.subr.mxu0 0.0
        %1208 = vmatpush2.msra.mxu0 0.0
        %1209 = vmatprep.subr.mxu0 0.0
        %1210 = vmatpush2.msra.mxu0 0.0
        %1211 = vmatprep.subr.mxu0 0.0
        %1212 = vmatpush2.msra.mxu0 0.0
        %1213 = vmatprep.subr.mxu0 0.0
        %1214 = vmatpush2.msra.mxu0 0.0
        %1215 = vmatprep.subr.mxu0 0.0
        %1216 = vmatpush2.msra.mxu0 0.0
        %1217 = vmatprep.subr.mxu0 0.0
        %1218 = vmatpush2.msra.mxu0 0.0
        %1219 = vmatprep.subr.mxu0 0.0
        %1220 = vmatpush2.msra.mxu0 0.0
        %1221 = vmatprep.subr.mxu0 0.0
        %1222 = vmatpush2.msra.mxu0 0.0
        %1223 = vmatprep.subr.mxu0 0.0
        %1224 = vmatpush2.msra.mxu0 0.0
        %1225 = vmatprep.subr.mxu0 0.0
        %1226 = vmatpush2.msra.mxu0 0.0
        %1227 = vmatprep.subr.mxu0 0.0
        %1228 = vmatpush2.msra.mxu0 0.0
        %1229 = vmatprep.subr.mxu0 0.0
        %1230 = vmatpush2.msra.mxu0 0.0
        %1231 = vmatprep.subr.mxu0 0.0
        %1232 = vmatpush2.msra.mxu0 0.0
        %1233 = vmatprep.subr.mxu0 0.0
        %1234 = vmatpush2.msra.mxu0 0.0
        %1235 = vmatprep.mubr.f32.mxu0 0.0
        %1236 = vmatmul.mubr.f32.gmra.mxu0 %v992
        %v1237 = vpop.f32.mrf.mxu0
        %v1238 = vadd.f32 %v1073, %v1237
        %v1239 = vpop.f32.mrf.mxu0
        %v1240 = vadd.f32 %v1077, %v1239
        %1241 = vmatprep.mubr.f32.mxu0 0.0
        %1242 = vmatmul.mubr.f32.gmra.mxu0 %v993
        %v1243 = vpop.f32.mrf.mxu0
        %v1244 = vadd.f32 %v1073, %v1243
        %v1245 = vpop.f32.mrf.mxu0
        %v1246 = vadd.f32 %v1077, %v1245
        %1247 = vmatprep.mubr.f32.mxu0 0.0
        %1248 = vmatmul.mubr.f32.gmra.mxu0 %v994
        %v1249 = vpop.f32.mrf.mxu0
        %v1250 = vadd.f32 %v1073, %v1249
        %v1251 = vpop.f32.mrf.mxu0
        %v1252 = vadd.f32 %v1077, %v1251
        %1253 = vmatprep.mubr.f32.mxu0 0.0
        %1254 = vmatmul.mubr.f32.gmra.mxu0 %v995
        %v1255 = vpop.f32.mrf.mxu0
        %v1256 = vadd.f32 %v1073, %v1255
        %v1257 = vpop.f32.mrf.mxu0
        %v1258 = vadd.f32 %v1077, %v1257
        %1259 = vdwg.mxu0
        %1260 = vst [vmem:[#allocation4] sm:$0xff] %v1149
        %1261 = vst [vmem:[#allocation4 + $0x8] sm:$0xff] %v1151
        %1262 = vst [vmem:[#allocation4 + $0x10] sm:$0xff] %v1238
        %1263 = vst [vmem:[#allocation4 + $0x18] sm:$0xff] %v1240
        %1264 = vst [vmem:[#allocation4 + $0x20] sm:$0xff] %v1155
        %1265 = vst [vmem:[#allocation4 + $0x28] sm:$0xff] %v1157
        %1266 = vst [vmem:[#allocation4 + $0x30] sm:$0xff] %v1244
        %1267 = vst [vmem:[#allocation4 + $0x38] sm:$0xff] %v1246
        %1268 = vst [vmem:[#allocation4 + $0x40] sm:$0xff] %v1161
        %1269 = vst [vmem:[#allocation4 + $0x48] sm:$0xff] %v1163
        %1270 = vst [vmem:[#allocation4 + $0x50] sm:$0xff] %v1250
        %1271 = vst [vmem:[#allocation4 + $0x58] sm:$0xff] %v1252
        %1272 = vst [vmem:[#allocation4 + $0x60] sm:$0xff] %v1167
        %1273 = vst [vmem:[#allocation4 + $0x68] sm:$0xff] %v1169
        %1274 = vst [vmem:[#allocation4 + $0x70] sm:$0xff] %v1256
        %1275 = vst [vmem:[#allocation4 + $0x78] sm:$0xff] %v1258
        %v1276 = vlaneseq
        %v1277 = vand.u32 %v1276, 127
        %vm1278 = vcmp.lt.s32.totalorder %v1277, 8
        %v1279 = vld [vmem:[#allocation2] sm:$0xff]
        %v1280 = vld [vmem:[#allocation3] sm:$0xff]
        %v1281 = vld [vmem:[#allocation4] sm:$0xff]
        %v1282 = vld [vmem:[#allocation4 + $0x8] sm:$0xff]
        %v1283 = vld [vmem:[#allocation4 + $0x10] sm:$0xff]
        %v1284 = vld [vmem:[#allocation4 + $0x18] sm:$0xff]
        %1285 = vmatprep.subr.mxu0 %v941
        %1286 = vmatpush1.msra.mxu0 %v940
        %1287 = vmatprep.subr.mxu0 %v937
        %1288 = vmatpush1.msra.mxu0 %v936
        %1289 = vmatprep.subr.mxu0 %v933
        %1290 = vmatpush1.msra.mxu0 %v932
        %1291 = vmatprep.subr.mxu0 %v929
        %1292 = vmatpush1.msra.mxu0 %v928
        %1293 = vmatprep.subr.mxu0 %v925
        %1294 = vmatpush1.msra.mxu0 %v924
        %1295 = vmatprep.subr.mxu0 %v921
        %1296 = vmatpush1.msra.mxu0 %v920
        %1297 = vmatprep.subr.mxu0 %v917
        %1298 = vmatpush1.msra.mxu0 %v916
        %1299 = vmatprep.subr.mxu0 %v913
        %1300 = vmatpush1.msra.mxu0 %v912
        %1301 = vmatprep.subr.mxu0 %v909
        %1302 = vmatpush1.msra.mxu0 %v908
        %1303 = vmatprep.subr.mxu0 %v905
        %1304 = vmatpush1.msra.mxu0 %v904
        %1305 = vmatprep.subr.mxu0 %v901
        %1306 = vmatpush1.msra.mxu0 %v900
        %1307 = vmatprep.subr.mxu0 %v897
        %1308 = vmatpush1.msra.mxu0 %v896
        %1309 = vmatprep.subr.mxu0 %v893
        %1310 = vmatpush1.msra.mxu0 %v892
        %1311 = vmatprep.subr.mxu0 %v889
        %1312 = vmatpush1.msra.mxu0 %v888
        %1313 = vmatprep.subr.mxu0 %v885
        %1314 = vmatpush1.msra.mxu0 %v884
        %1315 = vmatprep.subr.mxu0 %v881
        %1316 = vmatpush1.msra.mxu0 %v880
        %1317 = vmatprep.subr.mxu0 0.0
        %1318 = vmatpush2.msra.mxu0 0.0
        %1319 = vmatprep.subr.mxu0 0.0
        %1320 = vmatpush2.msra.mxu0 0.0
        %1321 = vmatprep.subr.mxu0 0.0
        %1322 = vmatpush2.msra.mxu0 0.0
        %1323 = vmatprep.subr.mxu0 0.0
        %1324 = vmatpush2.msra.mxu0 0.0
        %1325 = vmatprep.subr.mxu0 0.0
        %1326 = vmatpush2.msra.mxu0 0.0
        %1327 = vmatprep.subr.mxu0 0.0
        %1328 = vmatpush2.msra.mxu0 0.0
        %1329 = vmatprep.subr.mxu0 0.0
        %1330 = vmatpush2.msra.mxu0 0.0
        %1331 = vmatprep.subr.mxu0 0.0
        %1332 = vmatpush2.msra.mxu0 0.0
        %1333 = vmatprep.subr.mxu0 0.0
        %1334 = vmatpush2.msra.mxu0 0.0
        %1335 = vmatprep.subr.mxu0 0.0
        %1336 = vmatpush2.msra.mxu0 0.0
        %1337 = vmatprep.subr.mxu0 0.0
        %1338 = vmatpush2.msra.mxu0 0.0
        %1339 = vmatprep.subr.mxu0 0.0
        %1340 = vmatpush2.msra.mxu0 0.0
        %1341 = vmatprep.subr.mxu0 0.0
        %1342 = vmatpush2.msra.mxu0 0.0
        %1343 = vmatprep.subr.mxu0 0.0
        %1344 = vmatpush2.msra.mxu0 0.0
        %1345 = vmatprep.subr.mxu0 0.0
        %1346 = vmatpush2.msra.mxu0 0.0
        %1347 = vmatprep.subr.mxu0 0.0
        %1348 = vmatpush2.msra.mxu0 0.0
        %1349 = vmatprep.mubr.f32.mxu0 0.0
        %1350 = vmatmul.mubr.f32.gmra.mxu0 %v1279
        %v1351 = vpop.f32.mrf.mxu0
        %v1352 = vadd.f32 0.0, %v1351
        %v1353 = vpop.f32.mrf.mxu0
        %v1354 = vadd.f32 0.0, %v1353
        %1355 = vdwg.mxu0
        %1356 = vmatprep.subr.mxu0 %v943
        %1357 = vmatpush1.msra.mxu0 %v942
        %1358 = vmatprep.subr.mxu0 %v939
        %1359 = vmatpush1.msra.mxu0 %v938
        %1360 = vmatprep.subr.mxu0 %v935
        %1361 = vmatpush1.msra.mxu0 %v934
        %1362 = vmatprep.subr.mxu0 %v931
        %1363 = vmatpush1.msra.mxu0 %v930
        %1364 = vmatprep.subr.mxu0 %v927
        %1365 = vmatpush1.msra.mxu0 %v926
        %1366 = vmatprep.subr.mxu0 %v923
        %1367 = vmatpush1.msra.mxu0 %v922
        %1368 = vmatprep.subr.mxu0 %v919
        %1369 = vmatpush1.msra.mxu0 %v918
        %1370 = vmatprep.subr.mxu0 %v915
        %1371 = vmatpush1.msra.mxu0 %v914
        %1372 = vmatprep.subr.mxu0 %v911
        %1373 = vmatpush1.msra.mxu0 %v910
        %1374 = vmatprep.subr.mxu0 %v907
        %1375 = vmatpush1.msra.mxu0 %v906
        %1376 = vmatprep.subr.mxu0 %v903
        %1377 = vmatpush1.msra.mxu0 %v902
        %1378 = vmatprep.subr.mxu0 %v899
        %1379 = vmatpush1.msra.mxu0 %v898
        %1380 = vmatprep.subr.mxu0 %v895
        %1381 = vmatpush1.msra.mxu0 %v894
        %1382 = vmatprep.subr.mxu0 %v891
        %1383 = vmatpush1.msra.mxu0 %v890
        %1384 = vmatprep.subr.mxu0 %v887
        %1385 = vmatpush1.msra.mxu0 %v886
        %1386 = vmatprep.subr.mxu0 %v883
        %1387 = vmatpush1.msra.mxu0 %v882
        %1388 = vmatprep.subr.mxu0 0.0
        %1389 = vmatpush2.msra.mxu0 0.0
        %1390 = vmatprep.subr.mxu0 0.0
        %1391 = vmatpush2.msra.mxu0 0.0
        %1392 = vmatprep.subr.mxu0 0.0
        %1393 = vmatpush2.msra.mxu0 0.0
        %1394 = vmatprep.subr.mxu0 0.0
        %1395 = vmatpush2.msra.mxu0 0.0
        %1396 = vmatprep.subr.mxu0 0.0
        %1397 = vmatpush2.msra.mxu0 0.0
        %1398 = vmatprep.subr.mxu0 0.0
        %1399 = vmatpush2.msra.mxu0 0.0
        %1400 = vmatprep.subr.mxu0 0.0
        %1401 = vmatpush2.msra.mxu0 0.0
        %1402 = vmatprep.subr.mxu0 0.0
        %1403 = vmatpush2.msra.mxu0 0.0
        %1404 = vmatprep.subr.mxu0 0.0
        %1405 = vmatpush2.msra.mxu0 0.0
        %1406 = vmatprep.subr.mxu0 0.0
        %1407 = vmatpush2.msra.mxu0 0.0
        %1408 = vmatprep.subr.mxu0 0.0
        %1409 = vmatpush2.msra.mxu0 0.0
        %1410 = vmatprep.subr.mxu0 0.0
        %1411 = vmatpush2.msra.mxu0 0.0
        %1412 = vmatprep.subr.mxu0 0.0
        %1413 = vmatpush2.msra.mxu0 0.0
        %1414 = vmatprep.subr.mxu0 0.0
        %1415 = vmatpush2.msra.mxu0 0.0
        %1416 = vmatprep.subr.mxu0 0.0
        %1417 = vmatpush2.msra.mxu0 0.0
        %1418 = vmatprep.subr.mxu0 0.0
        %1419 = vmatpush2.msra.mxu0 0.0
        %1420 = vmatprep.mubr.f32.mxu0 0.0
        %1421 = vmatmul.mubr.f32.gmra.mxu0 %v1279
        %v1422 = vpop.f32.mrf.mxu0
        %v1423 = vadd.f32 0.0, %v1422
        %v1424 = vpop.f32.mrf.mxu0
        %v1425 = vadd.f32 0.0, %v1424
        %1426 = vdwg.mxu0
        %v1427 = vadd.f32 %v1281, %v1352
        %v1428 = vadd.f32 %v1282, %v1354
        %v1429 = vadd.f32 %v1283, %v1423
        %v1430 = vadd.f32 %v1284, %v1425
        %v1431 = vxor.u32 %v1427, 2147483648
        %v1432 = vxor.u32 %v1428, 2147483648
        %v1433 = vxor.u32 %v1429, 2147483648
        %v1434 = vmul.f32 %v1431, 1.442695
        %v1435 = vpow.pop %v1434
        %v1436 = vmul.f32 %v1432, 1.442695
        %v1437 = vpow.pop %v1436
        %v1438 = vmul.f32 %v1433, 1.442695
        %v1439 = vpow.pop %v1438
        %v1440 = vadd.f32 %v1435, 1.0
        %v1441 = vadd.f32 %v1437, 1.0
        %v1442 = vadd.f32 %v1439, 1.0
        %v1443 = vrcp.pop %v1440
        %v1444 = vmul.f32 1.0, %v1443
        %v1445 = vrcp.pop %v1441
        %v1446 = vmul.f32 1.0, %v1445
        %v1447 = vrcp.pop %v1442
        %v1448 = vmul.f32 1.0, %v1447
        %v1449 = vtanh.pop %v1430
        %v1450 = vmul.f32 %v1446, %v1280
        %v1451 = vmul.f32 %v1444, %v1449
        %v1452 = vadd.f32 %v1450, %v1451
        %v1453 = vtanh.pop %v1452
        %v1454 = vmul.f32 %v1448, %v1453
        %1455 = vmatprep.subr.mxu0 0.0
        %1456 = vmatpush1.msra.mxu0 %v959
        %1457 = vmatprep.subr.mxu0 0.0
        %1458 = vmatpush1.msra.mxu0 %v958
        %1459 = vmatprep.subr.mxu0 0.0
        %1460 = vmatpush1.msra.mxu0 %v957
        %1461 = vmatprep.subr.mxu0 0.0
        %1462 = vmatpush1.msra.mxu0 %v956
        %1463 = vmatprep.subr.mxu0 0.0
        %1464 = vmatpush1.msra.mxu0 %v955
        %1465 = vmatprep.subr.mxu0 0.0
        %1466 = vmatpush1.msra.mxu0 %v954
        %1467 = vmatprep.subr.mxu0 0.0
        %1468 = vmatpush1.msra.mxu0 %v953
        %1469 = vmatprep.subr.mxu0 0.0
        %1470 = vmatpush1.msra.mxu0 %v952
        %1471 = vmatprep.subr.mxu0 0.0
        %1472 = vmatpush1.msra.mxu0 %v951
        %1473 = vmatprep.subr.mxu0 0.0
        %1474 = vmatpush1.msra.mxu0 %v950
        %1475 = vmatprep.subr.mxu0 0.0
        %1476 = vmatpush1.msra.mxu0 %v949
        %1477 = vmatprep.subr.mxu0 0.0
        %1478 = vmatpush1.msra.mxu0 %v948
        %1479 = vmatprep.subr.mxu0 0.0
        %1480 = vmatpush1.msra.mxu0 %v947
        %1481 = vmatprep.subr.mxu0 0.0
        %1482 = vmatpush1.msra.mxu0 %v946
        %1483 = vmatprep.subr.mxu0 0.0
        %1484 = vmatpush1.msra.mxu0 %v945
        %1485 = vmatprep.subr.mxu0 0.0
        %1486 = vmatpush1.msra.mxu0 %v944
        %1487 = vmatprep.subr.mxu0 0.0
        %1488 = vmatpush2.msra.mxu0 0.0
        %1489 = vmatprep.subr.mxu0 0.0
        %1490 = vmatpush2.msra.mxu0 0.0
        %1491 = vmatprep.subr.mxu0 0.0
        %1492 = vmatpush2.msra.mxu0 0.0
        %1493 = vmatprep.subr.mxu0 0.0
        %1494 = vmatpush2.msra.mxu0 0.0
        %1495 = vmatprep.subr.mxu0 0.0
        %1496 = vmatpush2.msra.mxu0 0.0
        %1497 = vmatprep.subr.mxu0 0.0
        %1498 = vmatpush2.msra.mxu0 0.0
        %1499 = vmatprep.subr.mxu0 0.0
        %1500 = vmatpush2.msra.mxu0 0.0
        %1501 = vmatprep.subr.mxu0 0.0
        %1502 = vmatpush2.msra.mxu0 0.0
        %1503 = vmatprep.subr.mxu0 0.0
        %1504 = vmatpush2.msra.mxu0 0.0
        %1505 = vmatprep.subr.mxu0 0.0
        %1506 = vmatpush2.msra.mxu0 0.0
        %1507 = vmatprep.subr.mxu0 0.0
        %1508 = vmatpush2.msra.mxu0 0.0
        %1509 = vmatprep.subr.mxu0 0.0
        %1510 = vmatpush2.msra.mxu0 0.0
        %1511 = vmatprep.subr.mxu0 0.0
        %1512 = vmatpush2.msra.mxu0 0.0
        %1513 = vmatprep.subr.mxu0 0.0
        %1514 = vmatpush2.msra.mxu0 0.0
        %1515 = vmatprep.subr.mxu0 0.0
        %1516 = vmatpush2.msra.mxu0 0.0
        %1517 = vmatprep.subr.mxu0 0.0
        %1518 = vmatpush2.msra.mxu0 0.0
        %1519 = vmatprep.mubr.f32.mxu0 0.0
        %1520 = vmatmul.mubr.f32.gmra.mxu0 %v1454
        %v1521 = vpop.f32.mrf.mxu0
        %v1522 = vadd.f32 0.0, %v1521
        %v1523 = vpop.f32.mrf.mxu0
        %1524 = vdwg.mxu0
        %v1526 = vcombine.high %v1522, %v1522
        %v1528 = vunpack.c.l.s4 1966171168
        %v1529 = vunpack.c.0.s8 %v1528
        %v1530 = vlaneseq
        %v1531 = vshrl.u32 %v1530, 7
        %v1532 = vsub.s32 %v1529, %v1531
        %v1533 = vrot.slane %v1522, %v1532
        %v1535 = vunpack.c.l.s4 1966171168
        %v1536 = vunpack.c.0.s8 %v1535
        %v1537 = vlaneseq
        %v1538 = vshrl.u32 %v1537, 7
        %v1539 = vsub.s32 %v1536, %v1538
        %v1540 = vrot.slane %v1526, %v1539
        %v1541 = vcombine.high %v1533, %v1533
        %v1542 = vcombine.high %v1540, %v1540
        %v1544 = vunpack.c.l.s4 1966171168
        %v1545 = vunpack.c.0.s8 %v1544
        %v1546 = vlaneseq
        %v1547 = vshrl.u32 %v1546, 7
        %v1548 = vsub.s32 %v1545, %v1547
        %v1549 = vrot.slane %v1533, %v1548
        %v1551 = vunpack.c.l.s4 1966171168
        %v1552 = vunpack.c.0.s8 %v1551
        %v1553 = vlaneseq
        %v1554 = vshrl.u32 %v1553, 7
        %v1555 = vsub.s32 %v1552, %v1554
        %v1556 = vrot.slane %v1540, %v1555
        %v1558 = vunpack.c.l.s4 1966171168
        %v1559 = vunpack.c.0.s8 %v1558
        %v1560 = vlaneseq
        %v1561 = vshrl.u32 %v1560, 7
        %v1562 = vsub.s32 %v1559, %v1561
        %v1563 = vrot.slane %v1541, %v1562
        %v1565 = vunpack.c.l.s4 1966171168
        %v1566 = vunpack.c.0.s8 %v1565
        %v1567 = vlaneseq
        %v1568 = vshrl.u32 %v1567, 7
        %v1569 = vsub.s32 %v1566, %v1568
        %v1570 = vrot.slane %v1542, %v1569
        %v1571 = vcombine.high %v1549, %v1549
        %v1572 = vcombine.high %v1556, %v1556
        %v1573 = vcombine.high %v1563, %v1563
        %v1574 = vcombine.high %v1570, %v1570
        %1583 = vmatprep.subr.mxu0 0.0
        %1584 = vmatpush1.msra.mxu0 %v767
        %1585 = vmatprep.subr.mxu0 0.0
        %1586 = vmatpush1.msra.mxu0 %v766
        %1587 = vmatprep.subr.mxu0 0.0
        %1588 = vmatpush1.msra.mxu0 %v765
        %1589 = vmatprep.subr.mxu0 0.0
        %1590 = vmatpush1.msra.mxu0 %v764
        %1591 = vmatprep.subr.mxu0 0.0
        %1592 = vmatpush1.msra.mxu0 %v763
        %1593 = vmatprep.subr.mxu0 0.0
        %1594 = vmatpush1.msra.mxu0 %v762
        %1595 = vmatprep.subr.mxu0 0.0
        %1596 = vmatpush1.msra.mxu0 %v761
        %1597 = vmatprep.subr.mxu0 0.0
        %1598 = vmatpush1.msra.mxu0 %v760
        %1599 = vmatprep.subr.mxu0 0.0
        %1600 = vmatpush1.msra.mxu0 %v759
        %1601 = vmatprep.subr.mxu0 0.0
        %1602 = vmatpush1.msra.mxu0 %v758
        %1603 = vmatprep.subr.mxu0 0.0
        %1604 = vmatpush1.msra.mxu0 %v757
        %1605 = vmatprep.subr.mxu0 0.0
        %1606 = vmatpush1.msra.mxu0 %v756
        %1607 = vmatprep.subr.mxu0 0.0
        %1608 = vmatpush1.msra.mxu0 %v755
        %1609 = vmatprep.subr.mxu0 0.0
        %1610 = vmatpush1.msra.mxu0 %v754
        %1611 = vmatprep.subr.mxu0 0.0
        %1612 = vmatpush1.msra.mxu0 %v753
        %1613 = vmatprep.subr.mxu0 0.0
        %1614 = vmatpush1.msra.mxu0 %v752
        %1615 = vmatprep.subr.mxu0 0.0
        %1616 = vmatpush2.msra.mxu0 0.0
        %1617 = vmatprep.subr.mxu0 0.0
        %1618 = vmatpush2.msra.mxu0 0.0
        %1619 = vmatprep.subr.mxu0 0.0
        %1620 = vmatpush2.msra.mxu0 0.0
        %1621 = vmatprep.subr.mxu0 0.0
        %1622 = vmatpush2.msra.mxu0 0.0
        %1623 = vmatprep.subr.mxu0 0.0
        %1624 = vmatpush2.msra.mxu0 0.0
        %1625 = vmatprep.subr.mxu0 0.0
        %1626 = vmatpush2.msra.mxu0 0.0
        %1627 = vmatprep.subr.mxu0 0.0
        %1628 = vmatpush2.msra.mxu0 0.0
        %1629 = vmatprep.subr.mxu0 0.0
        %1630 = vmatpush2.msra.mxu0 0.0
        %1631 = vmatprep.subr.mxu0 0.0
        %1632 = vmatpush2.msra.mxu0 0.0
        %1633 = vmatprep.subr.mxu0 0.0
        %1634 = vmatpush2.msra.mxu0 0.0
        %1635 = vmatprep.subr.mxu0 0.0
        %1636 = vmatpush2.msra.mxu0 0.0
        %1637 = vmatprep.subr.mxu0 0.0
        %1638 = vmatpush2.msra.mxu0 0.0
        %1639 = vmatprep.subr.mxu0 0.0
        %1640 = vmatpush2.msra.mxu0 0.0
        %1641 = vmatprep.subr.mxu0 0.0
        %1642 = vmatpush2.msra.mxu0 0.0
        %1643 = vmatprep.subr.mxu0 0.0
        %1644 = vmatpush2.msra.mxu0 0.0
        %1645 = vmatprep.subr.mxu0 0.0
        %1646 = vmatpush2.msra.mxu0 0.0
        %1647 = vmatprep.mubr.f32.mxu0 0.0
        %1648 = vmatmul.mubr.f32.gmra.mxu0 %v1549
        %v1649 = vpop.f32.mrf.mxu0
        %v1650 = vadd.f32 0.0, %v1649
        %v1651 = vpop.f32.mrf.mxu0
        %1652 = vdwg.mxu0
        %1653 = vmatprep.subr.mxu0 0.0
        %1654 = vmatpush1.msra.mxu0 %v783
        %1655 = vmatprep.subr.mxu0 0.0
        %1656 = vmatpush1.msra.mxu0 %v782
        %1657 = vmatprep.subr.mxu0 0.0
        %1658 = vmatpush1.msra.mxu0 %v781
        %1659 = vmatprep.subr.mxu0 0.0
        %1660 = vmatpush1.msra.mxu0 %v780
        %1661 = vmatprep.subr.mxu0 0.0
        %1662 = vmatpush1.msra.mxu0 %v779
        %1663 = vmatprep.subr.mxu0 0.0
        %1664 = vmatpush1.msra.mxu0 %v778
        %1665 = vmatprep.subr.mxu0 0.0
        %1666 = vmatpush1.msra.mxu0 %v777
        %1667 = vmatprep.subr.mxu0 0.0
        %1668 = vmatpush1.msra.mxu0 %v776
        %1669 = vmatprep.subr.mxu0 0.0
        %1670 = vmatpush1.msra.mxu0 %v775
        %1671 = vmatprep.subr.mxu0 0.0
        %1672 = vmatpush1.msra.mxu0 %v774
        %1673 = vmatprep.subr.mxu0 0.0
        %1674 = vmatpush1.msra.mxu0 %v773
        %1675 = vmatprep.subr.mxu0 0.0
        %1676 = vmatpush1.msra.mxu0 %v772
        %1677 = vmatprep.subr.mxu0 0.0
        %1678 = vmatpush1.msra.mxu0 %v771
        %1679 = vmatprep.subr.mxu0 0.0
        %1680 = vmatpush1.msra.mxu0 %v770
        %1681 = vmatprep.subr.mxu0 0.0
        %1682 = vmatpush1.msra.mxu0 %v769
        %1683 = vmatprep.subr.mxu0 0.0
        %1684 = vmatpush1.msra.mxu0 %v768
        %1685 = vmatprep.subr.mxu0 0.0
        %1686 = vmatpush2.msra.mxu0 0.0
        %1687 = vmatprep.subr.mxu0 0.0
        %1688 = vmatpush2.msra.mxu0 0.0
        %1689 = vmatprep.subr.mxu0 0.0
        %1690 = vmatpush2.msra.mxu0 0.0
        %1691 = vmatprep.subr.mxu0 0.0
        %1692 = vmatpush2.msra.mxu0 0.0
        %1693 = vmatprep.subr.mxu0 0.0
        %1694 = vmatpush2.msra.mxu0 0.0
        %1695 = vmatprep.subr.mxu0 0.0
        %1696 = vmatpush2.msra.mxu0 0.0
        %1697 = vmatprep.subr.mxu0 0.0
        %1698 = vmatpush2.msra.mxu0 0.0
        %1699 = vmatprep.subr.mxu0 0.0
        %1700 = vmatpush2.msra.mxu0 0.0
        %1701 = vmatprep.subr.mxu0 0.0
        %1702 = vmatpush2.msra.mxu0 0.0
        %1703 = vmatprep.subr.mxu0 0.0
        %1704 = vmatpush2.msra.mxu0 0.0
        %1705 = vmatprep.subr.mxu0 0.0
        %1706 = vmatpush2.msra.mxu0 0.0
        %1707 = vmatprep.subr.mxu0 0.0
        %1708 = vmatpush2.msra.mxu0 0.0
        %1709 = vmatprep.subr.mxu0 0.0
        %1710 = vmatpush2.msra.mxu0 0.0
        %1711 = vmatprep.subr.mxu0 0.0
        %1712 = vmatpush2.msra.mxu0 0.0
        %1713 = vmatprep.subr.mxu0 0.0
        %1714 = vmatpush2.msra.mxu0 0.0
        %1715 = vmatprep.subr.mxu0 0.0
        %1716 = vmatpush2.msra.mxu0 0.0
        %1717 = vmatprep.mubr.f32.mxu0 0.0
        %1718 = vmatmul.mubr.f32.gmra.mxu0 %v1563
        %v1719 = vpop.f32.mrf.mxu0
        %v1720 = vadd.f32 0.0, %v1719
        %v1721 = vpop.f32.mrf.mxu0
        %1722 = vdwg.mxu0
        %1723 = vmatprep.subr.mxu0 0.0
        %1724 = vmatpush1.msra.mxu0 %v799
        %1725 = vmatprep.subr.mxu0 0.0
        %1726 = vmatpush1.msra.mxu0 %v798
        %1727 = vmatprep.subr.mxu0 0.0
        %1728 = vmatpush1.msra.mxu0 %v797
        %1729 = vmatprep.subr.mxu0 0.0
        %1730 = vmatpush1.msra.mxu0 %v796
        %1731 = vmatprep.subr.mxu0 0.0
        %1732 = vmatpush1.msra.mxu0 %v795
        %1733 = vmatprep.subr.mxu0 0.0
        %1734 = vmatpush1.msra.mxu0 %v794
        %1735 = vmatprep.subr.mxu0 0.0
        %1736 = vmatpush1.msra.mxu0 %v793
        %1737 = vmatprep.subr.mxu0 0.0
        %1738 = vmatpush1.msra.mxu0 %v792
        %1739 = vmatprep.subr.mxu0 0.0
        %1740 = vmatpush1.msra.mxu0 %v791
        %1741 = vmatprep.subr.mxu0 0.0
        %1742 = vmatpush1.msra.mxu0 %v790
        %1743 = vmatprep.subr.mxu0 0.0
        %1744 = vmatpush1.msra.mxu0 %v789
        %1745 = vmatprep.subr.mxu0 0.0
        %1746 = vmatpush1.msra.mxu0 %v788
        %1747 = vmatprep.subr.mxu0 0.0
        %1748 = vmatpush1.msra.mxu0 %v787
        %1749 = vmatprep.subr.mxu0 0.0
        %1750 = vmatpush1.msra.mxu0 %v786
        %1751 = vmatprep.subr.mxu0 0.0
        %1752 = vmatpush1.msra.mxu0 %v785
        %1753 = vmatprep.subr.mxu0 0.0
        %1754 = vmatpush1.msra.mxu0 %v784
        %1755 = vmatprep.subr.mxu0 0.0
        %1756 = vmatpush2.msra.mxu0 0.0
        %1757 = vmatprep.subr.mxu0 0.0
        %1758 = vmatpush2.msra.mxu0 0.0
        %1759 = vmatprep.subr.mxu0 0.0
        %1760 = vmatpush2.msra.mxu0 0.0
        %1761 = vmatprep.subr.mxu0 0.0
        %1762 = vmatpush2.msra.mxu0 0.0
        %1763 = vmatprep.subr.mxu0 0.0
        %1764 = vmatpush2.msra.mxu0 0.0
        %1765 = vmatprep.subr.mxu0 0.0
        %1766 = vmatpush2.msra.mxu0 0.0
        %1767 = vmatprep.subr.mxu0 0.0
        %1768 = vmatpush2.msra.mxu0 0.0
        %1769 = vmatprep.subr.mxu0 0.0
        %1770 = vmatpush2.msra.mxu0 0.0
        %1771 = vmatprep.subr.mxu0 0.0
        %1772 = vmatpush2.msra.mxu0 0.0
        %1773 = vmatprep.subr.mxu0 0.0
        %1774 = vmatpush2.msra.mxu0 0.0
        %1775 = vmatprep.subr.mxu0 0.0
        %1776 = vmatpush2.msra.mxu0 0.0
        %1777 = vmatprep.subr.mxu0 0.0
        %1778 = vmatpush2.msra.mxu0 0.0
        %1779 = vmatprep.subr.mxu0 0.0
        %1780 = vmatpush2.msra.mxu0 0.0
        %1781 = vmatprep.subr.mxu0 0.0
        %1782 = vmatpush2.msra.mxu0 0.0
        %1783 = vmatprep.subr.mxu0 0.0
        %1784 = vmatpush2.msra.mxu0 0.0
        %1785 = vmatprep.subr.mxu0 0.0
        %1786 = vmatpush2.msra.mxu0 0.0
        %1787 = vmatprep.mubr.f32.mxu0 0.0
        %1788 = vmatmul.mubr.f32.gmra.mxu0 %v1571
        %v1789 = vpop.f32.mrf.mxu0
        %v1790 = vadd.f32 0.0, %v1789
        %v1791 = vpop.f32.mrf.mxu0
        %1792 = vdwg.mxu0
        %1793 = vmatprep.subr.mxu0 0.0
        %1794 = vmatpush1.msra.mxu0 %v815
        %1795 = vmatprep.subr.mxu0 0.0
        %1796 = vmatpush1.msra.mxu0 %v814
        %1797 = vmatprep.subr.mxu0 0.0
        %1798 = vmatpush1.msra.mxu0 %v813
        %1799 = vmatprep.subr.mxu0 0.0
        %1800 = vmatpush1.msra.mxu0 %v812
        %1801 = vmatprep.subr.mxu0 0.0
        %1802 = vmatpush1.msra.mxu0 %v811
        %1803 = vmatprep.subr.mxu0 0.0
        %1804 = vmatpush1.msra.mxu0 %v810
        %1805 = vmatprep.subr.mxu0 0.0
        %1806 = vmatpush1.msra.mxu0 %v809
        %1807 = vmatprep.subr.mxu0 0.0
        %1808 = vmatpush1.msra.mxu0 %v808
        %1809 = vmatprep.subr.mxu0 0.0
        %1810 = vmatpush1.msra.mxu0 %v807
        %1811 = vmatprep.subr.mxu0 0.0
        %1812 = vmatpush1.msra.mxu0 %v806
        %1813 = vmatprep.subr.mxu0 0.0
        %1814 = vmatpush1.msra.mxu0 %v805
        %1815 = vmatprep.subr.mxu0 0.0
        %1816 = vmatpush1.msra.mxu0 %v804
        %1817 = vmatprep.subr.mxu0 0.0
        %1818 = vmatpush1.msra.mxu0 %v803
        %1819 = vmatprep.subr.mxu0 0.0
        %1820 = vmatpush1.msra.mxu0 %v802
        %1821 = vmatprep.subr.mxu0 0.0
        %1822 = vmatpush1.msra.mxu0 %v801
        %1823 = vmatprep.subr.mxu0 0.0
        %1824 = vmatpush1.msra.mxu0 %v800
        %1825 = vmatprep.subr.mxu0 0.0
        %1826 = vmatpush2.msra.mxu0 0.0
        %1827 = vmatprep.subr.mxu0 0.0
        %1828 = vmatpush2.msra.mxu0 0.0
        %1829 = vmatprep.subr.mxu0 0.0
        %1830 = vmatpush2.msra.mxu0 0.0
        %1831 = vmatprep.subr.mxu0 0.0
        %1832 = vmatpush2.msra.mxu0 0.0
        %1833 = vmatprep.subr.mxu0 0.0
        %1834 = vmatpush2.msra.mxu0 0.0
        %1835 = vmatprep.subr.mxu0 0.0
        %1836 = vmatpush2.msra.mxu0 0.0
        %1837 = vmatprep.subr.mxu0 0.0
        %1838 = vmatpush2.msra.mxu0 0.0
        %1839 = vmatprep.subr.mxu0 0.0
        %1840 = vmatpush2.msra.mxu0 0.0
        %1841 = vmatprep.subr.mxu0 0.0
        %1842 = vmatpush2.msra.mxu0 0.0
        %1843 = vmatprep.subr.mxu0 0.0
        %1844 = vmatpush2.msra.mxu0 0.0
        %1845 = vmatprep.subr.mxu0 0.0
        %1846 = vmatpush2.msra.mxu0 0.0
        %1847 = vmatprep.subr.mxu0 0.0
        %1848 = vmatpush2.msra.mxu0 0.0
        %1849 = vmatprep.subr.mxu0 0.0
        %1850 = vmatpush2.msra.mxu0 0.0
        %1851 = vmatprep.subr.mxu0 0.0
        %1852 = vmatpush2.msra.mxu0 0.0
        %1853 = vmatprep.subr.mxu0 0.0
        %1854 = vmatpush2.msra.mxu0 0.0
        %1855 = vmatprep.subr.mxu0 0.0
        %1856 = vmatpush2.msra.mxu0 0.0
        %1857 = vmatprep.mubr.f32.mxu0 0.0
        %1858 = vmatmul.mubr.f32.gmra.mxu0 %v1573
        %v1859 = vpop.f32.mrf.mxu0
        %v1860 = vadd.f32 0.0, %v1859
        %v1861 = vpop.f32.mrf.mxu0
        %1862 = vdwg.mxu0
        %1863 = vmatprep.subr.mxu0 0.0
        %1864 = vmatpush1.msra.mxu0 %v831
        %1865 = vmatprep.subr.mxu0 0.0
        %1866 = vmatpush1.msra.mxu0 %v830
        %1867 = vmatprep.subr.mxu0 0.0
        %1868 = vmatpush1.msra.mxu0 %v829
        %1869 = vmatprep.subr.mxu0 0.0
        %1870 = vmatpush1.msra.mxu0 %v828
        %1871 = vmatprep.subr.mxu0 0.0
        %1872 = vmatpush1.msra.mxu0 %v827
        %1873 = vmatprep.subr.mxu0 0.0
        %1874 = vmatpush1.msra.mxu0 %v826
        %1875 = vmatprep.subr.mxu0 0.0
        %1876 = vmatpush1.msra.mxu0 %v825
        %1877 = vmatprep.subr.mxu0 0.0
        %1878 = vmatpush1.msra.mxu0 %v824
        %1879 = vmatprep.subr.mxu0 0.0
        %1880 = vmatpush1.msra.mxu0 %v823
        %1881 = vmatprep.subr.mxu0 0.0
        %1882 = vmatpush1.msra.mxu0 %v822
        %1883 = vmatprep.subr.mxu0 0.0
        %1884 = vmatpush1.msra.mxu0 %v821
        %1885 = vmatprep.subr.mxu0 0.0
        %1886 = vmatpush1.msra.mxu0 %v820
        %1887 = vmatprep.subr.mxu0 0.0
        %1888 = vmatpush1.msra.mxu0 %v819
        %1889 = vmatprep.subr.mxu0 0.0
        %1890 = vmatpush1.msra.mxu0 %v818
        %1891 = vmatprep.subr.mxu0 0.0
        %1892 = vmatpush1.msra.mxu0 %v817
        %1893 = vmatprep.subr.mxu0 0.0
        %1894 = vmatpush1.msra.mxu0 %v816
        %1895 = vmatprep.subr.mxu0 0.0
        %1896 = vmatpush2.msra.mxu0 0.0
        %1897 = vmatprep.subr.mxu0 0.0
        %1898 = vmatpush2.msra.mxu0 0.0
        %1899 = vmatprep.subr.mxu0 0.0
        %1900 = vmatpush2.msra.mxu0 0.0
        %1901 = vmatprep.subr.mxu0 0.0
        %1902 = vmatpush2.msra.mxu0 0.0
        %1903 = vmatprep.subr.mxu0 0.0
        %1904 = vmatpush2.msra.mxu0 0.0
        %1905 = vmatprep.subr.mxu0 0.0
        %1906 = vmatpush2.msra.mxu0 0.0
        %1907 = vmatprep.subr.mxu0 0.0
        %1908 = vmatpush2.msra.mxu0 0.0
        %1909 = vmatprep.subr.mxu0 0.0
        %1910 = vmatpush2.msra.mxu0 0.0
        %1911 = vmatprep.subr.mxu0 0.0
        %1912 = vmatpush2.msra.mxu0 0.0
        %1913 = vmatprep.subr.mxu0 0.0
        %1914 = vmatpush2.msra.mxu0 0.0
        %1915 = vmatprep.subr.mxu0 0.0
        %1916 = vmatpush2.msra.mxu0 0.0
        %1917 = vmatprep.subr.mxu0 0.0
        %1918 = vmatpush2.msra.mxu0 0.0
        %1919 = vmatprep.subr.mxu0 0.0
        %1920 = vmatpush2.msra.mxu0 0.0
        %1921 = vmatprep.subr.mxu0 0.0
        %1922 = vmatpush2.msra.mxu0 0.0
        %1923 = vmatprep.subr.mxu0 0.0
        %1924 = vmatpush2.msra.mxu0 0.0
        %1925 = vmatprep.subr.mxu0 0.0
        %1926 = vmatpush2.msra.mxu0 0.0
        %1927 = vmatprep.mubr.f32.mxu0 0.0
        %1928 = vmatmul.mubr.f32.gmra.mxu0 %v1556
        %v1929 = vpop.f32.mrf.mxu0
        %v1930 = vadd.f32 0.0, %v1929
        %v1931 = vpop.f32.mrf.mxu0
        %1932 = vdwg.mxu0
        %1933 = vmatprep.subr.mxu0 0.0
        %1934 = vmatpush1.msra.mxu0 %v847
        %1935 = vmatprep.subr.mxu0 0.0
        %1936 = vmatpush1.msra.mxu0 %v846
        %1937 = vmatprep.subr.mxu0 0.0
        %1938 = vmatpush1.msra.mxu0 %v845
        %1939 = vmatprep.subr.mxu0 0.0
        %1940 = vmatpush1.msra.mxu0 %v844
        %1941 = vmatprep.subr.mxu0 0.0
        %1942 = vmatpush1.msra.mxu0 %v843
        %1943 = vmatprep.subr.mxu0 0.0
        %1944 = vmatpush1.msra.mxu0 %v842
        %1945 = vmatprep.subr.mxu0 0.0
        %1946 = vmatpush1.msra.mxu0 %v841
        %1947 = vmatprep.subr.mxu0 0.0
        %1948 = vmatpush1.msra.mxu0 %v840
        %1949 = vmatprep.subr.mxu0 0.0
        %1950 = vmatpush1.msra.mxu0 %v839
        %1951 = vmatprep.subr.mxu0 0.0
        %1952 = vmatpush1.msra.mxu0 %v838
        %1953 = vmatprep.subr.mxu0 0.0
        %1954 = vmatpush1.msra.mxu0 %v837
        %1955 = vmatprep.subr.mxu0 0.0
        %1956 = vmatpush1.msra.mxu0 %v836
        %1957 = vmatprep.subr.mxu0 0.0
        %1958 = vmatpush1.msra.mxu0 %v835
        %1959 = vmatprep.subr.mxu0 0.0
        %1960 = vmatpush1.msra.mxu0 %v834
        %1961 = vmatprep.subr.mxu0 0.0
        %1962 = vmatpush1.msra.mxu0 %v833
        %1963 = vmatprep.subr.mxu0 0.0
        %1964 = vmatpush1.msra.mxu0 %v832
        %1965 = vmatprep.subr.mxu0 0.0
        %1966 = vmatpush2.msra.mxu0 0.0
        %1967 = vmatprep.subr.mxu0 0.0
        %1968 = vmatpush2.msra.mxu0 0.0
        %1969 = vmatprep.subr.mxu0 0.0
        %1970 = vmatpush2.msra.mxu0 0.0
        %1971 = vmatprep.subr.mxu0 0.0
        %1972 = vmatpush2.msra.mxu0 0.0
        %1973 = vmatprep.subr.mxu0 0.0
        %1974 = vmatpush2.msra.mxu0 0.0
        %1975 = vmatprep.subr.mxu0 0.0
        %1976 = vmatpush2.msra.mxu0 0.0
        %1977 = vmatprep.subr.mxu0 0.0
        %1978 = vmatpush2.msra.mxu0 0.0
        %1979 = vmatprep.subr.mxu0 0.0
        %1980 = vmatpush2.msra.mxu0 0.0
        %1981 = vmatprep.subr.mxu0 0.0
        %1982 = vmatpush2.msra.mxu0 0.0
        %1983 = vmatprep.subr.mxu0 0.0
        %1984 = vmatpush2.msra.mxu0 0.0
        %1985 = vmatprep.subr.mxu0 0.0
        %1986 = vmatpush2.msra.mxu0 0.0
        %1987 = vmatprep.subr.mxu0 0.0
        %1988 = vmatpush2.msra.mxu0 0.0
        %1989 = vmatprep.subr.mxu0 0.0
        %1990 = vmatpush2.msra.mxu0 0.0
        %1991 = vmatprep.subr.mxu0 0.0
        %1992 = vmatpush2.msra.mxu0 0.0
        %1993 = vmatprep.subr.mxu0 0.0
        %1994 = vmatpush2.msra.mxu0 0.0
        %1995 = vmatprep.subr.mxu0 0.0
        %1996 = vmatpush2.msra.mxu0 0.0
        %1997 = vmatprep.mubr.f32.mxu0 0.0
        %1998 = vmatmul.mubr.f32.gmra.mxu0 %v1570
        %v1999 = vpop.f32.mrf.mxu0
        %v2000 = vadd.f32 0.0, %v1999
        %v2001 = vpop.f32.mrf.mxu0
        %2002 = vdwg.mxu0
        %2003 = vmatprep.subr.mxu0 0.0
        %2004 = vmatpush1.msra.mxu0 %v863
        %2005 = vmatprep.subr.mxu0 0.0
        %2006 = vmatpush1.msra.mxu0 %v862
        %2007 = vmatprep.subr.mxu0 0.0
        %2008 = vmatpush1.msra.mxu0 %v861
        %2009 = vmatprep.subr.mxu0 0.0
        %2010 = vmatpush1.msra.mxu0 %v860
        %2011 = vmatprep.subr.mxu0 0.0
        %2012 = vmatpush1.msra.mxu0 %v859
        %2013 = vmatprep.subr.mxu0 0.0
        %2014 = vmatpush1.msra.mxu0 %v858
        %2015 = vmatprep.subr.mxu0 0.0
        %2016 = vmatpush1.msra.mxu0 %v857
        %2017 = vmatprep.subr.mxu0 0.0
        %2018 = vmatpush1.msra.mxu0 %v856
        %2019 = vmatprep.subr.mxu0 0.0
        %2020 = vmatpush1.msra.mxu0 %v855
        %2021 = vmatprep.subr.mxu0 0.0
        %2022 = vmatpush1.msra.mxu0 %v854
        %2023 = vmatprep.subr.mxu0 0.0
        %2024 = vmatpush1.msra.mxu0 %v853
        %2025 = vmatprep.subr.mxu0 0.0
        %2026 = vmatpush1.msra.mxu0 %v852
        %2027 = vmatprep.subr.mxu0 0.0
        %2028 = vmatpush1.msra.mxu0 %v851
        %2029 = vmatprep.subr.mxu0 0.0
        %2030 = vmatpush1.msra.mxu0 %v850
        %2031 = vmatprep.subr.mxu0 0.0
        %2032 = vmatpush1.msra.mxu0 %v849
        %2033 = vmatprep.subr.mxu0 0.0
        %2034 = vmatpush1.msra.mxu0 %v848
        %2035 = vmatprep.subr.mxu0 0.0
        %2036 = vmatpush2.msra.mxu0 0.0
        %2037 = vmatprep.subr.mxu0 0.0
        %2038 = vmatpush2.msra.mxu0 0.0
        %2039 = vmatprep.subr.mxu0 0.0
        %2040 = vmatpush2.msra.mxu0 0.0
        %2041 = vmatprep.subr.mxu0 0.0
        %2042 = vmatpush2.msra.mxu0 0.0
        %2043 = vmatprep.subr.mxu0 0.0
        %2044 = vmatpush2.msra.mxu0 0.0
        %2045 = vmatprep.subr.mxu0 0.0
        %2046 = vmatpush2.msra.mxu0 0.0
        %2047 = vmatprep.subr.mxu0 0.0
        %2048 = vmatpush2.msra.mxu0 0.0
        %2049 = vmatprep.subr.mxu0 0.0
        %2050 = vmatpush2.msra.mxu0 0.0
        %2051 = vmatprep.subr.mxu0 0.0
        %2052 = vmatpush2.msra.mxu0 0.0
        %2053 = vmatprep.subr.mxu0 0.0
        %2054 = vmatpush2.msra.mxu0 0.0
        %2055 = vmatprep.subr.mxu0 0.0
        %2056 = vmatpush2.msra.mxu0 0.0
        %2057 = vmatprep.subr.mxu0 0.0
        %2058 = vmatpush2.msra.mxu0 0.0
        %2059 = vmatprep.subr.mxu0 0.0
        %2060 = vmatpush2.msra.mxu0 0.0
        %2061 = vmatprep.subr.mxu0 0.0
        %2062 = vmatpush2.msra.mxu0 0.0
        %2063 = vmatprep.subr.mxu0 0.0
        %2064 = vmatpush2.msra.mxu0 0.0
        %2065 = vmatprep.subr.mxu0 0.0
        %2066 = vmatpush2.msra.mxu0 0.0
        %2067 = vmatprep.mubr.f32.mxu0 0.0
        %2068 = vmatmul.mubr.f32.gmra.mxu0 %v1572
        %v2069 = vpop.f32.mrf.mxu0
        %v2070 = vadd.f32 0.0, %v2069
        %v2071 = vpop.f32.mrf.mxu0
        %2072 = vdwg.mxu0
        %2073 = vmatprep.subr.mxu0 0.0
        %2074 = vmatpush1.msra.mxu0 %v879
        %2075 = vmatprep.subr.mxu0 0.0
        %2076 = vmatpush1.msra.mxu0 %v878
        %2077 = vmatprep.subr.mxu0 0.0
        %2078 = vmatpush1.msra.mxu0 %v877
        %2079 = vmatprep.subr.mxu0 0.0
        %2080 = vmatpush1.msra.mxu0 %v876
        %2081 = vmatprep.subr.mxu0 0.0
        %2082 = vmatpush1.msra.mxu0 %v875
        %2083 = vmatprep.subr.mxu0 0.0
        %2084 = vmatpush1.msra.mxu0 %v874
        %2085 = vmatprep.subr.mxu0 0.0
        %2086 = vmatpush1.msra.mxu0 %v873
        %2087 = vmatprep.subr.mxu0 0.0
        %2088 = vmatpush1.msra.mxu0 %v872
        %2089 = vmatprep.subr.mxu0 0.0
        %2090 = vmatpush1.msra.mxu0 %v871
        %2091 = vmatprep.subr.mxu0 0.0
        %2092 = vmatpush1.msra.mxu0 %v870
        %2093 = vmatprep.subr.mxu0 0.0
        %2094 = vmatpush1.msra.mxu0 %v869
        %2095 = vmatprep.subr.mxu0 0.0
        %2096 = vmatpush1.msra.mxu0 %v868
        %2097 = vmatprep.subr.mxu0 0.0
        %2098 = vmatpush1.msra.mxu0 %v867
        %2099 = vmatprep.subr.mxu0 0.0
        %2100 = vmatpush1.msra.mxu0 %v866
        %2101 = vmatprep.subr.mxu0 0.0
        %2102 = vmatpush1.msra.mxu0 %v865
        %2103 = vmatprep.subr.mxu0 0.0
        %2104 = vmatpush1.msra.mxu0 %v864
        %2105 = vmatprep.subr.mxu0 0.0
        %2106 = vmatpush2.msra.mxu0 0.0
        %2107 = vmatprep.subr.mxu0 0.0
        %2108 = vmatpush2.msra.mxu0 0.0
        %2109 = vmatprep.subr.mxu0 0.0
        %2110 = vmatpush2.msra.mxu0 0.0
        %2111 = vmatprep.subr.mxu0 0.0
        %2112 = vmatpush2.msra.mxu0 0.0
        %2113 = vmatprep.subr.mxu0 0.0
        %2114 = vmatpush2.msra.mxu0 0.0
        %2115 = vmatprep.subr.mxu0 0.0
        %2116 = vmatpush2.msra.mxu0 0.0
        %2117 = vmatprep.subr.mxu0 0.0
        %2118 = vmatpush2.msra.mxu0 0.0
        %2119 = vmatprep.subr.mxu0 0.0
        %2120 = vmatpush2.msra.mxu0 0.0
        %2121 = vmatprep.subr.mxu0 0.0
        %2122 = vmatpush2.msra.mxu0 0.0
        %2123 = vmatprep.subr.mxu0 0.0
        %2124 = vmatpush2.msra.mxu0 0.0
        %2125 = vmatprep.subr.mxu0 0.0
        %2126 = vmatpush2.msra.mxu0 0.0
        %2127 = vmatprep.subr.mxu0 0.0
        %2128 = vmatpush2.msra.mxu0 0.0
        %2129 = vmatprep.subr.mxu0 0.0
        %2130 = vmatpush2.msra.mxu0 0.0
        %2131 = vmatprep.subr.mxu0 0.0
        %2132 = vmatpush2.msra.mxu0 0.0
        %2133 = vmatprep.subr.mxu0 0.0
        %2134 = vmatpush2.msra.mxu0 0.0
        %2135 = vmatprep.subr.mxu0 0.0
        %2136 = vmatpush2.msra.mxu0 0.0
        %2137 = vmatprep.mubr.f32.mxu0 0.0
        %2138 = vmatmul.mubr.f32.gmra.mxu0 %v1574
        %v2139 = vpop.f32.mrf.mxu0
        %v2140 = vadd.f32 0.0, %v2139
        %v2141 = vpop.f32.mrf.mxu0
        %2142 = vdwg.mxu0
        %v2151 = vrot.slane %v1720, 7
        %vm2152 = vcmask 1041409
        %v2153 = vsel %vm2152, %v2151, %v1650
        %v2154 = vrot.slane %v1790, 6
        %vm2155 = vcmask 1042434
        %v2156 = vsel %vm2155, %v2154, %v2153
        %v2157 = vrot.slane %v1860, 5
        %vm2158 = vcmask 1043459
        %v2159 = vsel %vm2158, %v2157, %v2156
        %v2160 = vrot.slane %v1930, 4
        %vm2161 = vcmask 1044484
        %v2162 = vsel %vm2161, %v2160, %v2159
        %v2163 = vrot.slane %v2000, 3
        %vm2164 = vcmask 1045509
        %v2165 = vsel %vm2164, %v2163, %v2162
        %v2166 = vrot.slane %v2070, 2
        %vm2167 = vcmask 1046534
        %v2168 = vsel %vm2167, %v2166, %v2165
        %v2169 = vrot.slane %v2140, 1
        %vm2170 = vcmask 1047559
        %v2171 = vsel %vm2170, %v2169, %v2168
        %v2173 = vsel %vm1278, %v2171, -1e+30
        %2174 = vmax.xlane.f32.xlu0 %v2173
        %v2175 = vpop.xlane.xlu0 %2174
        %v2176 = vsub.f32 %v2173, %v2175
        %v2177 = vmul.f32 %v2176, 1.442695
        %v2178 = vpow.pop %v2177
        %2179 = vadd.xlane.f32.xlu0 %v2178
        %v2180 = vpop.xlane.xlu0 %2179
        %v2181 = vrcp.pop %v2180
        %v2182 = vmul.f32 %v2178, %v2181
        %v2184 = vcombine.high %v2182, %v2182
        %v2186 = vunpack.c.l.s4 1966171168
        %v2187 = vunpack.c.0.s8 %v2186
        %v2188 = vlaneseq
        %v2189 = vshrl.u32 %v2188, 7
        %v2190 = vsub.s32 %v2187, %v2189
        %v2191 = vrot.slane %v2182, %v2190
        %v2193 = vunpack.c.l.s4 1966171168
        %v2194 = vunpack.c.0.s8 %v2193
        %v2195 = vlaneseq
        %v2196 = vshrl.u32 %v2195, 7
        %v2197 = vsub.s32 %v2194, %v2196
        %v2198 = vrot.slane %v2184, %v2197
        %v2199 = vcombine.high %v2191, %v2191
        %v2200 = vcombine.high %v2198, %v2198
        %v2202 = vunpack.c.l.s4 1966171168
        %v2203 = vunpack.c.0.s8 %v2202
        %v2204 = vlaneseq
        %v2205 = vshrl.u32 %v2204, 7
        %v2206 = vsub.s32 %v2203, %v2205
        %v2207 = vrot.slane %v2191, %v2206
        %v2209 = vunpack.c.l.s4 1966171168
        %v2210 = vunpack.c.0.s8 %v2209
        %v2211 = vlaneseq
        %v2212 = vshrl.u32 %v2211, 7
        %v2213 = vsub.s32 %v2210, %v2212
        %v2214 = vrot.slane %v2198, %v2213
        %v2216 = vunpack.c.l.s4 1966171168
        %v2217 = vunpack.c.0.s8 %v2216
        %v2218 = vlaneseq
        %v2219 = vshrl.u32 %v2218, 7
        %v2220 = vsub.s32 %v2217, %v2219
        %v2221 = vrot.slane %v2199, %v2220
        %v2223 = vunpack.c.l.s4 1966171168
        %v2224 = vunpack.c.0.s8 %v2223
        %v2225 = vlaneseq
        %v2226 = vshrl.u32 %v2225, 7
        %v2227 = vsub.s32 %v2224, %v2226
        %v2228 = vrot.slane %v2200, %v2227
        %v2229 = vcombine.high %v2207, %v2207
        %v2230 = vcombine.high %v2214, %v2214
        %v2231 = vcombine.high %v2221, %v2221
        %v2232 = vcombine.high %v2228, %v2228
        %2241 = vmatprep.subr.mxu0 0.0
        %2242 = vmatpush1.msra.mxu0 %v639
        %2243 = vmatprep.subr.mxu0 0.0
        %2244 = vmatpush1.msra.mxu0 %v638
        %2245 = vmatprep.subr.mxu0 0.0
        %2246 = vmatpush1.msra.mxu0 %v637
        %2247 = vmatprep.subr.mxu0 0.0
        %2248 = vmatpush1.msra.mxu0 %v636
        %2249 = vmatprep.subr.mxu0 0.0
        %2250 = vmatpush1.msra.mxu0 %v635
        %2251 = vmatprep.subr.mxu0 0.0
        %2252 = vmatpush1.msra.mxu0 %v634
        %2253 = vmatprep.subr.mxu0 0.0
        %2254 = vmatpush1.msra.mxu0 %v633
        %2255 = vmatprep.subr.mxu0 0.0
        %2256 = vmatpush1.msra.mxu0 %v632
        %2257 = vmatprep.subr.mxu0 0.0
        %2258 = vmatpush1.msra.mxu0 %v631
        %2259 = vmatprep.subr.mxu0 0.0
        %2260 = vmatpush1.msra.mxu0 %v630
        %2261 = vmatprep.subr.mxu0 0.0
        %2262 = vmatpush1.msra.mxu0 %v629
        %2263 = vmatprep.subr.mxu0 0.0
        %2264 = vmatpush1.msra.mxu0 %v628
        %2265 = vmatprep.subr.mxu0 0.0
        %2266 = vmatpush1.msra.mxu0 %v627
        %2267 = vmatprep.subr.mxu0 0.0
        %2268 = vmatpush1.msra.mxu0 %v626
        %2269 = vmatprep.subr.mxu0 0.0
        %2270 = vmatpush1.msra.mxu0 %v625
        %2271 = vmatprep.subr.mxu0 0.0
        %2272 = vmatpush1.msra.mxu0 %v624
        %2273 = vmatprep.subr.mxu0 0.0
        %2274 = vmatpush2.msra.mxu0 0.0
        %2275 = vmatprep.subr.mxu0 0.0
        %2276 = vmatpush2.msra.mxu0 0.0
        %2277 = vmatprep.subr.mxu0 0.0
        %2278 = vmatpush2.msra.mxu0 0.0
        %2279 = vmatprep.subr.mxu0 0.0
        %2280 = vmatpush2.msra.mxu0 0.0
        %2281 = vmatprep.subr.mxu0 0.0
        %2282 = vmatpush2.msra.mxu0 0.0
        %2283 = vmatprep.subr.mxu0 0.0
        %2284 = vmatpush2.msra.mxu0 0.0
        %2285 = vmatprep.subr.mxu0 0.0
        %2286 = vmatpush2.msra.mxu0 0.0
        %2287 = vmatprep.subr.mxu0 0.0
        %2288 = vmatpush2.msra.mxu0 0.0
        %2289 = vmatprep.subr.mxu0 0.0
        %2290 = vmatpush2.msra.mxu0 0.0
        %2291 = vmatprep.subr.mxu0 0.0
        %2292 = vmatpush2.msra.mxu0 0.0
        %2293 = vmatprep.subr.mxu0 0.0
        %2294 = vmatpush2.msra.mxu0 0.0
        %2295 = vmatprep.subr.mxu0 0.0
        %2296 = vmatpush2.msra.mxu0 0.0
        %2297 = vmatprep.subr.mxu0 0.0
        %2298 = vmatpush2.msra.mxu0 0.0
        %2299 = vmatprep.subr.mxu0 0.0
        %2300 = vmatpush2.msra.mxu0 0.0
        %2301 = vmatprep.subr.mxu0 0.0
        %2302 = vmatpush2.msra.mxu0 0.0
        %2303 = vmatprep.subr.mxu0 0.0
        %2304 = vmatpush2.msra.mxu0 0.0
        %2305 = vmatprep.mubr.f32.mxu0 0.0
        %2306 = vmatmul.mubr.f32.gmra.mxu0 %v2207
        %v2307 = vpop.f32.mrf.mxu0
        %v2308 = vadd.f32 0.0, %v2307
        %v2309 = vpop.f32.mrf.mxu0
        %2310 = vdwg.mxu0
        %2311 = vmatprep.subr.mxu0 0.0
        %2312 = vmatpush1.msra.mxu0 %v655
        %2313 = vmatprep.subr.mxu0 0.0
        %2314 = vmatpush1.msra.mxu0 %v654
        %2315 = vmatprep.subr.mxu0 0.0
        %2316 = vmatpush1.msra.mxu0 %v653
        %2317 = vmatprep.subr.mxu0 0.0
        %2318 = vmatpush1.msra.mxu0 %v652
        %2319 = vmatprep.subr.mxu0 0.0
        %2320 = vmatpush1.msra.mxu0 %v651
        %2321 = vmatprep.subr.mxu0 0.0
        %2322 = vmatpush1.msra.mxu0 %v650
        %2323 = vmatprep.subr.mxu0 0.0
        %2324 = vmatpush1.msra.mxu0 %v649
        %2325 = vmatprep.subr.mxu0 0.0
        %2326 = vmatpush1.msra.mxu0 %v648
        %2327 = vmatprep.subr.mxu0 0.0
        %2328 = vmatpush1.msra.mxu0 %v647
        %2329 = vmatprep.subr.mxu0 0.0
        %2330 = vmatpush1.msra.mxu0 %v646
        %2331 = vmatprep.subr.mxu0 0.0
        %2332 = vmatpush1.msra.mxu0 %v645
        %2333 = vmatprep.subr.mxu0 0.0
        %2334 = vmatpush1.msra.mxu0 %v644
        %2335 = vmatprep.subr.mxu0 0.0
        %2336 = vmatpush1.msra.mxu0 %v643
        %2337 = vmatprep.subr.mxu0 0.0
        %2338 = vmatpush1.msra.mxu0 %v642
        %2339 = vmatprep.subr.mxu0 0.0
        %2340 = vmatpush1.msra.mxu0 %v641
        %2341 = vmatprep.subr.mxu0 0.0
        %2342 = vmatpush1.msra.mxu0 %v640
        %2343 = vmatprep.subr.mxu0 0.0
        %2344 = vmatpush2.msra.mxu0 0.0
        %2345 = vmatprep.subr.mxu0 0.0
        %2346 = vmatpush2.msra.mxu0 0.0
        %2347 = vmatprep.subr.mxu0 0.0
        %2348 = vmatpush2.msra.mxu0 0.0
        %2349 = vmatprep.subr.mxu0 0.0
        %2350 = vmatpush2.msra.mxu0 0.0
        %2351 = vmatprep.subr.mxu0 0.0
        %2352 = vmatpush2.msra.mxu0 0.0
        %2353 = vmatprep.subr.mxu0 0.0
        %2354 = vmatpush2.msra.mxu0 0.0
        %2355 = vmatprep.subr.mxu0 0.0
        %2356 = vmatpush2.msra.mxu0 0.0
        %2357 = vmatprep.subr.mxu0 0.0
        %2358 = vmatpush2.msra.mxu0 0.0
        %2359 = vmatprep.subr.mxu0 0.0
        %2360 = vmatpush2.msra.mxu0 0.0
        %2361 = vmatprep.subr.mxu0 0.0
        %2362 = vmatpush2.msra.mxu0 0.0
        %2363 = vmatprep.subr.mxu0 0.0
        %2364 = vmatpush2.msra.mxu0 0.0
        %2365 = vmatprep.subr.mxu0 0.0
        %2366 = vmatpush2.msra.mxu0 0.0
        %2367 = vmatprep.subr.mxu0 0.0
        %2368 = vmatpush2.msra.mxu0 0.0
        %2369 = vmatprep.subr.mxu0 0.0
        %2370 = vmatpush2.msra.mxu0 0.0
        %2371 = vmatprep.subr.mxu0 0.0
        %2372 = vmatpush2.msra.mxu0 0.0
        %2373 = vmatprep.subr.mxu0 0.0
        %2374 = vmatpush2.msra.mxu0 0.0
        %2375 = vmatprep.mubr.f32.mxu0 0.0
        %2376 = vmatmul.mubr.f32.gmra.mxu0 %v2221
        %v2377 = vpop.f32.mrf.mxu0
        %v2378 = vadd.f32 0.0, %v2377
        %v2379 = vpop.f32.mrf.mxu0
        %2380 = vdwg.mxu0
        %2381 = vmatprep.subr.mxu0 0.0
        %2382 = vmatpush1.msra.mxu0 %v671
        %2383 = vmatprep.subr.mxu0 0.0
        %2384 = vmatpush1.msra.mxu0 %v670
        %2385 = vmatprep.subr.mxu0 0.0
        %2386 = vmatpush1.msra.mxu0 %v669
        %2387 = vmatprep.subr.mxu0 0.0
        %2388 = vmatpush1.msra.mxu0 %v668
        %2389 = vmatprep.subr.mxu0 0.0
        %2390 = vmatpush1.msra.mxu0 %v667
        %2391 = vmatprep.subr.mxu0 0.0
        %2392 = vmatpush1.msra.mxu0 %v666
        %2393 = vmatprep.subr.mxu0 0.0
        %2394 = vmatpush1.msra.mxu0 %v665
        %2395 = vmatprep.subr.mxu0 0.0
        %2396 = vmatpush1.msra.mxu0 %v664
        %2397 = vmatprep.subr.mxu0 0.0
        %2398 = vmatpush1.msra.mxu0 %v663
        %2399 = vmatprep.subr.mxu0 0.0
        %2400 = vmatpush1.msra.mxu0 %v662
        %2401 = vmatprep.subr.mxu0 0.0
        %2402 = vmatpush1.msra.mxu0 %v661
        %2403 = vmatprep.subr.mxu0 0.0
        %2404 = vmatpush1.msra.mxu0 %v660
        %2405 = vmatprep.subr.mxu0 0.0
        %2406 = vmatpush1.msra.mxu0 %v659
        %2407 = vmatprep.subr.mxu0 0.0
        %2408 = vmatpush1.msra.mxu0 %v658
        %2409 = vmatprep.subr.mxu0 0.0
        %2410 = vmatpush1.msra.mxu0 %v657
        %2411 = vmatprep.subr.mxu0 0.0
        %2412 = vmatpush1.msra.mxu0 %v656
        %2413 = vmatprep.subr.mxu0 0.0
        %2414 = vmatpush2.msra.mxu0 0.0
        %2415 = vmatprep.subr.mxu0 0.0
        %2416 = vmatpush2.msra.mxu0 0.0
        %2417 = vmatprep.subr.mxu0 0.0
        %2418 = vmatpush2.msra.mxu0 0.0
        %2419 = vmatprep.subr.mxu0 0.0
        %2420 = vmatpush2.msra.mxu0 0.0
        %2421 = vmatprep.subr.mxu0 0.0
        %2422 = vmatpush2.msra.mxu0 0.0
        %2423 = vmatprep.subr.mxu0 0.0
        %2424 = vmatpush2.msra.mxu0 0.0
        %2425 = vmatprep.subr.mxu0 0.0
        %2426 = vmatpush2.msra.mxu0 0.0
        %2427 = vmatprep.subr.mxu0 0.0
        %2428 = vmatpush2.msra.mxu0 0.0
        %2429 = vmatprep.subr.mxu0 0.0
        %2430 = vmatpush2.msra.mxu0 0.0
        %2431 = vmatprep.subr.mxu0 0.0
        %2432 = vmatpush2.msra.mxu0 0.0
        %2433 = vmatprep.subr.mxu0 0.0
        %2434 = vmatpush2.msra.mxu0 0.0
        %2435 = vmatprep.subr.mxu0 0.0
        %2436 = vmatpush2.msra.mxu0 0.0
        %2437 = vmatprep.subr.mxu0 0.0
        %2438 = vmatpush2.msra.mxu0 0.0
        %2439 = vmatprep.subr.mxu0 0.0
        %2440 = vmatpush2.msra.mxu0 0.0
        %2441 = vmatprep.subr.mxu0 0.0
        %2442 = vmatpush2.msra.mxu0 0.0
        %2443 = vmatprep.subr.mxu0 0.0
        %2444 = vmatpush2.msra.mxu0 0.0
        %2445 = vmatprep.mubr.f32.mxu0 0.0
        %2446 = vmatmul.mubr.f32.gmra.mxu0 %v2229
        %v2447 = vpop.f32.mrf.mxu0
        %v2448 = vadd.f32 0.0, %v2447
        %v2449 = vpop.f32.mrf.mxu0
        %2450 = vdwg.mxu0
        %2451 = vmatprep.subr.mxu0 0.0
        %2452 = vmatpush1.msra.mxu0 %v687
        %2453 = vmatprep.subr.mxu0 0.0
        %2454 = vmatpush1.msra.mxu0 %v686
        %2455 = vmatprep.subr.mxu0 0.0
        %2456 = vmatpush1.msra.mxu0 %v685
        %2457 = vmatprep.subr.mxu0 0.0
        %2458 = vmatpush1.msra.mxu0 %v684
        %2459 = vmatprep.subr.mxu0 0.0
        %2460 = vmatpush1.msra.mxu0 %v683
        %2461 = vmatprep.subr.mxu0 0.0
        %2462 = vmatpush1.msra.mxu0 %v682
        %2463 = vmatprep.subr.mxu0 0.0
        %2464 = vmatpush1.msra.mxu0 %v681
        %2465 = vmatprep.subr.mxu0 0.0
        %2466 = vmatpush1.msra.mxu0 %v680
        %2467 = vmatprep.subr.mxu0 0.0
        %2468 = vmatpush1.msra.mxu0 %v679
        %2469 = vmatprep.subr.mxu0 0.0
        %2470 = vmatpush1.msra.mxu0 %v678
        %2471 = vmatprep.subr.mxu0 0.0
        %2472 = vmatpush1.msra.mxu0 %v677
        %2473 = vmatprep.subr.mxu0 0.0
        %2474 = vmatpush1.msra.mxu0 %v676
        %2475 = vmatprep.subr.mxu0 0.0
        %2476 = vmatpush1.msra.mxu0 %v675
        %2477 = vmatprep.subr.mxu0 0.0
        %2478 = vmatpush1.msra.mxu0 %v674
        %2479 = vmatprep.subr.mxu0 0.0
        %2480 = vmatpush1.msra.mxu0 %v673
        %2481 = vmatprep.subr.mxu0 0.0
        %2482 = vmatpush1.msra.mxu0 %v672
        %2483 = vmatprep.subr.mxu0 0.0
        %2484 = vmatpush2.msra.mxu0 0.0
        %2485 = vmatprep.subr.mxu0 0.0
        %2486 = vmatpush2.msra.mxu0 0.0
        %2487 = vmatprep.subr.mxu0 0.0
        %2488 = vmatpush2.msra.mxu0 0.0
        %2489 = vmatprep.subr.mxu0 0.0
        %2490 = vmatpush2.msra.mxu0 0.0
        %2491 = vmatprep.subr.mxu0 0.0
        %2492 = vmatpush2.msra.mxu0 0.0
        %2493 = vmatprep.subr.mxu0 0.0
        %2494 = vmatpush2.msra.mxu0 0.0
        %2495 = vmatprep.subr.mxu0 0.0
        %2496 = vmatpush2.msra.mxu0 0.0
        %2497 = vmatprep.subr.mxu0 0.0
        %2498 = vmatpush2.msra.mxu0 0.0
        %2499 = vmatprep.subr.mxu0 0.0
        %2500 = vmatpush2.msra.mxu0 0.0
        %2501 = vmatprep.subr.mxu0 0.0
        %2502 = vmatpush2.msra.mxu0 0.0
        %2503 = vmatprep.subr.mxu0 0.0
        %2504 = vmatpush2.msra.mxu0 0.0
        %2505 = vmatprep.subr.mxu0 0.0
        %2506 = vmatpush2.msra.mxu0 0.0
        %2507 = vmatprep.subr.mxu0 0.0
        %2508 = vmatpush2.msra.mxu0 0.0
        %2509 = vmatprep.subr.mxu0 0.0
        %2510 = vmatpush2.msra.mxu0 0.0
        %2511 = vmatprep.subr.mxu0 0.0
        %2512 = vmatpush2.msra.mxu0 0.0
        %2513 = vmatprep.subr.mxu0 0.0
        %2514 = vmatpush2.msra.mxu0 0.0
        %2515 = vmatprep.mubr.f32.mxu0 0.0
        %2516 = vmatmul.mubr.f32.gmra.mxu0 %v2231
        %v2517 = vpop.f32.mrf.mxu0
        %v2518 = vadd.f32 0.0, %v2517
        %v2519 = vpop.f32.mrf.mxu0
        %2520 = vdwg.mxu0
        %2521 = vmatprep.subr.mxu0 0.0
        %2522 = vmatpush1.msra.mxu0 %v703
        %2523 = vmatprep.subr.mxu0 0.0
        %2524 = vmatpush1.msra.mxu0 %v702
        %2525 = vmatprep.subr.mxu0 0.0
        %2526 = vmatpush1.msra.mxu0 %v701
        %2527 = vmatprep.subr.mxu0 0.0
        %2528 = vmatpush1.msra.mxu0 %v700
        %2529 = vmatprep.subr.mxu0 0.0
        %2530 = vmatpush1.msra.mxu0 %v699
        %2531 = vmatprep.subr.mxu0 0.0
        %2532 = vmatpush1.msra.mxu0 %v698
        %2533 = vmatprep.subr.mxu0 0.0
        %2534 = vmatpush1.msra.mxu0 %v697
        %2535 = vmatprep.subr.mxu0 0.0
        %2536 = vmatpush1.msra.mxu0 %v696
        %2537 = vmatprep.subr.mxu0 0.0
        %2538 = vmatpush1.msra.mxu0 %v695
        %2539 = vmatprep.subr.mxu0 0.0
        %2540 = vmatpush1.msra.mxu0 %v694
        %2541 = vmatprep.subr.mxu0 0.0
        %2542 = vmatpush1.msra.mxu0 %v693
        %2543 = vmatprep.subr.mxu0 0.0
        %2544 = vmatpush1.msra.mxu0 %v692
        %2545 = vmatprep.subr.mxu0 0.0
        %2546 = vmatpush1.msra.mxu0 %v691
        %2547 = vmatprep.subr.mxu0 0.0
        %2548 = vmatpush1.msra.mxu0 %v690
        %2549 = vmatprep.subr.mxu0 0.0
        %2550 = vmatpush1.msra.mxu0 %v689
        %2551 = vmatprep.subr.mxu0 0.0
        %2552 = vmatpush1.msra.mxu0 %v688
        %2553 = vmatprep.subr.mxu0 0.0
        %2554 = vmatpush2.msra.mxu0 0.0
        %2555 = vmatprep.subr.mxu0 0.0
        %2556 = vmatpush2.msra.mxu0 0.0
        %2557 = vmatprep.subr.mxu0 0.0
        %2558 = vmatpush2.msra.mxu0 0.0
        %2559 = vmatprep.subr.mxu0 0.0
        %2560 = vmatpush2.msra.mxu0 0.0
        %2561 = vmatprep.subr.mxu0 0.0
        %2562 = vmatpush2.msra.mxu0 0.0
        %2563 = vmatprep.subr.mxu0 0.0
        %2564 = vmatpush2.msra.mxu0 0.0
        %2565 = vmatprep.subr.mxu0 0.0
        %2566 = vmatpush2.msra.mxu0 0.0
        %2567 = vmatprep.subr.mxu0 0.0
        %2568 = vmatpush2.msra.mxu0 0.0
        %2569 = vmatprep.subr.mxu0 0.0
        %2570 = vmatpush2.msra.mxu0 0.0
        %2571 = vmatprep.subr.mxu0 0.0
        %2572 = vmatpush2.msra.mxu0 0.0
        %2573 = vmatprep.subr.mxu0 0.0
        %2574 = vmatpush2.msra.mxu0 0.0
        %2575 = vmatprep.subr.mxu0 0.0
        %2576 = vmatpush2.msra.mxu0 0.0
        %2577 = vmatprep.subr.mxu0 0.0
        %2578 = vmatpush2.msra.mxu0 0.0
        %2579 = vmatprep.subr.mxu0 0.0
        %2580 = vmatpush2.msra.mxu0 0.0
        %2581 = vmatprep.subr.mxu0 0.0
        %2582 = vmatpush2.msra.mxu0 0.0
        %2583 = vmatprep.subr.mxu0 0.0
        %2584 = vmatpush2.msra.mxu0 0.0
        %2585 = vmatprep.mubr.f32.mxu0 0.0
        %2586 = vmatmul.mubr.f32.gmra.mxu0 %v2214
        %v2587 = vpop.f32.mrf.mxu0
        %v2588 = vadd.f32 0.0, %v2587
        %v2589 = vpop.f32.mrf.mxu0
        %2590 = vdwg.mxu0
        %2591 = vmatprep.subr.mxu0 0.0
        %2592 = vmatpush1.msra.mxu0 %v719
        %2593 = vmatprep.subr.mxu0 0.0
        %2594 = vmatpush1.msra.mxu0 %v718
        %2595 = vmatprep.subr.mxu0 0.0
        %2596 = vmatpush1.msra.mxu0 %v717
        %2597 = vmatprep.subr.mxu0 0.0
        %2598 = vmatpush1.msra.mxu0 %v716
        %2599 = vmatprep.subr.mxu0 0.0
        %2600 = vmatpush1.msra.mxu0 %v715
        %2601 = vmatprep.subr.mxu0 0.0
        %2602 = vmatpush1.msra.mxu0 %v714
        %2603 = vmatprep.subr.mxu0 0.0
        %2604 = vmatpush1.msra.mxu0 %v713
        %2605 = vmatprep.subr.mxu0 0.0
        %2606 = vmatpush1.msra.mxu0 %v712
        %2607 = vmatprep.subr.mxu0 0.0
        %2608 = vmatpush1.msra.mxu0 %v711
        %2609 = vmatprep.subr.mxu0 0.0
        %2610 = vmatpush1.msra.mxu0 %v710
        %2611 = vmatprep.subr.mxu0 0.0
        %2612 = vmatpush1.msra.mxu0 %v709
        %2613 = vmatprep.subr.mxu0 0.0
        %2614 = vmatpush1.msra.mxu0 %v708
        %2615 = vmatprep.subr.mxu0 0.0
        %2616 = vmatpush1.msra.mxu0 %v707
        %2617 = vmatprep.subr.mxu0 0.0
        %2618 = vmatpush1.msra.mxu0 %v706
        %2619 = vmatprep.subr.mxu0 0.0
        %2620 = vmatpush1.msra.mxu0 %v705
        %2621 = vmatprep.subr.mxu0 0.0
        %2622 = vmatpush1.msra.mxu0 %v704
        %2623 = vmatprep.subr.mxu0 0.0
        %2624 = vmatpush2.msra.mxu0 0.0
        %2625 = vmatprep.subr.mxu0 0.0
        %2626 = vmatpush2.msra.mxu0 0.0
        %2627 = vmatprep.subr.mxu0 0.0
        %2628 = vmatpush2.msra.mxu0 0.0
        %2629 = vmatprep.subr.mxu0 0.0
        %2630 = vmatpush2.msra.mxu0 0.0
        %2631 = vmatprep.subr.mxu0 0.0
        %2632 = vmatpush2.msra.mxu0 0.0
        %2633 = vmatprep.subr.mxu0 0.0
        %2634 = vmatpush2.msra.mxu0 0.0
        %2635 = vmatprep.subr.mxu0 0.0
        %2636 = vmatpush2.msra.mxu0 0.0
        %2637 = vmatprep.subr.mxu0 0.0
        %2638 = vmatpush2.msra.mxu0 0.0
        %2639 = vmatprep.subr.mxu0 0.0
        %2640 = vmatpush2.msra.mxu0 0.0
        %2641 = vmatprep.subr.mxu0 0.0
        %2642 = vmatpush2.msra.mxu0 0.0
        %2643 = vmatprep.subr.mxu0 0.0
        %2644 = vmatpush2.msra.mxu0 0.0
        %2645 = vmatprep.subr.mxu0 0.0
        %2646 = vmatpush2.msra.mxu0 0.0
        %2647 = vmatprep.subr.mxu0 0.0
        %2648 = vmatpush2.msra.mxu0 0.0
        %2649 = vmatprep.subr.mxu0 0.0
        %2650 = vmatpush2.msra.mxu0 0.0
        %2651 = vmatprep.subr.mxu0 0.0
        %2652 = vmatpush2.msra.mxu0 0.0
        %2653 = vmatprep.subr.mxu0 0.0
        %2654 = vmatpush2.msra.mxu0 0.0
        %2655 = vmatprep.mubr.f32.mxu0 0.0
        %2656 = vmatmul.mubr.f32.gmra.mxu0 %v2228
        %v2657 = vpop.f32.mrf.mxu0
        %v2658 = vadd.f32 0.0, %v2657
        %v2659 = vpop.f32.mrf.mxu0
        %2660 = vdwg.mxu0
        %2661 = vmatprep.subr.mxu0 0.0
        %2662 = vmatpush1.msra.mxu0 %v735
        %2663 = vmatprep.subr.mxu0 0.0
        %2664 = vmatpush1.msra.mxu0 %v734
        %2665 = vmatprep.subr.mxu0 0.0
        %2666 = vmatpush1.msra.mxu0 %v733
        %2667 = vmatprep.subr.mxu0 0.0
        %2668 = vmatpush1.msra.mxu0 %v732
        %2669 = vmatprep.subr.mxu0 0.0
        %2670 = vmatpush1.msra.mxu0 %v731
        %2671 = vmatprep.subr.mxu0 0.0
        %2672 = vmatpush1.msra.mxu0 %v730
        %2673 = vmatprep.subr.mxu0 0.0
        %2674 = vmatpush1.msra.mxu0 %v729
        %2675 = vmatprep.subr.mxu0 0.0
        %2676 = vmatpush1.msra.mxu0 %v728
        %2677 = vmatprep.subr.mxu0 0.0
        %2678 = vmatpush1.msra.mxu0 %v727
        %2679 = vmatprep.subr.mxu0 0.0
        %2680 = vmatpush1.msra.mxu0 %v726
        %2681 = vmatprep.subr.mxu0 0.0
        %2682 = vmatpush1.msra.mxu0 %v725
        %2683 = vmatprep.subr.mxu0 0.0
        %2684 = vmatpush1.msra.mxu0 %v724
        %2685 = vmatprep.subr.mxu0 0.0
        %2686 = vmatpush1.msra.mxu0 %v723
        %2687 = vmatprep.subr.mxu0 0.0
        %2688 = vmatpush1.msra.mxu0 %v722
        %2689 = vmatprep.subr.mxu0 0.0
        %2690 = vmatpush1.msra.mxu0 %v721
        %2691 = vmatprep.subr.mxu0 0.0
        %2692 = vmatpush1.msra.mxu0 %v720
        %2693 = vmatprep.subr.mxu0 0.0
        %2694 = vmatpush2.msra.mxu0 0.0
        %2695 = vmatprep.subr.mxu0 0.0
        %2696 = vmatpush2.msra.mxu0 0.0
        %2697 = vmatprep.subr.mxu0 0.0
        %2698 = vmatpush2.msra.mxu0 0.0
        %2699 = vmatprep.subr.mxu0 0.0
        %2700 = vmatpush2.msra.mxu0 0.0
        %2701 = vmatprep.subr.mxu0 0.0
        %2702 = vmatpush2.msra.mxu0 0.0
        %2703 = vmatprep.subr.mxu0 0.0
        %2704 = vmatpush2.msra.mxu0 0.0
        %2705 = vmatprep.subr.mxu0 0.0
        %2706 = vmatpush2.msra.mxu0 0.0
        %2707 = vmatprep.subr.mxu0 0.0
        %2708 = vmatpush2.msra.mxu0 0.0
        %2709 = vmatprep.subr.mxu0 0.0
        %2710 = vmatpush2.msra.mxu0 0.0
        %2711 = vmatprep.subr.mxu0 0.0
        %2712 = vmatpush2.msra.mxu0 0.0
        %2713 = vmatprep.subr.mxu0 0.0
        %2714 = vmatpush2.msra.mxu0 0.0
        %2715 = vmatprep.subr.mxu0 0.0
        %2716 = vmatpush2.msra.mxu0 0.0
        %2717 = vmatprep.subr.mxu0 0.0
        %2718 = vmatpush2.msra.mxu0 0.0
        %2719 = vmatprep.subr.mxu0 0.0
        %2720 = vmatpush2.msra.mxu0 0.0
        %2721 = vmatprep.subr.mxu0 0.0
        %2722 = vmatpush2.msra.mxu0 0.0
        %2723 = vmatprep.subr.mxu0 0.0
        %2724 = vmatpush2.msra.mxu0 0.0
        %2725 = vmatprep.mubr.f32.mxu0 0.0
        %2726 = vmatmul.mubr.f32.gmra.mxu0 %v2230
        %v2727 = vpop.f32.mrf.mxu0
        %v2728 = vadd.f32 0.0, %v2727
        %v2729 = vpop.f32.mrf.mxu0
        %2730 = vdwg.mxu0
        %2731 = vmatprep.subr.mxu0 0.0
        %2732 = vmatpush1.msra.mxu0 %v751
        %2733 = vmatprep.subr.mxu0 0.0
        %2734 = vmatpush1.msra.mxu0 %v750
        %2735 = vmatprep.subr.mxu0 0.0
        %2736 = vmatpush1.msra.mxu0 %v749
        %2737 = vmatprep.subr.mxu0 0.0
        %2738 = vmatpush1.msra.mxu0 %v748
        %2739 = vmatprep.subr.mxu0 0.0
        %2740 = vmatpush1.msra.mxu0 %v747
        %2741 = vmatprep.subr.mxu0 0.0
        %2742 = vmatpush1.msra.mxu0 %v746
        %2743 = vmatprep.subr.mxu0 0.0
        %2744 = vmatpush1.msra.mxu0 %v745
        %2745 = vmatprep.subr.mxu0 0.0
        %2746 = vmatpush1.msra.mxu0 %v744
        %2747 = vmatprep.subr.mxu0 0.0
        %2748 = vmatpush1.msra.mxu0 %v743
        %2749 = vmatprep.subr.mxu0 0.0
        %2750 = vmatpush1.msra.mxu0 %v742
        %2751 = vmatprep.subr.mxu0 0.0
        %2752 = vmatpush1.msra.mxu0 %v741
        %2753 = vmatprep.subr.mxu0 0.0
        %2754 = vmatpush1.msra.mxu0 %v740
        %2755 = vmatprep.subr.mxu0 0.0
        %2756 = vmatpush1.msra.mxu0 %v739
        %2757 = vmatprep.subr.mxu0 0.0
        %2758 = vmatpush1.msra.mxu0 %v738
        %2759 = vmatprep.subr.mxu0 0.0
        %2760 = vmatpush1.msra.mxu0 %v737
        %2761 = vmatprep.subr.mxu0 0.0
        %2762 = vmatpush1.msra.mxu0 %v736
        %2763 = vmatprep.subr.mxu0 0.0
        %2764 = vmatpush2.msra.mxu0 0.0
        %2765 = vmatprep.subr.mxu0 0.0
        %2766 = vmatpush2.msra.mxu0 0.0
        %2767 = vmatprep.subr.mxu0 0.0
        %2768 = vmatpush2.msra.mxu0 0.0
        %2769 = vmatprep.subr.mxu0 0.0
        %2770 = vmatpush2.msra.mxu0 0.0
        %2771 = vmatprep.subr.mxu0 0.0
        %2772 = vmatpush2.msra.mxu0 0.0
        %2773 = vmatprep.subr.mxu0 0.0
        %2774 = vmatpush2.msra.mxu0 0.0
        %2775 = vmatprep.subr.mxu0 0.0
        %2776 = vmatpush2.msra.mxu0 0.0
        %2777 = vmatprep.subr.mxu0 0.0
        %2778 = vmatpush2.msra.mxu0 0.0
        %2779 = vmatprep.subr.mxu0 0.0
        %2780 = vmatpush2.msra.mxu0 0.0
        %2781 = vmatprep.subr.mxu0 0.0
        %2782 = vmatpush2.msra.mxu0 0.0
        %2783 = vmatprep.subr.mxu0 0.0
        %2784 = vmatpush2.msra.mxu0 0.0
        %2785 = vmatprep.subr.mxu0 0.0
        %2786 = vmatpush2.msra.mxu0 0.0
        %2787 = vmatprep.subr.mxu0 0.0
        %2788 = vmatpush2.msra.mxu0 0.0
        %2789 = vmatprep.subr.mxu0 0.0
        %2790 = vmatpush2.msra.mxu0 0.0
        %2791 = vmatprep.subr.mxu0 0.0
        %2792 = vmatpush2.msra.mxu0 0.0
        %2793 = vmatprep.subr.mxu0 0.0
        %2794 = vmatpush2.msra.mxu0 0.0
        %2795 = vmatprep.mubr.f32.mxu0 0.0
        %2796 = vmatmul.mubr.f32.gmra.mxu0 %v2232
        %v2797 = vpop.f32.mrf.mxu0
        %v2798 = vadd.f32 0.0, %v2797
        %v2799 = vpop.f32.mrf.mxu0
        %2800 = vdwg.mxu0
        %2801 = vmatprep.subr.mxu0 0.0
        %2802 = vmatpush1.msra.mxu0 %v991
        %2803 = vmatprep.subr.mxu0 0.0
        %2804 = vmatpush1.msra.mxu0 %v990
        %2805 = vmatprep.subr.mxu0 0.0
        %2806 = vmatpush1.msra.mxu0 %v989
        %2807 = vmatprep.subr.mxu0 0.0
        %2808 = vmatpush1.msra.mxu0 %v988
        %2809 = vmatprep.subr.mxu0 0.0
        %2810 = vmatpush1.msra.mxu0 %v987
        %2811 = vmatprep.subr.mxu0 0.0
        %2812 = vmatpush1.msra.mxu0 %v986
        %2813 = vmatprep.subr.mxu0 0.0
        %2814 = vmatpush1.msra.mxu0 %v985
        %2815 = vmatprep.subr.mxu0 0.0
        %2816 = vmatpush1.msra.mxu0 %v984
        %2817 = vmatprep.subr.mxu0 0.0
        %2818 = vmatpush1.msra.mxu0 %v983
        %2819 = vmatprep.subr.mxu0 0.0
        %2820 = vmatpush1.msra.mxu0 %v982
        %2821 = vmatprep.subr.mxu0 0.0
        %2822 = vmatpush1.msra.mxu0 %v981
        %2823 = vmatprep.subr.mxu0 0.0
        %2824 = vmatpush1.msra.mxu0 %v980
        %2825 = vmatprep.subr.mxu0 0.0
        %2826 = vmatpush1.msra.mxu0 %v979
        %2827 = vmatprep.subr.mxu0 0.0
        %2828 = vmatpush1.msra.mxu0 %v978
        %2829 = vmatprep.subr.mxu0 0.0
        %2830 = vmatpush1.msra.mxu0 %v977
        %2831 = vmatprep.subr.mxu0 0.0
        %2832 = vmatpush1.msra.mxu0 %v976
        %2833 = vmatprep.subr.mxu0 0.0
        %2834 = vmatpush2.msra.mxu0 0.0
        %2835 = vmatprep.subr.mxu0 0.0
        %2836 = vmatpush2.msra.mxu0 0.0
        %2837 = vmatprep.subr.mxu0 0.0
        %2838 = vmatpush2.msra.mxu0 0.0
        %2839 = vmatprep.subr.mxu0 0.0
        %2840 = vmatpush2.msra.mxu0 0.0
        %2841 = vmatprep.subr.mxu0 0.0
        %2842 = vmatpush2.msra.mxu0 0.0
        %2843 = vmatprep.subr.mxu0 0.0
        %2844 = vmatpush2.msra.mxu0 0.0
        %2845 = vmatprep.subr.mxu0 0.0
        %2846 = vmatpush2.msra.mxu0 0.0
        %2847 = vmatprep.subr.mxu0 0.0
        %2848 = vmatpush2.msra.mxu0 0.0
        %2849 = vmatprep.subr.mxu0 0.0
        %2850 = vmatpush2.msra.mxu0 0.0
        %2851 = vmatprep.subr.mxu0 0.0
        %2852 = vmatpush2.msra.mxu0 0.0
        %2853 = vmatprep.subr.mxu0 0.0
        %2854 = vmatpush2.msra.mxu0 0.0
        %2855 = vmatprep.subr.mxu0 0.0
        %2856 = vmatpush2.msra.mxu0 0.0
        %2857 = vmatprep.subr.mxu0 0.0
        %2858 = vmatpush2.msra.mxu0 0.0
        %2859 = vmatprep.subr.mxu0 0.0
        %2860 = vmatpush2.msra.mxu0 0.0
        %2861 = vmatprep.subr.mxu0 0.0
        %2862 = vmatpush2.msra.mxu0 0.0
        %2863 = vmatprep.subr.mxu0 0.0
        %2864 = vmatpush2.msra.mxu0 0.0
        %2865 = vmatprep.mubr.f32.mxu0 0.0
        %2866 = vmatmul.mubr.f32.gmra.mxu0 %v1454
        %v2867 = vpop.f32.mrf.mxu0
        %v2868 = vadd.f32 0.0, %v2867
        %v2869 = vpop.f32.mrf.mxu0
        %2870 = vdwg.mxu0
        %v2879 = vrot.slane %v2378, 7
        %v2880 = vsel %vm2152, %v2879, %v2308
        %v2881 = vrot.slane %v2448, 6
        %v2882 = vsel %vm2155, %v2881, %v2880
        %v2883 = vrot.slane %v2518, 5
        %v2884 = vsel %vm2158, %v2883, %v2882
        %v2885 = vrot.slane %v2588, 4
        %v2886 = vsel %vm2161, %v2885, %v2884
        %v2887 = vrot.slane %v2658, 3
        %v2888 = vsel %vm2164, %v2887, %v2886
        %v2889 = vrot.slane %v2728, 2
        %v2890 = vsel %vm2167, %v2889, %v2888
        %v2891 = vrot.slane %v2798, 1
        %v2892 = vsel %vm2170, %v2891, %v2890
        %2894 = vmatprep.subr.mxu0 0.0
        %2895 = vmatpush1.msra.mxu0 %v975
        %2896 = vmatprep.subr.mxu0 0.0
        %2897 = vmatpush1.msra.mxu0 %v974
        %2898 = vmatprep.subr.mxu0 0.0
        %2899 = vmatpush1.msra.mxu0 %v973
        %2900 = vmatprep.subr.mxu0 0.0
        %2901 = vmatpush1.msra.mxu0 %v972
        %2902 = vmatprep.subr.mxu0 0.0
        %2903 = vmatpush1.msra.mxu0 %v971
        %2904 = vmatprep.subr.mxu0 0.0
        %2905 = vmatpush1.msra.mxu0 %v970
        %2906 = vmatprep.subr.mxu0 0.0
        %2907 = vmatpush1.msra.mxu0 %v969
        %2908 = vmatprep.subr.mxu0 0.0
        %2909 = vmatpush1.msra.mxu0 %v968
        %2910 = vmatprep.subr.mxu0 0.0
        %2911 = vmatpush1.msra.mxu0 %v967
        %2912 = vmatprep.subr.mxu0 0.0
        %2913 = vmatpush1.msra.mxu0 %v966
        %2914 = vmatprep.subr.mxu0 0.0
        %2915 = vmatpush1.msra.mxu0 %v965
        %2916 = vmatprep.subr.mxu0 0.0
        %2917 = vmatpush1.msra.mxu0 %v964
        %2918 = vmatprep.subr.mxu0 0.0
        %2919 = vmatpush1.msra.mxu0 %v963
        %2920 = vmatprep.subr.mxu0 0.0
        %2921 = vmatpush1.msra.mxu0 %v962
        %2922 = vmatprep.subr.mxu0 0.0
        %2923 = vmatpush1.msra.mxu0 %v961
        %2924 = vmatprep.subr.mxu0 0.0
        %2925 = vmatpush1.msra.mxu0 %v960
        %2926 = vmatprep.subr.mxu0 0.0
        %2927 = vmatpush2.msra.mxu0 0.0
        %2928 = vmatprep.subr.mxu0 0.0
        %2929 = vmatpush2.msra.mxu0 0.0
        %2930 = vmatprep.subr.mxu0 0.0
        %2931 = vmatpush2.msra.mxu0 0.0
        %2932 = vmatprep.subr.mxu0 0.0
        %2933 = vmatpush2.msra.mxu0 0.0
        %2934 = vmatprep.subr.mxu0 0.0
        %2935 = vmatpush2.msra.mxu0 0.0
        %2936 = vmatprep.subr.mxu0 0.0
        %2937 = vmatpush2.msra.mxu0 0.0
        %2938 = vmatprep.subr.mxu0 0.0
        %2939 = vmatpush2.msra.mxu0 0.0
        %2940 = vmatprep.subr.mxu0 0.0
        %2941 = vmatpush2.msra.mxu0 0.0
        %2942 = vmatprep.subr.mxu0 0.0
        %2943 = vmatpush2.msra.mxu0 0.0
        %2944 = vmatprep.subr.mxu0 0.0
        %2945 = vmatpush2.msra.mxu0 0.0
        %2946 = vmatprep.subr.mxu0 0.0
        %2947 = vmatpush2.msra.mxu0 0.0
        %2948 = vmatprep.subr.mxu0 0.0
        %2949 = vmatpush2.msra.mxu0 0.0
        %2950 = vmatprep.subr.mxu0 0.0
        %2951 = vmatpush2.msra.mxu0 0.0
        %2952 = vmatprep.subr.mxu0 0.0
        %2953 = vmatpush2.msra.mxu0 0.0
        %2954 = vmatprep.subr.mxu0 0.0
        %2955 = vmatpush2.msra.mxu0 0.0
        %2956 = vmatprep.subr.mxu0 0.0
        %2957 = vmatpush2.msra.mxu0 0.0
        %2958 = vmatprep.mubr.f32.mxu0 0.0
        %2959 = vmatmul.mubr.f32.gmra.mxu0 %v2892
        %v2960 = vpop.f32.mrf.mxu0
        %v2961 = vadd.f32 %v2868, %v2960
        %v2962 = vpop.f32.mrf.mxu0
        %2963 = vdwg.mxu0
        %v2964 = vtanh.pop %v2961
        %2965 = vst [vmem:[%s609] sm:$0xff] %v2964
        %s2966 = scalar_lea.vmem [#allocation4], 32
        %v2967 = vld [vmem:[%s2966] sm:$0xff]
        %v2968 = vld [vmem:[%s2966 + $0x8] sm:$0xff]
        %v2969 = vld [vmem:[%s2966 + $0x10] sm:$0xff]
        %v2970 = vld [vmem:[%s2966 + $0x18] sm:$0xff]
        %2971 = vmatprep.subr.mxu0 %v941
        %2972 = vmatpush1.msra.mxu0 %v940
        %2973 = vmatprep.subr.mxu0 %v937
        %2974 = vmatpush1.msra.mxu0 %v936
        %2975 = vmatprep.subr.mxu0 %v933
        %2976 = vmatpush1.msra.mxu0 %v932
        %2977 = vmatprep.subr.mxu0 %v929
        %2978 = vmatpush1.msra.mxu0 %v928
        %2979 = vmatprep.subr.mxu0 %v925
        %2980 = vmatpush1.msra.mxu0 %v924
        %2981 = vmatprep.subr.mxu0 %v921
        %2982 = vmatpush1.msra.mxu0 %v920
        %2983 = vmatprep.subr.mxu0 %v917
        %2984 = vmatpush1.msra.mxu0 %v916
        %2985 = vmatprep.subr.mxu0 %v913
        %2986 = vmatpush1.msra.mxu0 %v912
        %2987 = vmatprep.subr.mxu0 %v909
        %2988 = vmatpush1.msra.mxu0 %v908
        %2989 = vmatprep.subr.mxu0 %v905
        %2990 = vmatpush1.msra.mxu0 %v904
        %2991 = vmatprep.subr.mxu0 %v901
        %2992 = vmatpush1.msra.mxu0 %v900
        %2993 = vmatprep.subr.mxu0 %v897
        %2994 = vmatpush1.msra.mxu0 %v896
        %2995 = vmatprep.subr.mxu0 %v893
        %2996 = vmatpush1.msra.mxu0 %v892
        %2997 = vmatprep.subr.mxu0 %v889
        %2998 = vmatpush1.msra.mxu0 %v888
        %2999 = vmatprep.subr.mxu0 %v885
        %3000 = vmatpush1.msra.mxu0 %v884
        %3001 = vmatprep.subr.mxu0 %v881
        %3002 = vmatpush1.msra.mxu0 %v880
        %3003 = vmatprep.subr.mxu0 0.0
        %3004 = vmatpush2.msra.mxu0 0.0
        %3005 = vmatprep.subr.mxu0 0.0
        %3006 = vmatpush2.msra.mxu0 0.0
        %3007 = vmatprep.subr.mxu0 0.0
        %3008 = vmatpush2.msra.mxu0 0.0
        %3009 = vmatprep.subr.mxu0 0.0
        %3010 = vmatpush2.msra.mxu0 0.0
        %3011 = vmatprep.subr.mxu0 0.0
        %3012 = vmatpush2.msra.mxu0 0.0
        %3013 = vmatprep.subr.mxu0 0.0
        %3014 = vmatpush2.msra.mxu0 0.0
        %3015 = vmatprep.subr.mxu0 0.0
        %3016 = vmatpush2.msra.mxu0 0.0
        %3017 = vmatprep.subr.mxu0 0.0
        %3018 = vmatpush2.msra.mxu0 0.0
        %3019 = vmatprep.subr.mxu0 0.0
        %3020 = vmatpush2.msra.mxu0 0.0
        %3021 = vmatprep.subr.mxu0 0.0
        %3022 = vmatpush2.msra.mxu0 0.0
        %3023 = vmatprep.subr.mxu0 0.0
        %3024 = vmatpush2.msra.mxu0 0.0
        %3025 = vmatprep.subr.mxu0 0.0
        %3026 = vmatpush2.msra.mxu0 0.0
        %3027 = vmatprep.subr.mxu0 0.0
        %3028 = vmatpush2.msra.mxu0 0.0
        %3029 = vmatprep.subr.mxu0 0.0
        %3030 = vmatpush2.msra.mxu0 0.0
        %3031 = vmatprep.subr.mxu0 0.0
        %3032 = vmatpush2.msra.mxu0 0.0
        %3033 = vmatprep.subr.mxu0 0.0
        %3034 = vmatpush2.msra.mxu0 0.0
        %3035 = vmatprep.mubr.f32.mxu0 0.0
        %3036 = vmatmul.mubr.f32.gmra.mxu0 %v2964
        %v3037 = vpop.f32.mrf.mxu0
        %v3038 = vadd.f32 0.0, %v3037
        %v3039 = vpop.f32.mrf.mxu0
        %v3040 = vadd.f32 0.0, %v3039
        %3041 = vdwg.mxu0
        %3042 = vmatprep.subr.mxu0 %v943
        %3043 = vmatpush1.msra.mxu0 %v942
        %3044 = vmatprep.subr.mxu0 %v939
        %3045 = vmatpush1.msra.mxu0 %v938
        %3046 = vmatprep.subr.mxu0 %v935
        %3047 = vmatpush1.msra.mxu0 %v934
        %3048 = vmatprep.subr.mxu0 %v931
        %3049 = vmatpush1.msra.mxu0 %v930
        %3050 = vmatprep.subr.mxu0 %v927
        %3051 = vmatpush1.msra.mxu0 %v926
        %3052 = vmatprep.subr.mxu0 %v923
        %3053 = vmatpush1.msra.mxu0 %v922
        %3054 = vmatprep.subr.mxu0 %v919
        %3055 = vmatpush1.msra.mxu0 %v918
        %3056 = vmatprep.subr.mxu0 %v915
        %3057 = vmatpush1.msra.mxu0 %v914
        %3058 = vmatprep.subr.mxu0 %v911
        %3059 = vmatpush1.msra.mxu0 %v910
        %3060 = vmatprep.subr.mxu0 %v907
        %3061 = vmatpush1.msra.mxu0 %v906
        %3062 = vmatprep.subr.mxu0 %v903
        %3063 = vmatpush1.msra.mxu0 %v902
        %3064 = vmatprep.subr.mxu0 %v899
        %3065 = vmatpush1.msra.mxu0 %v898
        %3066 = vmatprep.subr.mxu0 %v895
        %3067 = vmatpush1.msra.mxu0 %v894
        %3068 = vmatprep.subr.mxu0 %v891
        %3069 = vmatpush1.msra.mxu0 %v890
        %3070 = vmatprep.subr.mxu0 %v887
        %3071 = vmatpush1.msra.mxu0 %v886
        %3072 = vmatprep.subr.mxu0 %v883
        %3073 = vmatpush1.msra.mxu0 %v882
        %3074 = vmatprep.subr.mxu0 0.0
        %3075 = vmatpush2.msra.mxu0 0.0
        %3076 = vmatprep.subr.mxu0 0.0
        %3077 = vmatpush2.msra.mxu0 0.0
        %3078 = vmatprep.subr.mxu0 0.0
        %3079 = vmatpush2.msra.mxu0 0.0
        %3080 = vmatprep.subr.mxu0 0.0
        %3081 = vmatpush2.msra.mxu0 0.0
        %3082 = vmatprep.subr.mxu0 0.0
        %3083 = vmatpush2.msra.mxu0 0.0
        %3084 = vmatprep.subr.mxu0 0.0
        %3085 = vmatpush2.msra.mxu0 0.0
        %3086 = vmatprep.subr.mxu0 0.0
        %3087 = vmatpush2.msra.mxu0 0.0
        %3088 = vmatprep.subr.mxu0 0.0
        %3089 = vmatpush2.msra.mxu0 0.0
        %3090 = vmatprep.subr.mxu0 0.0
        %3091 = vmatpush2.msra.mxu0 0.0
        %3092 = vmatprep.subr.mxu0 0.0
        %3093 = vmatpush2.msra.mxu0 0.0
        %3094 = vmatprep.subr.mxu0 0.0
        %3095 = vmatpush2.msra.mxu0 0.0
        %3096 = vmatprep.subr.mxu0 0.0
        %3097 = vmatpush2.msra.mxu0 0.0
        %3098 = vmatprep.subr.mxu0 0.0
        %3099 = vmatpush2.msra.mxu0 0.0
        %3100 = vmatprep.subr.mxu0 0.0
        %3101 = vmatpush2.msra.mxu0 0.0
        %3102 = vmatprep.subr.mxu0 0.0
        %3103 = vmatpush2.msra.mxu0 0.0
        %3104 = vmatprep.subr.mxu0 0.0
        %3105 = vmatpush2.msra.mxu0 0.0
        %3106 = vmatprep.mubr.f32.mxu0 0.0
        %3107 = vmatmul.mubr.f32.gmra.mxu0 %v2964
        %v3108 = vpop.f32.mrf.mxu0
        %v3109 = vadd.f32 0.0, %v3108
        %v3110 = vpop.f32.mrf.mxu0
        %v3111 = vadd.f32 0.0, %v3110
        %3112 = vdwg.mxu0
        %v3113 = vadd.f32 %v2967, %v3038
        %v3114 = vadd.f32 %v2968, %v3040
        %v3115 = vadd.f32 %v2969, %v3109
        %v3116 = vadd.f32 %v2970, %v3111
        %v3117 = vxor.u32 %v3113, 2147483648
        %v3118 = vxor.u32 %v3114, 2147483648
        %v3119 = vxor.u32 %v3115, 2147483648
        %v3120 = vmul.f32 %v3117, 1.442695
        %v3121 = vpow.pop %v3120
        %v3122 = vmul.f32 %v3118, 1.442695
        %v3123 = vpow.pop %v3122
        %v3124 = vmul.f32 %v3119, 1.442695
        %v3125 = vpow.pop %v3124
        %v3126 = vadd.f32 %v3121, 1.0
        %v3127 = vadd.f32 %v3123, 1.0
        %v3128 = vadd.f32 %v3125, 1.0
        %v3129 = vrcp.pop %v3126
        %v3130 = vmul.f32 1.0, %v3129
        %v3131 = vrcp.pop %v3127
        %v3132 = vmul.f32 1.0, %v3131
        %v3133 = vrcp.pop %v3128
        %v3134 = vmul.f32 1.0, %v3133
        %v3135 = vtanh.pop %v3116
        %v3136 = vmul.f32 %v3132, %v1452
        %v3137 = vmul.f32 %v3130, %v3135
        %v3138 = vadd.f32 %v3136, %v3137
        %v3139 = vtanh.pop %v3138
        %v3140 = vmul.f32 %v3134, %v3139
        %3141 = vmatprep.subr.mxu0 0.0
        %3142 = vmatpush1.msra.mxu0 %v959
        %3143 = vmatprep.subr.mxu0 0.0
        %3144 = vmatpush1.msra.mxu0 %v958
        %3145 = vmatprep.subr.mxu0 0.0
        %3146 = vmatpush1.msra.mxu0 %v957
        %3147 = vmatprep.subr.mxu0 0.0
        %3148 = vmatpush1.msra.mxu0 %v956
        %3149 = vmatprep.subr.mxu0 0.0
        %3150 = vmatpush1.msra.mxu0 %v955
        %3151 = vmatprep.subr.mxu0 0.0
        %3152 = vmatpush1.msra.mxu0 %v954
        %3153 = vmatprep.subr.mxu0 0.0
        %3154 = vmatpush1.msra.mxu0 %v953
        %3155 = vmatprep.subr.mxu0 0.0
        %3156 = vmatpush1.msra.mxu0 %v952
        %3157 = vmatprep.subr.mxu0 0.0
        %3158 = vmatpush1.msra.mxu0 %v951
        %3159 = vmatprep.subr.mxu0 0.0
        %3160 = vmatpush1.msra.mxu0 %v950
        %3161 = vmatprep.subr.mxu0 0.0
        %3162 = vmatpush1.msra.mxu0 %v949
        %3163 = vmatprep.subr.mxu0 0.0
        %3164 = vmatpush1.msra.mxu0 %v948
        %3165 = vmatprep.subr.mxu0 0.0
        %3166 = vmatpush1.msra.mxu0 %v947
        %3167 = vmatprep.subr.mxu0 0.0
        %3168 = vmatpush1.msra.mxu0 %v946
        %3169 = vmatprep.subr.mxu0 0.0
        %3170 = vmatpush1.msra.mxu0 %v945
        %3171 = vmatprep.subr.mxu0 0.0
        %3172 = vmatpush1.msra.mxu0 %v944
        %3173 = vmatprep.subr.mxu0 0.0
        %3174 = vmatpush2.msra.mxu0 0.0
        %3175 = vmatprep.subr.mxu0 0.0
        %3176 = vmatpush2.msra.mxu0 0.0
        %3177 = vmatprep.subr.mxu0 0.0
        %3178 = vmatpush2.msra.mxu0 0.0
        %3179 = vmatprep.subr.mxu0 0.0
        %3180 = vmatpush2.msra.mxu0 0.0
        %3181 = vmatprep.subr.mxu0 0.0
        %3182 = vmatpush2.msra.mxu0 0.0
        %3183 = vmatprep.subr.mxu0 0.0
        %3184 = vmatpush2.msra.mxu0 0.0
        %3185 = vmatprep.subr.mxu0 0.0
        %3186 = vmatpush2.msra.mxu0 0.0
        %3187 = vmatprep.subr.mxu0 0.0
        %3188 = vmatpush2.msra.mxu0 0.0
        %3189 = vmatprep.subr.mxu0 0.0
        %3190 = vmatpush2.msra.mxu0 0.0
        %3191 = vmatprep.subr.mxu0 0.0
        %3192 = vmatpush2.msra.mxu0 0.0
        %3193 = vmatprep.subr.mxu0 0.0
        %3194 = vmatpush2.msra.mxu0 0.0
        %3195 = vmatprep.subr.mxu0 0.0
        %3196 = vmatpush2.msra.mxu0 0.0
        %3197 = vmatprep.subr.mxu0 0.0
        %3198 = vmatpush2.msra.mxu0 0.0
        %3199 = vmatprep.subr.mxu0 0.0
        %3200 = vmatpush2.msra.mxu0 0.0
        %3201 = vmatprep.subr.mxu0 0.0
        %3202 = vmatpush2.msra.mxu0 0.0
        %3203 = vmatprep.subr.mxu0 0.0
        %3204 = vmatpush2.msra.mxu0 0.0
        %3205 = vmatprep.mubr.f32.mxu0 0.0
        %3206 = vmatmul.mubr.f32.gmra.mxu0 %v3140
        %v3207 = vpop.f32.mrf.mxu0
        %v3208 = vadd.f32 0.0, %v3207
        %v3209 = vpop.f32.mrf.mxu0
        %3210 = vdwg.mxu0
        %v3212 = vcombine.high %v3208, %v3208
        %v3214 = vunpack.c.l.s4 1966171168
        %v3215 = vunpack.c.0.s8 %v3214
        %v3216 = vlaneseq
        %v3217 = vshrl.u32 %v3216, 7
        %v3218 = vsub.s32 %v3215, %v3217
        %v3219 = vrot.slane %v3208, %v3218
        %v3221 = vunpack.c.l.s4 1966171168
        %v3222 = vunpack.c.0.s8 %v3221
        %v3223 = vlaneseq
        %v3224 = vshrl.u32 %v3223, 7
        %v3225 = vsub.s32 %v3222, %v3224
        %v3226 = vrot.slane %v3212, %v3225
        %v3227 = vcombine.high %v3219, %v3219
        %v3228 = vcombine.high %v3226, %v3226
        %v3230 = vunpack.c.l.s4 1966171168
        %v3231 = vunpack.c.0.s8 %v3230
        %v3232 = vlaneseq
        %v3233 = vshrl.u32 %v3232, 7
        %v3234 = vsub.s32 %v3231, %v3233
        %v3235 = vrot.slane %v3219, %v3234
        %v3237 = vunpack.c.l.s4 1966171168
        %v3238 = vunpack.c.0.s8 %v3237
        %v3239 = vlaneseq
        %v3240 = vshrl.u32 %v3239, 7
        %v3241 = vsub.s32 %v3238, %v3240
        %v3242 = vrot.slane %v3226, %v3241
        %v3244 = vunpack.c.l.s4 1966171168
        %v3245 = vunpack.c.0.s8 %v3244
        %v3246 = vlaneseq
        %v3247 = vshrl.u32 %v3246, 7
        %v3248 = vsub.s32 %v3245, %v3247
        %v3249 = vrot.slane %v3227, %v3248
        %v3251 = vunpack.c.l.s4 1966171168
        %v3252 = vunpack.c.0.s8 %v3251
        %v3253 = vlaneseq
        %v3254 = vshrl.u32 %v3253, 7
        %v3255 = vsub.s32 %v3252, %v3254
        %v3256 = vrot.slane %v3228, %v3255
        %v3257 = vcombine.high %v3235, %v3235
        %v3258 = vcombine.high %v3242, %v3242
        %v3259 = vcombine.high %v3249, %v3249
        %v3260 = vcombine.high %v3256, %v3256
        %3269 = vmatprep.subr.mxu0 0.0
        %3270 = vmatpush1.msra.mxu0 %v767
        %3271 = vmatprep.subr.mxu0 0.0
        %3272 = vmatpush1.msra.mxu0 %v766
        %3273 = vmatprep.subr.mxu0 0.0
        %3274 = vmatpush1.msra.mxu0 %v765
        %3275 = vmatprep.subr.mxu0 0.0
        %3276 = vmatpush1.msra.mxu0 %v764
        %3277 = vmatprep.subr.mxu0 0.0
        %3278 = vmatpush1.msra.mxu0 %v763
        %3279 = vmatprep.subr.mxu0 0.0
        %3280 = vmatpush1.msra.mxu0 %v762
        %3281 = vmatprep.subr.mxu0 0.0
        %3282 = vmatpush1.msra.mxu0 %v761
        %3283 = vmatprep.subr.mxu0 0.0
        %3284 = vmatpush1.msra.mxu0 %v760
        %3285 = vmatprep.subr.mxu0 0.0
        %3286 = vmatpush1.msra.mxu0 %v759
        %3287 = vmatprep.subr.mxu0 0.0
        %3288 = vmatpush1.msra.mxu0 %v758
        %3289 = vmatprep.subr.mxu0 0.0
        %3290 = vmatpush1.msra.mxu0 %v757
        %3291 = vmatprep.subr.mxu0 0.0
        %3292 = vmatpush1.msra.mxu0 %v756
        %3293 = vmatprep.subr.mxu0 0.0
        %3294 = vmatpush1.msra.mxu0 %v755
        %3295 = vmatprep.subr.mxu0 0.0
        %3296 = vmatpush1.msra.mxu0 %v754
        %3297 = vmatprep.subr.mxu0 0.0
        %3298 = vmatpush1.msra.mxu0 %v753
        %3299 = vmatprep.subr.mxu0 0.0
        %3300 = vmatpush1.msra.mxu0 %v752
        %3301 = vmatprep.subr.mxu0 0.0
        %3302 = vmatpush2.msra.mxu0 0.0
        %3303 = vmatprep.subr.mxu0 0.0
        %3304 = vmatpush2.msra.mxu0 0.0
        %3305 = vmatprep.subr.mxu0 0.0
        %3306 = vmatpush2.msra.mxu0 0.0
        %3307 = vmatprep.subr.mxu0 0.0
        %3308 = vmatpush2.msra.mxu0 0.0
        %3309 = vmatprep.subr.mxu0 0.0
        %3310 = vmatpush2.msra.mxu0 0.0
        %3311 = vmatprep.subr.mxu0 0.0
        %3312 = vmatpush2.msra.mxu0 0.0
        %3313 = vmatprep.subr.mxu0 0.0
        %3314 = vmatpush2.msra.mxu0 0.0
        %3315 = vmatprep.subr.mxu0 0.0
        %3316 = vmatpush2.msra.mxu0 0.0
        %3317 = vmatprep.subr.mxu0 0.0
        %3318 = vmatpush2.msra.mxu0 0.0
        %3319 = vmatprep.subr.mxu0 0.0
        %3320 = vmatpush2.msra.mxu0 0.0
        %3321 = vmatprep.subr.mxu0 0.0
        %3322 = vmatpush2.msra.mxu0 0.0
        %3323 = vmatprep.subr.mxu0 0.0
        %3324 = vmatpush2.msra.mxu0 0.0
        %3325 = vmatprep.subr.mxu0 0.0
        %3326 = vmatpush2.msra.mxu0 0.0
        %3327 = vmatprep.subr.mxu0 0.0
        %3328 = vmatpush2.msra.mxu0 0.0
        %3329 = vmatprep.subr.mxu0 0.0
        %3330 = vmatpush2.msra.mxu0 0.0
        %3331 = vmatprep.subr.mxu0 0.0
        %3332 = vmatpush2.msra.mxu0 0.0
        %3333 = vmatprep.mubr.f32.mxu0 0.0
        %3334 = vmatmul.mubr.f32.gmra.mxu0 %v3235
        %v3335 = vpop.f32.mrf.mxu0
        %v3336 = vadd.f32 0.0, %v3335
        %v3337 = vpop.f32.mrf.mxu0
        %3338 = vdwg.mxu0
        %3339 = vmatprep.subr.mxu0 0.0
        %3340 = vmatpush1.msra.mxu0 %v783
        %3341 = vmatprep.subr.mxu0 0.0
        %3342 = vmatpush1.msra.mxu0 %v782
        %3343 = vmatprep.subr.mxu0 0.0
        %3344 = vmatpush1.msra.mxu0 %v781
        %3345 = vmatprep.subr.mxu0 0.0
        %3346 = vmatpush1.msra.mxu0 %v780
        %3347 = vmatprep.subr.mxu0 0.0
        %3348 = vmatpush1.msra.mxu0 %v779
        %3349 = vmatprep.subr.mxu0 0.0
        %3350 = vmatpush1.msra.mxu0 %v778
        %3351 = vmatprep.subr.mxu0 0.0
        %3352 = vmatpush1.msra.mxu0 %v777
        %3353 = vmatprep.subr.mxu0 0.0
        %3354 = vmatpush1.msra.mxu0 %v776
        %3355 = vmatprep.subr.mxu0 0.0
        %3356 = vmatpush1.msra.mxu0 %v775
        %3357 = vmatprep.subr.mxu0 0.0
        %3358 = vmatpush1.msra.mxu0 %v774
        %3359 = vmatprep.subr.mxu0 0.0
        %3360 = vmatpush1.msra.mxu0 %v773
        %3361 = vmatprep.subr.mxu0 0.0
        %3362 = vmatpush1.msra.mxu0 %v772
        %3363 = vmatprep.subr.mxu0 0.0
        %3364 = vmatpush1.msra.mxu0 %v771
        %3365 = vmatprep.subr.mxu0 0.0
        %3366 = vmatpush1.msra.mxu0 %v770
        %3367 = vmatprep.subr.mxu0 0.0
        %3368 = vmatpush1.msra.mxu0 %v769
        %3369 = vmatprep.subr.mxu0 0.0
        %3370 = vmatpush1.msra.mxu0 %v768
        %3371 = vmatprep.subr.mxu0 0.0
        %3372 = vmatpush2.msra.mxu0 0.0
        %3373 = vmatprep.subr.mxu0 0.0
        %3374 = vmatpush2.msra.mxu0 0.0
        %3375 = vmatprep.subr.mxu0 0.0
        %3376 = vmatpush2.msra.mxu0 0.0
        %3377 = vmatprep.subr.mxu0 0.0
        %3378 = vmatpush2.msra.mxu0 0.0
        %3379 = vmatprep.subr.mxu0 0.0
        %3380 = vmatpush2.msra.mxu0 0.0
        %3381 = vmatprep.subr.mxu0 0.0
        %3382 = vmatpush2.msra.mxu0 0.0
        %3383 = vmatprep.subr.mxu0 0.0
        %3384 = vmatpush2.msra.mxu0 0.0
        %3385 = vmatprep.subr.mxu0 0.0
        %3386 = vmatpush2.msra.mxu0 0.0
        %3387 = vmatprep.subr.mxu0 0.0
        %3388 = vmatpush2.msra.mxu0 0.0
        %3389 = vmatprep.subr.mxu0 0.0
        %3390 = vmatpush2.msra.mxu0 0.0
        %3391 = vmatprep.subr.mxu0 0.0
        %3392 = vmatpush2.msra.mxu0 0.0
        %3393 = vmatprep.subr.mxu0 0.0
        %3394 = vmatpush2.msra.mxu0 0.0
        %3395 = vmatprep.subr.mxu0 0.0
        %3396 = vmatpush2.msra.mxu0 0.0
        %3397 = vmatprep.subr.mxu0 0.0
        %3398 = vmatpush2.msra.mxu0 0.0
        %3399 = vmatprep.subr.mxu0 0.0
        %3400 = vmatpush2.msra.mxu0 0.0
        %3401 = vmatprep.subr.mxu0 0.0
        %3402 = vmatpush2.msra.mxu0 0.0
        %3403 = vmatprep.mubr.f32.mxu0 0.0
        %3404 = vmatmul.mubr.f32.gmra.mxu0 %v3249
        %v3405 = vpop.f32.mrf.mxu0
        %v3406 = vadd.f32 0.0, %v3405
        %v3407 = vpop.f32.mrf.mxu0
        %3408 = vdwg.mxu0
        %3409 = vmatprep.subr.mxu0 0.0
        %3410 = vmatpush1.msra.mxu0 %v799
        %3411 = vmatprep.subr.mxu0 0.0
        %3412 = vmatpush1.msra.mxu0 %v798
        %3413 = vmatprep.subr.mxu0 0.0
        %3414 = vmatpush1.msra.mxu0 %v797
        %3415 = vmatprep.subr.mxu0 0.0
        %3416 = vmatpush1.msra.mxu0 %v796
        %3417 = vmatprep.subr.mxu0 0.0
        %3418 = vmatpush1.msra.mxu0 %v795
        %3419 = vmatprep.subr.mxu0 0.0
        %3420 = vmatpush1.msra.mxu0 %v794
        %3421 = vmatprep.subr.mxu0 0.0
        %3422 = vmatpush1.msra.mxu0 %v793
        %3423 = vmatprep.subr.mxu0 0.0
        %3424 = vmatpush1.msra.mxu0 %v792
        %3425 = vmatprep.subr.mxu0 0.0
        %3426 = vmatpush1.msra.mxu0 %v791
        %3427 = vmatprep.subr.mxu0 0.0
        %3428 = vmatpush1.msra.mxu0 %v790
        %3429 = vmatprep.subr.mxu0 0.0
        %3430 = vmatpush1.msra.mxu0 %v789
        %3431 = vmatprep.subr.mxu0 0.0
        %3432 = vmatpush1.msra.mxu0 %v788
        %3433 = vmatprep.subr.mxu0 0.0
        %3434 = vmatpush1.msra.mxu0 %v787
        %3435 = vmatprep.subr.mxu0 0.0
        %3436 = vmatpush1.msra.mxu0 %v786
        %3437 = vmatprep.subr.mxu0 0.0
        %3438 = vmatpush1.msra.mxu0 %v785
        %3439 = vmatprep.subr.mxu0 0.0
        %3440 = vmatpush1.msra.mxu0 %v784
        %3441 = vmatprep.subr.mxu0 0.0
        %3442 = vmatpush2.msra.mxu0 0.0
        %3443 = vmatprep.subr.mxu0 0.0
        %3444 = vmatpush2.msra.mxu0 0.0
        %3445 = vmatprep.subr.mxu0 0.0
        %3446 = vmatpush2.msra.mxu0 0.0
        %3447 = vmatprep.subr.mxu0 0.0
        %3448 = vmatpush2.msra.mxu0 0.0
        %3449 = vmatprep.subr.mxu0 0.0
        %3450 = vmatpush2.msra.mxu0 0.0
        %3451 = vmatprep.subr.mxu0 0.0
        %3452 = vmatpush2.msra.mxu0 0.0
        %3453 = vmatprep.subr.mxu0 0.0
        %3454 = vmatpush2.msra.mxu0 0.0
        %3455 = vmatprep.subr.mxu0 0.0
        %3456 = vmatpush2.msra.mxu0 0.0
        %3457 = vmatprep.subr.mxu0 0.0
        %3458 = vmatpush2.msra.mxu0 0.0
        %3459 = vmatprep.subr.mxu0 0.0
        %3460 = vmatpush2.msra.mxu0 0.0
        %3461 = vmatprep.subr.mxu0 0.0
        %3462 = vmatpush2.msra.mxu0 0.0
        %3463 = vmatprep.subr.mxu0 0.0
        %3464 = vmatpush2.msra.mxu0 0.0
        %3465 = vmatprep.subr.mxu0 0.0
        %3466 = vmatpush2.msra.mxu0 0.0
        %3467 = vmatprep.subr.mxu0 0.0
        %3468 = vmatpush2.msra.mxu0 0.0
        %3469 = vmatprep.subr.mxu0 0.0
        %3470 = vmatpush2.msra.mxu0 0.0
        %3471 = vmatprep.subr.mxu0 0.0
        %3472 = vmatpush2.msra.mxu0 0.0
        %3473 = vmatprep.mubr.f32.mxu0 0.0
        %3474 = vmatmul.mubr.f32.gmra.mxu0 %v3257
        %v3475 = vpop.f32.mrf.mxu0
        %v3476 = vadd.f32 0.0, %v3475
        %v3477 = vpop.f32.mrf.mxu0
        %3478 = vdwg.mxu0
        %3479 = vmatprep.subr.mxu0 0.0
        %3480 = vmatpush1.msra.mxu0 %v815
        %3481 = vmatprep.subr.mxu0 0.0
        %3482 = vmatpush1.msra.mxu0 %v814
        %3483 = vmatprep.subr.mxu0 0.0
        %3484 = vmatpush1.msra.mxu0 %v813
        %3485 = vmatprep.subr.mxu0 0.0
        %3486 = vmatpush1.msra.mxu0 %v812
        %3487 = vmatprep.subr.mxu0 0.0
        %3488 = vmatpush1.msra.mxu0 %v811
        %3489 = vmatprep.subr.mxu0 0.0
        %3490 = vmatpush1.msra.mxu0 %v810
        %3491 = vmatprep.subr.mxu0 0.0
        %3492 = vmatpush1.msra.mxu0 %v809
        %3493 = vmatprep.subr.mxu0 0.0
        %3494 = vmatpush1.msra.mxu0 %v808
        %3495 = vmatprep.subr.mxu0 0.0
        %3496 = vmatpush1.msra.mxu0 %v807
        %3497 = vmatprep.subr.mxu0 0.0
        %3498 = vmatpush1.msra.mxu0 %v806
        %3499 = vmatprep.subr.mxu0 0.0
        %3500 = vmatpush1.msra.mxu0 %v805
        %3501 = vmatprep.subr.mxu0 0.0
        %3502 = vmatpush1.msra.mxu0 %v804
        %3503 = vmatprep.subr.mxu0 0.0
        %3504 = vmatpush1.msra.mxu0 %v803
        %3505 = vmatprep.subr.mxu0 0.0
        %3506 = vmatpush1.msra.mxu0 %v802
        %3507 = vmatprep.subr.mxu0 0.0
        %3508 = vmatpush1.msra.mxu0 %v801
        %3509 = vmatprep.subr.mxu0 0.0
        %3510 = vmatpush1.msra.mxu0 %v800
        %3511 = vmatprep.subr.mxu0 0.0
        %3512 = vmatpush2.msra.mxu0 0.0
        %3513 = vmatprep.subr.mxu0 0.0
        %3514 = vmatpush2.msra.mxu0 0.0
        %3515 = vmatprep.subr.mxu0 0.0
        %3516 = vmatpush2.msra.mxu0 0.0
        %3517 = vmatprep.subr.mxu0 0.0
        %3518 = vmatpush2.msra.mxu0 0.0
        %3519 = vmatprep.subr.mxu0 0.0
        %3520 = vmatpush2.msra.mxu0 0.0
        %3521 = vmatprep.subr.mxu0 0.0
        %3522 = vmatpush2.msra.mxu0 0.0
        %3523 = vmatprep.subr.mxu0 0.0
        %3524 = vmatpush2.msra.mxu0 0.0
        %3525 = vmatprep.subr.mxu0 0.0
        %3526 = vmatpush2.msra.mxu0 0.0
        %3527 = vmatprep.subr.mxu0 0.0
        %3528 = vmatpush2.msra.mxu0 0.0
        %3529 = vmatprep.subr.mxu0 0.0
        %3530 = vmatpush2.msra.mxu0 0.0
        %3531 = vmatprep.subr.mxu0 0.0
        %3532 = vmatpush2.msra.mxu0 0.0
        %3533 = vmatprep.subr.mxu0 0.0
        %3534 = vmatpush2.msra.mxu0 0.0
        %3535 = vmatprep.subr.mxu0 0.0
        %3536 = vmatpush2.msra.mxu0 0.0
        %3537 = vmatprep.subr.mxu0 0.0
        %3538 = vmatpush2.msra.mxu0 0.0
        %3539 = vmatprep.subr.mxu0 0.0
        %3540 = vmatpush2.msra.mxu0 0.0
        %3541 = vmatprep.subr.mxu0 0.0
        %3542 = vmatpush2.msra.mxu0 0.0
        %3543 = vmatprep.mubr.f32.mxu0 0.0
        %3544 = vmatmul.mubr.f32.gmra.mxu0 %v3259
        %v3545 = vpop.f32.mrf.mxu0
        %v3546 = vadd.f32 0.0, %v3545
        %v3547 = vpop.f32.mrf.mxu0
        %3548 = vdwg.mxu0
        %3549 = vmatprep.subr.mxu0 0.0
        %3550 = vmatpush1.msra.mxu0 %v831
        %3551 = vmatprep.subr.mxu0 0.0
        %3552 = vmatpush1.msra.mxu0 %v830
        %3553 = vmatprep.subr.mxu0 0.0
        %3554 = vmatpush1.msra.mxu0 %v829
        %3555 = vmatprep.subr.mxu0 0.0
        %3556 = vmatpush1.msra.mxu0 %v828
        %3557 = vmatprep.subr.mxu0 0.0
        %3558 = vmatpush1.msra.mxu0 %v827
        %3559 = vmatprep.subr.mxu0 0.0
        %3560 = vmatpush1.msra.mxu0 %v826
        %3561 = vmatprep.subr.mxu0 0.0
        %3562 = vmatpush1.msra.mxu0 %v825
        %3563 = vmatprep.subr.mxu0 0.0
        %3564 = vmatpush1.msra.mxu0 %v824
        %3565 = vmatprep.subr.mxu0 0.0
        %3566 = vmatpush1.msra.mxu0 %v823
        %3567 = vmatprep.subr.mxu0 0.0
        %3568 = vmatpush1.msra.mxu0 %v822
        %3569 = vmatprep.subr.mxu0 0.0
        %3570 = vmatpush1.msra.mxu0 %v821
        %3571 = vmatprep.subr.mxu0 0.0
        %3572 = vmatpush1.msra.mxu0 %v820
        %3573 = vmatprep.subr.mxu0 0.0
        %3574 = vmatpush1.msra.mxu0 %v819
        %3575 = vmatprep.subr.mxu0 0.0
        %3576 = vmatpush1.msra.mxu0 %v818
        %3577 = vmatprep.subr.mxu0 0.0
        %3578 = vmatpush1.msra.mxu0 %v817
        %3579 = vmatprep.subr.mxu0 0.0
        %3580 = vmatpush1.msra.mxu0 %v816
        %3581 = vmatprep.subr.mxu0 0.0
        %3582 = vmatpush2.msra.mxu0 0.0
        %3583 = vmatprep.subr.mxu0 0.0
        %3584 = vmatpush2.msra.mxu0 0.0
        %3585 = vmatprep.subr.mxu0 0.0
        %3586 = vmatpush2.msra.mxu0 0.0
        %3587 = vmatprep.subr.mxu0 0.0
        %3588 = vmatpush2.msra.mxu0 0.0
        %3589 = vmatprep.subr.mxu0 0.0
        %3590 = vmatpush2.msra.mxu0 0.0
        %3591 = vmatprep.subr.mxu0 0.0
        %3592 = vmatpush2.msra.mxu0 0.0
        %3593 = vmatprep.subr.mxu0 0.0
        %3594 = vmatpush2.msra.mxu0 0.0
        %3595 = vmatprep.subr.mxu0 0.0
        %3596 = vmatpush2.msra.mxu0 0.0
        %3597 = vmatprep.subr.mxu0 0.0
        %3598 = vmatpush2.msra.mxu0 0.0
        %3599 = vmatprep.subr.mxu0 0.0
        %3600 = vmatpush2.msra.mxu0 0.0
        %3601 = vmatprep.subr.mxu0 0.0
        %3602 = vmatpush2.msra.mxu0 0.0
        %3603 = vmatprep.subr.mxu0 0.0
        %3604 = vmatpush2.msra.mxu0 0.0
        %3605 = vmatprep.subr.mxu0 0.0
        %3606 = vmatpush2.msra.mxu0 0.0
        %3607 = vmatprep.subr.mxu0 0.0
        %3608 = vmatpush2.msra.mxu0 0.0
        %3609 = vmatprep.subr.mxu0 0.0
        %3610 = vmatpush2.msra.mxu0 0.0
        %3611 = vmatprep.subr.mxu0 0.0
        %3612 = vmatpush2.msra.mxu0 0.0
        %3613 = vmatprep.mubr.f32.mxu0 0.0
        %3614 = vmatmul.mubr.f32.gmra.mxu0 %v3242
        %v3615 = vpop.f32.mrf.mxu0
        %v3616 = vadd.f32 0.0, %v3615
        %v3617 = vpop.f32.mrf.mxu0
        %3618 = vdwg.mxu0
        %3619 = vmatprep.subr.mxu0 0.0
        %3620 = vmatpush1.msra.mxu0 %v847
        %3621 = vmatprep.subr.mxu0 0.0
        %3622 = vmatpush1.msra.mxu0 %v846
        %3623 = vmatprep.subr.mxu0 0.0
        %3624 = vmatpush1.msra.mxu0 %v845
        %3625 = vmatprep.subr.mxu0 0.0
        %3626 = vmatpush1.msra.mxu0 %v844
        %3627 = vmatprep.subr.mxu0 0.0
        %3628 = vmatpush1.msra.mxu0 %v843
        %3629 = vmatprep.subr.mxu0 0.0
        %3630 = vmatpush1.msra.mxu0 %v842
        %3631 = vmatprep.subr.mxu0 0.0
        %3632 = vmatpush1.msra.mxu0 %v841
        %3633 = vmatprep.subr.mxu0 0.0
        %3634 = vmatpush1.msra.mxu0 %v840
        %3635 = vmatprep.subr.mxu0 0.0
        %3636 = vmatpush1.msra.mxu0 %v839
        %3637 = vmatprep.subr.mxu0 0.0
        %3638 = vmatpush1.msra.mxu0 %v838
        %3639 = vmatprep.subr.mxu0 0.0
        %3640 = vmatpush1.msra.mxu0 %v837
        %3641 = vmatprep.subr.mxu0 0.0
        %3642 = vmatpush1.msra.mxu0 %v836
        %3643 = vmatprep.subr.mxu0 0.0
        %3644 = vmatpush1.msra.mxu0 %v835
        %3645 = vmatprep.subr.mxu0 0.0
        %3646 = vmatpush1.msra.mxu0 %v834
        %3647 = vmatprep.subr.mxu0 0.0
        %3648 = vmatpush1.msra.mxu0 %v833
        %3649 = vmatprep.subr.mxu0 0.0
        %3650 = vmatpush1.msra.mxu0 %v832
        %3651 = vmatprep.subr.mxu0 0.0
        %3652 = vmatpush2.msra.mxu0 0.0
        %3653 = vmatprep.subr.mxu0 0.0
        %3654 = vmatpush2.msra.mxu0 0.0
        %3655 = vmatprep.subr.mxu0 0.0
        %3656 = vmatpush2.msra.mxu0 0.0
        %3657 = vmatprep.subr.mxu0 0.0
        %3658 = vmatpush2.msra.mxu0 0.0
        %3659 = vmatprep.subr.mxu0 0.0
        %3660 = vmatpush2.msra.mxu0 0.0
        %3661 = vmatprep.subr.mxu0 0.0
        %3662 = vmatpush2.msra.mxu0 0.0
        %3663 = vmatprep.subr.mxu0 0.0
        %3664 = vmatpush2.msra.mxu0 0.0
        %3665 = vmatprep.subr.mxu0 0.0
        %3666 = vmatpush2.msra.mxu0 0.0
        %3667 = vmatprep.subr.mxu0 0.0
        %3668 = vmatpush2.msra.mxu0 0.0
        %3669 = vmatprep.subr.mxu0 0.0
        %3670 = vmatpush2.msra.mxu0 0.0
        %3671 = vmatprep.subr.mxu0 0.0
        %3672 = vmatpush2.msra.mxu0 0.0
        %3673 = vmatprep.subr.mxu0 0.0
        %3674 = vmatpush2.msra.mxu0 0.0
        %3675 = vmatprep.subr.mxu0 0.0
        %3676 = vmatpush2.msra.mxu0 0.0
        %3677 = vmatprep.subr.mxu0 0.0
        %3678 = vmatpush2.msra.mxu0 0.0
        %3679 = vmatprep.subr.mxu0 0.0
        %3680 = vmatpush2.msra.mxu0 0.0
        %3681 = vmatprep.subr.mxu0 0.0
        %3682 = vmatpush2.msra.mxu0 0.0
        %3683 = vmatprep.mubr.f32.mxu0 0.0
        %3684 = vmatmul.mubr.f32.gmra.mxu0 %v3256
        %v3685 = vpop.f32.mrf.mxu0
        %v3686 = vadd.f32 0.0, %v3685
        %v3687 = vpop.f32.mrf.mxu0
        %3688 = vdwg.mxu0
        %3689 = vmatprep.subr.mxu0 0.0
        %3690 = vmatpush1.msra.mxu0 %v863
        %3691 = vmatprep.subr.mxu0 0.0
        %3692 = vmatpush1.msra.mxu0 %v862
        %3693 = vmatprep.subr.mxu0 0.0
        %3694 = vmatpush1.msra.mxu0 %v861
        %3695 = vmatprep.subr.mxu0 0.0
        %3696 = vmatpush1.msra.mxu0 %v860
        %3697 = vmatprep.subr.mxu0 0.0
        %3698 = vmatpush1.msra.mxu0 %v859
        %3699 = vmatprep.subr.mxu0 0.0
        %3700 = vmatpush1.msra.mxu0 %v858
        %3701 = vmatprep.subr.mxu0 0.0
        %3702 = vmatpush1.msra.mxu0 %v857
        %3703 = vmatprep.subr.mxu0 0.0
        %3704 = vmatpush1.msra.mxu0 %v856
        %3705 = vmatprep.subr.mxu0 0.0
        %3706 = vmatpush1.msra.mxu0 %v855
        %3707 = vmatprep.subr.mxu0 0.0
        %3708 = vmatpush1.msra.mxu0 %v854
        %3709 = vmatprep.subr.mxu0 0.0
        %3710 = vmatpush1.msra.mxu0 %v853
        %3711 = vmatprep.subr.mxu0 0.0
        %3712 = vmatpush1.msra.mxu0 %v852
        %3713 = vmatprep.subr.mxu0 0.0
        %3714 = vmatpush1.msra.mxu0 %v851
        %3715 = vmatprep.subr.mxu0 0.0
        %3716 = vmatpush1.msra.mxu0 %v850
        %3717 = vmatprep.subr.mxu0 0.0
        %3718 = vmatpush1.msra.mxu0 %v849
        %3719 = vmatprep.subr.mxu0 0.0
        %3720 = vmatpush1.msra.mxu0 %v848
        %3721 = vmatprep.subr.mxu0 0.0
        %3722 = vmatpush2.msra.mxu0 0.0
        %3723 = vmatprep.subr.mxu0 0.0
        %3724 = vmatpush2.msra.mxu0 0.0
        %3725 = vmatprep.subr.mxu0 0.0
        %3726 = vmatpush2.msra.mxu0 0.0
        %3727 = vmatprep.subr.mxu0 0.0
        %3728 = vmatpush2.msra.mxu0 0.0
        %3729 = vmatprep.subr.mxu0 0.0
        %3730 = vmatpush2.msra.mxu0 0.0
        %3731 = vmatprep.subr.mxu0 0.0
        %3732 = vmatpush2.msra.mxu0 0.0
        %3733 = vmatprep.subr.mxu0 0.0
        %3734 = vmatpush2.msra.mxu0 0.0
        %3735 = vmatprep.subr.mxu0 0.0
        %3736 = vmatpush2.msra.mxu0 0.0
        %3737 = vmatprep.subr.mxu0 0.0
        %3738 = vmatpush2.msra.mxu0 0.0
        %3739 = vmatprep.subr.mxu0 0.0
        %3740 = vmatpush2.msra.mxu0 0.0
        %3741 = vmatprep.subr.mxu0 0.0
        %3742 = vmatpush2.msra.mxu0 0.0
        %3743 = vmatprep.subr.mxu0 0.0
        %3744 = vmatpush2.msra.mxu0 0.0
        %3745 = vmatprep.subr.mxu0 0.0
        %3746 = vmatpush2.msra.mxu0 0.0
        %3747 = vmatprep.subr.mxu0 0.0
        %3748 = vmatpush2.msra.mxu0 0.0
        %3749 = vmatprep.subr.mxu0 0.0
        %3750 = vmatpush2.msra.mxu0 0.0
        %3751 = vmatprep.subr.mxu0 0.0
        %3752 = vmatpush2.msra.mxu0 0.0
        %3753 = vmatprep.mubr.f32.mxu0 0.0
        %3754 = vmatmul.mubr.f32.gmra.mxu0 %v3258
        %v3755 = vpop.f32.mrf.mxu0
        %v3756 = vadd.f32 0.0, %v3755
        %v3757 = vpop.f32.mrf.mxu0
        %3758 = vdwg.mxu0
        %3759 = vmatprep.subr.mxu0 0.0
        %3760 = vmatpush1.msra.mxu0 %v879
        %3761 = vmatprep.subr.mxu0 0.0
        %3762 = vmatpush1.msra.mxu0 %v878
        %3763 = vmatprep.subr.mxu0 0.0
        %3764 = vmatpush1.msra.mxu0 %v877
        %3765 = vmatprep.subr.mxu0 0.0
        %3766 = vmatpush1.msra.mxu0 %v876
        %3767 = vmatprep.subr.mxu0 0.0
        %3768 = vmatpush1.msra.mxu0 %v875
        %3769 = vmatprep.subr.mxu0 0.0
        %3770 = vmatpush1.msra.mxu0 %v874
        %3771 = vmatprep.subr.mxu0 0.0
        %3772 = vmatpush1.msra.mxu0 %v873
        %3773 = vmatprep.subr.mxu0 0.0
        %3774 = vmatpush1.msra.mxu0 %v872
        %3775 = vmatprep.subr.mxu0 0.0
        %3776 = vmatpush1.msra.mxu0 %v871
        %3777 = vmatprep.subr.mxu0 0.0
        %3778 = vmatpush1.msra.mxu0 %v870
        %3779 = vmatprep.subr.mxu0 0.0
        %3780 = vmatpush1.msra.mxu0 %v869
        %3781 = vmatprep.subr.mxu0 0.0
        %3782 = vmatpush1.msra.mxu0 %v868
        %3783 = vmatprep.subr.mxu0 0.0
        %3784 = vmatpush1.msra.mxu0 %v867
        %3785 = vmatprep.subr.mxu0 0.0
        %3786 = vmatpush1.msra.mxu0 %v866
        %3787 = vmatprep.subr.mxu0 0.0
        %3788 = vmatpush1.msra.mxu0 %v865
        %3789 = vmatprep.subr.mxu0 0.0
        %3790 = vmatpush1.msra.mxu0 %v864
        %3791 = vmatprep.subr.mxu0 0.0
        %3792 = vmatpush2.msra.mxu0 0.0
        %3793 = vmatprep.subr.mxu0 0.0
        %3794 = vmatpush2.msra.mxu0 0.0
        %3795 = vmatprep.subr.mxu0 0.0
        %3796 = vmatpush2.msra.mxu0 0.0
        %3797 = vmatprep.subr.mxu0 0.0
        %3798 = vmatpush2.msra.mxu0 0.0
        %3799 = vmatprep.subr.mxu0 0.0
        %3800 = vmatpush2.msra.mxu0 0.0
        %3801 = vmatprep.subr.mxu0 0.0
        %3802 = vmatpush2.msra.mxu0 0.0
        %3803 = vmatprep.subr.mxu0 0.0
        %3804 = vmatpush2.msra.mxu0 0.0
        %3805 = vmatprep.subr.mxu0 0.0
        %3806 = vmatpush2.msra.mxu0 0.0
        %3807 = vmatprep.subr.mxu0 0.0
        %3808 = vmatpush2.msra.mxu0 0.0
        %3809 = vmatprep.subr.mxu0 0.0
        %3810 = vmatpush2.msra.mxu0 0.0
        %3811 = vmatprep.subr.mxu0 0.0
        %3812 = vmatpush2.msra.mxu0 0.0
        %3813 = vmatprep.subr.mxu0 0.0
        %3814 = vmatpush2.msra.mxu0 0.0
        %3815 = vmatprep.subr.mxu0 0.0
        %3816 = vmatpush2.msra.mxu0 0.0
        %3817 = vmatprep.subr.mxu0 0.0
        %3818 = vmatpush2.msra.mxu0 0.0
        %3819 = vmatprep.subr.mxu0 0.0
        %3820 = vmatpush2.msra.mxu0 0.0
        %3821 = vmatprep.subr.mxu0 0.0
        %3822 = vmatpush2.msra.mxu0 0.0
        %3823 = vmatprep.mubr.f32.mxu0 0.0
        %3824 = vmatmul.mubr.f32.gmra.mxu0 %v3260
        %v3825 = vpop.f32.mrf.mxu0
        %v3826 = vadd.f32 0.0, %v3825
        %v3827 = vpop.f32.mrf.mxu0
        %3828 = vdwg.mxu0
        %v3837 = vrot.slane %v3406, 7
        %v3838 = vsel %vm2152, %v3837, %v3336
        %v3839 = vrot.slane %v3476, 6
        %v3840 = vsel %vm2155, %v3839, %v3838
        %v3841 = vrot.slane %v3546, 5
        %v3842 = vsel %vm2158, %v3841, %v3840
        %v3843 = vrot.slane %v3616, 4
        %v3844 = vsel %vm2161, %v3843, %v3842
        %v3845 = vrot.slane %v3686, 3
        %v3846 = vsel %vm2164, %v3845, %v3844
        %v3847 = vrot.slane %v3756, 2
        %v3848 = vsel %vm2167, %v3847, %v3846
        %v3849 = vrot.slane %v3826, 1
        %v3850 = vsel %vm2170, %v3849, %v3848
        %v3852 = vsel %vm1278, %v3850, -1e+30
        %3853 = vmax.xlane.f32.xlu0 %v3852
        %v3854 = vpop.xlane.xlu0 %3853
        %v3855 = vsub.f32 %v3852, %v3854
        %v3856 = vmul.f32 %v3855, 1.442695
        %v3857 = vpow.pop %v3856
        %3858 = vadd.xlane.f32.xlu0 %v3857
        %v3859 = vpop.xlane.xlu0 %3858
        %v3860 = vrcp.pop %v3859
        %v3861 = vmul.f32 %v3857, %v3860
        %v3863 = vcombine.high %v3861, %v3861
        %v3865 = vunpack.c.l.s4 1966171168
        %v3866 = vunpack.c.0.s8 %v3865
        %v3867 = vlaneseq
        %v3868 = vshrl.u32 %v3867, 7
        %v3869 = vsub.s32 %v3866, %v3868
        %v3870 = vrot.slane %v3861, %v3869
        %v3872 = vunpack.c.l.s4 1966171168
        %v3873 = vunpack.c.0.s8 %v3872
        %v3874 = vlaneseq
        %v3875 = vshrl.u32 %v3874, 7
        %v3876 = vsub.s32 %v3873, %v3875
        %v3877 = vrot.slane %v3863, %v3876
        %v3878 = vcombine.high %v3870, %v3870
        %v3879 = vcombine.high %v3877, %v3877
        %v3881 = vunpack.c.l.s4 1966171168
        %v3882 = vunpack.c.0.s8 %v3881
        %v3883 = vlaneseq
        %v3884 = vshrl.u32 %v3883, 7
        %v3885 = vsub.s32 %v3882, %v3884
        %v3886 = vrot.slane %v3870, %v3885
        %v3888 = vunpack.c.l.s4 1966171168
        %v3889 = vunpack.c.0.s8 %v3888
        %v3890 = vlaneseq
        %v3891 = vshrl.u32 %v3890, 7
        %v3892 = vsub.s32 %v3889, %v3891
        %v3893 = vrot.slane %v3877, %v3892
        %v3895 = vunpack.c.l.s4 1966171168
        %v3896 = vunpack.c.0.s8 %v3895
        %v3897 = vlaneseq
        %v3898 = vshrl.u32 %v3897, 7
        %v3899 = vsub.s32 %v3896, %v3898
        %v3900 = vrot.slane %v3878, %v3899
        %v3902 = vunpack.c.l.s4 1966171168
        %v3903 = vunpack.c.0.s8 %v3902
        %v3904 = vlaneseq
        %v3905 = vshrl.u32 %v3904, 7
        %v3906 = vsub.s32 %v3903, %v3905
        %v3907 = vrot.slane %v3879, %v3906
        %v3908 = vcombine.high %v3886, %v3886
        %v3909 = vcombine.high %v3893, %v3893
        %v3910 = vcombine.high %v3900, %v3900
        %v3911 = vcombine.high %v3907, %v3907
        %3920 = vmatprep.subr.mxu0 0.0
        %3921 = vmatpush1.msra.mxu0 %v639
        %3922 = vmatprep.subr.mxu0 0.0
        %3923 = vmatpush1.msra.mxu0 %v638
        %3924 = vmatprep.subr.mxu0 0.0
        %3925 = vmatpush1.msra.mxu0 %v637
        %3926 = vmatprep.subr.mxu0 0.0
        %3927 = vmatpush1.msra.mxu0 %v636
        %3928 = vmatprep.subr.mxu0 0.0
        %3929 = vmatpush1.msra.mxu0 %v635
        %3930 = vmatprep.subr.mxu0 0.0
        %3931 = vmatpush1.msra.mxu0 %v634
        %3932 = vmatprep.subr.mxu0 0.0
        %3933 = vmatpush1.msra.mxu0 %v633
        %3934 = vmatprep.subr.mxu0 0.0
        %3935 = vmatpush1.msra.mxu0 %v632
        %3936 = vmatprep.subr.mxu0 0.0
        %3937 = vmatpush1.msra.mxu0 %v631
        %3938 = vmatprep.subr.mxu0 0.0
        %3939 = vmatpush1.msra.mxu0 %v630
        %3940 = vmatprep.subr.mxu0 0.0
        %3941 = vmatpush1.msra.mxu0 %v629
        %3942 = vmatprep.subr.mxu0 0.0
        %3943 = vmatpush1.msra.mxu0 %v628
        %3944 = vmatprep.subr.mxu0 0.0
        %3945 = vmatpush1.msra.mxu0 %v627
        %3946 = vmatprep.subr.mxu0 0.0
        %3947 = vmatpush1.msra.mxu0 %v626
        %3948 = vmatprep.subr.mxu0 0.0
        %3949 = vmatpush1.msra.mxu0 %v625
        %3950 = vmatprep.subr.mxu0 0.0
        %3951 = vmatpush1.msra.mxu0 %v624
        %3952 = vmatprep.subr.mxu0 0.0
        %3953 = vmatpush2.msra.mxu0 0.0
        %3954 = vmatprep.subr.mxu0 0.0
        %3955 = vmatpush2.msra.mxu0 0.0
        %3956 = vmatprep.subr.mxu0 0.0
        %3957 = vmatpush2.msra.mxu0 0.0
        %3958 = vmatprep.subr.mxu0 0.0
        %3959 = vmatpush2.msra.mxu0 0.0
        %3960 = vmatprep.subr.mxu0 0.0
        %3961 = vmatpush2.msra.mxu0 0.0
        %3962 = vmatprep.subr.mxu0 0.0
        %3963 = vmatpush2.msra.mxu0 0.0
        %3964 = vmatprep.subr.mxu0 0.0
        %3965 = vmatpush2.msra.mxu0 0.0
        %3966 = vmatprep.subr.mxu0 0.0
        %3967 = vmatpush2.msra.mxu0 0.0
        %3968 = vmatprep.subr.mxu0 0.0
        %3969 = vmatpush2.msra.mxu0 0.0
        %3970 = vmatprep.subr.mxu0 0.0
        %3971 = vmatpush2.msra.mxu0 0.0
        %3972 = vmatprep.subr.mxu0 0.0
        %3973 = vmatpush2.msra.mxu0 0.0
        %3974 = vmatprep.subr.mxu0 0.0
        %3975 = vmatpush2.msra.mxu0 0.0
        %3976 = vmatprep.subr.mxu0 0.0
        %3977 = vmatpush2.msra.mxu0 0.0
        %3978 = vmatprep.subr.mxu0 0.0
        %3979 = vmatpush2.msra.mxu0 0.0
        %3980 = vmatprep.subr.mxu0 0.0
        %3981 = vmatpush2.msra.mxu0 0.0
        %3982 = vmatprep.subr.mxu0 0.0
        %3983 = vmatpush2.msra.mxu0 0.0
        %3984 = vmatprep.mubr.f32.mxu0 0.0
        %3985 = vmatmul.mubr.f32.gmra.mxu0 %v3886
        %v3986 = vpop.f32.mrf.mxu0
        %v3987 = vadd.f32 0.0, %v3986
        %v3988 = vpop.f32.mrf.mxu0
        %3989 = vdwg.mxu0
        %3990 = vmatprep.subr.mxu0 0.0
        %3991 = vmatpush1.msra.mxu0 %v655
        %3992 = vmatprep.subr.mxu0 0.0
        %3993 = vmatpush1.msra.mxu0 %v654
        %3994 = vmatprep.subr.mxu0 0.0
        %3995 = vmatpush1.msra.mxu0 %v653
        %3996 = vmatprep.subr.mxu0 0.0
        %3997 = vmatpush1.msra.mxu0 %v652
        %3998 = vmatprep.subr.mxu0 0.0
        %3999 = vmatpush1.msra.mxu0 %v651
        %4000 = vmatprep.subr.mxu0 0.0
        %4001 = vmatpush1.msra.mxu0 %v650
        %4002 = vmatprep.subr.mxu0 0.0
        %4003 = vmatpush1.msra.mxu0 %v649
        %4004 = vmatprep.subr.mxu0 0.0
        %4005 = vmatpush1.msra.mxu0 %v648
        %4006 = vmatprep.subr.mxu0 0.0
        %4007 = vmatpush1.msra.mxu0 %v647
        %4008 = vmatprep.subr.mxu0 0.0
        %4009 = vmatpush1.msra.mxu0 %v646
        %4010 = vmatprep.subr.mxu0 0.0
        %4011 = vmatpush1.msra.mxu0 %v645
        %4012 = vmatprep.subr.mxu0 0.0
        %4013 = vmatpush1.msra.mxu0 %v644
        %4014 = vmatprep.subr.mxu0 0.0
        %4015 = vmatpush1.msra.mxu0 %v643
        %4016 = vmatprep.subr.mxu0 0.0
        %4017 = vmatpush1.msra.mxu0 %v642
        %4018 = vmatprep.subr.mxu0 0.0
        %4019 = vmatpush1.msra.mxu0 %v641
        %4020 = vmatprep.subr.mxu0 0.0
        %4021 = vmatpush1.msra.mxu0 %v640
        %4022 = vmatprep.subr.mxu0 0.0
        %4023 = vmatpush2.msra.mxu0 0.0
        %4024 = vmatprep.subr.mxu0 0.0
        %4025 = vmatpush2.msra.mxu0 0.0
        %4026 = vmatprep.subr.mxu0 0.0
        %4027 = vmatpush2.msra.mxu0 0.0
        %4028 = vmatprep.subr.mxu0 0.0
        %4029 = vmatpush2.msra.mxu0 0.0
        %4030 = vmatprep.subr.mxu0 0.0
        %4031 = vmatpush2.msra.mxu0 0.0
        %4032 = vmatprep.subr.mxu0 0.0
        %4033 = vmatpush2.msra.mxu0 0.0
        %4034 = vmatprep.subr.mxu0 0.0
        %4035 = vmatpush2.msra.mxu0 0.0
        %4036 = vmatprep.subr.mxu0 0.0
        %4037 = vmatpush2.msra.mxu0 0.0
        %4038 = vmatprep.subr.mxu0 0.0
        %4039 = vmatpush2.msra.mxu0 0.0
        %4040 = vmatprep.subr.mxu0 0.0
        %4041 = vmatpush2.msra.mxu0 0.0
        %4042 = vmatprep.subr.mxu0 0.0
        %4043 = vmatpush2.msra.mxu0 0.0
        %4044 = vmatprep.subr.mxu0 0.0
        %4045 = vmatpush2.msra.mxu0 0.0
        %4046 = vmatprep.subr.mxu0 0.0
        %4047 = vmatpush2.msra.mxu0 0.0
        %4048 = vmatprep.subr.mxu0 0.0
        %4049 = vmatpush2.msra.mxu0 0.0
        %4050 = vmatprep.subr.mxu0 0.0
        %4051 = vmatpush2.msra.mxu0 0.0
        %4052 = vmatprep.subr.mxu0 0.0
        %4053 = vmatpush2.msra.mxu0 0.0
        %4054 = vmatprep.mubr.f32.mxu0 0.0
        %4055 = vmatmul.mubr.f32.gmra.mxu0 %v3900
        %v4056 = vpop.f32.mrf.mxu0
        %v4057 = vadd.f32 0.0, %v4056
        %v4058 = vpop.f32.mrf.mxu0
        %4059 = vdwg.mxu0
        %4060 = vmatprep.subr.mxu0 0.0
        %4061 = vmatpush1.msra.mxu0 %v671
        %4062 = vmatprep.subr.mxu0 0.0
        %4063 = vmatpush1.msra.mxu0 %v670
        %4064 = vmatprep.subr.mxu0 0.0
        %4065 = vmatpush1.msra.mxu0 %v669
        %4066 = vmatprep.subr.mxu0 0.0
        %4067 = vmatpush1.msra.mxu0 %v668
        %4068 = vmatprep.subr.mxu0 0.0
        %4069 = vmatpush1.msra.mxu0 %v667
        %4070 = vmatprep.subr.mxu0 0.0
        %4071 = vmatpush1.msra.mxu0 %v666
        %4072 = vmatprep.subr.mxu0 0.0
        %4073 = vmatpush1.msra.mxu0 %v665
        %4074 = vmatprep.subr.mxu0 0.0
        %4075 = vmatpush1.msra.mxu0 %v664
        %4076 = vmatprep.subr.mxu0 0.0
        %4077 = vmatpush1.msra.mxu0 %v663
        %4078 = vmatprep.subr.mxu0 0.0
        %4079 = vmatpush1.msra.mxu0 %v662
        %4080 = vmatprep.subr.mxu0 0.0
        %4081 = vmatpush1.msra.mxu0 %v661
        %4082 = vmatprep.subr.mxu0 0.0
        %4083 = vmatpush1.msra.mxu0 %v660
        %4084 = vmatprep.subr.mxu0 0.0
        %4085 = vmatpush1.msra.mxu0 %v659
        %4086 = vmatprep.subr.mxu0 0.0
        %4087 = vmatpush1.msra.mxu0 %v658
        %4088 = vmatprep.subr.mxu0 0.0
        %4089 = vmatpush1.msra.mxu0 %v657
        %4090 = vmatprep.subr.mxu0 0.0
        %4091 = vmatpush1.msra.mxu0 %v656
        %4092 = vmatprep.subr.mxu0 0.0
        %4093 = vmatpush2.msra.mxu0 0.0
        %4094 = vmatprep.subr.mxu0 0.0
        %4095 = vmatpush2.msra.mxu0 0.0
        %4096 = vmatprep.subr.mxu0 0.0
        %4097 = vmatpush2.msra.mxu0 0.0
        %4098 = vmatprep.subr.mxu0 0.0
        %4099 = vmatpush2.msra.mxu0 0.0
        %4100 = vmatprep.subr.mxu0 0.0
        %4101 = vmatpush2.msra.mxu0 0.0
        %4102 = vmatprep.subr.mxu0 0.0
        %4103 = vmatpush2.msra.mxu0 0.0
        %4104 = vmatprep.subr.mxu0 0.0
        %4105 = vmatpush2.msra.mxu0 0.0
        %4106 = vmatprep.subr.mxu0 0.0
        %4107 = vmatpush2.msra.mxu0 0.0
        %4108 = vmatprep.subr.mxu0 0.0
        %4109 = vmatpush2.msra.mxu0 0.0
        %4110 = vmatprep.subr.mxu0 0.0
        %4111 = vmatpush2.msra.mxu0 0.0
        %4112 = vmatprep.subr.mxu0 0.0
        %4113 = vmatpush2.msra.mxu0 0.0
        %4114 = vmatprep.subr.mxu0 0.0
        %4115 = vmatpush2.msra.mxu0 0.0
        %4116 = vmatprep.subr.mxu0 0.0
        %4117 = vmatpush2.msra.mxu0 0.0
        %4118 = vmatprep.subr.mxu0 0.0
        %4119 = vmatpush2.msra.mxu0 0.0
        %4120 = vmatprep.subr.mxu0 0.0
        %4121 = vmatpush2.msra.mxu0 0.0
        %4122 = vmatprep.subr.mxu0 0.0
        %4123 = vmatpush2.msra.mxu0 0.0
        %4124 = vmatprep.mubr.f32.mxu0 0.0
        %4125 = vmatmul.mubr.f32.gmra.mxu0 %v3908
        %v4126 = vpop.f32.mrf.mxu0
        %v4127 = vadd.f32 0.0, %v4126
        %v4128 = vpop.f32.mrf.mxu0
        %4129 = vdwg.mxu0
        %4130 = vmatprep.subr.mxu0 0.0
        %4131 = vmatpush1.msra.mxu0 %v687
        %4132 = vmatprep.subr.mxu0 0.0
        %4133 = vmatpush1.msra.mxu0 %v686
        %4134 = vmatprep.subr.mxu0 0.0
        %4135 = vmatpush1.msra.mxu0 %v685
        %4136 = vmatprep.subr.mxu0 0.0
        %4137 = vmatpush1.msra.mxu0 %v684
        %4138 = vmatprep.subr.mxu0 0.0
        %4139 = vmatpush1.msra.mxu0 %v683
        %4140 = vmatprep.subr.mxu0 0.0
        %4141 = vmatpush1.msra.mxu0 %v682
        %4142 = vmatprep.subr.mxu0 0.0
        %4143 = vmatpush1.msra.mxu0 %v681
        %4144 = vmatprep.subr.mxu0 0.0
        %4145 = vmatpush1.msra.mxu0 %v680
        %4146 = vmatprep.subr.mxu0 0.0
        %4147 = vmatpush1.msra.mxu0 %v679
        %4148 = vmatprep.subr.mxu0 0.0
        %4149 = vmatpush1.msra.mxu0 %v678
        %4150 = vmatprep.subr.mxu0 0.0
        %4151 = vmatpush1.msra.mxu0 %v677
        %4152 = vmatprep.subr.mxu0 0.0
        %4153 = vmatpush1.msra.mxu0 %v676
        %4154 = vmatprep.subr.mxu0 0.0
        %4155 = vmatpush1.msra.mxu0 %v675
        %4156 = vmatprep.subr.mxu0 0.0
        %4157 = vmatpush1.msra.mxu0 %v674
        %4158 = vmatprep.subr.mxu0 0.0
        %4159 = vmatpush1.msra.mxu0 %v673
        %4160 = vmatprep.subr.mxu0 0.0
        %4161 = vmatpush1.msra.mxu0 %v672
        %4162 = vmatprep.subr.mxu0 0.0
        %4163 = vmatpush2.msra.mxu0 0.0
        %4164 = vmatprep.subr.mxu0 0.0
        %4165 = vmatpush2.msra.mxu0 0.0
        %4166 = vmatprep.subr.mxu0 0.0
        %4167 = vmatpush2.msra.mxu0 0.0
        %4168 = vmatprep.subr.mxu0 0.0
        %4169 = vmatpush2.msra.mxu0 0.0
        %4170 = vmatprep.subr.mxu0 0.0
        %4171 = vmatpush2.msra.mxu0 0.0
        %4172 = vmatprep.subr.mxu0 0.0
        %4173 = vmatpush2.msra.mxu0 0.0
        %4174 = vmatprep.subr.mxu0 0.0
        %4175 = vmatpush2.msra.mxu0 0.0
        %4176 = vmatprep.subr.mxu0 0.0
        %4177 = vmatpush2.msra.mxu0 0.0
        %4178 = vmatprep.subr.mxu0 0.0
        %4179 = vmatpush2.msra.mxu0 0.0
        %4180 = vmatprep.subr.mxu0 0.0
        %4181 = vmatpush2.msra.mxu0 0.0
        %4182 = vmatprep.subr.mxu0 0.0
        %4183 = vmatpush2.msra.mxu0 0.0
        %4184 = vmatprep.subr.mxu0 0.0
        %4185 = vmatpush2.msra.mxu0 0.0
        %4186 = vmatprep.subr.mxu0 0.0
        %4187 = vmatpush2.msra.mxu0 0.0
        %4188 = vmatprep.subr.mxu0 0.0
        %4189 = vmatpush2.msra.mxu0 0.0
        %4190 = vmatprep.subr.mxu0 0.0
        %4191 = vmatpush2.msra.mxu0 0.0
        %4192 = vmatprep.subr.mxu0 0.0
        %4193 = vmatpush2.msra.mxu0 0.0
        %4194 = vmatprep.mubr.f32.mxu0 0.0
        %4195 = vmatmul.mubr.f32.gmra.mxu0 %v3910
        %v4196 = vpop.f32.mrf.mxu0
        %v4197 = vadd.f32 0.0, %v4196
        %v4198 = vpop.f32.mrf.mxu0
        %4199 = vdwg.mxu0
        %4200 = vmatprep.subr.mxu0 0.0
        %4201 = vmatpush1.msra.mxu0 %v703
        %4202 = vmatprep.subr.mxu0 0.0
        %4203 = vmatpush1.msra.mxu0 %v702
        %4204 = vmatprep.subr.mxu0 0.0
        %4205 = vmatpush1.msra.mxu0 %v701
        %4206 = vmatprep.subr.mxu0 0.0
        %4207 = vmatpush1.msra.mxu0 %v700
        %4208 = vmatprep.subr.mxu0 0.0
        %4209 = vmatpush1.msra.mxu0 %v699
        %4210 = vmatprep.subr.mxu0 0.0
        %4211 = vmatpush1.msra.mxu0 %v698
        %4212 = vmatprep.subr.mxu0 0.0
        %4213 = vmatpush1.msra.mxu0 %v697
        %4214 = vmatprep.subr.mxu0 0.0
        %4215 = vmatpush1.msra.mxu0 %v696
        %4216 = vmatprep.subr.mxu0 0.0
        %4217 = vmatpush1.msra.mxu0 %v695
        %4218 = vmatprep.subr.mxu0 0.0
        %4219 = vmatpush1.msra.mxu0 %v694
        %4220 = vmatprep.subr.mxu0 0.0
        %4221 = vmatpush1.msra.mxu0 %v693
        %4222 = vmatprep.subr.mxu0 0.0
        %4223 = vmatpush1.msra.mxu0 %v692
        %4224 = vmatprep.subr.mxu0 0.0
        %4225 = vmatpush1.msra.mxu0 %v691
        %4226 = vmatprep.subr.mxu0 0.0
        %4227 = vmatpush1.msra.mxu0 %v690
        %4228 = vmatprep.subr.mxu0 0.0
        %4229 = vmatpush1.msra.mxu0 %v689
        %4230 = vmatprep.subr.mxu0 0.0
        %4231 = vmatpush1.msra.mxu0 %v688
        %4232 = vmatprep.subr.mxu0 0.0
        %4233 = vmatpush2.msra.mxu0 0.0
        %4234 = vmatprep.subr.mxu0 0.0
        %4235 = vmatpush2.msra.mxu0 0.0
        %4236 = vmatprep.subr.mxu0 0.0
        %4237 = vmatpush2.msra.mxu0 0.0
        %4238 = vmatprep.subr.mxu0 0.0
        %4239 = vmatpush2.msra.mxu0 0.0
        %4240 = vmatprep.subr.mxu0 0.0
        %4241 = vmatpush2.msra.mxu0 0.0
        %4242 = vmatprep.subr.mxu0 0.0
        %4243 = vmatpush2.msra.mxu0 0.0
        %4244 = vmatprep.subr.mxu0 0.0
        %4245 = vmatpush2.msra.mxu0 0.0
        %4246 = vmatprep.subr.mxu0 0.0
        %4247 = vmatpush2.msra.mxu0 0.0
        %4248 = vmatprep.subr.mxu0 0.0
        %4249 = vmatpush2.msra.mxu0 0.0
        %4250 = vmatprep.subr.mxu0 0.0
        %4251 = vmatpush2.msra.mxu0 0.0
        %4252 = vmatprep.subr.mxu0 0.0
        %4253 = vmatpush2.msra.mxu0 0.0
        %4254 = vmatprep.subr.mxu0 0.0
        %4255 = vmatpush2.msra.mxu0 0.0
        %4256 = vmatprep.subr.mxu0 0.0
        %4257 = vmatpush2.msra.mxu0 0.0
        %4258 = vmatprep.subr.mxu0 0.0
        %4259 = vmatpush2.msra.mxu0 0.0
        %4260 = vmatprep.subr.mxu0 0.0
        %4261 = vmatpush2.msra.mxu0 0.0
        %4262 = vmatprep.subr.mxu0 0.0
        %4263 = vmatpush2.msra.mxu0 0.0
        %4264 = vmatprep.mubr.f32.mxu0 0.0
        %4265 = vmatmul.mubr.f32.gmra.mxu0 %v3893
        %v4266 = vpop.f32.mrf.mxu0
        %v4267 = vadd.f32 0.0, %v4266
        %v4268 = vpop.f32.mrf.mxu0
        %4269 = vdwg.mxu0
        %4270 = vmatprep.subr.mxu0 0.0
        %4271 = vmatpush1.msra.mxu0 %v719
        %4272 = vmatprep.subr.mxu0 0.0
        %4273 = vmatpush1.msra.mxu0 %v718
        %4274 = vmatprep.subr.mxu0 0.0
        %4275 = vmatpush1.msra.mxu0 %v717
        %4276 = vmatprep.subr.mxu0 0.0
        %4277 = vmatpush1.msra.mxu0 %v716
        %4278 = vmatprep.subr.mxu0 0.0
        %4279 = vmatpush1.msra.mxu0 %v715
        %4280 = vmatprep.subr.mxu0 0.0
        %4281 = vmatpush1.msra.mxu0 %v714
        %4282 = vmatprep.subr.mxu0 0.0
        %4283 = vmatpush1.msra.mxu0 %v713
        %4284 = vmatprep.subr.mxu0 0.0
        %4285 = vmatpush1.msra.mxu0 %v712
        %4286 = vmatprep.subr.mxu0 0.0
        %4287 = vmatpush1.msra.mxu0 %v711
        %4288 = vmatprep.subr.mxu0 0.0
        %4289 = vmatpush1.msra.mxu0 %v710
        %4290 = vmatprep.subr.mxu0 0.0
        %4291 = vmatpush1.msra.mxu0 %v709
        %4292 = vmatprep.subr.mxu0 0.0
        %4293 = vmatpush1.msra.mxu0 %v708
        %4294 = vmatprep.subr.mxu0 0.0
        %4295 = vmatpush1.msra.mxu0 %v707
        %4296 = vmatprep.subr.mxu0 0.0
        %4297 = vmatpush1.msra.mxu0 %v706
        %4298 = vmatprep.subr.mxu0 0.0
        %4299 = vmatpush1.msra.mxu0 %v705
        %4300 = vmatprep.subr.mxu0 0.0
        %4301 = vmatpush1.msra.mxu0 %v704
        %4302 = vmatprep.subr.mxu0 0.0
        %4303 = vmatpush2.msra.mxu0 0.0
        %4304 = vmatprep.subr.mxu0 0.0
        %4305 = vmatpush2.msra.mxu0 0.0
        %4306 = vmatprep.subr.mxu0 0.0
        %4307 = vmatpush2.msra.mxu0 0.0
        %4308 = vmatprep.subr.mxu0 0.0
        %4309 = vmatpush2.msra.mxu0 0.0
        %4310 = vmatprep.subr.mxu0 0.0
        %4311 = vmatpush2.msra.mxu0 0.0
        %4312 = vmatprep.subr.mxu0 0.0
        %4313 = vmatpush2.msra.mxu0 0.0
        %4314 = vmatprep.subr.mxu0 0.0
        %4315 = vmatpush2.msra.mxu0 0.0
        %4316 = vmatprep.subr.mxu0 0.0
        %4317 = vmatpush2.msra.mxu0 0.0
        %4318 = vmatprep.subr.mxu0 0.0
        %4319 = vmatpush2.msra.mxu0 0.0
        %4320 = vmatprep.subr.mxu0 0.0
        %4321 = vmatpush2.msra.mxu0 0.0
        %4322 = vmatprep.subr.mxu0 0.0
        %4323 = vmatpush2.msra.mxu0 0.0
        %4324 = vmatprep.subr.mxu0 0.0
        %4325 = vmatpush2.msra.mxu0 0.0
        %4326 = vmatprep.subr.mxu0 0.0
        %4327 = vmatpush2.msra.mxu0 0.0
        %4328 = vmatprep.subr.mxu0 0.0
        %4329 = vmatpush2.msra.mxu0 0.0
        %4330 = vmatprep.subr.mxu0 0.0
        %4331 = vmatpush2.msra.mxu0 0.0
        %4332 = vmatprep.subr.mxu0 0.0
        %4333 = vmatpush2.msra.mxu0 0.0
        %4334 = vmatprep.mubr.f32.mxu0 0.0
        %4335 = vmatmul.mubr.f32.gmra.mxu0 %v3907
        %v4336 = vpop.f32.mrf.mxu0
        %v4337 = vadd.f32 0.0, %v4336
        %v4338 = vpop.f32.mrf.mxu0
        %4339 = vdwg.mxu0
        %4340 = vmatprep.subr.mxu0 0.0
        %4341 = vmatpush1.msra.mxu0 %v735
        %4342 = vmatprep.subr.mxu0 0.0
        %4343 = vmatpush1.msra.mxu0 %v734
        %4344 = vmatprep.subr.mxu0 0.0
        %4345 = vmatpush1.msra.mxu0 %v733
        %4346 = vmatprep.subr.mxu0 0.0
        %4347 = vmatpush1.msra.mxu0 %v732
        %4348 = vmatprep.subr.mxu0 0.0
        %4349 = vmatpush1.msra.mxu0 %v731
        %4350 = vmatprep.subr.mxu0 0.0
        %4351 = vmatpush1.msra.mxu0 %v730
        %4352 = vmatprep.subr.mxu0 0.0
        %4353 = vmatpush1.msra.mxu0 %v729
        %4354 = vmatprep.subr.mxu0 0.0
        %4355 = vmatpush1.msra.mxu0 %v728
        %4356 = vmatprep.subr.mxu0 0.0
        %4357 = vmatpush1.msra.mxu0 %v727
        %4358 = vmatprep.subr.mxu0 0.0
        %4359 = vmatpush1.msra.mxu0 %v726
        %4360 = vmatprep.subr.mxu0 0.0
        %4361 = vmatpush1.msra.mxu0 %v725
        %4362 = vmatprep.subr.mxu0 0.0
        %4363 = vmatpush1.msra.mxu0 %v724
        %4364 = vmatprep.subr.mxu0 0.0
        %4365 = vmatpush1.msra.mxu0 %v723
        %4366 = vmatprep.subr.mxu0 0.0
        %4367 = vmatpush1.msra.mxu0 %v722
        %4368 = vmatprep.subr.mxu0 0.0
        %4369 = vmatpush1.msra.mxu0 %v721
        %4370 = vmatprep.subr.mxu0 0.0
        %4371 = vmatpush1.msra.mxu0 %v720
        %4372 = vmatprep.subr.mxu0 0.0
        %4373 = vmatpush2.msra.mxu0 0.0
        %4374 = vmatprep.subr.mxu0 0.0
        %4375 = vmatpush2.msra.mxu0 0.0
        %4376 = vmatprep.subr.mxu0 0.0
        %4377 = vmatpush2.msra.mxu0 0.0
        %4378 = vmatprep.subr.mxu0 0.0
        %4379 = vmatpush2.msra.mxu0 0.0
        %4380 = vmatprep.subr.mxu0 0.0
        %4381 = vmatpush2.msra.mxu0 0.0
        %4382 = vmatprep.subr.mxu0 0.0
        %4383 = vmatpush2.msra.mxu0 0.0
        %4384 = vmatprep.subr.mxu0 0.0
        %4385 = vmatpush2.msra.mxu0 0.0
        %4386 = vmatprep.subr.mxu0 0.0
        %4387 = vmatpush2.msra.mxu0 0.0
        %4388 = vmatprep.subr.mxu0 0.0
        %4389 = vmatpush2.msra.mxu0 0.0
        %4390 = vmatprep.subr.mxu0 0.0
        %4391 = vmatpush2.msra.mxu0 0.0
        %4392 = vmatprep.subr.mxu0 0.0
        %4393 = vmatpush2.msra.mxu0 0.0
        %4394 = vmatprep.subr.mxu0 0.0
        %4395 = vmatpush2.msra.mxu0 0.0
        %4396 = vmatprep.subr.mxu0 0.0
        %4397 = vmatpush2.msra.mxu0 0.0
        %4398 = vmatprep.subr.mxu0 0.0
        %4399 = vmatpush2.msra.mxu0 0.0
        %4400 = vmatprep.subr.mxu0 0.0
        %4401 = vmatpush2.msra.mxu0 0.0
        %4402 = vmatprep.subr.mxu0 0.0
        %4403 = vmatpush2.msra.mxu0 0.0
        %4404 = vmatprep.mubr.f32.mxu0 0.0
        %4405 = vmatmul.mubr.f32.gmra.mxu0 %v3909
        %v4406 = vpop.f32.mrf.mxu0
        %v4407 = vadd.f32 0.0, %v4406
        %v4408 = vpop.f32.mrf.mxu0
        %4409 = vdwg.mxu0
        %4410 = vmatprep.subr.mxu0 0.0
        %4411 = vmatpush1.msra.mxu0 %v751
        %4412 = vmatprep.subr.mxu0 0.0
        %4413 = vmatpush1.msra.mxu0 %v750
        %4414 = vmatprep.subr.mxu0 0.0
        %4415 = vmatpush1.msra.mxu0 %v749
        %4416 = vmatprep.subr.mxu0 0.0
        %4417 = vmatpush1.msra.mxu0 %v748
        %4418 = vmatprep.subr.mxu0 0.0
        %4419 = vmatpush1.msra.mxu0 %v747
        %4420 = vmatprep.subr.mxu0 0.0
        %4421 = vmatpush1.msra.mxu0 %v746
        %4422 = vmatprep.subr.mxu0 0.0
        %4423 = vmatpush1.msra.mxu0 %v745
        %4424 = vmatprep.subr.mxu0 0.0
        %4425 = vmatpush1.msra.mxu0 %v744
        %4426 = vmatprep.subr.mxu0 0.0
        %4427 = vmatpush1.msra.mxu0 %v743
        %4428 = vmatprep.subr.mxu0 0.0
        %4429 = vmatpush1.msra.mxu0 %v742
        %4430 = vmatprep.subr.mxu0 0.0
        %4431 = vmatpush1.msra.mxu0 %v741
        %4432 = vmatprep.subr.mxu0 0.0
        %4433 = vmatpush1.msra.mxu0 %v740
        %4434 = vmatprep.subr.mxu0 0.0
        %4435 = vmatpush1.msra.mxu0 %v739
        %4436 = vmatprep.subr.mxu0 0.0
        %4437 = vmatpush1.msra.mxu0 %v738
        %4438 = vmatprep.subr.mxu0 0.0
        %4439 = vmatpush1.msra.mxu0 %v737
        %4440 = vmatprep.subr.mxu0 0.0
        %4441 = vmatpush1.msra.mxu0 %v736
        %4442 = vmatprep.subr.mxu0 0.0
        %4443 = vmatpush2.msra.mxu0 0.0
        %4444 = vmatprep.subr.mxu0 0.0
        %4445 = vmatpush2.msra.mxu0 0.0
        %4446 = vmatprep.subr.mxu0 0.0
        %4447 = vmatpush2.msra.mxu0 0.0
        %4448 = vmatprep.subr.mxu0 0.0
        %4449 = vmatpush2.msra.mxu0 0.0
        %4450 = vmatprep.subr.mxu0 0.0
        %4451 = vmatpush2.msra.mxu0 0.0
        %4452 = vmatprep.subr.mxu0 0.0
        %4453 = vmatpush2.msra.mxu0 0.0
        %4454 = vmatprep.subr.mxu0 0.0
        %4455 = vmatpush2.msra.mxu0 0.0
        %4456 = vmatprep.subr.mxu0 0.0
        %4457 = vmatpush2.msra.mxu0 0.0
        %4458 = vmatprep.subr.mxu0 0.0
        %4459 = vmatpush2.msra.mxu0 0.0
        %4460 = vmatprep.subr.mxu0 0.0
        %4461 = vmatpush2.msra.mxu0 0.0
        %4462 = vmatprep.subr.mxu0 0.0
        %4463 = vmatpush2.msra.mxu0 0.0
        %4464 = vmatprep.subr.mxu0 0.0
        %4465 = vmatpush2.msra.mxu0 0.0
        %4466 = vmatprep.subr.mxu0 0.0
        %4467 = vmatpush2.msra.mxu0 0.0
        %4468 = vmatprep.subr.mxu0 0.0
        %4469 = vmatpush2.msra.mxu0 0.0
        %4470 = vmatprep.subr.mxu0 0.0
        %4471 = vmatpush2.msra.mxu0 0.0
        %4472 = vmatprep.subr.mxu0 0.0
        %4473 = vmatpush2.msra.mxu0 0.0
        %4474 = vmatprep.mubr.f32.mxu0 0.0
        %4475 = vmatmul.mubr.f32.gmra.mxu0 %v3911
        %v4476 = vpop.f32.mrf.mxu0
        %v4477 = vadd.f32 0.0, %v4476
        %v4478 = vpop.f32.mrf.mxu0
        %4479 = vdwg.mxu0
        %4480 = vmatprep.subr.mxu0 0.0
        %4481 = vmatpush1.msra.mxu0 %v991
        %4482 = vmatprep.subr.mxu0 0.0
        %4483 = vmatpush1.msra.mxu0 %v990
        %4484 = vmatprep.subr.mxu0 0.0
        %4485 = vmatpush1.msra.mxu0 %v989
        %4486 = vmatprep.subr.mxu0 0.0
        %4487 = vmatpush1.msra.mxu0 %v988
        %4488 = vmatprep.subr.mxu0 0.0
        %4489 = vmatpush1.msra.mxu0 %v987
        %4490 = vmatprep.subr.mxu0 0.0
        %4491 = vmatpush1.msra.mxu0 %v986
        %4492 = vmatprep.subr.mxu0 0.0
        %4493 = vmatpush1.msra.mxu0 %v985
        %4494 = vmatprep.subr.mxu0 0.0
        %4495 = vmatpush1.msra.mxu0 %v984
        %4496 = vmatprep.subr.mxu0 0.0
        %4497 = vmatpush1.msra.mxu0 %v983
        %4498 = vmatprep.subr.mxu0 0.0
        %4499 = vmatpush1.msra.mxu0 %v982
        %4500 = vmatprep.subr.mxu0 0.0
        %4501 = vmatpush1.msra.mxu0 %v981
        %4502 = vmatprep.subr.mxu0 0.0
        %4503 = vmatpush1.msra.mxu0 %v980
        %4504 = vmatprep.subr.mxu0 0.0
        %4505 = vmatpush1.msra.mxu0 %v979
        %4506 = vmatprep.subr.mxu0 0.0
        %4507 = vmatpush1.msra.mxu0 %v978
        %4508 = vmatprep.subr.mxu0 0.0
        %4509 = vmatpush1.msra.mxu0 %v977
        %4510 = vmatprep.subr.mxu0 0.0
        %4511 = vmatpush1.msra.mxu0 %v976
        %4512 = vmatprep.subr.mxu0 0.0
        %4513 = vmatpush2.msra.mxu0 0.0
        %4514 = vmatprep.subr.mxu0 0.0
        %4515 = vmatpush2.msra.mxu0 0.0
        %4516 = vmatprep.subr.mxu0 0.0
        %4517 = vmatpush2.msra.mxu0 0.0
        %4518 = vmatprep.subr.mxu0 0.0
        %4519 = vmatpush2.msra.mxu0 0.0
        %4520 = vmatprep.subr.mxu0 0.0
        %4521 = vmatpush2.msra.mxu0 0.0
        %4522 = vmatprep.subr.mxu0 0.0
        %4523 = vmatpush2.msra.mxu0 0.0
        %4524 = vmatprep.subr.mxu0 0.0
        %4525 = vmatpush2.msra.mxu0 0.0
        %4526 = vmatprep.subr.mxu0 0.0
        %4527 = vmatpush2.msra.mxu0 0.0
        %4528 = vmatprep.subr.mxu0 0.0
        %4529 = vmatpush2.msra.mxu0 0.0
        %4530 = vmatprep.subr.mxu0 0.0
        %4531 = vmatpush2.msra.mxu0 0.0
        %4532 = vmatprep.subr.mxu0 0.0
        %4533 = vmatpush2.msra.mxu0 0.0
        %4534 = vmatprep.subr.mxu0 0.0
        %4535 = vmatpush2.msra.mxu0 0.0
        %4536 = vmatprep.subr.mxu0 0.0
        %4537 = vmatpush2.msra.mxu0 0.0
        %4538 = vmatprep.subr.mxu0 0.0
        %4539 = vmatpush2.msra.mxu0 0.0
        %4540 = vmatprep.subr.mxu0 0.0
        %4541 = vmatpush2.msra.mxu0 0.0
        %4542 = vmatprep.subr.mxu0 0.0
        %4543 = vmatpush2.msra.mxu0 0.0
        %4544 = vmatprep.mubr.f32.mxu0 0.0
        %4545 = vmatmul.mubr.f32.gmra.mxu0 %v3140
        %v4546 = vpop.f32.mrf.mxu0
        %v4547 = vadd.f32 0.0, %v4546
        %v4548 = vpop.f32.mrf.mxu0
        %4549 = vdwg.mxu0
        %v4558 = vrot.slane %v4057, 7
        %v4559 = vsel %vm2152, %v4558, %v3987
        %v4560 = vrot.slane %v4127, 6
        %v4561 = vsel %vm2155, %v4560, %v4559
        %v4562 = vrot.slane %v4197, 5
        %v4563 = vsel %vm2158, %v4562, %v4561
        %v4564 = vrot.slane %v4267, 4
        %v4565 = vsel %vm2161, %v4564, %v4563
        %v4566 = vrot.slane %v4337, 3
        %v4567 = vsel %vm2164, %v4566, %v4565
        %v4568 = vrot.slane %v4407, 2
        %v4569 = vsel %vm2167, %v4568, %v4567
        %v4570 = vrot.slane %v4477, 1
        %v4571 = vsel %vm2170, %v4570, %v4569
        %4573 = vmatprep.subr.mxu0 0.0
        %4574 = vmatpush1.msra.mxu0 %v975
        %4575 = vmatprep.subr.mxu0 0.0
        %4576 = vmatpush1.msra.mxu0 %v974
        %4577 = vmatprep.subr.mxu0 0.0
        %4578 = vmatpush1.msra.mxu0 %v973
        %4579 = vmatprep.subr.mxu0 0.0
        %4580 = vmatpush1.msra.mxu0 %v972
        %4581 = vmatprep.subr.mxu0 0.0
        %4582 = vmatpush1.msra.mxu0 %v971
        %4583 = vmatprep.subr.mxu0 0.0
        %4584 = vmatpush1.msra.mxu0 %v970
        %4585 = vmatprep.subr.mxu0 0.0
        %4586 = vmatpush1.msra.mxu0 %v969
        %4587 = vmatprep.subr.mxu0 0.0
        %4588 = vmatpush1.msra.mxu0 %v968
        %4589 = vmatprep.subr.mxu0 0.0
        %4590 = vmatpush1.msra.mxu0 %v967
        %4591 = vmatprep.subr.mxu0 0.0
        %4592 = vmatpush1.msra.mxu0 %v966
        %4593 = vmatprep.subr.mxu0 0.0
        %4594 = vmatpush1.msra.mxu0 %v965
        %4595 = vmatprep.subr.mxu0 0.0
        %4596 = vmatpush1.msra.mxu0 %v964
        %4597 = vmatprep.subr.mxu0 0.0
        %4598 = vmatpush1.msra.mxu0 %v963
        %4599 = vmatprep.subr.mxu0 0.0
        %4600 = vmatpush1.msra.mxu0 %v962
        %4601 = vmatprep.subr.mxu0 0.0
        %4602 = vmatpush1.msra.mxu0 %v961
        %4603 = vmatprep.subr.mxu0 0.0
        %4604 = vmatpush1.msra.mxu0 %v960
        %4605 = vmatprep.subr.mxu0 0.0
        %4606 = vmatpush2.msra.mxu0 0.0
        %4607 = vmatprep.subr.mxu0 0.0
        %4608 = vmatpush2.msra.mxu0 0.0
        %4609 = vmatprep.subr.mxu0 0.0
        %4610 = vmatpush2.msra.mxu0 0.0
        %4611 = vmatprep.subr.mxu0 0.0
        %4612 = vmatpush2.msra.mxu0 0.0
        %4613 = vmatprep.subr.mxu0 0.0
        %4614 = vmatpush2.msra.mxu0 0.0
        %4615 = vmatprep.subr.mxu0 0.0
        %4616 = vmatpush2.msra.mxu0 0.0
        %4617 = vmatprep.subr.mxu0 0.0
        %4618 = vmatpush2.msra.mxu0 0.0
        %4619 = vmatprep.subr.mxu0 0.0
        %4620 = vmatpush2.msra.mxu0 0.0
        %4621 = vmatprep.subr.mxu0 0.0
        %4622 = vmatpush2.msra.mxu0 0.0
        %4623 = vmatprep.subr.mxu0 0.0
        %4624 = vmatpush2.msra.mxu0 0.0
        %4625 = vmatprep.subr.mxu0 0.0
        %4626 = vmatpush2.msra.mxu0 0.0
        %4627 = vmatprep.subr.mxu0 0.0
        %4628 = vmatpush2.msra.mxu0 0.0
        %4629 = vmatprep.subr.mxu0 0.0
        %4630 = vmatpush2.msra.mxu0 0.0
        %4631 = vmatprep.subr.mxu0 0.0
        %4632 = vmatpush2.msra.mxu0 0.0
        %4633 = vmatprep.subr.mxu0 0.0
        %4634 = vmatpush2.msra.mxu0 0.0
        %4635 = vmatprep.subr.mxu0 0.0
        %4636 = vmatpush2.msra.mxu0 0.0
        %4637 = vmatprep.mubr.f32.mxu0 0.0
        %4638 = vmatmul.mubr.f32.gmra.mxu0 %v4571
        %v4639 = vpop.f32.mrf.mxu0
        %v4640 = vadd.f32 %v4547, %v4639
        %v4641 = vpop.f32.mrf.mxu0
        %4642 = vdwg.mxu0
        %v4643 = vtanh.pop %v4640
        %s4644 = scalar_lea.vmem %s609, 8 [#allocation22]
        %4645 = vst [vmem:[%s4644] sm:$0xff] %v4643
        %s4646 = scalar_lea.vmem [#allocation4], 64
        %v4647 = vld [vmem:[%s4646] sm:$0xff]
        %v4648 = vld [vmem:[%s4646 + $0x8] sm:$0xff]
        %v4649 = vld [vmem:[%s4646 + $0x10] sm:$0xff]
        %v4650 = vld [vmem:[%s4646 + $0x18] sm:$0xff]
        %4651 = vmatprep.subr.mxu0 %v941
        %4652 = vmatpush1.msra.mxu0 %v940
        %4653 = vmatprep.subr.mxu0 %v937
        %4654 = vmatpush1.msra.mxu0 %v936
        %4655 = vmatprep.subr.mxu0 %v933
        %4656 = vmatpush1.msra.mxu0 %v932
        %4657 = vmatprep.subr.mxu0 %v929
        %4658 = vmatpush1.msra.mxu0 %v928
        %4659 = vmatprep.subr.mxu0 %v925
        %4660 = vmatpush1.msra.mxu0 %v924
        %4661 = vmatprep.subr.mxu0 %v921
        %4662 = vmatpush1.msra.mxu0 %v920
        %4663 = vmatprep.subr.mxu0 %v917
        %4664 = vmatpush1.msra.mxu0 %v916
        %4665 = vmatprep.subr.mxu0 %v913
        %4666 = vmatpush1.msra.mxu0 %v912
        %4667 = vmatprep.subr.mxu0 %v909
        %4668 = vmatpush1.msra.mxu0 %v908
        %4669 = vmatprep.subr.mxu0 %v905
        %4670 = vmatpush1.msra.mxu0 %v904
        %4671 = vmatprep.subr.mxu0 %v901
        %4672 = vmatpush1.msra.mxu0 %v900
        %4673 = vmatprep.subr.mxu0 %v897
        %4674 = vmatpush1.msra.mxu0 %v896
        %4675 = vmatprep.subr.mxu0 %v893
        %4676 = vmatpush1.msra.mxu0 %v892
        %4677 = vmatprep.subr.mxu0 %v889
        %4678 = vmatpush1.msra.mxu0 %v888
        %4679 = vmatprep.subr.mxu0 %v885
        %4680 = vmatpush1.msra.mxu0 %v884
        %4681 = vmatprep.subr.mxu0 %v881
        %4682 = vmatpush1.msra.mxu0 %v880
        %4683 = vmatprep.subr.mxu0 0.0
        %4684 = vmatpush2.msra.mxu0 0.0
        %4685 = vmatprep.subr.mxu0 0.0
        %4686 = vmatpush2.msra.mxu0 0.0
        %4687 = vmatprep.subr.mxu0 0.0
        %4688 = vmatpush2.msra.mxu0 0.0
        %4689 = vmatprep.subr.mxu0 0.0
        %4690 = vmatpush2.msra.mxu0 0.0
        %4691 = vmatprep.subr.mxu0 0.0
        %4692 = vmatpush2.msra.mxu0 0.0
        %4693 = vmatprep.subr.mxu0 0.0
        %4694 = vmatpush2.msra.mxu0 0.0
        %4695 = vmatprep.subr.mxu0 0.0
        %4696 = vmatpush2.msra.mxu0 0.0
        %4697 = vmatprep.subr.mxu0 0.0
        %4698 = vmatpush2.msra.mxu0 0.0
        %4699 = vmatprep.subr.mxu0 0.0
        %4700 = vmatpush2.msra.mxu0 0.0
        %4701 = vmatprep.subr.mxu0 0.0
        %4702 = vmatpush2.msra.mxu0 0.0
        %4703 = vmatprep.subr.mxu0 0.0
        %4704 = vmatpush2.msra.mxu0 0.0
        %4705 = vmatprep.subr.mxu0 0.0
        %4706 = vmatpush2.msra.mxu0 0.0
        %4707 = vmatprep.subr.mxu0 0.0
        %4708 = vmatpush2.msra.mxu0 0.0
        %4709 = vmatprep.subr.mxu0 0.0
        %4710 = vmatpush2.msra.mxu0 0.0
        %4711 = vmatprep.subr.mxu0 0.0
        %4712 = vmatpush2.msra.mxu0 0.0
        %4713 = vmatprep.subr.mxu0 0.0
        %4714 = vmatpush2.msra.mxu0 0.0
        %4715 = vmatprep.mubr.f32.mxu0 0.0
        %4716 = vmatmul.mubr.f32.gmra.mxu0 %v4643
        %v4717 = vpop.f32.mrf.mxu0
        %v4718 = vadd.f32 0.0, %v4717
        %v4719 = vpop.f32.mrf.mxu0
        %v4720 = vadd.f32 0.0, %v4719
        %4721 = vdwg.mxu0
        %4722 = vmatprep.subr.mxu0 %v943
        %4723 = vmatpush1.msra.mxu0 %v942
        %4724 = vmatprep.subr.mxu0 %v939
        %4725 = vmatpush1.msra.mxu0 %v938
        %4726 = vmatprep.subr.mxu0 %v935
        %4727 = vmatpush1.msra.mxu0 %v934
        %4728 = vmatprep.subr.mxu0 %v931
        %4729 = vmatpush1.msra.mxu0 %v930
        %4730 = vmatprep.subr.mxu0 %v927
        %4731 = vmatpush1.msra.mxu0 %v926
        %4732 = vmatprep.subr.mxu0 %v923
        %4733 = vmatpush1.msra.mxu0 %v922
        %4734 = vmatprep.subr.mxu0 %v919
        %4735 = vmatpush1.msra.mxu0 %v918
        %4736 = vmatprep.subr.mxu0 %v915
        %4737 = vmatpush1.msra.mxu0 %v914
        %4738 = vmatprep.subr.mxu0 %v911
        %4739 = vmatpush1.msra.mxu0 %v910
        %4740 = vmatprep.subr.mxu0 %v907
        %4741 = vmatpush1.msra.mxu0 %v906
        %4742 = vmatprep.subr.mxu0 %v903
        %4743 = vmatpush1.msra.mxu0 %v902
        %4744 = vmatprep.subr.mxu0 %v899
        %4745 = vmatpush1.msra.mxu0 %v898
        %4746 = vmatprep.subr.mxu0 %v895
        %4747 = vmatpush1.msra.mxu0 %v894
        %4748 = vmatprep.subr.mxu0 %v891
        %4749 = vmatpush1.msra.mxu0 %v890
        %4750 = vmatprep.subr.mxu0 %v887
        %4751 = vmatpush1.msra.mxu0 %v886
        %4752 = vmatprep.subr.mxu0 %v883
        %4753 = vmatpush1.msra.mxu0 %v882
        %4754 = vmatprep.subr.mxu0 0.0
        %4755 = vmatpush2.msra.mxu0 0.0
        %4756 = vmatprep.subr.mxu0 0.0
        %4757 = vmatpush2.msra.mxu0 0.0
        %4758 = vmatprep.subr.mxu0 0.0
        %4759 = vmatpush2.msra.mxu0 0.0
        %4760 = vmatprep.subr.mxu0 0.0
        %4761 = vmatpush2.msra.mxu0 0.0
        %4762 = vmatprep.subr.mxu0 0.0
        %4763 = vmatpush2.msra.mxu0 0.0
        %4764 = vmatprep.subr.mxu0 0.0
        %4765 = vmatpush2.msra.mxu0 0.0
        %4766 = vmatprep.subr.mxu0 0.0
        %4767 = vmatpush2.msra.mxu0 0.0
        %4768 = vmatprep.subr.mxu0 0.0
        %4769 = vmatpush2.msra.mxu0 0.0
        %4770 = vmatprep.subr.mxu0 0.0
        %4771 = vmatpush2.msra.mxu0 0.0
        %4772 = vmatprep.subr.mxu0 0.0
        %4773 = vmatpush2.msra.mxu0 0.0
        %4774 = vmatprep.subr.mxu0 0.0
        %4775 = vmatpush2.msra.mxu0 0.0
        %4776 = vmatprep.subr.mxu0 0.0
        %4777 = vmatpush2.msra.mxu0 0.0
        %4778 = vmatprep.subr.mxu0 0.0
        %4779 = vmatpush2.msra.mxu0 0.0
        %4780 = vmatprep.subr.mxu0 0.0
        %4781 = vmatpush2.msra.mxu0 0.0
        %4782 = vmatprep.subr.mxu0 0.0
        %4783 = vmatpush2.msra.mxu0 0.0
        %4784 = vmatprep.subr.mxu0 0.0
        %4785 = vmatpush2.msra.mxu0 0.0
        %4786 = vmatprep.mubr.f32.mxu0 0.0
        %4787 = vmatmul.mubr.f32.gmra.mxu0 %v4643
        %v4788 = vpop.f32.mrf.mxu0
        %v4789 = vadd.f32 0.0, %v4788
        %v4790 = vpop.f32.mrf.mxu0
        %v4791 = vadd.f32 0.0, %v4790
        %4792 = vdwg.mxu0
        %v4793 = vadd.f32 %v4647, %v4718
        %v4794 = vadd.f32 %v4648, %v4720
        %v4795 = vadd.f32 %v4649, %v4789
        %v4796 = vadd.f32 %v4650, %v4791
        %v4797 = vxor.u32 %v4793, 2147483648
        %v4798 = vxor.u32 %v4794, 2147483648
        %v4799 = vxor.u32 %v4795, 2147483648
        %v4800 = vmul.f32 %v4797, 1.442695
        %v4801 = vpow.pop %v4800
        %v4802 = vmul.f32 %v4798, 1.442695
        %v4803 = vpow.pop %v4802
        %v4804 = vmul.f32 %v4799, 1.442695
        %v4805 = vpow.pop %v4804
        %v4806 = vadd.f32 %v4801, 1.0
        %v4807 = vadd.f32 %v4803, 1.0
        %v4808 = vadd.f32 %v4805, 1.0
        %v4809 = vrcp.pop %v4806
        %v4810 = vmul.f32 1.0, %v4809
        %v4811 = vrcp.pop %v4807
        %v4812 = vmul.f32 1.0, %v4811
        %v4813 = vrcp.pop %v4808
        %v4814 = vmul.f32 1.0, %v4813
        %v4815 = vtanh.pop %v4796
        %v4816 = vmul.f32 %v4812, %v3138
        %v4817 = vmul.f32 %v4810, %v4815
        %v4818 = vadd.f32 %v4816, %v4817
        %v4819 = vtanh.pop %v4818
        %v4820 = vmul.f32 %v4814, %v4819
        %4821 = vmatprep.subr.mxu0 0.0
        %4822 = vmatpush1.msra.mxu0 %v959
        %4823 = vmatprep.subr.mxu0 0.0
        %4824 = vmatpush1.msra.mxu0 %v958
        %4825 = vmatprep.subr.mxu0 0.0
        %4826 = vmatpush1.msra.mxu0 %v957
        %4827 = vmatprep.subr.mxu0 0.0
        %4828 = vmatpush1.msra.mxu0 %v956
        %4829 = vmatprep.subr.mxu0 0.0
        %4830 = vmatpush1.msra.mxu0 %v955
        %4831 = vmatprep.subr.mxu0 0.0
        %4832 = vmatpush1.msra.mxu0 %v954
        %4833 = vmatprep.subr.mxu0 0.0
        %4834 = vmatpush1.msra.mxu0 %v953
        %4835 = vmatprep.subr.mxu0 0.0
        %4836 = vmatpush1.msra.mxu0 %v952
        %4837 = vmatprep.subr.mxu0 0.0
        %4838 = vmatpush1.msra.mxu0 %v951
        %4839 = vmatprep.subr.mxu0 0.0
        %4840 = vmatpush1.msra.mxu0 %v950
        %4841 = vmatprep.subr.mxu0 0.0
        %4842 = vmatpush1.msra.mxu0 %v949
        %4843 = vmatprep.subr.mxu0 0.0
        %4844 = vmatpush1.msra.mxu0 %v948
        %4845 = vmatprep.subr.mxu0 0.0
        %4846 = vmatpush1.msra.mxu0 %v947
        %4847 = vmatprep.subr.mxu0 0.0
        %4848 = vmatpush1.msra.mxu0 %v946
        %4849 = vmatprep.subr.mxu0 0.0
        %4850 = vmatpush1.msra.mxu0 %v945
        %4851 = vmatprep.subr.mxu0 0.0
        %4852 = vmatpush1.msra.mxu0 %v944
        %4853 = vmatprep.subr.mxu0 0.0
        %4854 = vmatpush2.msra.mxu0 0.0
        %4855 = vmatprep.subr.mxu0 0.0
        %4856 = vmatpush2.msra.mxu0 0.0
        %4857 = vmatprep.subr.mxu0 0.0
        %4858 = vmatpush2.msra.mxu0 0.0
        %4859 = vmatprep.subr.mxu0 0.0
        %4860 = vmatpush2.msra.mxu0 0.0
        %4861 = vmatprep.subr.mxu0 0.0
        %4862 = vmatpush2.msra.mxu0 0.0
        %4863 = vmatprep.subr.mxu0 0.0
        %4864 = vmatpush2.msra.mxu0 0.0
        %4865 = vmatprep.subr.mxu0 0.0
        %4866 = vmatpush2.msra.mxu0 0.0
        %4867 = vmatprep.subr.mxu0 0.0
        %4868 = vmatpush2.msra.mxu0 0.0
        %4869 = vmatprep.subr.mxu0 0.0
        %4870 = vmatpush2.msra.mxu0 0.0
        %4871 = vmatprep.subr.mxu0 0.0
        %4872 = vmatpush2.msra.mxu0 0.0
        %4873 = vmatprep.subr.mxu0 0.0
        %4874 = vmatpush2.msra.mxu0 0.0
        %4875 = vmatprep.subr.mxu0 0.0
        %4876 = vmatpush2.msra.mxu0 0.0
        %4877 = vmatprep.subr.mxu0 0.0
        %4878 = vmatpush2.msra.mxu0 0.0
        %4879 = vmatprep.subr.mxu0 0.0
        %4880 = vmatpush2.msra.mxu0 0.0
        %4881 = vmatprep.subr.mxu0 0.0
        %4882 = vmatpush2.msra.mxu0 0.0
        %4883 = vmatprep.subr.mxu0 0.0
        %4884 = vmatpush2.msra.mxu0 0.0
        %4885 = vmatprep.mubr.f32.mxu0 0.0
        %4886 = vmatmul.mubr.f32.gmra.mxu0 %v4820
        %v4887 = vpop.f32.mrf.mxu0
        %v4888 = vadd.f32 0.0, %v4887
        %v4889 = vpop.f32.mrf.mxu0
        %4890 = vdwg.mxu0
        %v4892 = vcombine.high %v4888, %v4888
        %v4894 = vunpack.c.l.s4 1966171168
        %v4895 = vunpack.c.0.s8 %v4894
        %v4896 = vlaneseq
        %v4897 = vshrl.u32 %v4896, 7
        %v4898 = vsub.s32 %v4895, %v4897
        %v4899 = vrot.slane %v4888, %v4898
        %v4901 = vunpack.c.l.s4 1966171168
        %v4902 = vunpack.c.0.s8 %v4901
        %v4903 = vlaneseq
        %v4904 = vshrl.u32 %v4903, 7
        %v4905 = vsub.s32 %v4902, %v4904
        %v4906 = vrot.slane %v4892, %v4905
        %v4907 = vcombine.high %v4899, %v4899
        %v4908 = vcombine.high %v4906, %v4906
        %v4910 = vunpack.c.l.s4 1966171168
        %v4911 = vunpack.c.0.s8 %v4910
        %v4912 = vlaneseq
        %v4913 = vshrl.u32 %v4912, 7
        %v4914 = vsub.s32 %v4911, %v4913
        %v4915 = vrot.slane %v4899, %v4914
        %v4917 = vunpack.c.l.s4 1966171168
        %v4918 = vunpack.c.0.s8 %v4917
        %v4919 = vlaneseq
        %v4920 = vshrl.u32 %v4919, 7
        %v4921 = vsub.s32 %v4918, %v4920
        %v4922 = vrot.slane %v4906, %v4921
        %v4924 = vunpack.c.l.s4 1966171168
        %v4925 = vunpack.c.0.s8 %v4924
        %v4926 = vlaneseq
        %v4927 = vshrl.u32 %v4926, 7
        %v4928 = vsub.s32 %v4925, %v4927
        %v4929 = vrot.slane %v4907, %v4928
        %v4931 = vunpack.c.l.s4 1966171168
        %v4932 = vunpack.c.0.s8 %v4931
        %v4933 = vlaneseq
        %v4934 = vshrl.u32 %v4933, 7
        %v4935 = vsub.s32 %v4932, %v4934
        %v4936 = vrot.slane %v4908, %v4935
        %v4937 = vcombine.high %v4915, %v4915
        %v4938 = vcombine.high %v4922, %v4922
        %v4939 = vcombine.high %v4929, %v4929
        %v4940 = vcombine.high %v4936, %v4936
        %4949 = vmatprep.subr.mxu0 0.0
        %4950 = vmatpush1.msra.mxu0 %v767
        %4951 = vmatprep.subr.mxu0 0.0
        %4952 = vmatpush1.msra.mxu0 %v766
        %4953 = vmatprep.subr.mxu0 0.0
        %4954 = vmatpush1.msra.mxu0 %v765
        %4955 = vmatprep.subr.mxu0 0.0
        %4956 = vmatpush1.msra.mxu0 %v764
        %4957 = vmatprep.subr.mxu0 0.0
        %4958 = vmatpush1.msra.mxu0 %v763
        %4959 = vmatprep.subr.mxu0 0.0
        %4960 = vmatpush1.msra.mxu0 %v762
        %4961 = vmatprep.subr.mxu0 0.0
        %4962 = vmatpush1.msra.mxu0 %v761
        %4963 = vmatprep.subr.mxu0 0.0
        %4964 = vmatpush1.msra.mxu0 %v760
        %4965 = vmatprep.subr.mxu0 0.0
        %4966 = vmatpush1.msra.mxu0 %v759
        %4967 = vmatprep.subr.mxu0 0.0
        %4968 = vmatpush1.msra.mxu0 %v758
        %4969 = vmatprep.subr.mxu0 0.0
        %4970 = vmatpush1.msra.mxu0 %v757
        %4971 = vmatprep.subr.mxu0 0.0
        %4972 = vmatpush1.msra.mxu0 %v756
        %4973 = vmatprep.subr.mxu0 0.0
        %4974 = vmatpush1.msra.mxu0 %v755
        %4975 = vmatprep.subr.mxu0 0.0
        %4976 = vmatpush1.msra.mxu0 %v754
        %4977 = vmatprep.subr.mxu0 0.0
        %4978 = vmatpush1.msra.mxu0 %v753
        %4979 = vmatprep.subr.mxu0 0.0
        %4980 = vmatpush1.msra.mxu0 %v752
        %4981 = vmatprep.subr.mxu0 0.0
        %4982 = vmatpush2.msra.mxu0 0.0
        %4983 = vmatprep.subr.mxu0 0.0
        %4984 = vmatpush2.msra.mxu0 0.0
        %4985 = vmatprep.subr.mxu0 0.0
        %4986 = vmatpush2.msra.mxu0 0.0
        %4987 = vmatprep.subr.mxu0 0.0
        %4988 = vmatpush2.msra.mxu0 0.0
        %4989 = vmatprep.subr.mxu0 0.0
        %4990 = vmatpush2.msra.mxu0 0.0
        %4991 = vmatprep.subr.mxu0 0.0
        %4992 = vmatpush2.msra.mxu0 0.0
        %4993 = vmatprep.subr.mxu0 0.0
        %4994 = vmatpush2.msra.mxu0 0.0
        %4995 = vmatprep.subr.mxu0 0.0
        %4996 = vmatpush2.msra.mxu0 0.0
        %4997 = vmatprep.subr.mxu0 0.0
        %4998 = vmatpush2.msra.mxu0 0.0
        %4999 = vmatprep.subr.mxu0 0.0
        %5000 = vmatpush2.msra.mxu0 0.0
        %5001 = vmatprep.subr.mxu0 0.0
        %5002 = vmatpush2.msra.mxu0 0.0
        %5003 = vmatprep.subr.mxu0 0.0
        %5004 = vmatpush2.msra.mxu0 0.0
        %5005 = vmatprep.subr.mxu0 0.0
        %5006 = vmatpush2.msra.mxu0 0.0
        %5007 = vmatprep.subr.mxu0 0.0
        %5008 = vmatpush2.msra.mxu0 0.0
        %5009 = vmatprep.subr.mxu0 0.0
        %5010 = vmatpush2.msra.mxu0 0.0
        %5011 = vmatprep.subr.mxu0 0.0
        %5012 = vmatpush2.msra.mxu0 0.0
        %5013 = vmatprep.mubr.f32.mxu0 0.0
        %5014 = vmatmul.mubr.f32.gmra.mxu0 %v4915
        %v5015 = vpop.f32.mrf.mxu0
        %v5016 = vadd.f32 0.0, %v5015
        %v5017 = vpop.f32.mrf.mxu0
        %5018 = vdwg.mxu0
        %5019 = vmatprep.subr.mxu0 0.0
        %5020 = vmatpush1.msra.mxu0 %v783
        %5021 = vmatprep.subr.mxu0 0.0
        %5022 = vmatpush1.msra.mxu0 %v782
        %5023 = vmatprep.subr.mxu0 0.0
        %5024 = vmatpush1.msra.mxu0 %v781
        %5025 = vmatprep.subr.mxu0 0.0
        %5026 = vmatpush1.msra.mxu0 %v780
        %5027 = vmatprep.subr.mxu0 0.0
        %5028 = vmatpush1.msra.mxu0 %v779
        %5029 = vmatprep.subr.mxu0 0.0
        %5030 = vmatpush1.msra.mxu0 %v778
        %5031 = vmatprep.subr.mxu0 0.0
        %5032 = vmatpush1.msra.mxu0 %v777
        %5033 = vmatprep.subr.mxu0 0.0
        %5034 = vmatpush1.msra.mxu0 %v776
        %5035 = vmatprep.subr.mxu0 0.0
        %5036 = vmatpush1.msra.mxu0 %v775
        %5037 = vmatprep.subr.mxu0 0.0
        %5038 = vmatpush1.msra.mxu0 %v774
        %5039 = vmatprep.subr.mxu0 0.0
        %5040 = vmatpush1.msra.mxu0 %v773
        %5041 = vmatprep.subr.mxu0 0.0
        %5042 = vmatpush1.msra.mxu0 %v772
        %5043 = vmatprep.subr.mxu0 0.0
        %5044 = vmatpush1.msra.mxu0 %v771
        %5045 = vmatprep.subr.mxu0 0.0
        %5046 = vmatpush1.msra.mxu0 %v770
        %5047 = vmatprep.subr.mxu0 0.0
        %5048 = vmatpush1.msra.mxu0 %v769
        %5049 = vmatprep.subr.mxu0 0.0
        %5050 = vmatpush1.msra.mxu0 %v768
        %5051 = vmatprep.subr.mxu0 0.0
        %5052 = vmatpush2.msra.mxu0 0.0
        %5053 = vmatprep.subr.mxu0 0.0
        %5054 = vmatpush2.msra.mxu0 0.0
        %5055 = vmatprep.subr.mxu0 0.0
        %5056 = vmatpush2.msra.mxu0 0.0
        %5057 = vmatprep.subr.mxu0 0.0
        %5058 = vmatpush2.msra.mxu0 0.0
        %5059 = vmatprep.subr.mxu0 0.0
        %5060 = vmatpush2.msra.mxu0 0.0
        %5061 = vmatprep.subr.mxu0 0.0
        %5062 = vmatpush2.msra.mxu0 0.0
        %5063 = vmatprep.subr.mxu0 0.0
        %5064 = vmatpush2.msra.mxu0 0.0
        %5065 = vmatprep.subr.mxu0 0.0
        %5066 = vmatpush2.msra.mxu0 0.0
        %5067 = vmatprep.subr.mxu0 0.0
        %5068 = vmatpush2.msra.mxu0 0.0
        %5069 = vmatprep.subr.mxu0 0.0
        %5070 = vmatpush2.msra.mxu0 0.0
        %5071 = vmatprep.subr.mxu0 0.0
        %5072 = vmatpush2.msra.mxu0 0.0
        %5073 = vmatprep.subr.mxu0 0.0
        %5074 = vmatpush2.msra.mxu0 0.0
        %5075 = vmatprep.subr.mxu0 0.0
        %5076 = vmatpush2.msra.mxu0 0.0
        %5077 = vmatprep.subr.mxu0 0.0
        %5078 = vmatpush2.msra.mxu0 0.0
        %5079 = vmatprep.subr.mxu0 0.0
        %5080 = vmatpush2.msra.mxu0 0.0
        %5081 = vmatprep.subr.mxu0 0.0
        %5082 = vmatpush2.msra.mxu0 0.0
        %5083 = vmatprep.mubr.f32.mxu0 0.0
        %5084 = vmatmul.mubr.f32.gmra.mxu0 %v4929
        %v5085 = vpop.f32.mrf.mxu0
        %v5086 = vadd.f32 0.0, %v5085
        %v5087 = vpop.f32.mrf.mxu0
        %5088 = vdwg.mxu0
        %5089 = vmatprep.subr.mxu0 0.0
        %5090 = vmatpush1.msra.mxu0 %v799
        %5091 = vmatprep.subr.mxu0 0.0
        %5092 = vmatpush1.msra.mxu0 %v798
        %5093 = vmatprep.subr.mxu0 0.0
        %5094 = vmatpush1.msra.mxu0 %v797
        %5095 = vmatprep.subr.mxu0 0.0
        %5096 = vmatpush1.msra.mxu0 %v796
        %5097 = vmatprep.subr.mxu0 0.0
        %5098 = vmatpush1.msra.mxu0 %v795
        %5099 = vmatprep.subr.mxu0 0.0
        %5100 = vmatpush1.msra.mxu0 %v794
        %5101 = vmatprep.subr.mxu0 0.0
        %5102 = vmatpush1.msra.mxu0 %v793
        %5103 = vmatprep.subr.mxu0 0.0
        %5104 = vmatpush1.msra.mxu0 %v792
        %5105 = vmatprep.subr.mxu0 0.0
        %5106 = vmatpush1.msra.mxu0 %v791
        %5107 = vmatprep.subr.mxu0 0.0
        %5108 = vmatpush1.msra.mxu0 %v790
        %5109 = vmatprep.subr.mxu0 0.0
        %5110 = vmatpush1.msra.mxu0 %v789
        %5111 = vmatprep.subr.mxu0 0.0
        %5112 = vmatpush1.msra.mxu0 %v788
        %5113 = vmatprep.subr.mxu0 0.0
        %5114 = vmatpush1.msra.mxu0 %v787
        %5115 = vmatprep.subr.mxu0 0.0
        %5116 = vmatpush1.msra.mxu0 %v786
        %5117 = vmatprep.subr.mxu0 0.0
        %5118 = vmatpush1.msra.mxu0 %v785
        %5119 = vmatprep.subr.mxu0 0.0
        %5120 = vmatpush1.msra.mxu0 %v784
        %5121 = vmatprep.subr.mxu0 0.0
        %5122 = vmatpush2.msra.mxu0 0.0
        %5123 = vmatprep.subr.mxu0 0.0
        %5124 = vmatpush2.msra.mxu0 0.0
        %5125 = vmatprep.subr.mxu0 0.0
        %5126 = vmatpush2.msra.mxu0 0.0
        %5127 = vmatprep.subr.mxu0 0.0
        %5128 = vmatpush2.msra.mxu0 0.0
        %5129 = vmatprep.subr.mxu0 0.0
        %5130 = vmatpush2.msra.mxu0 0.0
        %5131 = vmatprep.subr.mxu0 0.0
        %5132 = vmatpush2.msra.mxu0 0.0
        %5133 = vmatprep.subr.mxu0 0.0
        %5134 = vmatpush2.msra.mxu0 0.0
        %5135 = vmatprep.subr.mxu0 0.0
        %5136 = vmatpush2.msra.mxu0 0.0
        %5137 = vmatprep.subr.mxu0 0.0
        %5138 = vmatpush2.msra.mxu0 0.0
        %5139 = vmatprep.subr.mxu0 0.0
        %5140 = vmatpush2.msra.mxu0 0.0
        %5141 = vmatprep.subr.mxu0 0.0
        %5142 = vmatpush2.msra.mxu0 0.0
        %5143 = vmatprep.subr.mxu0 0.0
        %5144 = vmatpush2.msra.mxu0 0.0
        %5145 = vmatprep.subr.mxu0 0.0
        %5146 = vmatpush2.msra.mxu0 0.0
        %5147 = vmatprep.subr.mxu0 0.0
        %5148 = vmatpush2.msra.mxu0 0.0
        %5149 = vmatprep.subr.mxu0 0.0
        %5150 = vmatpush2.msra.mxu0 0.0
        %5151 = vmatprep.subr.mxu0 0.0
        %5152 = vmatpush2.msra.mxu0 0.0
        %5153 = vmatprep.mubr.f32.mxu0 0.0
        %5154 = vmatmul.mubr.f32.gmra.mxu0 %v4937
        %v5155 = vpop.f32.mrf.mxu0
        %v5156 = vadd.f32 0.0, %v5155
        %v5157 = vpop.f32.mrf.mxu0
        %5158 = vdwg.mxu0
        %5159 = vmatprep.subr.mxu0 0.0
        %5160 = vmatpush1.msra.mxu0 %v815
        %5161 = vmatprep.subr.mxu0 0.0
        %5162 = vmatpush1.msra.mxu0 %v814
        %5163 = vmatprep.subr.mxu0 0.0
        %5164 = vmatpush1.msra.mxu0 %v813
        %5165 = vmatprep.subr.mxu0 0.0
        %5166 = vmatpush1.msra.mxu0 %v812
        %5167 = vmatprep.subr.mxu0 0.0
        %5168 = vmatpush1.msra.mxu0 %v811
        %5169 = vmatprep.subr.mxu0 0.0
        %5170 = vmatpush1.msra.mxu0 %v810
        %5171 = vmatprep.subr.mxu0 0.0
        %5172 = vmatpush1.msra.mxu0 %v809
        %5173 = vmatprep.subr.mxu0 0.0
        %5174 = vmatpush1.msra.mxu0 %v808
        %5175 = vmatprep.subr.mxu0 0.0
        %5176 = vmatpush1.msra.mxu0 %v807
        %5177 = vmatprep.subr.mxu0 0.0
        %5178 = vmatpush1.msra.mxu0 %v806
        %5179 = vmatprep.subr.mxu0 0.0
        %5180 = vmatpush1.msra.mxu0 %v805
        %5181 = vmatprep.subr.mxu0 0.0
        %5182 = vmatpush1.msra.mxu0 %v804
        %5183 = vmatprep.subr.mxu0 0.0
        %5184 = vmatpush1.msra.mxu0 %v803
        %5185 = vmatprep.subr.mxu0 0.0
        %5186 = vmatpush1.msra.mxu0 %v802
        %5187 = vmatprep.subr.mxu0 0.0
        %5188 = vmatpush1.msra.mxu0 %v801
        %5189 = vmatprep.subr.mxu0 0.0
        %5190 = vmatpush1.msra.mxu0 %v800
        %5191 = vmatprep.subr.mxu0 0.0
        %5192 = vmatpush2.msra.mxu0 0.0
        %5193 = vmatprep.subr.mxu0 0.0
        %5194 = vmatpush2.msra.mxu0 0.0
        %5195 = vmatprep.subr.mxu0 0.0
        %5196 = vmatpush2.msra.mxu0 0.0
        %5197 = vmatprep.subr.mxu0 0.0
        %5198 = vmatpush2.msra.mxu0 0.0
        %5199 = vmatprep.subr.mxu0 0.0
        %5200 = vmatpush2.msra.mxu0 0.0
        %5201 = vmatprep.subr.mxu0 0.0
        %5202 = vmatpush2.msra.mxu0 0.0
        %5203 = vmatprep.subr.mxu0 0.0
        %5204 = vmatpush2.msra.mxu0 0.0
        %5205 = vmatprep.subr.mxu0 0.0
        %5206 = vmatpush2.msra.mxu0 0.0
        %5207 = vmatprep.subr.mxu0 0.0
        %5208 = vmatpush2.msra.mxu0 0.0
        %5209 = vmatprep.subr.mxu0 0.0
        %5210 = vmatpush2.msra.mxu0 0.0
        %5211 = vmatprep.subr.mxu0 0.0
        %5212 = vmatpush2.msra.mxu0 0.0
        %5213 = vmatprep.subr.mxu0 0.0
        %5214 = vmatpush2.msra.mxu0 0.0
        %5215 = vmatprep.subr.mxu0 0.0
        %5216 = vmatpush2.msra.mxu0 0.0
        %5217 = vmatprep.subr.mxu0 0.0
        %5218 = vmatpush2.msra.mxu0 0.0
        %5219 = vmatprep.subr.mxu0 0.0
        %5220 = vmatpush2.msra.mxu0 0.0
        %5221 = vmatprep.subr.mxu0 0.0
        %5222 = vmatpush2.msra.mxu0 0.0
        %5223 = vmatprep.mubr.f32.mxu0 0.0
        %5224 = vmatmul.mubr.f32.gmra.mxu0 %v4939
        %v5225 = vpop.f32.mrf.mxu0
        %v5226 = vadd.f32 0.0, %v5225
        %v5227 = vpop.f32.mrf.mxu0
        %5228 = vdwg.mxu0
        %5229 = vmatprep.subr.mxu0 0.0
        %5230 = vmatpush1.msra.mxu0 %v831
        %5231 = vmatprep.subr.mxu0 0.0
        %5232 = vmatpush1.msra.mxu0 %v830
        %5233 = vmatprep.subr.mxu0 0.0
        %5234 = vmatpush1.msra.mxu0 %v829
        %5235 = vmatprep.subr.mxu0 0.0
        %5236 = vmatpush1.msra.mxu0 %v828
        %5237 = vmatprep.subr.mxu0 0.0
        %5238 = vmatpush1.msra.mxu0 %v827
        %5239 = vmatprep.subr.mxu0 0.0
        %5240 = vmatpush1.msra.mxu0 %v826
        %5241 = vmatprep.subr.mxu0 0.0
        %5242 = vmatpush1.msra.mxu0 %v825
        %5243 = vmatprep.subr.mxu0 0.0
        %5244 = vmatpush1.msra.mxu0 %v824
        %5245 = vmatprep.subr.mxu0 0.0
        %5246 = vmatpush1.msra.mxu0 %v823
        %5247 = vmatprep.subr.mxu0 0.0
        %5248 = vmatpush1.msra.mxu0 %v822
        %5249 = vmatprep.subr.mxu0 0.0
        %5250 = vmatpush1.msra.mxu0 %v821
        %5251 = vmatprep.subr.mxu0 0.0
        %5252 = vmatpush1.msra.mxu0 %v820
        %5253 = vmatprep.subr.mxu0 0.0
        %5254 = vmatpush1.msra.mxu0 %v819
        %5255 = vmatprep.subr.mxu0 0.0
        %5256 = vmatpush1.msra.mxu0 %v818
        %5257 = vmatprep.subr.mxu0 0.0
        %5258 = vmatpush1.msra.mxu0 %v817
        %5259 = vmatprep.subr.mxu0 0.0
        %5260 = vmatpush1.msra.mxu0 %v816
        %5261 = vmatprep.subr.mxu0 0.0
        %5262 = vmatpush2.msra.mxu0 0.0
        %5263 = vmatprep.subr.mxu0 0.0
        %5264 = vmatpush2.msra.mxu0 0.0
        %5265 = vmatprep.subr.mxu0 0.0
        %5266 = vmatpush2.msra.mxu0 0.0
        %5267 = vmatprep.subr.mxu0 0.0
        %5268 = vmatpush2.msra.mxu0 0.0
        %5269 = vmatprep.subr.mxu0 0.0
        %5270 = vmatpush2.msra.mxu0 0.0
        %5271 = vmatprep.subr.mxu0 0.0
        %5272 = vmatpush2.msra.mxu0 0.0
        %5273 = vmatprep.subr.mxu0 0.0
        %5274 = vmatpush2.msra.mxu0 0.0
        %5275 = vmatprep.subr.mxu0 0.0
        %5276 = vmatpush2.msra.mxu0 0.0
        %5277 = vmatprep.subr.mxu0 0.0
        %5278 = vmatpush2.msra.mxu0 0.0
        %5279 = vmatprep.subr.mxu0 0.0
        %5280 = vmatpush2.msra.mxu0 0.0
        %5281 = vmatprep.subr.mxu0 0.0
        %5282 = vmatpush2.msra.mxu0 0.0
        %5283 = vmatprep.subr.mxu0 0.0
        %5284 = vmatpush2.msra.mxu0 0.0
        %5285 = vmatprep.subr.mxu0 0.0
        %5286 = vmatpush2.msra.mxu0 0.0
        %5287 = vmatprep.subr.mxu0 0.0
        %5288 = vmatpush2.msra.mxu0 0.0
        %5289 = vmatprep.subr.mxu0 0.0
        %5290 = vmatpush2.msra.mxu0 0.0
        %5291 = vmatprep.subr.mxu0 0.0
        %5292 = vmatpush2.msra.mxu0 0.0
        %5293 = vmatprep.mubr.f32.mxu0 0.0
        %5294 = vmatmul.mubr.f32.gmra.mxu0 %v4922
        %v5295 = vpop.f32.mrf.mxu0
        %v5296 = vadd.f32 0.0, %v5295
        %v5297 = vpop.f32.mrf.mxu0
        %5298 = vdwg.mxu0
        %5299 = vmatprep.subr.mxu0 0.0
        %5300 = vmatpush1.msra.mxu0 %v847
        %5301 = vmatprep.subr.mxu0 0.0
        %5302 = vmatpush1.msra.mxu0 %v846
        %5303 = vmatprep.subr.mxu0 0.0
        %5304 = vmatpush1.msra.mxu0 %v845
        %5305 = vmatprep.subr.mxu0 0.0
        %5306 = vmatpush1.msra.mxu0 %v844
        %5307 = vmatprep.subr.mxu0 0.0
        %5308 = vmatpush1.msra.mxu0 %v843
        %5309 = vmatprep.subr.mxu0 0.0
        %5310 = vmatpush1.msra.mxu0 %v842
        %5311 = vmatprep.subr.mxu0 0.0
        %5312 = vmatpush1.msra.mxu0 %v841
        %5313 = vmatprep.subr.mxu0 0.0
        %5314 = vmatpush1.msra.mxu0 %v840
        %5315 = vmatprep.subr.mxu0 0.0
        %5316 = vmatpush1.msra.mxu0 %v839
        %5317 = vmatprep.subr.mxu0 0.0
        %5318 = vmatpush1.msra.mxu0 %v838
        %5319 = vmatprep.subr.mxu0 0.0
        %5320 = vmatpush1.msra.mxu0 %v837
        %5321 = vmatprep.subr.mxu0 0.0
        %5322 = vmatpush1.msra.mxu0 %v836
        %5323 = vmatprep.subr.mxu0 0.0
        %5324 = vmatpush1.msra.mxu0 %v835
        %5325 = vmatprep.subr.mxu0 0.0
        %5326 = vmatpush1.msra.mxu0 %v834
        %5327 = vmatprep.subr.mxu0 0.0
        %5328 = vmatpush1.msra.mxu0 %v833
        %5329 = vmatprep.subr.mxu0 0.0
        %5330 = vmatpush1.msra.mxu0 %v832
        %5331 = vmatprep.subr.mxu0 0.0
        %5332 = vmatpush2.msra.mxu0 0.0
        %5333 = vmatprep.subr.mxu0 0.0
        %5334 = vmatpush2.msra.mxu0 0.0
        %5335 = vmatprep.subr.mxu0 0.0
        %5336 = vmatpush2.msra.mxu0 0.0
        %5337 = vmatprep.subr.mxu0 0.0
        %5338 = vmatpush2.msra.mxu0 0.0
        %5339 = vmatprep.subr.mxu0 0.0
        %5340 = vmatpush2.msra.mxu0 0.0
        %5341 = vmatprep.subr.mxu0 0.0
        %5342 = vmatpush2.msra.mxu0 0.0
        %5343 = vmatprep.subr.mxu0 0.0
        %5344 = vmatpush2.msra.mxu0 0.0
        %5345 = vmatprep.subr.mxu0 0.0
        %5346 = vmatpush2.msra.mxu0 0.0
        %5347 = vmatprep.subr.mxu0 0.0
        %5348 = vmatpush2.msra.mxu0 0.0
        %5349 = vmatprep.subr.mxu0 0.0
        %5350 = vmatpush2.msra.mxu0 0.0
        %5351 = vmatprep.subr.mxu0 0.0
        %5352 = vmatpush2.msra.mxu0 0.0
        %5353 = vmatprep.subr.mxu0 0.0
        %5354 = vmatpush2.msra.mxu0 0.0
        %5355 = vmatprep.subr.mxu0 0.0
        %5356 = vmatpush2.msra.mxu0 0.0
        %5357 = vmatprep.subr.mxu0 0.0
        %5358 = vmatpush2.msra.mxu0 0.0
        %5359 = vmatprep.subr.mxu0 0.0
        %5360 = vmatpush2.msra.mxu0 0.0
        %5361 = vmatprep.subr.mxu0 0.0
        %5362 = vmatpush2.msra.mxu0 0.0
        %5363 = vmatprep.mubr.f32.mxu0 0.0
        %5364 = vmatmul.mubr.f32.gmra.mxu0 %v4936
        %v5365 = vpop.f32.mrf.mxu0
        %v5366 = vadd.f32 0.0, %v5365
        %v5367 = vpop.f32.mrf.mxu0
        %5368 = vdwg.mxu0
        %5369 = vmatprep.subr.mxu0 0.0
        %5370 = vmatpush1.msra.mxu0 %v863
        %5371 = vmatprep.subr.mxu0 0.0
        %5372 = vmatpush1.msra.mxu0 %v862
        %5373 = vmatprep.subr.mxu0 0.0
        %5374 = vmatpush1.msra.mxu0 %v861
        %5375 = vmatprep.subr.mxu0 0.0
        %5376 = vmatpush1.msra.mxu0 %v860
        %5377 = vmatprep.subr.mxu0 0.0
        %5378 = vmatpush1.msra.mxu0 %v859
        %5379 = vmatprep.subr.mxu0 0.0
        %5380 = vmatpush1.msra.mxu0 %v858
        %5381 = vmatprep.subr.mxu0 0.0
        %5382 = vmatpush1.msra.mxu0 %v857
        %5383 = vmatprep.subr.mxu0 0.0
        %5384 = vmatpush1.msra.mxu0 %v856
        %5385 = vmatprep.subr.mxu0 0.0
        %5386 = vmatpush1.msra.mxu0 %v855
        %5387 = vmatprep.subr.mxu0 0.0
        %5388 = vmatpush1.msra.mxu0 %v854
        %5389 = vmatprep.subr.mxu0 0.0
        %5390 = vmatpush1.msra.mxu0 %v853
        %5391 = vmatprep.subr.mxu0 0.0
        %5392 = vmatpush1.msra.mxu0 %v852
        %5393 = vmatprep.subr.mxu0 0.0
        %5394 = vmatpush1.msra.mxu0 %v851
        %5395 = vmatprep.subr.mxu0 0.0
        %5396 = vmatpush1.msra.mxu0 %v850
        %5397 = vmatprep.subr.mxu0 0.0
        %5398 = vmatpush1.msra.mxu0 %v849
        %5399 = vmatprep.subr.mxu0 0.0
        %5400 = vmatpush1.msra.mxu0 %v848
        %5401 = vmatprep.subr.mxu0 0.0
        %5402 = vmatpush2.msra.mxu0 0.0
        %5403 = vmatprep.subr.mxu0 0.0
        %5404 = vmatpush2.msra.mxu0 0.0
        %5405 = vmatprep.subr.mxu0 0.0
        %5406 = vmatpush2.msra.mxu0 0.0
        %5407 = vmatprep.subr.mxu0 0.0
        %5408 = vmatpush2.msra.mxu0 0.0
        %5409 = vmatprep.subr.mxu0 0.0
        %5410 = vmatpush2.msra.mxu0 0.0
        %5411 = vmatprep.subr.mxu0 0.0
        %5412 = vmatpush2.msra.mxu0 0.0
        %5413 = vmatprep.subr.mxu0 0.0
        %5414 = vmatpush2.msra.mxu0 0.0
        %5415 = vmatprep.subr.mxu0 0.0
        %5416 = vmatpush2.msra.mxu0 0.0
        %5417 = vmatprep.subr.mxu0 0.0
        %5418 = vmatpush2.msra.mxu0 0.0
        %5419 = vmatprep.subr.mxu0 0.0
        %5420 = vmatpush2.msra.mxu0 0.0
        %5421 = vmatprep.subr.mxu0 0.0
        %5422 = vmatpush2.msra.mxu0 0.0
        %5423 = vmatprep.subr.mxu0 0.0
        %5424 = vmatpush2.msra.mxu0 0.0
        %5425 = vmatprep.subr.mxu0 0.0
        %5426 = vmatpush2.msra.mxu0 0.0
        %5427 = vmatprep.subr.mxu0 0.0
        %5428 = vmatpush2.msra.mxu0 0.0
        %5429 = vmatprep.subr.mxu0 0.0
        %5430 = vmatpush2.msra.mxu0 0.0
        %5431 = vmatprep.subr.mxu0 0.0
        %5432 = vmatpush2.msra.mxu0 0.0
        %5433 = vmatprep.mubr.f32.mxu0 0.0
        %5434 = vmatmul.mubr.f32.gmra.mxu0 %v4938
        %v5435 = vpop.f32.mrf.mxu0
        %v5436 = vadd.f32 0.0, %v5435
        %v5437 = vpop.f32.mrf.mxu0
        %5438 = vdwg.mxu0
        %5439 = vmatprep.subr.mxu0 0.0
        %5440 = vmatpush1.msra.mxu0 %v879
        %5441 = vmatprep.subr.mxu0 0.0
        %5442 = vmatpush1.msra.mxu0 %v878
        %5443 = vmatprep.subr.mxu0 0.0
        %5444 = vmatpush1.msra.mxu0 %v877
        %5445 = vmatprep.subr.mxu0 0.0
        %5446 = vmatpush1.msra.mxu0 %v876
        %5447 = vmatprep.subr.mxu0 0.0
        %5448 = vmatpush1.msra.mxu0 %v875
        %5449 = vmatprep.subr.mxu0 0.0
        %5450 = vmatpush1.msra.mxu0 %v874
        %5451 = vmatprep.subr.mxu0 0.0
        %5452 = vmatpush1.msra.mxu0 %v873
        %5453 = vmatprep.subr.mxu0 0.0
        %5454 = vmatpush1.msra.mxu0 %v872
        %5455 = vmatprep.subr.mxu0 0.0
        %5456 = vmatpush1.msra.mxu0 %v871
        %5457 = vmatprep.subr.mxu0 0.0
        %5458 = vmatpush1.msra.mxu0 %v870
        %5459 = vmatprep.subr.mxu0 0.0
        %5460 = vmatpush1.msra.mxu0 %v869
        %5461 = vmatprep.subr.mxu0 0.0
        %5462 = vmatpush1.msra.mxu0 %v868
        %5463 = vmatprep.subr.mxu0 0.0
        %5464 = vmatpush1.msra.mxu0 %v867
        %5465 = vmatprep.subr.mxu0 0.0
        %5466 = vmatpush1.msra.mxu0 %v866
        %5467 = vmatprep.subr.mxu0 0.0
        %5468 = vmatpush1.msra.mxu0 %v865
        %5469 = vmatprep.subr.mxu0 0.0
        %5470 = vmatpush1.msra.mxu0 %v864
        %5471 = vmatprep.subr.mxu0 0.0
        %5472 = vmatpush2.msra.mxu0 0.0
        %5473 = vmatprep.subr.mxu0 0.0
        %5474 = vmatpush2.msra.mxu0 0.0
        %5475 = vmatprep.subr.mxu0 0.0
        %5476 = vmatpush2.msra.mxu0 0.0
        %5477 = vmatprep.subr.mxu0 0.0
        %5478 = vmatpush2.msra.mxu0 0.0
        %5479 = vmatprep.subr.mxu0 0.0
        %5480 = vmatpush2.msra.mxu0 0.0
        %5481 = vmatprep.subr.mxu0 0.0
        %5482 = vmatpush2.msra.mxu0 0.0
        %5483 = vmatprep.subr.mxu0 0.0
        %5484 = vmatpush2.msra.mxu0 0.0
        %5485 = vmatprep.subr.mxu0 0.0
        %5486 = vmatpush2.msra.mxu0 0.0
        %5487 = vmatprep.subr.mxu0 0.0
        %5488 = vmatpush2.msra.mxu0 0.0
        %5489 = vmatprep.subr.mxu0 0.0
        %5490 = vmatpush2.msra.mxu0 0.0
        %5491 = vmatprep.subr.mxu0 0.0
        %5492 = vmatpush2.msra.mxu0 0.0
        %5493 = vmatprep.subr.mxu0 0.0
        %5494 = vmatpush2.msra.mxu0 0.0
        %5495 = vmatprep.subr.mxu0 0.0
        %5496 = vmatpush2.msra.mxu0 0.0
        %5497 = vmatprep.subr.mxu0 0.0
        %5498 = vmatpush2.msra.mxu0 0.0
        %5499 = vmatprep.subr.mxu0 0.0
        %5500 = vmatpush2.msra.mxu0 0.0
        %5501 = vmatprep.subr.mxu0 0.0
        %5502 = vmatpush2.msra.mxu0 0.0
        %5503 = vmatprep.mubr.f32.mxu0 0.0
        %5504 = vmatmul.mubr.f32.gmra.mxu0 %v4940
        %v5505 = vpop.f32.mrf.mxu0
        %v5506 = vadd.f32 0.0, %v5505
        %v5507 = vpop.f32.mrf.mxu0
        %5508 = vdwg.mxu0
        %v5517 = vrot.slane %v5086, 7
        %v5518 = vsel %vm2152, %v5517, %v5016
        %v5519 = vrot.slane %v5156, 6
        %v5520 = vsel %vm2155, %v5519, %v5518
        %v5521 = vrot.slane %v5226, 5
        %v5522 = vsel %vm2158, %v5521, %v5520
        %v5523 = vrot.slane %v5296, 4
        %v5524 = vsel %vm2161, %v5523, %v5522
        %v5525 = vrot.slane %v5366, 3
        %v5526 = vsel %vm2164, %v5525, %v5524
        %v5527 = vrot.slane %v5436, 2
        %v5528 = vsel %vm2167, %v5527, %v5526
        %v5529 = vrot.slane %v5506, 1
        %v5530 = vsel %vm2170, %v5529, %v5528
        %v5532 = vsel %vm1278, %v5530, -1e+30
        %5533 = vmax.xlane.f32.xlu0 %v5532
        %v5534 = vpop.xlane.xlu0 %5533
        %v5535 = vsub.f32 %v5532, %v5534
        %v5536 = vmul.f32 %v5535, 1.442695
        %v5537 = vpow.pop %v5536
        %5538 = vadd.xlane.f32.xlu0 %v5537
        %v5539 = vpop.xlane.xlu0 %5538
        %v5540 = vrcp.pop %v5539
        %v5541 = vmul.f32 %v5537, %v5540
        %v5543 = vcombine.high %v5541, %v5541
        %v5545 = vunpack.c.l.s4 1966171168
        %v5546 = vunpack.c.0.s8 %v5545
        %v5547 = vlaneseq
        %v5548 = vshrl.u32 %v5547, 7
        %v5549 = vsub.s32 %v5546, %v5548
        %v5550 = vrot.slane %v5541, %v5549
        %v5552 = vunpack.c.l.s4 1966171168
        %v5553 = vunpack.c.0.s8 %v5552
        %v5554 = vlaneseq
        %v5555 = vshrl.u32 %v5554, 7
        %v5556 = vsub.s32 %v5553, %v5555
        %v5557 = vrot.slane %v5543, %v5556
        %v5558 = vcombine.high %v5550, %v5550
        %v5559 = vcombine.high %v5557, %v5557
        %v5561 = vunpack.c.l.s4 1966171168
        %v5562 = vunpack.c.0.s8 %v5561
        %v5563 = vlaneseq
        %v5564 = vshrl.u32 %v5563, 7
        %v5565 = vsub.s32 %v5562, %v5564
        %v5566 = vrot.slane %v5550, %v5565
        %v5568 = vunpack.c.l.s4 1966171168
        %v5569 = vunpack.c.0.s8 %v5568
        %v5570 = vlaneseq
        %v5571 = vshrl.u32 %v5570, 7
        %v5572 = vsub.s32 %v5569, %v5571
        %v5573 = vrot.slane %v5557, %v5572
        %v5575 = vunpack.c.l.s4 1966171168
        %v5576 = vunpack.c.0.s8 %v5575
        %v5577 = vlaneseq
        %v5578 = vshrl.u32 %v5577, 7
        %v5579 = vsub.s32 %v5576, %v5578
        %v5580 = vrot.slane %v5558, %v5579
        %v5582 = vunpack.c.l.s4 1966171168
        %v5583 = vunpack.c.0.s8 %v5582
        %v5584 = vlaneseq
        %v5585 = vshrl.u32 %v5584, 7
        %v5586 = vsub.s32 %v5583, %v5585
        %v5587 = vrot.slane %v5559, %v5586
        %v5588 = vcombine.high %v5566, %v5566
        %v5589 = vcombine.high %v5573, %v5573
        %v5590 = vcombine.high %v5580, %v5580
        %v5591 = vcombine.high %v5587, %v5587
        %5600 = vmatprep.subr.mxu0 0.0
        %5601 = vmatpush1.msra.mxu0 %v639
        %5602 = vmatprep.subr.mxu0 0.0
        %5603 = vmatpush1.msra.mxu0 %v638
        %5604 = vmatprep.subr.mxu0 0.0
        %5605 = vmatpush1.msra.mxu0 %v637
        %5606 = vmatprep.subr.mxu0 0.0
        %5607 = vmatpush1.msra.mxu0 %v636
        %5608 = vmatprep.subr.mxu0 0.0
        %5609 = vmatpush1.msra.mxu0 %v635
        %5610 = vmatprep.subr.mxu0 0.0
        %5611 = vmatpush1.msra.mxu0 %v634
        %5612 = vmatprep.subr.mxu0 0.0
        %5613 = vmatpush1.msra.mxu0 %v633
        %5614 = vmatprep.subr.mxu0 0.0
        %5615 = vmatpush1.msra.mxu0 %v632
        %5616 = vmatprep.subr.mxu0 0.0
        %5617 = vmatpush1.msra.mxu0 %v631
        %5618 = vmatprep.subr.mxu0 0.0
        %5619 = vmatpush1.msra.mxu0 %v630
        %5620 = vmatprep.subr.mxu0 0.0
        %5621 = vmatpush1.msra.mxu0 %v629
        %5622 = vmatprep.subr.mxu0 0.0
        %5623 = vmatpush1.msra.mxu0 %v628
        %5624 = vmatprep.subr.mxu0 0.0
        %5625 = vmatpush1.msra.mxu0 %v627
        %5626 = vmatprep.subr.mxu0 0.0
        %5627 = vmatpush1.msra.mxu0 %v626
        %5628 = vmatprep.subr.mxu0 0.0
        %5629 = vmatpush1.msra.mxu0 %v625
        %5630 = vmatprep.subr.mxu0 0.0
        %5631 = vmatpush1.msra.mxu0 %v624
        %5632 = vmatprep.subr.mxu0 0.0
        %5633 = vmatpush2.msra.mxu0 0.0
        %5634 = vmatprep.subr.mxu0 0.0
        %5635 = vmatpush2.msra.mxu0 0.0
        %5636 = vmatprep.subr.mxu0 0.0
        %5637 = vmatpush2.msra.mxu0 0.0
        %5638 = vmatprep.subr.mxu0 0.0
        %5639 = vmatpush2.msra.mxu0 0.0
        %5640 = vmatprep.subr.mxu0 0.0
        %5641 = vmatpush2.msra.mxu0 0.0
        %5642 = vmatprep.subr.mxu0 0.0
        %5643 = vmatpush2.msra.mxu0 0.0
        %5644 = vmatprep.subr.mxu0 0.0
        %5645 = vmatpush2.msra.mxu0 0.0
        %5646 = vmatprep.subr.mxu0 0.0
        %5647 = vmatpush2.msra.mxu0 0.0
        %5648 = vmatprep.subr.mxu0 0.0
        %5649 = vmatpush2.msra.mxu0 0.0
        %5650 = vmatprep.subr.mxu0 0.0
        %5651 = vmatpush2.msra.mxu0 0.0
        %5652 = vmatprep.subr.mxu0 0.0
        %5653 = vmatpush2.msra.mxu0 0.0
        %5654 = vmatprep.subr.mxu0 0.0
        %5655 = vmatpush2.msra.mxu0 0.0
        %5656 = vmatprep.subr.mxu0 0.0
        %5657 = vmatpush2.msra.mxu0 0.0
        %5658 = vmatprep.subr.mxu0 0.0
        %5659 = vmatpush2.msra.mxu0 0.0
        %5660 = vmatprep.subr.mxu0 0.0
        %5661 = vmatpush2.msra.mxu0 0.0
        %5662 = vmatprep.subr.mxu0 0.0
        %5663 = vmatpush2.msra.mxu0 0.0
        %5664 = vmatprep.mubr.f32.mxu0 0.0
        %5665 = vmatmul.mubr.f32.gmra.mxu0 %v5566
        %v5666 = vpop.f32.mrf.mxu0
        %v5667 = vadd.f32 0.0, %v5666
        %v5668 = vpop.f32.mrf.mxu0
        %5669 = vdwg.mxu0
        %5670 = vmatprep.subr.mxu0 0.0
        %5671 = vmatpush1.msra.mxu0 %v655
        %5672 = vmatprep.subr.mxu0 0.0
        %5673 = vmatpush1.msra.mxu0 %v654
        %5674 = vmatprep.subr.mxu0 0.0
        %5675 = vmatpush1.msra.mxu0 %v653
        %5676 = vmatprep.subr.mxu0 0.0
        %5677 = vmatpush1.msra.mxu0 %v652
        %5678 = vmatprep.subr.mxu0 0.0
        %5679 = vmatpush1.msra.mxu0 %v651
        %5680 = vmatprep.subr.mxu0 0.0
        %5681 = vmatpush1.msra.mxu0 %v650
        %5682 = vmatprep.subr.mxu0 0.0
        %5683 = vmatpush1.msra.mxu0 %v649
        %5684 = vmatprep.subr.mxu0 0.0
        %5685 = vmatpush1.msra.mxu0 %v648
        %5686 = vmatprep.subr.mxu0 0.0
        %5687 = vmatpush1.msra.mxu0 %v647
        %5688 = vmatprep.subr.mxu0 0.0
        %5689 = vmatpush1.msra.mxu0 %v646
        %5690 = vmatprep.subr.mxu0 0.0
        %5691 = vmatpush1.msra.mxu0 %v645
        %5692 = vmatprep.subr.mxu0 0.0
        %5693 = vmatpush1.msra.mxu0 %v644
        %5694 = vmatprep.subr.mxu0 0.0
        %5695 = vmatpush1.msra.mxu0 %v643
        %5696 = vmatprep.subr.mxu0 0.0
        %5697 = vmatpush1.msra.mxu0 %v642
        %5698 = vmatprep.subr.mxu0 0.0
        %5699 = vmatpush1.msra.mxu0 %v641
        %5700 = vmatprep.subr.mxu0 0.0
        %5701 = vmatpush1.msra.mxu0 %v640
        %5702 = vmatprep.subr.mxu0 0.0
        %5703 = vmatpush2.msra.mxu0 0.0
        %5704 = vmatprep.subr.mxu0 0.0
        %5705 = vmatpush2.msra.mxu0 0.0
        %5706 = vmatprep.subr.mxu0 0.0
        %5707 = vmatpush2.msra.mxu0 0.0
        %5708 = vmatprep.subr.mxu0 0.0
        %5709 = vmatpush2.msra.mxu0 0.0
        %5710 = vmatprep.subr.mxu0 0.0
        %5711 = vmatpush2.msra.mxu0 0.0
        %5712 = vmatprep.subr.mxu0 0.0
        %5713 = vmatpush2.msra.mxu0 0.0
        %5714 = vmatprep.subr.mxu0 0.0
        %5715 = vmatpush2.msra.mxu0 0.0
        %5716 = vmatprep.subr.mxu0 0.0
        %5717 = vmatpush2.msra.mxu0 0.0
        %5718 = vmatprep.subr.mxu0 0.0
        %5719 = vmatpush2.msra.mxu0 0.0
        %5720 = vmatprep.subr.mxu0 0.0
        %5721 = vmatpush2.msra.mxu0 0.0
        %5722 = vmatprep.subr.mxu0 0.0
        %5723 = vmatpush2.msra.mxu0 0.0
        %5724 = vmatprep.subr.mxu0 0.0
        %5725 = vmatpush2.msra.mxu0 0.0
        %5726 = vmatprep.subr.mxu0 0.0
        %5727 = vmatpush2.msra.mxu0 0.0
        %5728 = vmatprep.subr.mxu0 0.0
        %5729 = vmatpush2.msra.mxu0 0.0
        %5730 = vmatprep.subr.mxu0 0.0
        %5731 = vmatpush2.msra.mxu0 0.0
        %5732 = vmatprep.subr.mxu0 0.0
        %5733 = vmatpush2.msra.mxu0 0.0
        %5734 = vmatprep.mubr.f32.mxu0 0.0
        %5735 = vmatmul.mubr.f32.gmra.mxu0 %v5580
        %v5736 = vpop.f32.mrf.mxu0
        %v5737 = vadd.f32 0.0, %v5736
        %v5738 = vpop.f32.mrf.mxu0
        %5739 = vdwg.mxu0
        %5740 = vmatprep.subr.mxu0 0.0
        %5741 = vmatpush1.msra.mxu0 %v671
        %5742 = vmatprep.subr.mxu0 0.0
        %5743 = vmatpush1.msra.mxu0 %v670
        %5744 = vmatprep.subr.mxu0 0.0
        %5745 = vmatpush1.msra.mxu0 %v669
        %5746 = vmatprep.subr.mxu0 0.0
        %5747 = vmatpush1.msra.mxu0 %v668
        %5748 = vmatprep.subr.mxu0 0.0
        %5749 = vmatpush1.msra.mxu0 %v667
        %5750 = vmatprep.subr.mxu0 0.0
        %5751 = vmatpush1.msra.mxu0 %v666
        %5752 = vmatprep.subr.mxu0 0.0
        %5753 = vmatpush1.msra.mxu0 %v665
        %5754 = vmatprep.subr.mxu0 0.0
        %5755 = vmatpush1.msra.mxu0 %v664
        %5756 = vmatprep.subr.mxu0 0.0
        %5757 = vmatpush1.msra.mxu0 %v663
        %5758 = vmatprep.subr.mxu0 0.0
        %5759 = vmatpush1.msra.mxu0 %v662
        %5760 = vmatprep.subr.mxu0 0.0
        %5761 = vmatpush1.msra.mxu0 %v661
        %5762 = vmatprep.subr.mxu0 0.0
        %5763 = vmatpush1.msra.mxu0 %v660
        %5764 = vmatprep.subr.mxu0 0.0
        %5765 = vmatpush1.msra.mxu0 %v659
        %5766 = vmatprep.subr.mxu0 0.0
        %5767 = vmatpush1.msra.mxu0 %v658
        %5768 = vmatprep.subr.mxu0 0.0
        %5769 = vmatpush1.msra.mxu0 %v657
        %5770 = vmatprep.subr.mxu0 0.0
        %5771 = vmatpush1.msra.mxu0 %v656
        %5772 = vmatprep.subr.mxu0 0.0
        %5773 = vmatpush2.msra.mxu0 0.0
        %5774 = vmatprep.subr.mxu0 0.0
        %5775 = vmatpush2.msra.mxu0 0.0
        %5776 = vmatprep.subr.mxu0 0.0
        %5777 = vmatpush2.msra.mxu0 0.0
        %5778 = vmatprep.subr.mxu0 0.0
        %5779 = vmatpush2.msra.mxu0 0.0
        %5780 = vmatprep.subr.mxu0 0.0
        %5781 = vmatpush2.msra.mxu0 0.0
        %5782 = vmatprep.subr.mxu0 0.0
        %5783 = vmatpush2.msra.mxu0 0.0
        %5784 = vmatprep.subr.mxu0 0.0
        %5785 = vmatpush2.msra.mxu0 0.0
        %5786 = vmatprep.subr.mxu0 0.0
        %5787 = vmatpush2.msra.mxu0 0.0
        %5788 = vmatprep.subr.mxu0 0.0
        %5789 = vmatpush2.msra.mxu0 0.0
        %5790 = vmatprep.subr.mxu0 0.0
        %5791 = vmatpush2.msra.mxu0 0.0
        %5792 = vmatprep.subr.mxu0 0.0
        %5793 = vmatpush2.msra.mxu0 0.0
        %5794 = vmatprep.subr.mxu0 0.0
        %5795 = vmatpush2.msra.mxu0 0.0
        %5796 = vmatprep.subr.mxu0 0.0
        %5797 = vmatpush2.msra.mxu0 0.0
        %5798 = vmatprep.subr.mxu0 0.0
        %5799 = vmatpush2.msra.mxu0 0.0
        %5800 = vmatprep.subr.mxu0 0.0
        %5801 = vmatpush2.msra.mxu0 0.0
        %5802 = vmatprep.subr.mxu0 0.0
        %5803 = vmatpush2.msra.mxu0 0.0
        %5804 = vmatprep.mubr.f32.mxu0 0.0
        %5805 = vmatmul.mubr.f32.gmra.mxu0 %v5588
        %v5806 = vpop.f32.mrf.mxu0
        %v5807 = vadd.f32 0.0, %v5806
        %v5808 = vpop.f32.mrf.mxu0
        %5809 = vdwg.mxu0
        %5810 = vmatprep.subr.mxu0 0.0
        %5811 = vmatpush1.msra.mxu0 %v687
        %5812 = vmatprep.subr.mxu0 0.0
        %5813 = vmatpush1.msra.mxu0 %v686
        %5814 = vmatprep.subr.mxu0 0.0
        %5815 = vmatpush1.msra.mxu0 %v685
        %5816 = vmatprep.subr.mxu0 0.0
        %5817 = vmatpush1.msra.mxu0 %v684
        %5818 = vmatprep.subr.mxu0 0.0
        %5819 = vmatpush1.msra.mxu0 %v683
        %5820 = vmatprep.subr.mxu0 0.0
        %5821 = vmatpush1.msra.mxu0 %v682
        %5822 = vmatprep.subr.mxu0 0.0
        %5823 = vmatpush1.msra.mxu0 %v681
        %5824 = vmatprep.subr.mxu0 0.0
        %5825 = vmatpush1.msra.mxu0 %v680
        %5826 = vmatprep.subr.mxu0 0.0
        %5827 = vmatpush1.msra.mxu0 %v679
        %5828 = vmatprep.subr.mxu0 0.0
        %5829 = vmatpush1.msra.mxu0 %v678
        %5830 = vmatprep.subr.mxu0 0.0
        %5831 = vmatpush1.msra.mxu0 %v677
        %5832 = vmatprep.subr.mxu0 0.0
        %5833 = vmatpush1.msra.mxu0 %v676
        %5834 = vmatprep.subr.mxu0 0.0
        %5835 = vmatpush1.msra.mxu0 %v675
        %5836 = vmatprep.subr.mxu0 0.0
        %5837 = vmatpush1.msra.mxu0 %v674
        %5838 = vmatprep.subr.mxu0 0.0
        %5839 = vmatpush1.msra.mxu0 %v673
        %5840 = vmatprep.subr.mxu0 0.0
        %5841 = vmatpush1.msra.mxu0 %v672
        %5842 = vmatprep.subr.mxu0 0.0
        %5843 = vmatpush2.msra.mxu0 0.0
        %5844 = vmatprep.subr.mxu0 0.0
        %5845 = vmatpush2.msra.mxu0 0.0
        %5846 = vmatprep.subr.mxu0 0.0
        %5847 = vmatpush2.msra.mxu0 0.0
        %5848 = vmatprep.subr.mxu0 0.0
        %5849 = vmatpush2.msra.mxu0 0.0
        %5850 = vmatprep.subr.mxu0 0.0
        %5851 = vmatpush2.msra.mxu0 0.0
        %5852 = vmatprep.subr.mxu0 0.0
        %5853 = vmatpush2.msra.mxu0 0.0
        %5854 = vmatprep.subr.mxu0 0.0
        %5855 = vmatpush2.msra.mxu0 0.0
        %5856 = vmatprep.subr.mxu0 0.0
        %5857 = vmatpush2.msra.mxu0 0.0
        %5858 = vmatprep.subr.mxu0 0.0
        %5859 = vmatpush2.msra.mxu0 0.0
        %5860 = vmatprep.subr.mxu0 0.0
        %5861 = vmatpush2.msra.mxu0 0.0
        %5862 = vmatprep.subr.mxu0 0.0
        %5863 = vmatpush2.msra.mxu0 0.0
        %5864 = vmatprep.subr.mxu0 0.0
        %5865 = vmatpush2.msra.mxu0 0.0
        %5866 = vmatprep.subr.mxu0 0.0
        %5867 = vmatpush2.msra.mxu0 0.0
        %5868 = vmatprep.subr.mxu0 0.0
        %5869 = vmatpush2.msra.mxu0 0.0
        %5870 = vmatprep.subr.mxu0 0.0
        %5871 = vmatpush2.msra.mxu0 0.0
        %5872 = vmatprep.subr.mxu0 0.0
        %5873 = vmatpush2.msra.mxu0 0.0
        %5874 = vmatprep.mubr.f32.mxu0 0.0
        %5875 = vmatmul.mubr.f32.gmra.mxu0 %v5590
        %v5876 = vpop.f32.mrf.mxu0
        %v5877 = vadd.f32 0.0, %v5876
        %v5878 = vpop.f32.mrf.mxu0
        %5879 = vdwg.mxu0
        %5880 = vmatprep.subr.mxu0 0.0
        %5881 = vmatpush1.msra.mxu0 %v703
        %5882 = vmatprep.subr.mxu0 0.0
        %5883 = vmatpush1.msra.mxu0 %v702
        %5884 = vmatprep.subr.mxu0 0.0
        %5885 = vmatpush1.msra.mxu0 %v701
        %5886 = vmatprep.subr.mxu0 0.0
        %5887 = vmatpush1.msra.mxu0 %v700
        %5888 = vmatprep.subr.mxu0 0.0
        %5889 = vmatpush1.msra.mxu0 %v699
        %5890 = vmatprep.subr.mxu0 0.0
        %5891 = vmatpush1.msra.mxu0 %v698
        %5892 = vmatprep.subr.mxu0 0.0
        %5893 = vmatpush1.msra.mxu0 %v697
        %5894 = vmatprep.subr.mxu0 0.0
        %5895 = vmatpush1.msra.mxu0 %v696
        %5896 = vmatprep.subr.mxu0 0.0
        %5897 = vmatpush1.msra.mxu0 %v695
        %5898 = vmatprep.subr.mxu0 0.0
        %5899 = vmatpush1.msra.mxu0 %v694
        %5900 = vmatprep.subr.mxu0 0.0
        %5901 = vmatpush1.msra.mxu0 %v693
        %5902 = vmatprep.subr.mxu0 0.0
        %5903 = vmatpush1.msra.mxu0 %v692
        %5904 = vmatprep.subr.mxu0 0.0
        %5905 = vmatpush1.msra.mxu0 %v691
        %5906 = vmatprep.subr.mxu0 0.0
        %5907 = vmatpush1.msra.mxu0 %v690
        %5908 = vmatprep.subr.mxu0 0.0
        %5909 = vmatpush1.msra.mxu0 %v689
        %5910 = vmatprep.subr.mxu0 0.0
        %5911 = vmatpush1.msra.mxu0 %v688
        %5912 = vmatprep.subr.mxu0 0.0
        %5913 = vmatpush2.msra.mxu0 0.0
        %5914 = vmatprep.subr.mxu0 0.0
        %5915 = vmatpush2.msra.mxu0 0.0
        %5916 = vmatprep.subr.mxu0 0.0
        %5917 = vmatpush2.msra.mxu0 0.0
        %5918 = vmatprep.subr.mxu0 0.0
        %5919 = vmatpush2.msra.mxu0 0.0
        %5920 = vmatprep.subr.mxu0 0.0
        %5921 = vmatpush2.msra.mxu0 0.0
        %5922 = vmatprep.subr.mxu0 0.0
        %5923 = vmatpush2.msra.mxu0 0.0
        %5924 = vmatprep.subr.mxu0 0.0
        %5925 = vmatpush2.msra.mxu0 0.0
        %5926 = vmatprep.subr.mxu0 0.0
        %5927 = vmatpush2.msra.mxu0 0.0
        %5928 = vmatprep.subr.mxu0 0.0
        %5929 = vmatpush2.msra.mxu0 0.0
        %5930 = vmatprep.subr.mxu0 0.0
        %5931 = vmatpush2.msra.mxu0 0.0
        %5932 = vmatprep.subr.mxu0 0.0
        %5933 = vmatpush2.msra.mxu0 0.0
        %5934 = vmatprep.subr.mxu0 0.0
        %5935 = vmatpush2.msra.mxu0 0.0
        %5936 = vmatprep.subr.mxu0 0.0
        %5937 = vmatpush2.msra.mxu0 0.0
        %5938 = vmatprep.subr.mxu0 0.0
        %5939 = vmatpush2.msra.mxu0 0.0
        %5940 = vmatprep.subr.mxu0 0.0
        %5941 = vmatpush2.msra.mxu0 0.0
        %5942 = vmatprep.subr.mxu0 0.0
        %5943 = vmatpush2.msra.mxu0 0.0
        %5944 = vmatprep.mubr.f32.mxu0 0.0
        %5945 = vmatmul.mubr.f32.gmra.mxu0 %v5573
        %v5946 = vpop.f32.mrf.mxu0
        %v5947 = vadd.f32 0.0, %v5946
        %v5948 = vpop.f32.mrf.mxu0
        %5949 = vdwg.mxu0
        %5950 = vmatprep.subr.mxu0 0.0
        %5951 = vmatpush1.msra.mxu0 %v719
        %5952 = vmatprep.subr.mxu0 0.0
        %5953 = vmatpush1.msra.mxu0 %v718
        %5954 = vmatprep.subr.mxu0 0.0
        %5955 = vmatpush1.msra.mxu0 %v717
        %5956 = vmatprep.subr.mxu0 0.0
        %5957 = vmatpush1.msra.mxu0 %v716
        %5958 = vmatprep.subr.mxu0 0.0
        %5959 = vmatpush1.msra.mxu0 %v715
        %5960 = vmatprep.subr.mxu0 0.0
        %5961 = vmatpush1.msra.mxu0 %v714
        %5962 = vmatprep.subr.mxu0 0.0
        %5963 = vmatpush1.msra.mxu0 %v713
        %5964 = vmatprep.subr.mxu0 0.0
        %5965 = vmatpush1.msra.mxu0 %v712
        %5966 = vmatprep.subr.mxu0 0.0
        %5967 = vmatpush1.msra.mxu0 %v711
        %5968 = vmatprep.subr.mxu0 0.0
        %5969 = vmatpush1.msra.mxu0 %v710
        %5970 = vmatprep.subr.mxu0 0.0
        %5971 = vmatpush1.msra.mxu0 %v709
        %5972 = vmatprep.subr.mxu0 0.0
        %5973 = vmatpush1.msra.mxu0 %v708
        %5974 = vmatprep.subr.mxu0 0.0
        %5975 = vmatpush1.msra.mxu0 %v707
        %5976 = vmatprep.subr.mxu0 0.0
        %5977 = vmatpush1.msra.mxu0 %v706
        %5978 = vmatprep.subr.mxu0 0.0
        %5979 = vmatpush1.msra.mxu0 %v705
        %5980 = vmatprep.subr.mxu0 0.0
        %5981 = vmatpush1.msra.mxu0 %v704
        %5982 = vmatprep.subr.mxu0 0.0
        %5983 = vmatpush2.msra.mxu0 0.0
        %5984 = vmatprep.subr.mxu0 0.0
        %5985 = vmatpush2.msra.mxu0 0.0
        %5986 = vmatprep.subr.mxu0 0.0
        %5987 = vmatpush2.msra.mxu0 0.0
        %5988 = vmatprep.subr.mxu0 0.0
        %5989 = vmatpush2.msra.mxu0 0.0
        %5990 = vmatprep.subr.mxu0 0.0
        %5991 = vmatpush2.msra.mxu0 0.0
        %5992 = vmatprep.subr.mxu0 0.0
        %5993 = vmatpush2.msra.mxu0 0.0
        %5994 = vmatprep.subr.mxu0 0.0
        %5995 = vmatpush2.msra.mxu0 0.0
        %5996 = vmatprep.subr.mxu0 0.0
        %5997 = vmatpush2.msra.mxu0 0.0
        %5998 = vmatprep.subr.mxu0 0.0
        %5999 = vmatpush2.msra.mxu0 0.0
        %6000 = vmatprep.subr.mxu0 0.0
        %6001 = vmatpush2.msra.mxu0 0.0
        %6002 = vmatprep.subr.mxu0 0.0
        %6003 = vmatpush2.msra.mxu0 0.0
        %6004 = vmatprep.subr.mxu0 0.0
        %6005 = vmatpush2.msra.mxu0 0.0
        %6006 = vmatprep.subr.mxu0 0.0
        %6007 = vmatpush2.msra.mxu0 0.0
        %6008 = vmatprep.subr.mxu0 0.0
        %6009 = vmatpush2.msra.mxu0 0.0
        %6010 = vmatprep.subr.mxu0 0.0
        %6011 = vmatpush2.msra.mxu0 0.0
        %6012 = vmatprep.subr.mxu0 0.0
        %6013 = vmatpush2.msra.mxu0 0.0
        %6014 = vmatprep.mubr.f32.mxu0 0.0
        %6015 = vmatmul.mubr.f32.gmra.mxu0 %v5587
        %v6016 = vpop.f32.mrf.mxu0
        %v6017 = vadd.f32 0.0, %v6016
        %v6018 = vpop.f32.mrf.mxu0
        %6019 = vdwg.mxu0
        %6020 = vmatprep.subr.mxu0 0.0
        %6021 = vmatpush1.msra.mxu0 %v735
        %6022 = vmatprep.subr.mxu0 0.0
        %6023 = vmatpush1.msra.mxu0 %v734
        %6024 = vmatprep.subr.mxu0 0.0
        %6025 = vmatpush1.msra.mxu0 %v733
        %6026 = vmatprep.subr.mxu0 0.0
        %6027 = vmatpush1.msra.mxu0 %v732
        %6028 = vmatprep.subr.mxu0 0.0
        %6029 = vmatpush1.msra.mxu0 %v731
        %6030 = vmatprep.subr.mxu0 0.0
        %6031 = vmatpush1.msra.mxu0 %v730
        %6032 = vmatprep.subr.mxu0 0.0
        %6033 = vmatpush1.msra.mxu0 %v729
        %6034 = vmatprep.subr.mxu0 0.0
        %6035 = vmatpush1.msra.mxu0 %v728
        %6036 = vmatprep.subr.mxu0 0.0
        %6037 = vmatpush1.msra.mxu0 %v727
        %6038 = vmatprep.subr.mxu0 0.0
        %6039 = vmatpush1.msra.mxu0 %v726
        %6040 = vmatprep.subr.mxu0 0.0
        %6041 = vmatpush1.msra.mxu0 %v725
        %6042 = vmatprep.subr.mxu0 0.0
        %6043 = vmatpush1.msra.mxu0 %v724
        %6044 = vmatprep.subr.mxu0 0.0
        %6045 = vmatpush1.msra.mxu0 %v723
        %6046 = vmatprep.subr.mxu0 0.0
        %6047 = vmatpush1.msra.mxu0 %v722
        %6048 = vmatprep.subr.mxu0 0.0
        %6049 = vmatpush1.msra.mxu0 %v721
        %6050 = vmatprep.subr.mxu0 0.0
        %6051 = vmatpush1.msra.mxu0 %v720
        %6052 = vmatprep.subr.mxu0 0.0
        %6053 = vmatpush2.msra.mxu0 0.0
        %6054 = vmatprep.subr.mxu0 0.0
        %6055 = vmatpush2.msra.mxu0 0.0
        %6056 = vmatprep.subr.mxu0 0.0
        %6057 = vmatpush2.msra.mxu0 0.0
        %6058 = vmatprep.subr.mxu0 0.0
        %6059 = vmatpush2.msra.mxu0 0.0
        %6060 = vmatprep.subr.mxu0 0.0
        %6061 = vmatpush2.msra.mxu0 0.0
        %6062 = vmatprep.subr.mxu0 0.0
        %6063 = vmatpush2.msra.mxu0 0.0
        %6064 = vmatprep.subr.mxu0 0.0
        %6065 = vmatpush2.msra.mxu0 0.0
        %6066 = vmatprep.subr.mxu0 0.0
        %6067 = vmatpush2.msra.mxu0 0.0
        %6068 = vmatprep.subr.mxu0 0.0
        %6069 = vmatpush2.msra.mxu0 0.0
        %6070 = vmatprep.subr.mxu0 0.0
        %6071 = vmatpush2.msra.mxu0 0.0
        %6072 = vmatprep.subr.mxu0 0.0
        %6073 = vmatpush2.msra.mxu0 0.0
        %6074 = vmatprep.subr.mxu0 0.0
        %6075 = vmatpush2.msra.mxu0 0.0
        %6076 = vmatprep.subr.mxu0 0.0
        %6077 = vmatpush2.msra.mxu0 0.0
        %6078 = vmatprep.subr.mxu0 0.0
        %6079 = vmatpush2.msra.mxu0 0.0
        %6080 = vmatprep.subr.mxu0 0.0
        %6081 = vmatpush2.msra.mxu0 0.0
        %6082 = vmatprep.subr.mxu0 0.0
        %6083 = vmatpush2.msra.mxu0 0.0
        %6084 = vmatprep.mubr.f32.mxu0 0.0
        %6085 = vmatmul.mubr.f32.gmra.mxu0 %v5589
        %v6086 = vpop.f32.mrf.mxu0
        %v6087 = vadd.f32 0.0, %v6086
        %v6088 = vpop.f32.mrf.mxu0
        %6089 = vdwg.mxu0
        %6090 = vmatprep.subr.mxu0 0.0
        %6091 = vmatpush1.msra.mxu0 %v751
        %6092 = vmatprep.subr.mxu0 0.0
        %6093 = vmatpush1.msra.mxu0 %v750
        %6094 = vmatprep.subr.mxu0 0.0
        %6095 = vmatpush1.msra.mxu0 %v749
        %6096 = vmatprep.subr.mxu0 0.0
        %6097 = vmatpush1.msra.mxu0 %v748
        %6098 = vmatprep.subr.mxu0 0.0
        %6099 = vmatpush1.msra.mxu0 %v747
        %6100 = vmatprep.subr.mxu0 0.0
        %6101 = vmatpush1.msra.mxu0 %v746
        %6102 = vmatprep.subr.mxu0 0.0
        %6103 = vmatpush1.msra.mxu0 %v745
        %6104 = vmatprep.subr.mxu0 0.0
        %6105 = vmatpush1.msra.mxu0 %v744
        %6106 = vmatprep.subr.mxu0 0.0
        %6107 = vmatpush1.msra.mxu0 %v743
        %6108 = vmatprep.subr.mxu0 0.0
        %6109 = vmatpush1.msra.mxu0 %v742
        %6110 = vmatprep.subr.mxu0 0.0
        %6111 = vmatpush1.msra.mxu0 %v741
        %6112 = vmatprep.subr.mxu0 0.0
        %6113 = vmatpush1.msra.mxu0 %v740
        %6114 = vmatprep.subr.mxu0 0.0
        %6115 = vmatpush1.msra.mxu0 %v739
        %6116 = vmatprep.subr.mxu0 0.0
        %6117 = vmatpush1.msra.mxu0 %v738
        %6118 = vmatprep.subr.mxu0 0.0
        %6119 = vmatpush1.msra.mxu0 %v737
        %6120 = vmatprep.subr.mxu0 0.0
        %6121 = vmatpush1.msra.mxu0 %v736
        %6122 = vmatprep.subr.mxu0 0.0
        %6123 = vmatpush2.msra.mxu0 0.0
        %6124 = vmatprep.subr.mxu0 0.0
        %6125 = vmatpush2.msra.mxu0 0.0
        %6126 = vmatprep.subr.mxu0 0.0
        %6127 = vmatpush2.msra.mxu0 0.0
        %6128 = vmatprep.subr.mxu0 0.0
        %6129 = vmatpush2.msra.mxu0 0.0
        %6130 = vmatprep.subr.mxu0 0.0
        %6131 = vmatpush2.msra.mxu0 0.0
        %6132 = vmatprep.subr.mxu0 0.0
        %6133 = vmatpush2.msra.mxu0 0.0
        %6134 = vmatprep.subr.mxu0 0.0
        %6135 = vmatpush2.msra.mxu0 0.0
        %6136 = vmatprep.subr.mxu0 0.0
        %6137 = vmatpush2.msra.mxu0 0.0
        %6138 = vmatprep.subr.mxu0 0.0
        %6139 = vmatpush2.msra.mxu0 0.0
        %6140 = vmatprep.subr.mxu0 0.0
        %6141 = vmatpush2.msra.mxu0 0.0
        %6142 = vmatprep.subr.mxu0 0.0
        %6143 = vmatpush2.msra.mxu0 0.0
        %6144 = vmatprep.subr.mxu0 0.0
        %6145 = vmatpush2.msra.mxu0 0.0
        %6146 = vmatprep.subr.mxu0 0.0
        %6147 = vmatpush2.msra.mxu0 0.0
        %6148 = vmatprep.subr.mxu0 0.0
        %6149 = vmatpush2.msra.mxu0 0.0
        %6150 = vmatprep.subr.mxu0 0.0
        %6151 = vmatpush2.msra.mxu0 0.0
        %6152 = vmatprep.subr.mxu0 0.0
        %6153 = vmatpush2.msra.mxu0 0.0
        %6154 = vmatprep.mubr.f32.mxu0 0.0
        %6155 = vmatmul.mubr.f32.gmra.mxu0 %v5591
        %v6156 = vpop.f32.mrf.mxu0
        %v6157 = vadd.f32 0.0, %v6156
        %v6158 = vpop.f32.mrf.mxu0
        %6159 = vdwg.mxu0
        %6160 = vmatprep.subr.mxu0 0.0
        %6161 = vmatpush1.msra.mxu0 %v991
        %6162 = vmatprep.subr.mxu0 0.0
        %6163 = vmatpush1.msra.mxu0 %v990
        %6164 = vmatprep.subr.mxu0 0.0
        %6165 = vmatpush1.msra.mxu0 %v989
        %6166 = vmatprep.subr.mxu0 0.0
        %6167 = vmatpush1.msra.mxu0 %v988
        %6168 = vmatprep.subr.mxu0 0.0
        %6169 = vmatpush1.msra.mxu0 %v987
        %6170 = vmatprep.subr.mxu0 0.0
        %6171 = vmatpush1.msra.mxu0 %v986
        %6172 = vmatprep.subr.mxu0 0.0
        %6173 = vmatpush1.msra.mxu0 %v985
        %6174 = vmatprep.subr.mxu0 0.0
        %6175 = vmatpush1.msra.mxu0 %v984
        %6176 = vmatprep.subr.mxu0 0.0
        %6177 = vmatpush1.msra.mxu0 %v983
        %6178 = vmatprep.subr.mxu0 0.0
        %6179 = vmatpush1.msra.mxu0 %v982
        %6180 = vmatprep.subr.mxu0 0.0
        %6181 = vmatpush1.msra.mxu0 %v981
        %6182 = vmatprep.subr.mxu0 0.0
        %6183 = vmatpush1.msra.mxu0 %v980
        %6184 = vmatprep.subr.mxu0 0.0
        %6185 = vmatpush1.msra.mxu0 %v979
        %6186 = vmatprep.subr.mxu0 0.0
        %6187 = vmatpush1.msra.mxu0 %v978
        %6188 = vmatprep.subr.mxu0 0.0
        %6189 = vmatpush1.msra.mxu0 %v977
        %6190 = vmatprep.subr.mxu0 0.0
        %6191 = vmatpush1.msra.mxu0 %v976
        %6192 = vmatprep.subr.mxu0 0.0
        %6193 = vmatpush2.msra.mxu0 0.0
        %6194 = vmatprep.subr.mxu0 0.0
        %6195 = vmatpush2.msra.mxu0 0.0
        %6196 = vmatprep.subr.mxu0 0.0
        %6197 = vmatpush2.msra.mxu0 0.0
        %6198 = vmatprep.subr.mxu0 0.0
        %6199 = vmatpush2.msra.mxu0 0.0
        %6200 = vmatprep.subr.mxu0 0.0
        %6201 = vmatpush2.msra.mxu0 0.0
        %6202 = vmatprep.subr.mxu0 0.0
        %6203 = vmatpush2.msra.mxu0 0.0
        %6204 = vmatprep.subr.mxu0 0.0
        %6205 = vmatpush2.msra.mxu0 0.0
        %6206 = vmatprep.subr.mxu0 0.0
        %6207 = vmatpush2.msra.mxu0 0.0
        %6208 = vmatprep.subr.mxu0 0.0
        %6209 = vmatpush2.msra.mxu0 0.0
        %6210 = vmatprep.subr.mxu0 0.0
        %6211 = vmatpush2.msra.mxu0 0.0
        %6212 = vmatprep.subr.mxu0 0.0
        %6213 = vmatpush2.msra.mxu0 0.0
        %6214 = vmatprep.subr.mxu0 0.0
        %6215 = vmatpush2.msra.mxu0 0.0
        %6216 = vmatprep.subr.mxu0 0.0
        %6217 = vmatpush2.msra.mxu0 0.0
        %6218 = vmatprep.subr.mxu0 0.0
        %6219 = vmatpush2.msra.mxu0 0.0
        %6220 = vmatprep.subr.mxu0 0.0
        %6221 = vmatpush2.msra.mxu0 0.0
        %6222 = vmatprep.subr.mxu0 0.0
        %6223 = vmatpush2.msra.mxu0 0.0
        %6224 = vmatprep.mubr.f32.mxu0 0.0
        %6225 = vmatmul.mubr.f32.gmra.mxu0 %v4820
        %v6226 = vpop.f32.mrf.mxu0
        %v6227 = vadd.f32 0.0, %v6226
        %v6228 = vpop.f32.mrf.mxu0
        %6229 = vdwg.mxu0
        %v6238 = vrot.slane %v5737, 7
        %v6239 = vsel %vm2152, %v6238, %v5667
        %v6240 = vrot.slane %v5807, 6
        %v6241 = vsel %vm2155, %v6240, %v6239
        %v6242 = vrot.slane %v5877, 5
        %v6243 = vsel %vm2158, %v6242, %v6241
        %v6244 = vrot.slane %v5947, 4
        %v6245 = vsel %vm2161, %v6244, %v6243
        %v6246 = vrot.slane %v6017, 3
        %v6247 = vsel %vm2164, %v6246, %v6245
        %v6248 = vrot.slane %v6087, 2
        %v6249 = vsel %vm2167, %v6248, %v6247
        %v6250 = vrot.slane %v6157, 1
        %v6251 = vsel %vm2170, %v6250, %v6249
        %6253 = vmatprep.subr.mxu0 0.0
        %6254 = vmatpush1.msra.mxu0 %v975
        %6255 = vmatprep.subr.mxu0 0.0
        %6256 = vmatpush1.msra.mxu0 %v974
        %6257 = vmatprep.subr.mxu0 0.0
        %6258 = vmatpush1.msra.mxu0 %v973
        %6259 = vmatprep.subr.mxu0 0.0
        %6260 = vmatpush1.msra.mxu0 %v972
        %6261 = vmatprep.subr.mxu0 0.0
        %6262 = vmatpush1.msra.mxu0 %v971
        %6263 = vmatprep.subr.mxu0 0.0
        %6264 = vmatpush1.msra.mxu0 %v970
        %6265 = vmatprep.subr.mxu0 0.0
        %6266 = vmatpush1.msra.mxu0 %v969
        %6267 = vmatprep.subr.mxu0 0.0
        %6268 = vmatpush1.msra.mxu0 %v968
        %6269 = vmatprep.subr.mxu0 0.0
        %6270 = vmatpush1.msra.mxu0 %v967
        %6271 = vmatprep.subr.mxu0 0.0
        %6272 = vmatpush1.msra.mxu0 %v966
        %6273 = vmatprep.subr.mxu0 0.0
        %6274 = vmatpush1.msra.mxu0 %v965
        %6275 = vmatprep.subr.mxu0 0.0
        %6276 = vmatpush1.msra.mxu0 %v964
        %6277 = vmatprep.subr.mxu0 0.0
        %6278 = vmatpush1.msra.mxu0 %v963
        %6279 = vmatprep.subr.mxu0 0.0
        %6280 = vmatpush1.msra.mxu0 %v962
        %6281 = vmatprep.subr.mxu0 0.0
        %6282 = vmatpush1.msra.mxu0 %v961
        %6283 = vmatprep.subr.mxu0 0.0
        %6284 = vmatpush1.msra.mxu0 %v960
        %6285 = vmatprep.subr.mxu0 0.0
        %6286 = vmatpush2.msra.mxu0 0.0
        %6287 = vmatprep.subr.mxu0 0.0
        %6288 = vmatpush2.msra.mxu0 0.0
        %6289 = vmatprep.subr.mxu0 0.0
        %6290 = vmatpush2.msra.mxu0 0.0
        %6291 = vmatprep.subr.mxu0 0.0
        %6292 = vmatpush2.msra.mxu0 0.0
        %6293 = vmatprep.subr.mxu0 0.0
        %6294 = vmatpush2.msra.mxu0 0.0
        %6295 = vmatprep.subr.mxu0 0.0
        %6296 = vmatpush2.msra.mxu0 0.0
        %6297 = vmatprep.subr.mxu0 0.0
        %6298 = vmatpush2.msra.mxu0 0.0
        %6299 = vmatprep.subr.mxu0 0.0
        %6300 = vmatpush2.msra.mxu0 0.0
        %6301 = vmatprep.subr.mxu0 0.0
        %6302 = vmatpush2.msra.mxu0 0.0
        %6303 = vmatprep.subr.mxu0 0.0
        %6304 = vmatpush2.msra.mxu0 0.0
        %6305 = vmatprep.subr.mxu0 0.0
        %6306 = vmatpush2.msra.mxu0 0.0
        %6307 = vmatprep.subr.mxu0 0.0
        %6308 = vmatpush2.msra.mxu0 0.0
        %6309 = vmatprep.subr.mxu0 0.0
        %6310 = vmatpush2.msra.mxu0 0.0
        %6311 = vmatprep.subr.mxu0 0.0
        %6312 = vmatpush2.msra.mxu0 0.0
        %6313 = vmatprep.subr.mxu0 0.0
        %6314 = vmatpush2.msra.mxu0 0.0
        %6315 = vmatprep.subr.mxu0 0.0
        %6316 = vmatpush2.msra.mxu0 0.0
        %6317 = vmatprep.mubr.f32.mxu0 0.0
        %6318 = vmatmul.mubr.f32.gmra.mxu0 %v6251
        %v6319 = vpop.f32.mrf.mxu0
        %v6320 = vadd.f32 %v6227, %v6319
        %v6321 = vpop.f32.mrf.mxu0
        %6322 = vdwg.mxu0
        %v6323 = vtanh.pop %v6320
        %s6324 = scalar_lea.vmem %s609, 16 [#allocation22]
        %6325 = vst [vmem:[%s6324] sm:$0xff] %v6323
        %s6326 = scalar_lea.vmem [#allocation4], 96
        %v6327 = vld [vmem:[%s6326] sm:$0xff]
        %v6328 = vld [vmem:[%s6326 + $0x8] sm:$0xff]
        %v6329 = vld [vmem:[%s6326 + $0x10] sm:$0xff]
        %v6330 = vld [vmem:[%s6326 + $0x18] sm:$0xff]
        %6331 = vmatprep.subr.mxu0 %v941
        %6332 = vmatpush1.msra.mxu0 %v940
        %6333 = vmatprep.subr.mxu0 %v937
        %6334 = vmatpush1.msra.mxu0 %v936
        %6335 = vmatprep.subr.mxu0 %v933
        %6336 = vmatpush1.msra.mxu0 %v932
        %6337 = vmatprep.subr.mxu0 %v929
        %6338 = vmatpush1.msra.mxu0 %v928
        %6339 = vmatprep.subr.mxu0 %v925
        %6340 = vmatpush1.msra.mxu0 %v924
        %6341 = vmatprep.subr.mxu0 %v921
        %6342 = vmatpush1.msra.mxu0 %v920
        %6343 = vmatprep.subr.mxu0 %v917
        %6344 = vmatpush1.msra.mxu0 %v916
        %6345 = vmatprep.subr.mxu0 %v913
        %6346 = vmatpush1.msra.mxu0 %v912
        %6347 = vmatprep.subr.mxu0 %v909
        %6348 = vmatpush1.msra.mxu0 %v908
        %6349 = vmatprep.subr.mxu0 %v905
        %6350 = vmatpush1.msra.mxu0 %v904
        %6351 = vmatprep.subr.mxu0 %v901
        %6352 = vmatpush1.msra.mxu0 %v900
        %6353 = vmatprep.subr.mxu0 %v897
        %6354 = vmatpush1.msra.mxu0 %v896
        %6355 = vmatprep.subr.mxu0 %v893
        %6356 = vmatpush1.msra.mxu0 %v892
        %6357 = vmatprep.subr.mxu0 %v889
        %6358 = vmatpush1.msra.mxu0 %v888
        %6359 = vmatprep.subr.mxu0 %v885
        %6360 = vmatpush1.msra.mxu0 %v884
        %6361 = vmatprep.subr.mxu0 %v881
        %6362 = vmatpush1.msra.mxu0 %v880
        %6363 = vmatprep.subr.mxu0 0.0
        %6364 = vmatpush2.msra.mxu0 0.0
        %6365 = vmatprep.subr.mxu0 0.0
        %6366 = vmatpush2.msra.mxu0 0.0
        %6367 = vmatprep.subr.mxu0 0.0
        %6368 = vmatpush2.msra.mxu0 0.0
        %6369 = vmatprep.subr.mxu0 0.0
        %6370 = vmatpush2.msra.mxu0 0.0
        %6371 = vmatprep.subr.mxu0 0.0
        %6372 = vmatpush2.msra.mxu0 0.0
        %6373 = vmatprep.subr.mxu0 0.0
        %6374 = vmatpush2.msra.mxu0 0.0
        %6375 = vmatprep.subr.mxu0 0.0
        %6376 = vmatpush2.msra.mxu0 0.0
        %6377 = vmatprep.subr.mxu0 0.0
        %6378 = vmatpush2.msra.mxu0 0.0
        %6379 = vmatprep.subr.mxu0 0.0
        %6380 = vmatpush2.msra.mxu0 0.0
        %6381 = vmatprep.subr.mxu0 0.0
        %6382 = vmatpush2.msra.mxu0 0.0
        %6383 = vmatprep.subr.mxu0 0.0
        %6384 = vmatpush2.msra.mxu0 0.0
        %6385 = vmatprep.subr.mxu0 0.0
        %6386 = vmatpush2.msra.mxu0 0.0
        %6387 = vmatprep.subr.mxu0 0.0
        %6388 = vmatpush2.msra.mxu0 0.0
        %6389 = vmatprep.subr.mxu0 0.0
        %6390 = vmatpush2.msra.mxu0 0.0
        %6391 = vmatprep.subr.mxu0 0.0
        %6392 = vmatpush2.msra.mxu0 0.0
        %6393 = vmatprep.subr.mxu0 0.0
        %6394 = vmatpush2.msra.mxu0 0.0
        %6395 = vmatprep.mubr.f32.mxu0 0.0
        %6396 = vmatmul.mubr.f32.gmra.mxu0 %v6323
        %v6397 = vpop.f32.mrf.mxu0
        %v6398 = vadd.f32 0.0, %v6397
        %v6399 = vpop.f32.mrf.mxu0
        %v6400 = vadd.f32 0.0, %v6399
        %6401 = vdwg.mxu0
        %6402 = vmatprep.subr.mxu0 %v943
        %6403 = vmatpush1.msra.mxu0 %v942
        %6404 = vmatprep.subr.mxu0 %v939
        %6405 = vmatpush1.msra.mxu0 %v938
        %6406 = vmatprep.subr.mxu0 %v935
        %6407 = vmatpush1.msra.mxu0 %v934
        %6408 = vmatprep.subr.mxu0 %v931
        %6409 = vmatpush1.msra.mxu0 %v930
        %6410 = vmatprep.subr.mxu0 %v927
        %6411 = vmatpush1.msra.mxu0 %v926
        %6412 = vmatprep.subr.mxu0 %v923
        %6413 = vmatpush1.msra.mxu0 %v922
        %6414 = vmatprep.subr.mxu0 %v919
        %6415 = vmatpush1.msra.mxu0 %v918
        %6416 = vmatprep.subr.mxu0 %v915
        %6417 = vmatpush1.msra.mxu0 %v914
        %6418 = vmatprep.subr.mxu0 %v911
        %6419 = vmatpush1.msra.mxu0 %v910
        %6420 = vmatprep.subr.mxu0 %v907
        %6421 = vmatpush1.msra.mxu0 %v906
        %6422 = vmatprep.subr.mxu0 %v903
        %6423 = vmatpush1.msra.mxu0 %v902
        %6424 = vmatprep.subr.mxu0 %v899
        %6425 = vmatpush1.msra.mxu0 %v898
        %6426 = vmatprep.subr.mxu0 %v895
        %6427 = vmatpush1.msra.mxu0 %v894
        %6428 = vmatprep.subr.mxu0 %v891
        %6429 = vmatpush1.msra.mxu0 %v890
        %6430 = vmatprep.subr.mxu0 %v887
        %6431 = vmatpush1.msra.mxu0 %v886
        %6432 = vmatprep.subr.mxu0 %v883
        %6433 = vmatpush1.msra.mxu0 %v882
        %6434 = vmatprep.subr.mxu0 0.0
        %6435 = vmatpush2.msra.mxu0 0.0
        %6436 = vmatprep.subr.mxu0 0.0
        %6437 = vmatpush2.msra.mxu0 0.0
        %6438 = vmatprep.subr.mxu0 0.0
        %6439 = vmatpush2.msra.mxu0 0.0
        %6440 = vmatprep.subr.mxu0 0.0
        %6441 = vmatpush2.msra.mxu0 0.0
        %6442 = vmatprep.subr.mxu0 0.0
        %6443 = vmatpush2.msra.mxu0 0.0
        %6444 = vmatprep.subr.mxu0 0.0
        %6445 = vmatpush2.msra.mxu0 0.0
        %6446 = vmatprep.subr.mxu0 0.0
        %6447 = vmatpush2.msra.mxu0 0.0
        %6448 = vmatprep.subr.mxu0 0.0
        %6449 = vmatpush2.msra.mxu0 0.0
        %6450 = vmatprep.subr.mxu0 0.0
        %6451 = vmatpush2.msra.mxu0 0.0
        %6452 = vmatprep.subr.mxu0 0.0
        %6453 = vmatpush2.msra.mxu0 0.0
        %6454 = vmatprep.subr.mxu0 0.0
        %6455 = vmatpush2.msra.mxu0 0.0
        %6456 = vmatprep.subr.mxu0 0.0
        %6457 = vmatpush2.msra.mxu0 0.0
        %6458 = vmatprep.subr.mxu0 0.0
        %6459 = vmatpush2.msra.mxu0 0.0
        %6460 = vmatprep.subr.mxu0 0.0
        %6461 = vmatpush2.msra.mxu0 0.0
        %6462 = vmatprep.subr.mxu0 0.0
        %6463 = vmatpush2.msra.mxu0 0.0
        %6464 = vmatprep.subr.mxu0 0.0
        %6465 = vmatpush2.msra.mxu0 0.0
        %6466 = vmatprep.mubr.f32.mxu0 0.0
        %6467 = vmatmul.mubr.f32.gmra.mxu0 %v6323
        %v6468 = vpop.f32.mrf.mxu0
        %v6469 = vadd.f32 0.0, %v6468
        %v6470 = vpop.f32.mrf.mxu0
        %v6471 = vadd.f32 0.0, %v6470
        %6472 = vdwg.mxu0
        %v6473 = vadd.f32 %v6327, %v6398
        %v6474 = vadd.f32 %v6328, %v6400
        %v6475 = vadd.f32 %v6329, %v6469
        %v6476 = vadd.f32 %v6330, %v6471
        %v6477 = vxor.u32 %v6473, 2147483648
        %v6478 = vxor.u32 %v6474, 2147483648
        %v6479 = vxor.u32 %v6475, 2147483648
        %v6480 = vmul.f32 %v6477, 1.442695
        %v6481 = vpow.pop %v6480
        %v6482 = vmul.f32 %v6478, 1.442695
        %v6483 = vpow.pop %v6482
        %v6484 = vmul.f32 %v6479, 1.442695
        %v6485 = vpow.pop %v6484
        %v6486 = vadd.f32 %v6481, 1.0
        %v6487 = vadd.f32 %v6483, 1.0
        %v6488 = vadd.f32 %v6485, 1.0
        %v6489 = vrcp.pop %v6486
        %v6490 = vmul.f32 1.0, %v6489
        %v6491 = vrcp.pop %v6487
        %v6492 = vmul.f32 1.0, %v6491
        %v6493 = vrcp.pop %v6488
        %v6494 = vmul.f32 1.0, %v6493
        %v6495 = vtanh.pop %v6476
        %v6496 = vmul.f32 %v6492, %v4818
        %v6497 = vmul.f32 %v6490, %v6495
        %v6498 = vadd.f32 %v6496, %v6497
        %v6499 = vtanh.pop %v6498
        %v6500 = vmul.f32 %v6494, %v6499
        %6501 = vmatprep.subr.mxu0 0.0
        %6502 = vmatpush1.msra.mxu0 %v959
        %6503 = vmatprep.subr.mxu0 0.0
        %6504 = vmatpush1.msra.mxu0 %v958
        %6505 = vmatprep.subr.mxu0 0.0
        %6506 = vmatpush1.msra.mxu0 %v957
        %6507 = vmatprep.subr.mxu0 0.0
        %6508 = vmatpush1.msra.mxu0 %v956
        %6509 = vmatprep.subr.mxu0 0.0
        %6510 = vmatpush1.msra.mxu0 %v955
        %6511 = vmatprep.subr.mxu0 0.0
        %6512 = vmatpush1.msra.mxu0 %v954
        %6513 = vmatprep.subr.mxu0 0.0
        %6514 = vmatpush1.msra.mxu0 %v953
        %6515 = vmatprep.subr.mxu0 0.0
        %6516 = vmatpush1.msra.mxu0 %v952
        %6517 = vmatprep.subr.mxu0 0.0
        %6518 = vmatpush1.msra.mxu0 %v951
        %6519 = vmatprep.subr.mxu0 0.0
        %6520 = vmatpush1.msra.mxu0 %v950
        %6521 = vmatprep.subr.mxu0 0.0
        %6522 = vmatpush1.msra.mxu0 %v949
        %6523 = vmatprep.subr.mxu0 0.0
        %6524 = vmatpush1.msra.mxu0 %v948
        %6525 = vmatprep.subr.mxu0 0.0
        %6526 = vmatpush1.msra.mxu0 %v947
        %6527 = vmatprep.subr.mxu0 0.0
        %6528 = vmatpush1.msra.mxu0 %v946
        %6529 = vmatprep.subr.mxu0 0.0
        %6530 = vmatpush1.msra.mxu0 %v945
        %6531 = vmatprep.subr.mxu0 0.0
        %6532 = vmatpush1.msra.mxu0 %v944
        %6533 = vmatprep.subr.mxu0 0.0
        %6534 = vmatpush2.msra.mxu0 0.0
        %6535 = vmatprep.subr.mxu0 0.0
        %6536 = vmatpush2.msra.mxu0 0.0
        %6537 = vmatprep.subr.mxu0 0.0
        %6538 = vmatpush2.msra.mxu0 0.0
        %6539 = vmatprep.subr.mxu0 0.0
        %6540 = vmatpush2.msra.mxu0 0.0
        %6541 = vmatprep.subr.mxu0 0.0
        %6542 = vmatpush2.msra.mxu0 0.0
        %6543 = vmatprep.subr.mxu0 0.0
        %6544 = vmatpush2.msra.mxu0 0.0
        %6545 = vmatprep.subr.mxu0 0.0
        %6546 = vmatpush2.msra.mxu0 0.0
        %6547 = vmatprep.subr.mxu0 0.0
        %6548 = vmatpush2.msra.mxu0 0.0
        %6549 = vmatprep.subr.mxu0 0.0
        %6550 = vmatpush2.msra.mxu0 0.0
        %6551 = vmatprep.subr.mxu0 0.0
        %6552 = vmatpush2.msra.mxu0 0.0
        %6553 = vmatprep.subr.mxu0 0.0
        %6554 = vmatpush2.msra.mxu0 0.0
        %6555 = vmatprep.subr.mxu0 0.0
        %6556 = vmatpush2.msra.mxu0 0.0
        %6557 = vmatprep.subr.mxu0 0.0
        %6558 = vmatpush2.msra.mxu0 0.0
        %6559 = vmatprep.subr.mxu0 0.0
        %6560 = vmatpush2.msra.mxu0 0.0
        %6561 = vmatprep.subr.mxu0 0.0
        %6562 = vmatpush2.msra.mxu0 0.0
        %6563 = vmatprep.subr.mxu0 0.0
        %6564 = vmatpush2.msra.mxu0 0.0
        %6565 = vmatprep.mubr.f32.mxu0 0.0
        %6566 = vmatmul.mubr.f32.gmra.mxu0 %v6500
        %v6567 = vpop.f32.mrf.mxu0
        %v6568 = vadd.f32 0.0, %v6567
        %v6569 = vpop.f32.mrf.mxu0
        %6570 = vdwg.mxu0
        %v6572 = vcombine.high %v6568, %v6568
        %v6574 = vunpack.c.l.s4 1966171168
        %v6575 = vunpack.c.0.s8 %v6574
        %v6576 = vlaneseq
        %v6577 = vshrl.u32 %v6576, 7
        %v6578 = vsub.s32 %v6575, %v6577
        %v6579 = vrot.slane %v6568, %v6578
        %v6581 = vunpack.c.l.s4 1966171168
        %v6582 = vunpack.c.0.s8 %v6581
        %v6583 = vlaneseq
        %v6584 = vshrl.u32 %v6583, 7
        %v6585 = vsub.s32 %v6582, %v6584
        %v6586 = vrot.slane %v6572, %v6585
        %v6587 = vcombine.high %v6579, %v6579
        %v6588 = vcombine.high %v6586, %v6586
        %v6590 = vunpack.c.l.s4 1966171168
        %v6591 = vunpack.c.0.s8 %v6590
        %v6592 = vlaneseq
        %v6593 = vshrl.u32 %v6592, 7
        %v6594 = vsub.s32 %v6591, %v6593
        %v6595 = vrot.slane %v6579, %v6594
        %v6597 = vunpack.c.l.s4 1966171168
        %v6598 = vunpack.c.0.s8 %v6597
        %v6599 = vlaneseq
        %v6600 = vshrl.u32 %v6599, 7
        %v6601 = vsub.s32 %v6598, %v6600
        %v6602 = vrot.slane %v6586, %v6601
        %v6604 = vunpack.c.l.s4 1966171168
        %v6605 = vunpack.c.0.s8 %v6604
        %v6606 = vlaneseq
        %v6607 = vshrl.u32 %v6606, 7
        %v6608 = vsub.s32 %v6605, %v6607
        %v6609 = vrot.slane %v6587, %v6608
        %v6611 = vunpack.c.l.s4 1966171168
        %v6612 = vunpack.c.0.s8 %v6611
        %v6613 = vlaneseq
        %v6614 = vshrl.u32 %v6613, 7
        %v6615 = vsub.s32 %v6612, %v6614
        %v6616 = vrot.slane %v6588, %v6615
        %v6617 = vcombine.high %v6595, %v6595
        %v6618 = vcombine.high %v6602, %v6602
        %v6619 = vcombine.high %v6609, %v6609
        %v6620 = vcombine.high %v6616, %v6616
        %6629 = vmatprep.subr.mxu0 0.0
        %6630 = vmatpush1.msra.mxu0 %v767
        %6631 = vmatprep.subr.mxu0 0.0
        %6632 = vmatpush1.msra.mxu0 %v766
        %6633 = vmatprep.subr.mxu0 0.0
        %6634 = vmatpush1.msra.mxu0 %v765
        %6635 = vmatprep.subr.mxu0 0.0
        %6636 = vmatpush1.msra.mxu0 %v764
        %6637 = vmatprep.subr.mxu0 0.0
        %6638 = vmatpush1.msra.mxu0 %v763
        %6639 = vmatprep.subr.mxu0 0.0
        %6640 = vmatpush1.msra.mxu0 %v762
        %6641 = vmatprep.subr.mxu0 0.0
        %6642 = vmatpush1.msra.mxu0 %v761
        %6643 = vmatprep.subr.mxu0 0.0
        %6644 = vmatpush1.msra.mxu0 %v760
        %6645 = vmatprep.subr.mxu0 0.0
        %6646 = vmatpush1.msra.mxu0 %v759
        %6647 = vmatprep.subr.mxu0 0.0
        %6648 = vmatpush1.msra.mxu0 %v758
        %6649 = vmatprep.subr.mxu0 0.0
        %6650 = vmatpush1.msra.mxu0 %v757
        %6651 = vmatprep.subr.mxu0 0.0
        %6652 = vmatpush1.msra.mxu0 %v756
        %6653 = vmatprep.subr.mxu0 0.0
        %6654 = vmatpush1.msra.mxu0 %v755
        %6655 = vmatprep.subr.mxu0 0.0
        %6656 = vmatpush1.msra.mxu0 %v754
        %6657 = vmatprep.subr.mxu0 0.0
        %6658 = vmatpush1.msra.mxu0 %v753
        %6659 = vmatprep.subr.mxu0 0.0
        %6660 = vmatpush1.msra.mxu0 %v752
        %6661 = vmatprep.subr.mxu0 0.0
        %6662 = vmatpush2.msra.mxu0 0.0
        %6663 = vmatprep.subr.mxu0 0.0
        %6664 = vmatpush2.msra.mxu0 0.0
        %6665 = vmatprep.subr.mxu0 0.0
        %6666 = vmatpush2.msra.mxu0 0.0
        %6667 = vmatprep.subr.mxu0 0.0
        %6668 = vmatpush2.msra.mxu0 0.0
        %6669 = vmatprep.subr.mxu0 0.0
        %6670 = vmatpush2.msra.mxu0 0.0
        %6671 = vmatprep.subr.mxu0 0.0
        %6672 = vmatpush2.msra.mxu0 0.0
        %6673 = vmatprep.subr.mxu0 0.0
        %6674 = vmatpush2.msra.mxu0 0.0
        %6675 = vmatprep.subr.mxu0 0.0
        %6676 = vmatpush2.msra.mxu0 0.0
        %6677 = vmatprep.subr.mxu0 0.0
        %6678 = vmatpush2.msra.mxu0 0.0
        %6679 = vmatprep.subr.mxu0 0.0
        %6680 = vmatpush2.msra.mxu0 0.0
        %6681 = vmatprep.subr.mxu0 0.0
        %6682 = vmatpush2.msra.mxu0 0.0
        %6683 = vmatprep.subr.mxu0 0.0
        %6684 = vmatpush2.msra.mxu0 0.0
        %6685 = vmatprep.subr.mxu0 0.0
        %6686 = vmatpush2.msra.mxu0 0.0
        %6687 = vmatprep.subr.mxu0 0.0
        %6688 = vmatpush2.msra.mxu0 0.0
        %6689 = vmatprep.subr.mxu0 0.0
        %6690 = vmatpush2.msra.mxu0 0.0
        %6691 = vmatprep.subr.mxu0 0.0
        %6692 = vmatpush2.msra.mxu0 0.0
        %6693 = vmatprep.mubr.f32.mxu0 0.0
        %6694 = vmatmul.mubr.f32.gmra.mxu0 %v6595
        %v6695 = vpop.f32.mrf.mxu0
        %v6696 = vadd.f32 0.0, %v6695
        %v6697 = vpop.f32.mrf.mxu0
        %6698 = vdwg.mxu0
        %6699 = vmatprep.subr.mxu0 0.0
        %6700 = vmatpush1.msra.mxu0 %v783
        %6701 = vmatprep.subr.mxu0 0.0
        %6702 = vmatpush1.msra.mxu0 %v782
        %6703 = vmatprep.subr.mxu0 0.0
        %6704 = vmatpush1.msra.mxu0 %v781
        %6705 = vmatprep.subr.mxu0 0.0
        %6706 = vmatpush1.msra.mxu0 %v780
        %6707 = vmatprep.subr.mxu0 0.0
        %6708 = vmatpush1.msra.mxu0 %v779
        %6709 = vmatprep.subr.mxu0 0.0
        %6710 = vmatpush1.msra.mxu0 %v778
        %6711 = vmatprep.subr.mxu0 0.0
        %6712 = vmatpush1.msra.mxu0 %v777
        %6713 = vmatprep.subr.mxu0 0.0
        %6714 = vmatpush1.msra.mxu0 %v776
        %6715 = vmatprep.subr.mxu0 0.0
        %6716 = vmatpush1.msra.mxu0 %v775
        %6717 = vmatprep.subr.mxu0 0.0
        %6718 = vmatpush1.msra.mxu0 %v774
        %6719 = vmatprep.subr.mxu0 0.0
        %6720 = vmatpush1.msra.mxu0 %v773
        %6721 = vmatprep.subr.mxu0 0.0
        %6722 = vmatpush1.msra.mxu0 %v772
        %6723 = vmatprep.subr.mxu0 0.0
        %6724 = vmatpush1.msra.mxu0 %v771
        %6725 = vmatprep.subr.mxu0 0.0
        %6726 = vmatpush1.msra.mxu0 %v770
        %6727 = vmatprep.subr.mxu0 0.0
        %6728 = vmatpush1.msra.mxu0 %v769
        %6729 = vmatprep.subr.mxu0 0.0
        %6730 = vmatpush1.msra.mxu0 %v768
        %6731 = vmatprep.subr.mxu0 0.0
        %6732 = vmatpush2.msra.mxu0 0.0
        %6733 = vmatprep.subr.mxu0 0.0
        %6734 = vmatpush2.msra.mxu0 0.0
        %6735 = vmatprep.subr.mxu0 0.0
        %6736 = vmatpush2.msra.mxu0 0.0
        %6737 = vmatprep.subr.mxu0 0.0
        %6738 = vmatpush2.msra.mxu0 0.0
        %6739 = vmatprep.subr.mxu0 0.0
        %6740 = vmatpush2.msra.mxu0 0.0
        %6741 = vmatprep.subr.mxu0 0.0
        %6742 = vmatpush2.msra.mxu0 0.0
        %6743 = vmatprep.subr.mxu0 0.0
        %6744 = vmatpush2.msra.mxu0 0.0
        %6745 = vmatprep.subr.mxu0 0.0
        %6746 = vmatpush2.msra.mxu0 0.0
        %6747 = vmatprep.subr.mxu0 0.0
        %6748 = vmatpush2.msra.mxu0 0.0
        %6749 = vmatprep.subr.mxu0 0.0
        %6750 = vmatpush2.msra.mxu0 0.0
        %6751 = vmatprep.subr.mxu0 0.0
        %6752 = vmatpush2.msra.mxu0 0.0
        %6753 = vmatprep.subr.mxu0 0.0
        %6754 = vmatpush2.msra.mxu0 0.0
        %6755 = vmatprep.subr.mxu0 0.0
        %6756 = vmatpush2.msra.mxu0 0.0
        %6757 = vmatprep.subr.mxu0 0.0
        %6758 = vmatpush2.msra.mxu0 0.0
        %6759 = vmatprep.subr.mxu0 0.0
        %6760 = vmatpush2.msra.mxu0 0.0
        %6761 = vmatprep.subr.mxu0 0.0
        %6762 = vmatpush2.msra.mxu0 0.0
        %6763 = vmatprep.mubr.f32.mxu0 0.0
        %6764 = vmatmul.mubr.f32.gmra.mxu0 %v6609
        %v6765 = vpop.f32.mrf.mxu0
        %v6766 = vadd.f32 0.0, %v6765
        %v6767 = vpop.f32.mrf.mxu0
        %6768 = vdwg.mxu0
        %6769 = vmatprep.subr.mxu0 0.0
        %6770 = vmatpush1.msra.mxu0 %v799
        %6771 = vmatprep.subr.mxu0 0.0
        %6772 = vmatpush1.msra.mxu0 %v798
        %6773 = vmatprep.subr.mxu0 0.0
        %6774 = vmatpush1.msra.mxu0 %v797
        %6775 = vmatprep.subr.mxu0 0.0
        %6776 = vmatpush1.msra.mxu0 %v796
        %6777 = vmatprep.subr.mxu0 0.0
        %6778 = vmatpush1.msra.mxu0 %v795
        %6779 = vmatprep.subr.mxu0 0.0
        %6780 = vmatpush1.msra.mxu0 %v794
        %6781 = vmatprep.subr.mxu0 0.0
        %6782 = vmatpush1.msra.mxu0 %v793
        %6783 = vmatprep.subr.mxu0 0.0
        %6784 = vmatpush1.msra.mxu0 %v792
        %6785 = vmatprep.subr.mxu0 0.0
        %6786 = vmatpush1.msra.mxu0 %v791
        %6787 = vmatprep.subr.mxu0 0.0
        %6788 = vmatpush1.msra.mxu0 %v790
        %6789 = vmatprep.subr.mxu0 0.0
        %6790 = vmatpush1.msra.mxu0 %v789
        %6791 = vmatprep.subr.mxu0 0.0
        %6792 = vmatpush1.msra.mxu0 %v788
        %6793 = vmatprep.subr.mxu0 0.0
        %6794 = vmatpush1.msra.mxu0 %v787
        %6795 = vmatprep.subr.mxu0 0.0
        %6796 = vmatpush1.msra.mxu0 %v786
        %6797 = vmatprep.subr.mxu0 0.0
        %6798 = vmatpush1.msra.mxu0 %v785
        %6799 = vmatprep.subr.mxu0 0.0
        %6800 = vmatpush1.msra.mxu0 %v784
        %6801 = vmatprep.subr.mxu0 0.0
        %6802 = vmatpush2.msra.mxu0 0.0
        %6803 = vmatprep.subr.mxu0 0.0
        %6804 = vmatpush2.msra.mxu0 0.0
        %6805 = vmatprep.subr.mxu0 0.0
        %6806 = vmatpush2.msra.mxu0 0.0
        %6807 = vmatprep.subr.mxu0 0.0
        %6808 = vmatpush2.msra.mxu0 0.0
        %6809 = vmatprep.subr.mxu0 0.0
        %6810 = vmatpush2.msra.mxu0 0.0
        %6811 = vmatprep.subr.mxu0 0.0
        %6812 = vmatpush2.msra.mxu0 0.0
        %6813 = vmatprep.subr.mxu0 0.0
        %6814 = vmatpush2.msra.mxu0 0.0
        %6815 = vmatprep.subr.mxu0 0.0
        %6816 = vmatpush2.msra.mxu0 0.0
        %6817 = vmatprep.subr.mxu0 0.0
        %6818 = vmatpush2.msra.mxu0 0.0
        %6819 = vmatprep.subr.mxu0 0.0
        %6820 = vmatpush2.msra.mxu0 0.0
        %6821 = vmatprep.subr.mxu0 0.0
        %6822 = vmatpush2.msra.mxu0 0.0
        %6823 = vmatprep.subr.mxu0 0.0
        %6824 = vmatpush2.msra.mxu0 0.0
        %6825 = vmatprep.subr.mxu0 0.0
        %6826 = vmatpush2.msra.mxu0 0.0
        %6827 = vmatprep.subr.mxu0 0.0
        %6828 = vmatpush2.msra.mxu0 0.0
        %6829 = vmatprep.subr.mxu0 0.0
        %6830 = vmatpush2.msra.mxu0 0.0
        %6831 = vmatprep.subr.mxu0 0.0
        %6832 = vmatpush2.msra.mxu0 0.0
        %6833 = vmatprep.mubr.f32.mxu0 0.0
        %6834 = vmatmul.mubr.f32.gmra.mxu0 %v6617
        %v6835 = vpop.f32.mrf.mxu0
        %v6836 = vadd.f32 0.0, %v6835
        %v6837 = vpop.f32.mrf.mxu0
        %6838 = vdwg.mxu0
        %6839 = vmatprep.subr.mxu0 0.0
        %6840 = vmatpush1.msra.mxu0 %v815
        %6841 = vmatprep.subr.mxu0 0.0
        %6842 = vmatpush1.msra.mxu0 %v814
        %6843 = vmatprep.subr.mxu0 0.0
        %6844 = vmatpush1.msra.mxu0 %v813
        %6845 = vmatprep.subr.mxu0 0.0
        %6846 = vmatpush1.msra.mxu0 %v812
        %6847 = vmatprep.subr.mxu0 0.0
        %6848 = vmatpush1.msra.mxu0 %v811
        %6849 = vmatprep.subr.mxu0 0.0
        %6850 = vmatpush1.msra.mxu0 %v810
        %6851 = vmatprep.subr.mxu0 0.0
        %6852 = vmatpush1.msra.mxu0 %v809
        %6853 = vmatprep.subr.mxu0 0.0
        %6854 = vmatpush1.msra.mxu0 %v808
        %6855 = vmatprep.subr.mxu0 0.0
        %6856 = vmatpush1.msra.mxu0 %v807
        %6857 = vmatprep.subr.mxu0 0.0
        %6858 = vmatpush1.msra.mxu0 %v806
        %6859 = vmatprep.subr.mxu0 0.0
        %6860 = vmatpush1.msra.mxu0 %v805
        %6861 = vmatprep.subr.mxu0 0.0
        %6862 = vmatpush1.msra.mxu0 %v804
        %6863 = vmatprep.subr.mxu0 0.0
        %6864 = vmatpush1.msra.mxu0 %v803
        %6865 = vmatprep.subr.mxu0 0.0
        %6866 = vmatpush1.msra.mxu0 %v802
        %6867 = vmatprep.subr.mxu0 0.0
        %6868 = vmatpush1.msra.mxu0 %v801
        %6869 = vmatprep.subr.mxu0 0.0
        %6870 = vmatpush1.msra.mxu0 %v800
        %6871 = vmatprep.subr.mxu0 0.0
        %6872 = vmatpush2.msra.mxu0 0.0
        %6873 = vmatprep.subr.mxu0 0.0
        %6874 = vmatpush2.msra.mxu0 0.0
        %6875 = vmatprep.subr.mxu0 0.0
        %6876 = vmatpush2.msra.mxu0 0.0
        %6877 = vmatprep.subr.mxu0 0.0
        %6878 = vmatpush2.msra.mxu0 0.0
        %6879 = vmatprep.subr.mxu0 0.0
        %6880 = vmatpush2.msra.mxu0 0.0
        %6881 = vmatprep.subr.mxu0 0.0
        %6882 = vmatpush2.msra.mxu0 0.0
        %6883 = vmatprep.subr.mxu0 0.0
        %6884 = vmatpush2.msra.mxu0 0.0
        %6885 = vmatprep.subr.mxu0 0.0
        %6886 = vmatpush2.msra.mxu0 0.0
        %6887 = vmatprep.subr.mxu0 0.0
        %6888 = vmatpush2.msra.mxu0 0.0
        %6889 = vmatprep.subr.mxu0 0.0
        %6890 = vmatpush2.msra.mxu0 0.0
        %6891 = vmatprep.subr.mxu0 0.0
        %6892 = vmatpush2.msra.mxu0 0.0
        %6893 = vmatprep.subr.mxu0 0.0
        %6894 = vmatpush2.msra.mxu0 0.0
        %6895 = vmatprep.subr.mxu0 0.0
        %6896 = vmatpush2.msra.mxu0 0.0
        %6897 = vmatprep.subr.mxu0 0.0
        %6898 = vmatpush2.msra.mxu0 0.0
        %6899 = vmatprep.subr.mxu0 0.0
        %6900 = vmatpush2.msra.mxu0 0.0
        %6901 = vmatprep.subr.mxu0 0.0
        %6902 = vmatpush2.msra.mxu0 0.0
        %6903 = vmatprep.mubr.f32.mxu0 0.0
        %6904 = vmatmul.mubr.f32.gmra.mxu0 %v6619
        %v6905 = vpop.f32.mrf.mxu0
        %v6906 = vadd.f32 0.0, %v6905
        %v6907 = vpop.f32.mrf.mxu0
        %6908 = vdwg.mxu0
        %6909 = vmatprep.subr.mxu0 0.0
        %6910 = vmatpush1.msra.mxu0 %v831
        %6911 = vmatprep.subr.mxu0 0.0
        %6912 = vmatpush1.msra.mxu0 %v830
        %6913 = vmatprep.subr.mxu0 0.0
        %6914 = vmatpush1.msra.mxu0 %v829
        %6915 = vmatprep.subr.mxu0 0.0
        %6916 = vmatpush1.msra.mxu0 %v828
        %6917 = vmatprep.subr.mxu0 0.0
        %6918 = vmatpush1.msra.mxu0 %v827
        %6919 = vmatprep.subr.mxu0 0.0
        %6920 = vmatpush1.msra.mxu0 %v826
        %6921 = vmatprep.subr.mxu0 0.0
        %6922 = vmatpush1.msra.mxu0 %v825
        %6923 = vmatprep.subr.mxu0 0.0
        %6924 = vmatpush1.msra.mxu0 %v824
        %6925 = vmatprep.subr.mxu0 0.0
        %6926 = vmatpush1.msra.mxu0 %v823
        %6927 = vmatprep.subr.mxu0 0.0
        %6928 = vmatpush1.msra.mxu0 %v822
        %6929 = vmatprep.subr.mxu0 0.0
        %6930 = vmatpush1.msra.mxu0 %v821
        %6931 = vmatprep.subr.mxu0 0.0
        %6932 = vmatpush1.msra.mxu0 %v820
        %6933 = vmatprep.subr.mxu0 0.0
        %6934 = vmatpush1.msra.mxu0 %v819
        %6935 = vmatprep.subr.mxu0 0.0
        %6936 = vmatpush1.msra.mxu0 %v818
        %6937 = vmatprep.subr.mxu0 0.0
        %6938 = vmatpush1.msra.mxu0 %v817
        %6939 = vmatprep.subr.mxu0 0.0
        %6940 = vmatpush1.msra.mxu0 %v816
        %6941 = vmatprep.subr.mxu0 0.0
        %6942 = vmatpush2.msra.mxu0 0.0
        %6943 = vmatprep.subr.mxu0 0.0
        %6944 = vmatpush2.msra.mxu0 0.0
        %6945 = vmatprep.subr.mxu0 0.0
        %6946 = vmatpush2.msra.mxu0 0.0
        %6947 = vmatprep.subr.mxu0 0.0
        %6948 = vmatpush2.msra.mxu0 0.0
        %6949 = vmatprep.subr.mxu0 0.0
        %6950 = vmatpush2.msra.mxu0 0.0
        %6951 = vmatprep.subr.mxu0 0.0
        %6952 = vmatpush2.msra.mxu0 0.0
        %6953 = vmatprep.subr.mxu0 0.0
        %6954 = vmatpush2.msra.mxu0 0.0
        %6955 = vmatprep.subr.mxu0 0.0
        %6956 = vmatpush2.msra.mxu0 0.0
        %6957 = vmatprep.subr.mxu0 0.0
        %6958 = vmatpush2.msra.mxu0 0.0
        %6959 = vmatprep.subr.mxu0 0.0
        %6960 = vmatpush2.msra.mxu0 0.0
        %6961 = vmatprep.subr.mxu0 0.0
        %6962 = vmatpush2.msra.mxu0 0.0
        %6963 = vmatprep.subr.mxu0 0.0
        %6964 = vmatpush2.msra.mxu0 0.0
        %6965 = vmatprep.subr.mxu0 0.0
        %6966 = vmatpush2.msra.mxu0 0.0
        %6967 = vmatprep.subr.mxu0 0.0
        %6968 = vmatpush2.msra.mxu0 0.0
        %6969 = vmatprep.subr.mxu0 0.0
        %6970 = vmatpush2.msra.mxu0 0.0
        %6971 = vmatprep.subr.mxu0 0.0
        %6972 = vmatpush2.msra.mxu0 0.0
        %6973 = vmatprep.mubr.f32.mxu0 0.0
        %6974 = vmatmul.mubr.f32.gmra.mxu0 %v6602
        %v6975 = vpop.f32.mrf.mxu0
        %v6976 = vadd.f32 0.0, %v6975
        %v6977 = vpop.f32.mrf.mxu0
        %6978 = vdwg.mxu0
        %6979 = vmatprep.subr.mxu0 0.0
        %6980 = vmatpush1.msra.mxu0 %v847
        %6981 = vmatprep.subr.mxu0 0.0
        %6982 = vmatpush1.msra.mxu0 %v846
        %6983 = vmatprep.subr.mxu0 0.0
        %6984 = vmatpush1.msra.mxu0 %v845
        %6985 = vmatprep.subr.mxu0 0.0
        %6986 = vmatpush1.msra.mxu0 %v844
        %6987 = vmatprep.subr.mxu0 0.0
        %6988 = vmatpush1.msra.mxu0 %v843
        %6989 = vmatprep.subr.mxu0 0.0
        %6990 = vmatpush1.msra.mxu0 %v842
        %6991 = vmatprep.subr.mxu0 0.0
        %6992 = vmatpush1.msra.mxu0 %v841
        %6993 = vmatprep.subr.mxu0 0.0
        %6994 = vmatpush1.msra.mxu0 %v840
        %6995 = vmatprep.subr.mxu0 0.0
        %6996 = vmatpush1.msra.mxu0 %v839
        %6997 = vmatprep.subr.mxu0 0.0
        %6998 = vmatpush1.msra.mxu0 %v838
        %6999 = vmatprep.subr.mxu0 0.0
        %7000 = vmatpush1.msra.mxu0 %v837
        %7001 = vmatprep.subr.mxu0 0.0
        %7002 = vmatpush1.msra.mxu0 %v836
        %7003 = vmatprep.subr.mxu0 0.0
        %7004 = vmatpush1.msra.mxu0 %v835
        %7005 = vmatprep.subr.mxu0 0.0
        %7006 = vmatpush1.msra.mxu0 %v834
        %7007 = vmatprep.subr.mxu0 0.0
        %7008 = vmatpush1.msra.mxu0 %v833
        %7009 = vmatprep.subr.mxu0 0.0
        %7010 = vmatpush1.msra.mxu0 %v832
        %7011 = vmatprep.subr.mxu0 0.0
        %7012 = vmatpush2.msra.mxu0 0.0
        %7013 = vmatprep.subr.mxu0 0.0
        %7014 = vmatpush2.msra.mxu0 0.0
        %7015 = vmatprep.subr.mxu0 0.0
        %7016 = vmatpush2.msra.mxu0 0.0
        %7017 = vmatprep.subr.mxu0 0.0
        %7018 = vmatpush2.msra.mxu0 0.0
        %7019 = vmatprep.subr.mxu0 0.0
        %7020 = vmatpush2.msra.mxu0 0.0
        %7021 = vmatprep.subr.mxu0 0.0
        %7022 = vmatpush2.msra.mxu0 0.0
        %7023 = vmatprep.subr.mxu0 0.0
        %7024 = vmatpush2.msra.mxu0 0.0
        %7025 = vmatprep.subr.mxu0 0.0
        %7026 = vmatpush2.msra.mxu0 0.0
        %7027 = vmatprep.subr.mxu0 0.0
        %7028 = vmatpush2.msra.mxu0 0.0
        %7029 = vmatprep.subr.mxu0 0.0
        %7030 = vmatpush2.msra.mxu0 0.0
        %7031 = vmatprep.subr.mxu0 0.0
        %7032 = vmatpush2.msra.mxu0 0.0
        %7033 = vmatprep.subr.mxu0 0.0
        %7034 = vmatpush2.msra.mxu0 0.0
        %7035 = vmatprep.subr.mxu0 0.0
        %7036 = vmatpush2.msra.mxu0 0.0
        %7037 = vmatprep.subr.mxu0 0.0
        %7038 = vmatpush2.msra.mxu0 0.0
        %7039 = vmatprep.subr.mxu0 0.0
        %7040 = vmatpush2.msra.mxu0 0.0
        %7041 = vmatprep.subr.mxu0 0.0
        %7042 = vmatpush2.msra.mxu0 0.0
        %7043 = vmatprep.mubr.f32.mxu0 0.0
        %7044 = vmatmul.mubr.f32.gmra.mxu0 %v6616
        %v7045 = vpop.f32.mrf.mxu0
        %v7046 = vadd.f32 0.0, %v7045
        %v7047 = vpop.f32.mrf.mxu0
        %7048 = vdwg.mxu0
        %7049 = vmatprep.subr.mxu0 0.0
        %7050 = vmatpush1.msra.mxu0 %v863
        %7051 = vmatprep.subr.mxu0 0.0
        %7052 = vmatpush1.msra.mxu0 %v862
        %7053 = vmatprep.subr.mxu0 0.0
        %7054 = vmatpush1.msra.mxu0 %v861
        %7055 = vmatprep.subr.mxu0 0.0
        %7056 = vmatpush1.msra.mxu0 %v860
        %7057 = vmatprep.subr.mxu0 0.0
        %7058 = vmatpush1.msra.mxu0 %v859
        %7059 = vmatprep.subr.mxu0 0.0
        %7060 = vmatpush1.msra.mxu0 %v858
        %7061 = vmatprep.subr.mxu0 0.0
        %7062 = vmatpush1.msra.mxu0 %v857
        %7063 = vmatprep.subr.mxu0 0.0
        %7064 = vmatpush1.msra.mxu0 %v856
        %7065 = vmatprep.subr.mxu0 0.0
        %7066 = vmatpush1.msra.mxu0 %v855
        %7067 = vmatprep.subr.mxu0 0.0
        %7068 = vmatpush1.msra.mxu0 %v854
        %7069 = vmatprep.subr.mxu0 0.0
        %7070 = vmatpush1.msra.mxu0 %v853
        %7071 = vmatprep.subr.mxu0 0.0
        %7072 = vmatpush1.msra.mxu0 %v852
        %7073 = vmatprep.subr.mxu0 0.0
        %7074 = vmatpush1.msra.mxu0 %v851
        %7075 = vmatprep.subr.mxu0 0.0
        %7076 = vmatpush1.msra.mxu0 %v850
        %7077 = vmatprep.subr.mxu0 0.0
        %7078 = vmatpush1.msra.mxu0 %v849
        %7079 = vmatprep.subr.mxu0 0.0
        %7080 = vmatpush1.msra.mxu0 %v848
        %7081 = vmatprep.subr.mxu0 0.0
        %7082 = vmatpush2.msra.mxu0 0.0
        %7083 = vmatprep.subr.mxu0 0.0
        %7084 = vmatpush2.msra.mxu0 0.0
        %7085 = vmatprep.subr.mxu0 0.0
        %7086 = vmatpush2.msra.mxu0 0.0
        %7087 = vmatprep.subr.mxu0 0.0
        %7088 = vmatpush2.msra.mxu0 0.0
        %7089 = vmatprep.subr.mxu0 0.0
        %7090 = vmatpush2.msra.mxu0 0.0
        %7091 = vmatprep.subr.mxu0 0.0
        %7092 = vmatpush2.msra.mxu0 0.0
        %7093 = vmatprep.subr.mxu0 0.0
        %7094 = vmatpush2.msra.mxu0 0.0
        %7095 = vmatprep.subr.mxu0 0.0
        %7096 = vmatpush2.msra.mxu0 0.0
        %7097 = vmatprep.subr.mxu0 0.0
        %7098 = vmatpush2.msra.mxu0 0.0
        %7099 = vmatprep.subr.mxu0 0.0
        %7100 = vmatpush2.msra.mxu0 0.0
        %7101 = vmatprep.subr.mxu0 0.0
        %7102 = vmatpush2.msra.mxu0 0.0
        %7103 = vmatprep.subr.mxu0 0.0
        %7104 = vmatpush2.msra.mxu0 0.0
        %7105 = vmatprep.subr.mxu0 0.0
        %7106 = vmatpush2.msra.mxu0 0.0
        %7107 = vmatprep.subr.mxu0 0.0
        %7108 = vmatpush2.msra.mxu0 0.0
        %7109 = vmatprep.subr.mxu0 0.0
        %7110 = vmatpush2.msra.mxu0 0.0
        %7111 = vmatprep.subr.mxu0 0.0
        %7112 = vmatpush2.msra.mxu0 0.0
        %7113 = vmatprep.mubr.f32.mxu0 0.0
        %7114 = vmatmul.mubr.f32.gmra.mxu0 %v6618
        %v7115 = vpop.f32.mrf.mxu0
        %v7116 = vadd.f32 0.0, %v7115
        %v7117 = vpop.f32.mrf.mxu0
        %7118 = vdwg.mxu0
        %7119 = vmatprep.subr.mxu0 0.0
        %7120 = vmatpush1.msra.mxu0 %v879
        %7121 = vmatprep.subr.mxu0 0.0
        %7122 = vmatpush1.msra.mxu0 %v878
        %7123 = vmatprep.subr.mxu0 0.0
        %7124 = vmatpush1.msra.mxu0 %v877
        %7125 = vmatprep.subr.mxu0 0.0
        %7126 = vmatpush1.msra.mxu0 %v876
        %7127 = vmatprep.subr.mxu0 0.0
        %7128 = vmatpush1.msra.mxu0 %v875
        %7129 = vmatprep.subr.mxu0 0.0
        %7130 = vmatpush1.msra.mxu0 %v874
        %7131 = vmatprep.subr.mxu0 0.0
        %7132 = vmatpush1.msra.mxu0 %v873
        %7133 = vmatprep.subr.mxu0 0.0
        %7134 = vmatpush1.msra.mxu0 %v872
        %7135 = vmatprep.subr.mxu0 0.0
        %7136 = vmatpush1.msra.mxu0 %v871
        %7137 = vmatprep.subr.mxu0 0.0
        %7138 = vmatpush1.msra.mxu0 %v870
        %7139 = vmatprep.subr.mxu0 0.0
        %7140 = vmatpush1.msra.mxu0 %v869
        %7141 = vmatprep.subr.mxu0 0.0
        %7142 = vmatpush1.msra.mxu0 %v868
        %7143 = vmatprep.subr.mxu0 0.0
        %7144 = vmatpush1.msra.mxu0 %v867
        %7145 = vmatprep.subr.mxu0 0.0
        %7146 = vmatpush1.msra.mxu0 %v866
        %7147 = vmatprep.subr.mxu0 0.0
        %7148 = vmatpush1.msra.mxu0 %v865
        %7149 = vmatprep.subr.mxu0 0.0
        %7150 = vmatpush1.msra.mxu0 %v864
        %7151 = vmatprep.subr.mxu0 0.0
        %7152 = vmatpush2.msra.mxu0 0.0
        %7153 = vmatprep.subr.mxu0 0.0
        %7154 = vmatpush2.msra.mxu0 0.0
        %7155 = vmatprep.subr.mxu0 0.0
        %7156 = vmatpush2.msra.mxu0 0.0
        %7157 = vmatprep.subr.mxu0 0.0
        %7158 = vmatpush2.msra.mxu0 0.0
        %7159 = vmatprep.subr.mxu0 0.0
        %7160 = vmatpush2.msra.mxu0 0.0
        %7161 = vmatprep.subr.mxu0 0.0
        %7162 = vmatpush2.msra.mxu0 0.0
        %7163 = vmatprep.subr.mxu0 0.0
        %7164 = vmatpush2.msra.mxu0 0.0
        %7165 = vmatprep.subr.mxu0 0.0
        %7166 = vmatpush2.msra.mxu0 0.0
        %7167 = vmatprep.subr.mxu0 0.0
        %7168 = vmatpush2.msra.mxu0 0.0
        %7169 = vmatprep.subr.mxu0 0.0
        %7170 = vmatpush2.msra.mxu0 0.0
        %7171 = vmatprep.subr.mxu0 0.0
        %7172 = vmatpush2.msra.mxu0 0.0
        %7173 = vmatprep.subr.mxu0 0.0
        %7174 = vmatpush2.msra.mxu0 0.0
        %7175 = vmatprep.subr.mxu0 0.0
        %7176 = vmatpush2.msra.mxu0 0.0
        %7177 = vmatprep.subr.mxu0 0.0
        %7178 = vmatpush2.msra.mxu0 0.0
        %7179 = vmatprep.subr.mxu0 0.0
        %7180 = vmatpush2.msra.mxu0 0.0
        %7181 = vmatprep.subr.mxu0 0.0
        %7182 = vmatpush2.msra.mxu0 0.0
        %7183 = vmatprep.mubr.f32.mxu0 0.0
        %7184 = vmatmul.mubr.f32.gmra.mxu0 %v6620
        %v7185 = vpop.f32.mrf.mxu0
        %v7186 = vadd.f32 0.0, %v7185
        %v7187 = vpop.f32.mrf.mxu0
        %7188 = vdwg.mxu0
        %v7197 = vrot.slane %v6766, 7
        %v7198 = vsel %vm2152, %v7197, %v6696
        %v7199 = vrot.slane %v6836, 6
        %v7200 = vsel %vm2155, %v7199, %v7198
        %v7201 = vrot.slane %v6906, 5
        %v7202 = vsel %vm2158, %v7201, %v7200
        %v7203 = vrot.slane %v6976, 4
        %v7204 = vsel %vm2161, %v7203, %v7202
        %v7205 = vrot.slane %v7046, 3
        %v7206 = vsel %vm2164, %v7205, %v7204
        %v7207 = vrot.slane %v7116, 2
        %v7208 = vsel %vm2167, %v7207, %v7206
        %v7209 = vrot.slane %v7186, 1
        %v7210 = vsel %vm2170, %v7209, %v7208
        %v7212 = vsel %vm1278, %v7210, -1e+30
        %7213 = vmax.xlane.f32.xlu0 %v7212
        %v7214 = vpop.xlane.xlu0 %7213
        %v7215 = vsub.f32 %v7212, %v7214
        %v7216 = vmul.f32 %v7215, 1.442695
        %v7217 = vpow.pop %v7216
        %7218 = vadd.xlane.f32.xlu0 %v7217
        %v7219 = vpop.xlane.xlu0 %7218
        %v7220 = vrcp.pop %v7219
        %v7221 = vmul.f32 %v7217, %v7220
        %v7223 = vcombine.high %v7221, %v7221
        %v7225 = vunpack.c.l.s4 1966171168
        %v7226 = vunpack.c.0.s8 %v7225
        %v7227 = vlaneseq
        %v7228 = vshrl.u32 %v7227, 7
        %v7229 = vsub.s32 %v7226, %v7228
        %v7230 = vrot.slane %v7221, %v7229
        %v7232 = vunpack.c.l.s4 1966171168
        %v7233 = vunpack.c.0.s8 %v7232
        %v7234 = vlaneseq
        %v7235 = vshrl.u32 %v7234, 7
        %v7236 = vsub.s32 %v7233, %v7235
        %v7237 = vrot.slane %v7223, %v7236
        %v7238 = vcombine.high %v7230, %v7230
        %v7239 = vcombine.high %v7237, %v7237
        %v7241 = vunpack.c.l.s4 1966171168
        %v7242 = vunpack.c.0.s8 %v7241
        %v7243 = vlaneseq
        %v7244 = vshrl.u32 %v7243, 7
        %v7245 = vsub.s32 %v7242, %v7244
        %v7246 = vrot.slane %v7230, %v7245
        %v7248 = vunpack.c.l.s4 1966171168
        %v7249 = vunpack.c.0.s8 %v7248
        %v7250 = vlaneseq
        %v7251 = vshrl.u32 %v7250, 7
        %v7252 = vsub.s32 %v7249, %v7251
        %v7253 = vrot.slane %v7237, %v7252
        %v7255 = vunpack.c.l.s4 1966171168
        %v7256 = vunpack.c.0.s8 %v7255
        %v7257 = vlaneseq
        %v7258 = vshrl.u32 %v7257, 7
        %v7259 = vsub.s32 %v7256, %v7258
        %v7260 = vrot.slane %v7238, %v7259
        %v7262 = vunpack.c.l.s4 1966171168
        %v7263 = vunpack.c.0.s8 %v7262
        %v7264 = vlaneseq
        %v7265 = vshrl.u32 %v7264, 7
        %v7266 = vsub.s32 %v7263, %v7265
        %v7267 = vrot.slane %v7239, %v7266
        %v7268 = vcombine.high %v7246, %v7246
        %v7269 = vcombine.high %v7253, %v7253
        %v7270 = vcombine.high %v7260, %v7260
        %v7271 = vcombine.high %v7267, %v7267
        %7280 = vmatprep.subr.mxu0 0.0
        %7281 = vmatpush1.msra.mxu0 %v639
        %7282 = vmatprep.subr.mxu0 0.0
        %7283 = vmatpush1.msra.mxu0 %v638
        %7284 = vmatprep.subr.mxu0 0.0
        %7285 = vmatpush1.msra.mxu0 %v637
        %7286 = vmatprep.subr.mxu0 0.0
        %7287 = vmatpush1.msra.mxu0 %v636
        %7288 = vmatprep.subr.mxu0 0.0
        %7289 = vmatpush1.msra.mxu0 %v635
        %7290 = vmatprep.subr.mxu0 0.0
        %7291 = vmatpush1.msra.mxu0 %v634
        %7292 = vmatprep.subr.mxu0 0.0
        %7293 = vmatpush1.msra.mxu0 %v633
        %7294 = vmatprep.subr.mxu0 0.0
        %7295 = vmatpush1.msra.mxu0 %v632
        %7296 = vmatprep.subr.mxu0 0.0
        %7297 = vmatpush1.msra.mxu0 %v631
        %7298 = vmatprep.subr.mxu0 0.0
        %7299 = vmatpush1.msra.mxu0 %v630
        %7300 = vmatprep.subr.mxu0 0.0
        %7301 = vmatpush1.msra.mxu0 %v629
        %7302 = vmatprep.subr.mxu0 0.0
        %7303 = vmatpush1.msra.mxu0 %v628
        %7304 = vmatprep.subr.mxu0 0.0
        %7305 = vmatpush1.msra.mxu0 %v627
        %7306 = vmatprep.subr.mxu0 0.0
        %7307 = vmatpush1.msra.mxu0 %v626
        %7308 = vmatprep.subr.mxu0 0.0
        %7309 = vmatpush1.msra.mxu0 %v625
        %7310 = vmatprep.subr.mxu0 0.0
        %7311 = vmatpush1.msra.mxu0 %v624
        %7312 = vmatprep.subr.mxu0 0.0
        %7313 = vmatpush2.msra.mxu0 0.0
        %7314 = vmatprep.subr.mxu0 0.0
        %7315 = vmatpush2.msra.mxu0 0.0
        %7316 = vmatprep.subr.mxu0 0.0
        %7317 = vmatpush2.msra.mxu0 0.0
        %7318 = vmatprep.subr.mxu0 0.0
        %7319 = vmatpush2.msra.mxu0 0.0
        %7320 = vmatprep.subr.mxu0 0.0
        %7321 = vmatpush2.msra.mxu0 0.0
        %7322 = vmatprep.subr.mxu0 0.0
        %7323 = vmatpush2.msra.mxu0 0.0
        %7324 = vmatprep.subr.mxu0 0.0
        %7325 = vmatpush2.msra.mxu0 0.0
        %7326 = vmatprep.subr.mxu0 0.0
        %7327 = vmatpush2.msra.mxu0 0.0
        %7328 = vmatprep.subr.mxu0 0.0
        %7329 = vmatpush2.msra.mxu0 0.0
        %7330 = vmatprep.subr.mxu0 0.0
        %7331 = vmatpush2.msra.mxu0 0.0
        %7332 = vmatprep.subr.mxu0 0.0
        %7333 = vmatpush2.msra.mxu0 0.0
        %7334 = vmatprep.subr.mxu0 0.0
        %7335 = vmatpush2.msra.mxu0 0.0
        %7336 = vmatprep.subr.mxu0 0.0
        %7337 = vmatpush2.msra.mxu0 0.0
        %7338 = vmatprep.subr.mxu0 0.0
        %7339 = vmatpush2.msra.mxu0 0.0
        %7340 = vmatprep.subr.mxu0 0.0
        %7341 = vmatpush2.msra.mxu0 0.0
        %7342 = vmatprep.subr.mxu0 0.0
        %7343 = vmatpush2.msra.mxu0 0.0
        %7344 = vmatprep.mubr.f32.mxu0 0.0
        %7345 = vmatmul.mubr.f32.gmra.mxu0 %v7246
        %v7346 = vpop.f32.mrf.mxu0
        %v7347 = vadd.f32 0.0, %v7346
        %v7348 = vpop.f32.mrf.mxu0
        %7349 = vdwg.mxu0
        %7350 = vmatprep.subr.mxu0 0.0
        %7351 = vmatpush1.msra.mxu0 %v655
        %7352 = vmatprep.subr.mxu0 0.0
        %7353 = vmatpush1.msra.mxu0 %v654
        %7354 = vmatprep.subr.mxu0 0.0
        %7355 = vmatpush1.msra.mxu0 %v653
        %7356 = vmatprep.subr.mxu0 0.0
        %7357 = vmatpush1.msra.mxu0 %v652
        %7358 = vmatprep.subr.mxu0 0.0
        %7359 = vmatpush1.msra.mxu0 %v651
        %7360 = vmatprep.subr.mxu0 0.0
        %7361 = vmatpush1.msra.mxu0 %v650
        %7362 = vmatprep.subr.mxu0 0.0
        %7363 = vmatpush1.msra.mxu0 %v649
        %7364 = vmatprep.subr.mxu0 0.0
        %7365 = vmatpush1.msra.mxu0 %v648
        %7366 = vmatprep.subr.mxu0 0.0
        %7367 = vmatpush1.msra.mxu0 %v647
        %7368 = vmatprep.subr.mxu0 0.0
        %7369 = vmatpush1.msra.mxu0 %v646
        %7370 = vmatprep.subr.mxu0 0.0
        %7371 = vmatpush1.msra.mxu0 %v645
        %7372 = vmatprep.subr.mxu0 0.0
        %7373 = vmatpush1.msra.mxu0 %v644
        %7374 = vmatprep.subr.mxu0 0.0
        %7375 = vmatpush1.msra.mxu0 %v643
        %7376 = vmatprep.subr.mxu0 0.0
        %7377 = vmatpush1.msra.mxu0 %v642
        %7378 = vmatprep.subr.mxu0 0.0
        %7379 = vmatpush1.msra.mxu0 %v641
        %7380 = vmatprep.subr.mxu0 0.0
        %7381 = vmatpush1.msra.mxu0 %v640
        %7382 = vmatprep.subr.mxu0 0.0
        %7383 = vmatpush2.msra.mxu0 0.0
        %7384 = vmatprep.subr.mxu0 0.0
        %7385 = vmatpush2.msra.mxu0 0.0
        %7386 = vmatprep.subr.mxu0 0.0
        %7387 = vmatpush2.msra.mxu0 0.0
        %7388 = vmatprep.subr.mxu0 0.0
        %7389 = vmatpush2.msra.mxu0 0.0
        %7390 = vmatprep.subr.mxu0 0.0
        %7391 = vmatpush2.msra.mxu0 0.0
        %7392 = vmatprep.subr.mxu0 0.0
        %7393 = vmatpush2.msra.mxu0 0.0
        %7394 = vmatprep.subr.mxu0 0.0
        %7395 = vmatpush2.msra.mxu0 0.0
        %7396 = vmatprep.subr.mxu0 0.0
        %7397 = vmatpush2.msra.mxu0 0.0
        %7398 = vmatprep.subr.mxu0 0.0
        %7399 = vmatpush2.msra.mxu0 0.0
        %7400 = vmatprep.subr.mxu0 0.0
        %7401 = vmatpush2.msra.mxu0 0.0
        %7402 = vmatprep.subr.mxu0 0.0
        %7403 = vmatpush2.msra.mxu0 0.0
        %7404 = vmatprep.subr.mxu0 0.0
        %7405 = vmatpush2.msra.mxu0 0.0
        %7406 = vmatprep.subr.mxu0 0.0
        %7407 = vmatpush2.msra.mxu0 0.0
        %7408 = vmatprep.subr.mxu0 0.0
        %7409 = vmatpush2.msra.mxu0 0.0
        %7410 = vmatprep.subr.mxu0 0.0
        %7411 = vmatpush2.msra.mxu0 0.0
        %7412 = vmatprep.subr.mxu0 0.0
        %7413 = vmatpush2.msra.mxu0 0.0
        %7414 = vmatprep.mubr.f32.mxu0 0.0
        %7415 = vmatmul.mubr.f32.gmra.mxu0 %v7260
        %v7416 = vpop.f32.mrf.mxu0
        %v7417 = vadd.f32 0.0, %v7416
        %v7418 = vpop.f32.mrf.mxu0
        %7419 = vdwg.mxu0
        %7420 = vmatprep.subr.mxu0 0.0
        %7421 = vmatpush1.msra.mxu0 %v671
        %7422 = vmatprep.subr.mxu0 0.0
        %7423 = vmatpush1.msra.mxu0 %v670
        %7424 = vmatprep.subr.mxu0 0.0
        %7425 = vmatpush1.msra.mxu0 %v669
        %7426 = vmatprep.subr.mxu0 0.0
        %7427 = vmatpush1.msra.mxu0 %v668
        %7428 = vmatprep.subr.mxu0 0.0
        %7429 = vmatpush1.msra.mxu0 %v667
        %7430 = vmatprep.subr.mxu0 0.0
        %7431 = vmatpush1.msra.mxu0 %v666
        %7432 = vmatprep.subr.mxu0 0.0
        %7433 = vmatpush1.msra.mxu0 %v665
        %7434 = vmatprep.subr.mxu0 0.0
        %7435 = vmatpush1.msra.mxu0 %v664
        %7436 = vmatprep.subr.mxu0 0.0
        %7437 = vmatpush1.msra.mxu0 %v663
        %7438 = vmatprep.subr.mxu0 0.0
        %7439 = vmatpush1.msra.mxu0 %v662
        %7440 = vmatprep.subr.mxu0 0.0
        %7441 = vmatpush1.msra.mxu0 %v661
        %7442 = vmatprep.subr.mxu0 0.0
        %7443 = vmatpush1.msra.mxu0 %v660
        %7444 = vmatprep.subr.mxu0 0.0
        %7445 = vmatpush1.msra.mxu0 %v659
        %7446 = vmatprep.subr.mxu0 0.0
        %7447 = vmatpush1.msra.mxu0 %v658
        %7448 = vmatprep.subr.mxu0 0.0
        %7449 = vmatpush1.msra.mxu0 %v657
        %7450 = vmatprep.subr.mxu0 0.0
        %7451 = vmatpush1.msra.mxu0 %v656
        %7452 = vmatprep.subr.mxu0 0.0
        %7453 = vmatpush2.msra.mxu0 0.0
        %7454 = vmatprep.subr.mxu0 0.0
        %7455 = vmatpush2.msra.mxu0 0.0
        %7456 = vmatprep.subr.mxu0 0.0
        %7457 = vmatpush2.msra.mxu0 0.0
        %7458 = vmatprep.subr.mxu0 0.0
        %7459 = vmatpush2.msra.mxu0 0.0
        %7460 = vmatprep.subr.mxu0 0.0
        %7461 = vmatpush2.msra.mxu0 0.0
        %7462 = vmatprep.subr.mxu0 0.0
        %7463 = vmatpush2.msra.mxu0 0.0
        %7464 = vmatprep.subr.mxu0 0.0
        %7465 = vmatpush2.msra.mxu0 0.0
        %7466 = vmatprep.subr.mxu0 0.0
        %7467 = vmatpush2.msra.mxu0 0.0
        %7468 = vmatprep.subr.mxu0 0.0
        %7469 = vmatpush2.msra.mxu0 0.0
        %7470 = vmatprep.subr.mxu0 0.0
        %7471 = vmatpush2.msra.mxu0 0.0
        %7472 = vmatprep.subr.mxu0 0.0
        %7473 = vmatpush2.msra.mxu0 0.0
        %7474 = vmatprep.subr.mxu0 0.0
        %7475 = vmatpush2.msra.mxu0 0.0
        %7476 = vmatprep.subr.mxu0 0.0
        %7477 = vmatpush2.msra.mxu0 0.0
        %7478 = vmatprep.subr.mxu0 0.0
        %7479 = vmatpush2.msra.mxu0 0.0
        %7480 = vmatprep.subr.mxu0 0.0
        %7481 = vmatpush2.msra.mxu0 0.0
        %7482 = vmatprep.subr.mxu0 0.0
        %7483 = vmatpush2.msra.mxu0 0.0
        %7484 = vmatprep.mubr.f32.mxu0 0.0
        %7485 = vmatmul.mubr.f32.gmra.mxu0 %v7268
        %v7486 = vpop.f32.mrf.mxu0
        %v7487 = vadd.f32 0.0, %v7486
        %v7488 = vpop.f32.mrf.mxu0
        %7489 = vdwg.mxu0
        %7490 = vmatprep.subr.mxu0 0.0
        %7491 = vmatpush1.msra.mxu0 %v687
        %7492 = vmatprep.subr.mxu0 0.0
        %7493 = vmatpush1.msra.mxu0 %v686
        %7494 = vmatprep.subr.mxu0 0.0
        %7495 = vmatpush1.msra.mxu0 %v685
        %7496 = vmatprep.subr.mxu0 0.0
        %7497 = vmatpush1.msra.mxu0 %v684
        %7498 = vmatprep.subr.mxu0 0.0
        %7499 = vmatpush1.msra.mxu0 %v683
        %7500 = vmatprep.subr.mxu0 0.0
        %7501 = vmatpush1.msra.mxu0 %v682
        %7502 = vmatprep.subr.mxu0 0.0
        %7503 = vmatpush1.msra.mxu0 %v681
        %7504 = vmatprep.subr.mxu0 0.0
        %7505 = vmatpush1.msra.mxu0 %v680
        %7506 = vmatprep.subr.mxu0 0.0
        %7507 = vmatpush1.msra.mxu0 %v679
        %7508 = vmatprep.subr.mxu0 0.0
        %7509 = vmatpush1.msra.mxu0 %v678
        %7510 = vmatprep.subr.mxu0 0.0
        %7511 = vmatpush1.msra.mxu0 %v677
        %7512 = vmatprep.subr.mxu0 0.0
        %7513 = vmatpush1.msra.mxu0 %v676
        %7514 = vmatprep.subr.mxu0 0.0
        %7515 = vmatpush1.msra.mxu0 %v675
        %7516 = vmatprep.subr.mxu0 0.0
        %7517 = vmatpush1.msra.mxu0 %v674
        %7518 = vmatprep.subr.mxu0 0.0
        %7519 = vmatpush1.msra.mxu0 %v673
        %7520 = vmatprep.subr.mxu0 0.0
        %7521 = vmatpush1.msra.mxu0 %v672
        %7522 = vmatprep.subr.mxu0 0.0
        %7523 = vmatpush2.msra.mxu0 0.0
        %7524 = vmatprep.subr.mxu0 0.0
        %7525 = vmatpush2.msra.mxu0 0.0
        %7526 = vmatprep.subr.mxu0 0.0
        %7527 = vmatpush2.msra.mxu0 0.0
        %7528 = vmatprep.subr.mxu0 0.0
        %7529 = vmatpush2.msra.mxu0 0.0
        %7530 = vmatprep.subr.mxu0 0.0
        %7531 = vmatpush2.msra.mxu0 0.0
        %7532 = vmatprep.subr.mxu0 0.0
        %7533 = vmatpush2.msra.mxu0 0.0
        %7534 = vmatprep.subr.mxu0 0.0
        %7535 = vmatpush2.msra.mxu0 0.0
        %7536 = vmatprep.subr.mxu0 0.0
        %7537 = vmatpush2.msra.mxu0 0.0
        %7538 = vmatprep.subr.mxu0 0.0
        %7539 = vmatpush2.msra.mxu0 0.0
        %7540 = vmatprep.subr.mxu0 0.0
        %7541 = vmatpush2.msra.mxu0 0.0
        %7542 = vmatprep.subr.mxu0 0.0
        %7543 = vmatpush2.msra.mxu0 0.0
        %7544 = vmatprep.subr.mxu0 0.0
        %7545 = vmatpush2.msra.mxu0 0.0
        %7546 = vmatprep.subr.mxu0 0.0
        %7547 = vmatpush2.msra.mxu0 0.0
        %7548 = vmatprep.subr.mxu0 0.0
        %7549 = vmatpush2.msra.mxu0 0.0
        %7550 = vmatprep.subr.mxu0 0.0
        %7551 = vmatpush2.msra.mxu0 0.0
        %7552 = vmatprep.subr.mxu0 0.0
        %7553 = vmatpush2.msra.mxu0 0.0
        %7554 = vmatprep.mubr.f32.mxu0 0.0
        %7555 = vmatmul.mubr.f32.gmra.mxu0 %v7270
        %v7556 = vpop.f32.mrf.mxu0
        %v7557 = vadd.f32 0.0, %v7556
        %v7558 = vpop.f32.mrf.mxu0
        %7559 = vdwg.mxu0
        %7560 = vmatprep.subr.mxu0 0.0
        %7561 = vmatpush1.msra.mxu0 %v703
        %7562 = vmatprep.subr.mxu0 0.0
        %7563 = vmatpush1.msra.mxu0 %v702
        %7564 = vmatprep.subr.mxu0 0.0
        %7565 = vmatpush1.msra.mxu0 %v701
        %7566 = vmatprep.subr.mxu0 0.0
        %7567 = vmatpush1.msra.mxu0 %v700
        %7568 = vmatprep.subr.mxu0 0.0
        %7569 = vmatpush1.msra.mxu0 %v699
        %7570 = vmatprep.subr.mxu0 0.0
        %7571 = vmatpush1.msra.mxu0 %v698
        %7572 = vmatprep.subr.mxu0 0.0
        %7573 = vmatpush1.msra.mxu0 %v697
        %7574 = vmatprep.subr.mxu0 0.0
        %7575 = vmatpush1.msra.mxu0 %v696
        %7576 = vmatprep.subr.mxu0 0.0
        %7577 = vmatpush1.msra.mxu0 %v695
        %7578 = vmatprep.subr.mxu0 0.0
        %7579 = vmatpush1.msra.mxu0 %v694
        %7580 = vmatprep.subr.mxu0 0.0
        %7581 = vmatpush1.msra.mxu0 %v693
        %7582 = vmatprep.subr.mxu0 0.0
        %7583 = vmatpush1.msra.mxu0 %v692
        %7584 = vmatprep.subr.mxu0 0.0
        %7585 = vmatpush1.msra.mxu0 %v691
        %7586 = vmatprep.subr.mxu0 0.0
        %7587 = vmatpush1.msra.mxu0 %v690
        %7588 = vmatprep.subr.mxu0 0.0
        %7589 = vmatpush1.msra.mxu0 %v689
        %7590 = vmatprep.subr.mxu0 0.0
        %7591 = vmatpush1.msra.mxu0 %v688
        %7592 = vmatprep.subr.mxu0 0.0
        %7593 = vmatpush2.msra.mxu0 0.0
        %7594 = vmatprep.subr.mxu0 0.0
        %7595 = vmatpush2.msra.mxu0 0.0
        %7596 = vmatprep.subr.mxu0 0.0
        %7597 = vmatpush2.msra.mxu0 0.0
        %7598 = vmatprep.subr.mxu0 0.0
        %7599 = vmatpush2.msra.mxu0 0.0
        %7600 = vmatprep.subr.mxu0 0.0
        %7601 = vmatpush2.msra.mxu0 0.0
        %7602 = vmatprep.subr.mxu0 0.0
        %7603 = vmatpush2.msra.mxu0 0.0
        %7604 = vmatprep.subr.mxu0 0.0
        %7605 = vmatpush2.msra.mxu0 0.0
        %7606 = vmatprep.subr.mxu0 0.0
        %7607 = vmatpush2.msra.mxu0 0.0
        %7608 = vmatprep.subr.mxu0 0.0
        %7609 = vmatpush2.msra.mxu0 0.0
        %7610 = vmatprep.subr.mxu0 0.0
        %7611 = vmatpush2.msra.mxu0 0.0
        %7612 = vmatprep.subr.mxu0 0.0
        %7613 = vmatpush2.msra.mxu0 0.0
        %7614 = vmatprep.subr.mxu0 0.0
        %7615 = vmatpush2.msra.mxu0 0.0
        %7616 = vmatprep.subr.mxu0 0.0
        %7617 = vmatpush2.msra.mxu0 0.0
        %7618 = vmatprep.subr.mxu0 0.0
        %7619 = vmatpush2.msra.mxu0 0.0
        %7620 = vmatprep.subr.mxu0 0.0
        %7621 = vmatpush2.msra.mxu0 0.0
        %7622 = vmatprep.subr.mxu0 0.0
        %7623 = vmatpush2.msra.mxu0 0.0
        %7624 = vmatprep.mubr.f32.mxu0 0.0
        %7625 = vmatmul.mubr.f32.gmra.mxu0 %v7253
        %v7626 = vpop.f32.mrf.mxu0
        %v7627 = vadd.f32 0.0, %v7626
        %v7628 = vpop.f32.mrf.mxu0
        %7629 = vdwg.mxu0
        %7630 = vmatprep.subr.mxu0 0.0
        %7631 = vmatpush1.msra.mxu0 %v719
        %7632 = vmatprep.subr.mxu0 0.0
        %7633 = vmatpush1.msra.mxu0 %v718
        %7634 = vmatprep.subr.mxu0 0.0
        %7635 = vmatpush1.msra.mxu0 %v717
        %7636 = vmatprep.subr.mxu0 0.0
        %7637 = vmatpush1.msra.mxu0 %v716
        %7638 = vmatprep.subr.mxu0 0.0
        %7639 = vmatpush1.msra.mxu0 %v715
        %7640 = vmatprep.subr.mxu0 0.0
        %7641 = vmatpush1.msra.mxu0 %v714
        %7642 = vmatprep.subr.mxu0 0.0
        %7643 = vmatpush1.msra.mxu0 %v713
        %7644 = vmatprep.subr.mxu0 0.0
        %7645 = vmatpush1.msra.mxu0 %v712
        %7646 = vmatprep.subr.mxu0 0.0
        %7647 = vmatpush1.msra.mxu0 %v711
        %7648 = vmatprep.subr.mxu0 0.0
        %7649 = vmatpush1.msra.mxu0 %v710
        %7650 = vmatprep.subr.mxu0 0.0
        %7651 = vmatpush1.msra.mxu0 %v709
        %7652 = vmatprep.subr.mxu0 0.0
        %7653 = vmatpush1.msra.mxu0 %v708
        %7654 = vmatprep.subr.mxu0 0.0
        %7655 = vmatpush1.msra.mxu0 %v707
        %7656 = vmatprep.subr.mxu0 0.0
        %7657 = vmatpush1.msra.mxu0 %v706
        %7658 = vmatprep.subr.mxu0 0.0
        %7659 = vmatpush1.msra.mxu0 %v705
        %7660 = vmatprep.subr.mxu0 0.0
        %7661 = vmatpush1.msra.mxu0 %v704
        %7662 = vmatprep.subr.mxu0 0.0
        %7663 = vmatpush2.msra.mxu0 0.0
        %7664 = vmatprep.subr.mxu0 0.0
        %7665 = vmatpush2.msra.mxu0 0.0
        %7666 = vmatprep.subr.mxu0 0.0
        %7667 = vmatpush2.msra.mxu0 0.0
        %7668 = vmatprep.subr.mxu0 0.0
        %7669 = vmatpush2.msra.mxu0 0.0
        %7670 = vmatprep.subr.mxu0 0.0
        %7671 = vmatpush2.msra.mxu0 0.0
        %7672 = vmatprep.subr.mxu0 0.0
        %7673 = vmatpush2.msra.mxu0 0.0
        %7674 = vmatprep.subr.mxu0 0.0
        %7675 = vmatpush2.msra.mxu0 0.0
        %7676 = vmatprep.subr.mxu0 0.0
        %7677 = vmatpush2.msra.mxu0 0.0
        %7678 = vmatprep.subr.mxu0 0.0
        %7679 = vmatpush2.msra.mxu0 0.0
        %7680 = vmatprep.subr.mxu0 0.0
        %7681 = vmatpush2.msra.mxu0 0.0
        %7682 = vmatprep.subr.mxu0 0.0
        %7683 = vmatpush2.msra.mxu0 0.0
        %7684 = vmatprep.subr.mxu0 0.0
        %7685 = vmatpush2.msra.mxu0 0.0
        %7686 = vmatprep.subr.mxu0 0.0
        %7687 = vmatpush2.msra.mxu0 0.0
        %7688 = vmatprep.subr.mxu0 0.0
        %7689 = vmatpush2.msra.mxu0 0.0
        %7690 = vmatprep.subr.mxu0 0.0
        %7691 = vmatpush2.msra.mxu0 0.0
        %7692 = vmatprep.subr.mxu0 0.0
        %7693 = vmatpush2.msra.mxu0 0.0
        %7694 = vmatprep.mubr.f32.mxu0 0.0
        %7695 = vmatmul.mubr.f32.gmra.mxu0 %v7267
        %v7696 = vpop.f32.mrf.mxu0
        %v7697 = vadd.f32 0.0, %v7696
        %v7698 = vpop.f32.mrf.mxu0
        %7699 = vdwg.mxu0
        %7700 = vmatprep.subr.mxu0 0.0
        %7701 = vmatpush1.msra.mxu0 %v735
        %7702 = vmatprep.subr.mxu0 0.0
        %7703 = vmatpush1.msra.mxu0 %v734
        %7704 = vmatprep.subr.mxu0 0.0
        %7705 = vmatpush1.msra.mxu0 %v733
        %7706 = vmatprep.subr.mxu0 0.0
        %7707 = vmatpush1.msra.mxu0 %v732
        %7708 = vmatprep.subr.mxu0 0.0
        %7709 = vmatpush1.msra.mxu0 %v731
        %7710 = vmatprep.subr.mxu0 0.0
        %7711 = vmatpush1.msra.mxu0 %v730
        %7712 = vmatprep.subr.mxu0 0.0
        %7713 = vmatpush1.msra.mxu0 %v729
        %7714 = vmatprep.subr.mxu0 0.0
        %7715 = vmatpush1.msra.mxu0 %v728
        %7716 = vmatprep.subr.mxu0 0.0
        %7717 = vmatpush1.msra.mxu0 %v727
        %7718 = vmatprep.subr.mxu0 0.0
        %7719 = vmatpush1.msra.mxu0 %v726
        %7720 = vmatprep.subr.mxu0 0.0
        %7721 = vmatpush1.msra.mxu0 %v725
        %7722 = vmatprep.subr.mxu0 0.0
        %7723 = vmatpush1.msra.mxu0 %v724
        %7724 = vmatprep.subr.mxu0 0.0
        %7725 = vmatpush1.msra.mxu0 %v723
        %7726 = vmatprep.subr.mxu0 0.0
        %7727 = vmatpush1.msra.mxu0 %v722
        %7728 = vmatprep.subr.mxu0 0.0
        %7729 = vmatpush1.msra.mxu0 %v721
        %7730 = vmatprep.subr.mxu0 0.0
        %7731 = vmatpush1.msra.mxu0 %v720
        %7732 = vmatprep.subr.mxu0 0.0
        %7733 = vmatpush2.msra.mxu0 0.0
        %7734 = vmatprep.subr.mxu0 0.0
        %7735 = vmatpush2.msra.mxu0 0.0
        %7736 = vmatprep.subr.mxu0 0.0
        %7737 = vmatpush2.msra.mxu0 0.0
        %7738 = vmatprep.subr.mxu0 0.0
        %7739 = vmatpush2.msra.mxu0 0.0
        %7740 = vmatprep.subr.mxu0 0.0
        %7741 = vmatpush2.msra.mxu0 0.0
        %7742 = vmatprep.subr.mxu0 0.0
        %7743 = vmatpush2.msra.mxu0 0.0
        %7744 = vmatprep.subr.mxu0 0.0
        %7745 = vmatpush2.msra.mxu0 0.0
        %7746 = vmatprep.subr.mxu0 0.0
        %7747 = vmatpush2.msra.mxu0 0.0
        %7748 = vmatprep.subr.mxu0 0.0
        %7749 = vmatpush2.msra.mxu0 0.0
        %7750 = vmatprep.subr.mxu0 0.0
        %7751 = vmatpush2.msra.mxu0 0.0
        %7752 = vmatprep.subr.mxu0 0.0
        %7753 = vmatpush2.msra.mxu0 0.0
        %7754 = vmatprep.subr.mxu0 0.0
        %7755 = vmatpush2.msra.mxu0 0.0
        %7756 = vmatprep.subr.mxu0 0.0
        %7757 = vmatpush2.msra.mxu0 0.0
        %7758 = vmatprep.subr.mxu0 0.0
        %7759 = vmatpush2.msra.mxu0 0.0
        %7760 = vmatprep.subr.mxu0 0.0
        %7761 = vmatpush2.msra.mxu0 0.0
        %7762 = vmatprep.subr.mxu0 0.0
        %7763 = vmatpush2.msra.mxu0 0.0
        %7764 = vmatprep.mubr.f32.mxu0 0.0
        %7765 = vmatmul.mubr.f32.gmra.mxu0 %v7269
        %v7766 = vpop.f32.mrf.mxu0
        %v7767 = vadd.f32 0.0, %v7766
        %v7768 = vpop.f32.mrf.mxu0
        %7769 = vdwg.mxu0
        %7770 = vmatprep.subr.mxu0 0.0
        %7771 = vmatpush1.msra.mxu0 %v751
        %7772 = vmatprep.subr.mxu0 0.0
        %7773 = vmatpush1.msra.mxu0 %v750
        %7774 = vmatprep.subr.mxu0 0.0
        %7775 = vmatpush1.msra.mxu0 %v749
        %7776 = vmatprep.subr.mxu0 0.0
        %7777 = vmatpush1.msra.mxu0 %v748
        %7778 = vmatprep.subr.mxu0 0.0
        %7779 = vmatpush1.msra.mxu0 %v747
        %7780 = vmatprep.subr.mxu0 0.0
        %7781 = vmatpush1.msra.mxu0 %v746
        %7782 = vmatprep.subr.mxu0 0.0
        %7783 = vmatpush1.msra.mxu0 %v745
        %7784 = vmatprep.subr.mxu0 0.0
        %7785 = vmatpush1.msra.mxu0 %v744
        %7786 = vmatprep.subr.mxu0 0.0
        %7787 = vmatpush1.msra.mxu0 %v743
        %7788 = vmatprep.subr.mxu0 0.0
        %7789 = vmatpush1.msra.mxu0 %v742
        %7790 = vmatprep.subr.mxu0 0.0
        %7791 = vmatpush1.msra.mxu0 %v741
        %7792 = vmatprep.subr.mxu0 0.0
        %7793 = vmatpush1.msra.mxu0 %v740
        %7794 = vmatprep.subr.mxu0 0.0
        %7795 = vmatpush1.msra.mxu0 %v739
        %7796 = vmatprep.subr.mxu0 0.0
        %7797 = vmatpush1.msra.mxu0 %v738
        %7798 = vmatprep.subr.mxu0 0.0
        %7799 = vmatpush1.msra.mxu0 %v737
        %7800 = vmatprep.subr.mxu0 0.0
        %7801 = vmatpush1.msra.mxu0 %v736
        %7802 = vmatprep.subr.mxu0 0.0
        %7803 = vmatpush2.msra.mxu0 0.0
        %7804 = vmatprep.subr.mxu0 0.0
        %7805 = vmatpush2.msra.mxu0 0.0
        %7806 = vmatprep.subr.mxu0 0.0
        %7807 = vmatpush2.msra.mxu0 0.0
        %7808 = vmatprep.subr.mxu0 0.0
        %7809 = vmatpush2.msra.mxu0 0.0
        %7810 = vmatprep.subr.mxu0 0.0
        %7811 = vmatpush2.msra.mxu0 0.0
        %7812 = vmatprep.subr.mxu0 0.0
        %7813 = vmatpush2.msra.mxu0 0.0
        %7814 = vmatprep.subr.mxu0 0.0
        %7815 = vmatpush2.msra.mxu0 0.0
        %7816 = vmatprep.subr.mxu0 0.0
        %7817 = vmatpush2.msra.mxu0 0.0
        %7818 = vmatprep.subr.mxu0 0.0
        %7819 = vmatpush2.msra.mxu0 0.0
        %7820 = vmatprep.subr.mxu0 0.0
        %7821 = vmatpush2.msra.mxu0 0.0
        %7822 = vmatprep.subr.mxu0 0.0
        %7823 = vmatpush2.msra.mxu0 0.0
        %7824 = vmatprep.subr.mxu0 0.0
        %7825 = vmatpush2.msra.mxu0 0.0
        %7826 = vmatprep.subr.mxu0 0.0
        %7827 = vmatpush2.msra.mxu0 0.0
        %7828 = vmatprep.subr.mxu0 0.0
        %7829 = vmatpush2.msra.mxu0 0.0
        %7830 = vmatprep.subr.mxu0 0.0
        %7831 = vmatpush2.msra.mxu0 0.0
        %7832 = vmatprep.subr.mxu0 0.0
        %7833 = vmatpush2.msra.mxu0 0.0
        %7834 = vmatprep.mubr.f32.mxu0 0.0
        %7835 = vmatmul.mubr.f32.gmra.mxu0 %v7271
        %v7836 = vpop.f32.mrf.mxu0
        %v7837 = vadd.f32 0.0, %v7836
        %v7838 = vpop.f32.mrf.mxu0
        %7839 = vdwg.mxu0
        %7840 = vmatprep.subr.mxu0 0.0
        %7841 = vmatpush1.msra.mxu0 %v991
        %7842 = vmatprep.subr.mxu0 0.0
        %7843 = vmatpush1.msra.mxu0 %v990
        %7844 = vmatprep.subr.mxu0 0.0
        %7845 = vmatpush1.msra.mxu0 %v989
        %7846 = vmatprep.subr.mxu0 0.0
        %7847 = vmatpush1.msra.mxu0 %v988
        %7848 = vmatprep.subr.mxu0 0.0
        %7849 = vmatpush1.msra.mxu0 %v987
        %7850 = vmatprep.subr.mxu0 0.0
        %7851 = vmatpush1.msra.mxu0 %v986
        %7852 = vmatprep.subr.mxu0 0.0
        %7853 = vmatpush1.msra.mxu0 %v985
        %7854 = vmatprep.subr.mxu0 0.0
        %7855 = vmatpush1.msra.mxu0 %v984
        %7856 = vmatprep.subr.mxu0 0.0
        %7857 = vmatpush1.msra.mxu0 %v983
        %7858 = vmatprep.subr.mxu0 0.0
        %7859 = vmatpush1.msra.mxu0 %v982
        %7860 = vmatprep.subr.mxu0 0.0
        %7861 = vmatpush1.msra.mxu0 %v981
        %7862 = vmatprep.subr.mxu0 0.0
        %7863 = vmatpush1.msra.mxu0 %v980
        %7864 = vmatprep.subr.mxu0 0.0
        %7865 = vmatpush1.msra.mxu0 %v979
        %7866 = vmatprep.subr.mxu0 0.0
        %7867 = vmatpush1.msra.mxu0 %v978
        %7868 = vmatprep.subr.mxu0 0.0
        %7869 = vmatpush1.msra.mxu0 %v977
        %7870 = vmatprep.subr.mxu0 0.0
        %7871 = vmatpush1.msra.mxu0 %v976
        %7872 = vmatprep.subr.mxu0 0.0
        %7873 = vmatpush2.msra.mxu0 0.0
        %7874 = vmatprep.subr.mxu0 0.0
        %7875 = vmatpush2.msra.mxu0 0.0
        %7876 = vmatprep.subr.mxu0 0.0
        %7877 = vmatpush2.msra.mxu0 0.0
        %7878 = vmatprep.subr.mxu0 0.0
        %7879 = vmatpush2.msra.mxu0 0.0
        %7880 = vmatprep.subr.mxu0 0.0
        %7881 = vmatpush2.msra.mxu0 0.0
        %7882 = vmatprep.subr.mxu0 0.0
        %7883 = vmatpush2.msra.mxu0 0.0
        %7884 = vmatprep.subr.mxu0 0.0
        %7885 = vmatpush2.msra.mxu0 0.0
        %7886 = vmatprep.subr.mxu0 0.0
        %7887 = vmatpush2.msra.mxu0 0.0
        %7888 = vmatprep.subr.mxu0 0.0
        %7889 = vmatpush2.msra.mxu0 0.0
        %7890 = vmatprep.subr.mxu0 0.0
        %7891 = vmatpush2.msra.mxu0 0.0
        %7892 = vmatprep.subr.mxu0 0.0
        %7893 = vmatpush2.msra.mxu0 0.0
        %7894 = vmatprep.subr.mxu0 0.0
        %7895 = vmatpush2.msra.mxu0 0.0
        %7896 = vmatprep.subr.mxu0 0.0
        %7897 = vmatpush2.msra.mxu0 0.0
        %7898 = vmatprep.subr.mxu0 0.0
        %7899 = vmatpush2.msra.mxu0 0.0
        %7900 = vmatprep.subr.mxu0 0.0
        %7901 = vmatpush2.msra.mxu0 0.0
        %7902 = vmatprep.subr.mxu0 0.0
        %7903 = vmatpush2.msra.mxu0 0.0
        %7904 = vmatprep.mubr.f32.mxu0 0.0
        %7905 = vmatmul.mubr.f32.gmra.mxu0 %v6500
        %v7906 = vpop.f32.mrf.mxu0
        %v7907 = vadd.f32 0.0, %v7906
        %v7908 = vpop.f32.mrf.mxu0
        %7909 = vdwg.mxu0
        %v7918 = vrot.slane %v7417, 7
        %v7919 = vsel %vm2152, %v7918, %v7347
        %v7920 = vrot.slane %v7487, 6
        %v7921 = vsel %vm2155, %v7920, %v7919
        %v7922 = vrot.slane %v7557, 5
        %v7923 = vsel %vm2158, %v7922, %v7921
        %v7924 = vrot.slane %v7627, 4
        %v7925 = vsel %vm2161, %v7924, %v7923
        %v7926 = vrot.slane %v7697, 3
        %v7927 = vsel %vm2164, %v7926, %v7925
        %v7928 = vrot.slane %v7767, 2
        %v7929 = vsel %vm2167, %v7928, %v7927
        %v7930 = vrot.slane %v7837, 1
        %v7931 = vsel %vm2170, %v7930, %v7929
        %7933 = vmatprep.subr.mxu0 0.0
        %7934 = vmatpush1.msra.mxu0 %v975
        %7935 = vmatprep.subr.mxu0 0.0
        %7936 = vmatpush1.msra.mxu0 %v974
        %7937 = vmatprep.subr.mxu0 0.0
        %7938 = vmatpush1.msra.mxu0 %v973
        %7939 = vmatprep.subr.mxu0 0.0
        %7940 = vmatpush1.msra.mxu0 %v972
        %7941 = vmatprep.subr.mxu0 0.0
        %7942 = vmatpush1.msra.mxu0 %v971
        %7943 = vmatprep.subr.mxu0 0.0
        %7944 = vmatpush1.msra.mxu0 %v970
        %7945 = vmatprep.subr.mxu0 0.0
        %7946 = vmatpush1.msra.mxu0 %v969
        %7947 = vmatprep.subr.mxu0 0.0
        %7948 = vmatpush1.msra.mxu0 %v968
        %7949 = vmatprep.subr.mxu0 0.0
        %7950 = vmatpush1.msra.mxu0 %v967
        %7951 = vmatprep.subr.mxu0 0.0
        %7952 = vmatpush1.msra.mxu0 %v966
        %7953 = vmatprep.subr.mxu0 0.0
        %7954 = vmatpush1.msra.mxu0 %v965
        %7955 = vmatprep.subr.mxu0 0.0
        %7956 = vmatpush1.msra.mxu0 %v964
        %7957 = vmatprep.subr.mxu0 0.0
        %7958 = vmatpush1.msra.mxu0 %v963
        %7959 = vmatprep.subr.mxu0 0.0
        %7960 = vmatpush1.msra.mxu0 %v962
        %7961 = vmatprep.subr.mxu0 0.0
        %7962 = vmatpush1.msra.mxu0 %v961
        %7963 = vmatprep.subr.mxu0 0.0
        %7964 = vmatpush1.msra.mxu0 %v960
        %7965 = vmatprep.subr.mxu0 0.0
        %7966 = vmatpush2.msra.mxu0 0.0
        %7967 = vmatprep.subr.mxu0 0.0
        %7968 = vmatpush2.msra.mxu0 0.0
        %7969 = vmatprep.subr.mxu0 0.0
        %7970 = vmatpush2.msra.mxu0 0.0
        %7971 = vmatprep.subr.mxu0 0.0
        %7972 = vmatpush2.msra.mxu0 0.0
        %7973 = vmatprep.subr.mxu0 0.0
        %7974 = vmatpush2.msra.mxu0 0.0
        %7975 = vmatprep.subr.mxu0 0.0
        %7976 = vmatpush2.msra.mxu0 0.0
        %7977 = vmatprep.subr.mxu0 0.0
        %7978 = vmatpush2.msra.mxu0 0.0
        %7979 = vmatprep.subr.mxu0 0.0
        %7980 = vmatpush2.msra.mxu0 0.0
        %7981 = vmatprep.subr.mxu0 0.0
        %7982 = vmatpush2.msra.mxu0 0.0
        %7983 = vmatprep.subr.mxu0 0.0
        %7984 = vmatpush2.msra.mxu0 0.0
        %7985 = vmatprep.subr.mxu0 0.0
        %7986 = vmatpush2.msra.mxu0 0.0
        %7987 = vmatprep.subr.mxu0 0.0
        %7988 = vmatpush2.msra.mxu0 0.0
        %7989 = vmatprep.subr.mxu0 0.0
        %7990 = vmatpush2.msra.mxu0 0.0
        %7991 = vmatprep.subr.mxu0 0.0
        %7992 = vmatpush2.msra.mxu0 0.0
        %7993 = vmatprep.subr.mxu0 0.0
        %7994 = vmatpush2.msra.mxu0 0.0
        %7995 = vmatprep.subr.mxu0 0.0
        %7996 = vmatpush2.msra.mxu0 0.0
        %7997 = vmatprep.mubr.f32.mxu0 0.0
        %7998 = vmatmul.mubr.f32.gmra.mxu0 %v7931
        %v7999 = vpop.f32.mrf.mxu0
        %v8000 = vadd.f32 %v7907, %v7999
        %v8001 = vpop.f32.mrf.mxu0
        %8002 = vdwg.mxu0
        %v8003 = vtanh.pop %v8000
        %s8004 = scalar_lea.vmem %s609, 24 [#allocation22]
        %8005 = vst [vmem:[%s8004] sm:$0xff] %v8003
        %8006 = vst [vmem:[#allocation2] sm:$0xff] %v8003
        %8007 = vst [vmem:[#allocation3] sm:$0xff] %v6498
        %p8008 = scmp.eq.s32.totalorder %s41, 1
        // Predicated region
        $region109: #{tpu_custom_call.1} parent=63 // pred_check
          %p8009 = pneg %p8008
        $region110: #{tpu_custom_call.1} parent=63 // pred_check_branch
          %8011 = sbr.rel (%p8009) target = $region112
        $region111: #{tpu_custom_call.1} parent=63 // pred_region
          %8012 = vst [vmem:[#allocation23] sm:$0xff] %v6498
        $region112: #{tpu_custom_call.1} parent=63 // pred_fallthru
          _
        %s8013 = sand.u32 %s316, 1
        %s8014 = scalar_lea.sflag [#allocation7], %s8013
        %s8015 = sand.u32 %s316, 1
        %s8016 = smul.addr %s8015, 32
        %s8017 = scalar_lea.vmem [#allocation22], %s8016
        // Predicated region
        $region113: #{tpu_custom_call.1} parent=63 // pred_check
          %p8018 = pneg %p326
        $region114: #{tpu_custom_call.1} parent=63 // pred_check_branch
          %8020 = sbr.rel (%p8018) target = $region116
        $region115: #{tpu_custom_call.1} parent=63 // pred_region
          %s8021 = smul.u32 4, %s41
          %s8023 = ssub.s32 512, 512
          %8024 = vsyncadd %s8014, %s8023
          %s8025 = sadd.s32 %s40, %s8021
          %s8026 = smul.addr %s8025, 128
          %s8027 = scalar_lea.hbm %s11, %s8026
          %s8028 = sshll.u32 %s8017, 4
          %s8029 = int_to_ptr.vmem [resolvable:$true] %s8028
          %8034 = dma.vmem_to_hbm [thread:$0]  %s8029, 512, %s8027, %s8014, 128, 128, 8
        $region116: #{tpu_custom_call.1} parent=63 // pred_fallthru
          _
        // Predicated region
        $region117: #{tpu_custom_call.1} parent=63 // pred_check
          %p8035 = pneg %p352
        $region118: #{tpu_custom_call.1} parent=63 // pred_check_branch
          %8037 = sbr.rel (%p8035) target = $region120
        $region119: #{tpu_custom_call.1} parent=63 // pred_region
          %s8039 = ssub.s32 128, 128
          %8040 = vsyncadd [#allocation24], %s8039
          %s8041 = smul.addr %s40, 128
          %s8042 = scalar_lea.hbm %s12, %s8041
          %s8044 = sshll.u32 [#allocation23], 4
          %s8045 = int_to_ptr.vmem [resolvable:$true] %s8044
          %8047 = dma.vmem_to_hbm [thread:$0]  %s8045, 128, %s8042, [#allocation24]
        $region120: #{tpu_custom_call.1} parent=63 // pred_fallthru
          _
        // Predicated region
        $region121: #{tpu_custom_call.1} parent=63 // pred_check
          %p8048 = pneg %p352
        $region122: #{tpu_custom_call.1} parent=63 // pred_check_branch
          %8050 = sbr.rel (%p8048) target = $region124
        $region123: #{tpu_custom_call.1} parent=63 // pred_region
          %8051 = dma.done [#allocation24], 128
        $region124: #{tpu_custom_call.1} parent=63 // pred_fallthru
          _
      $region64: #{tpu_custom_call.1} parent=5 // pred_fallthru
        _
      %p8052 = scmp.le.s32.totalorder 2, %s31
      // Predicated region
      $region125: #{tpu_custom_call.1} parent=5 // pred_check
        %p8053 = pneg %p8052
      $region126: #{tpu_custom_call.1} parent=5 // pred_check_branch
        %8055 = sbr.rel (%p8053) target = $region128
      $region127: #{tpu_custom_call.1} parent=5 // pred_region
        %s8056 = ssub.s32 %s31, 2
        // Predicated region
        $region129: #{tpu_custom_call.1} parent=127 // pred_check
          %p8057 = pneg %p332
        $region130: #{tpu_custom_call.1} parent=127 // pred_check_branch
          %8059 = sbr.rel (%p8057) target = $region132
        $region131: #{tpu_custom_call.1} parent=127 // pred_region
          %s8060 = sand.u32 %s317, 1
          %s8061 = scalar_lea.sflag [#allocation7], %s8060
          %s8062 = sand.u32 %s317, 1
          %s8063 = smul.addr %s8062, 32
          %s8064 = scalar_lea.vmem [#allocation22], %s8063
          %8065 = dma.done %s8061, 512
        $region132: #{tpu_custom_call.1} parent=127 // pred_fallthru
          _
      $region128: #{tpu_custom_call.1} parent=5 // pred_fallthru
        _
    $region6: #{tpu_custom_call.1} parent=1 // loop_footer
      %s35 = sadd.s32 1, %s31
    $region7: #{tpu_custom_call.1} parent=1 // loop_footer_branch
      %30 = sbr.rel target = $region3
    $region8: #{tpu_custom_call.1} parent=1 // loop_exit
      _
    %8066 = vsyncpa [#allocation6], 1
    %s8067 = scalar_lea.sflag [#allocation6], 1
    %8068 = vsyncpa %s8067, 1
    %8069 = vsyncpa [#allocation9], 1
    %8070 = vsyncpa [#allocation12], 1
    %8071 = vsyncpa [#allocation15], 1
    %8072 = vsyncpa [#allocation18], 1
    %8073 = vsyncpa [#allocation21], 1
    %8074 = vsyncpa [#allocation7], 1
    %s8075 = scalar_lea.sflag [#allocation7], 1
    %8076 = vsyncpa %s8075, 1
    %8077 = vsyncpa [#allocation24], 1

</llo_original>
